<compile_context>
chip_gen: v5e
topology: v5e:2x2
jax: 0.10.0
libtpu: 0.0.40
codegen_flags: <defaults>
</compile_context>

<pallas_src>
import jax
import jax.numpy as jnp
from jax.experimental import pallas as pl
from jax.experimental.pallas import tpu as pltpu

BN_EPS = 1e-5
FILTERS = [32, 32, 64, 64, 128, 128]          # filter_channel_list
KSIZE, STRIDE, PAD = 3, 2, 1                  # kernel_size=(3,3), stride=(2,2), pad=1
ROW_TILE = 1024                               # row tile for pipelined GEMM passes
LANE = 128
VMEM_LIMIT = 32 * 1024 * 1024                 # explicit scoped-VMEM budget (safe on v5e/v6e/v7x)


def _round_up(x, m):
    return ((x + m - 1) // m) * m


def _pick_row_tile(rows):
    return min(ROW_TILE, _round_up(rows, 8))


# ----------------------------------------------------------------------------
# Pallas kernel 1 (pass A): row-tiled conv-as-GEMM + per-tile BN statistics
# ----------------------------------------------------------------------------
def _conv_gemm_stats_kernel(p_ref, w_ref, o_ref, stats_ref):
    # p_ref: (TR, K) bf16   w_ref: (K, Cp) bf16
    # o_ref: (TR, Cp) bf16  stats_ref: (1, 2, Cp) f32  (row0=sum, row1=sumsq)
    acc = jnp.dot(p_ref[...], w_ref[...], preferred_element_type=jnp.float32)
    o_ref[...] = acc.astype(o_ref.dtype)
    s = jnp.sum(acc, axis=0, keepdims=True)
    ss = jnp.sum(acc * acc, axis=0, keepdims=True)
    stats_ref[...] = jnp.concatenate([s, ss], axis=0)[None]


def conv_gemm_stats(patches, w_mat, tile):
    Rp, K = patches.shape
    Cp = w_mat.shape[1]
    nt = Rp // tile
    return pl.pallas_call(
        _conv_gemm_stats_kernel,
        out_shape=(jax.ShapeDtypeStruct((Rp, Cp), jnp.bfloat16),
                   jax.ShapeDtypeStruct((nt, 2, Cp), jnp.float32)),
        grid=(nt,),
        in_specs=[
            pl.BlockSpec((tile, K), lambda i: (i, 0)),      # last dim == full K (no HBM pad)
            pl.BlockSpec((K, Cp), lambda i: (0, 0)),
        ],
        out_specs=(
            pl.BlockSpec((tile, Cp), lambda i: (i, 0)),
            pl.BlockSpec((1, 2, Cp), lambda i: (i, 0, 0)),
        ),
        compiler_params=pltpu.CompilerParams(
            dimension_semantics=("parallel",),
            vmem_limit_bytes=VMEM_LIMIT),
    )(patches, w_mat)


# ----------------------------------------------------------------------------
# Pallas kernel 2 (pass B): row-tiled BatchNorm affine + ReLU (bf16 in/out)
# ----------------------------------------------------------------------------
def _bn_relu_kernel(x_ref, scale_ref, shift_ref, o_ref):
    y = x_ref[...].astype(jnp.float32) * scale_ref[...] + shift_ref[...]
    o_ref[...] = jnp.maximum(y, 0.0).astype(o_ref.dtype)


def bn_relu_apply(x_raw, scale, shift, tile):
    Rp, Cp = x_raw.shape
    nt = Rp // tile
    return pl.pallas_call(
        _bn_relu_kernel,
        out_shape=jax.ShapeDtypeStruct((Rp, Cp), jnp.bfloat16),
        grid=(nt,),
        in_specs=[
            pl.BlockSpec((tile, Cp), lambda i: (i, 0)),
            pl.BlockSpec((1, Cp), lambda i: (0, 0)),
            pl.BlockSpec((1, Cp), lambda i: (0, 0)),
        ],
        out_specs=pl.BlockSpec((tile, Cp), lambda i: (i, 0)),
        compiler_params=pltpu.CompilerParams(
            dimension_semantics=("parallel",),
            vmem_limit_bytes=VMEM_LIMIT),
    )(x_raw, scale.reshape(1, Cp), shift.reshape(1, Cp))


# ----------------------------------------------------------------------------
# Pallas kernel 3: batched GEMM + bias (GRU input projections, all timesteps)
# ----------------------------------------------------------------------------
def _matmul_bias_kernel(x_ref, w_ref, b_ref, o_ref):
    o_ref[...] = (jnp.dot(x_ref[...], w_ref[...], preferred_element_type=jnp.float32)
                  + b_ref[...]).astype(o_ref.dtype)


def matmul_bias(x_pad, w, b, tile):
    Rp, D = x_pad.shape
    G = w.shape[1]
    nt = Rp // tile
    return pl.pallas_call(
        _matmul_bias_kernel,
        out_shape=jax.ShapeDtypeStruct((Rp, G), jnp.float32),
        grid=(nt,),
        in_specs=[
            pl.BlockSpec((tile, D), lambda i: (i, 0)),
            pl.BlockSpec((D, G), lambda i: (0, 0)),
            pl.BlockSpec((1, G), lambda i: (0, 0)),
        ],
        out_specs=pl.BlockSpec((tile, G), lambda i: (i, 0)),
        compiler_params=pltpu.CompilerParams(
            dimension_semantics=("parallel",),
            vmem_limit_bytes=VMEM_LIMIT),
    )(x_pad, w, b)


# ----------------------------------------------------------------------------
# Pallas kernel 4: full GRU recurrence in ONE invocation (gates r, z, n)
# ----------------------------------------------------------------------------
def _gru_seq_kernel(gi_ref, whh_ref, bhh_ref, o_ref):
    # gi_ref: (T, N, 3*Hp) f32  whh_ref: (Hp, 3*Hp) bf16  bhh_ref: (1, 3*Hp) f32
    # o_ref:  (N, Hp) f32  — final hidden state.
    T = gi_ref.shape[0]
    N = gi_ref.shape[1]
    Hp = o_ref.shape[1]
    whh = whh_ref[...]
    bhh = bhh_ref[...]

    def step(t, h):
        gi = gi_ref[t]                                     # (N, 3Hp), lane-aligned gates
        gh = jnp.dot(h.astype(whh.dtype), whh,
                     preferred_element_type=jnp.float32) + bhh
        r = jax.nn.sigmoid(gi[:, 0:Hp] + gh[:, 0:Hp])
        z = jax.nn.sigmoid(gi[:, Hp:2 * Hp] + gh[:, Hp:2 * Hp])
        n = jnp.tanh(gi[:, 2 * Hp:3 * Hp] + r * gh[:, 2 * Hp:3 * Hp])
        return (1.0 - z) * n + z * h

    h0 = jnp.zeros((N, Hp), jnp.float32)
    o_ref[...] = jax.lax.fori_loop(0, T, step, h0, unroll=T <= 8)


# ----------------------------------------------------------------------------
# Plain-JAX glue (NHWC im2col, padding, parameter setup)
# ----------------------------------------------------------------------------
def im2col_nhwc(x, k=KSIZE, s=STRIDE, p=PAD):
    """(N,H,W,C) -> patch matrix (N*Ho*Wo, k*k*C), column order (ki, kj, ci)."""
    # TODO(synk): fuse im2col into the conv GEMM kernel (9-tap accumulated GEMM
    # reading the padded NHWC activation directly) to remove this XLA-side
    # patch-matrix HBM round trip — largest remaining structural win.
    N, H, W, C = x.shape
    Ho = (H - k + 2 * p) // s + 1
    Wo = (W - k + 2 * p) // s + 1
    xp = jnp.pad(x, ((0, 0), (p, p), (p, p), (0, 0)))
    cols = []
    for i in range(k):
        for j in range(k):
            cols.append(xp[:, i:i + s * (Ho - 1) + 1:s, j:j + s * (Wo - 1) + 1:s, :])
    pat = jnp.stack(cols, axis=3)                       # (N, Ho, Wo, k*k, C)
    return pat.reshape(N * Ho * Wo, k * k * C), Ho, Wo


def conv_bn_relu_layer(x_nhwc, w, gamma, beta):
    """One Conv2d(3x3, s2, p1) + BatchNorm2d(train) + ReLU layer, NHWC in/out."""
    N = x_nhwc.shape[0]
    Cout, Cin, kh, kw = w.shape
    patches, Ho, Wo = im2col_nhwc(x_nhwc.astype(jnp.bfloat16))
    R, K = patches.shape

    Cp = _round_up(Cout, LANE)                          # lane-dense output (=128)
    tile = _pick_row_tile(R)
    Rp = _round_up(R, tile)
    if Rp != R:
        patches = jnp.pad(patches, ((0, Rp - R), (0, 0)))

    # weight rows ordered (ki, kj, ci) to match NHWC im2col columns; K kept at
    # its true size (no HBM pad) — MXU contraction padding happens in VMEM.
    w_mat = jnp.transpose(w, (2, 3, 1, 0)).reshape(K, Cout).astype(jnp.bfloat16)
    if Cp != Cout:
        w_mat = jnp.pad(w_mat, ((0, 0), (0, Cp - Cout)))

    # pass A: GEMM (bf16 store) + per-tile partial stats (f32). Zero-padded rows
    # contribute zero because the conv bias is dropped (cancels under BN mean).
    raw, stats = conv_gemm_stats(patches, w_mat, tile)

    s_tot = jnp.sum(stats[:, 0, :], axis=0)
    ss_tot = jnp.sum(stats[:, 1, :], axis=0)
    mean = s_tot / float(R)
    var = jnp.maximum(ss_tot / float(R) - mean * mean, 0.0)
    gamma_p = jnp.pad(gamma, (0, Cp - Cout))            # padded channels -> scale 0
    beta_p = jnp.pad(beta, (0, Cp - Cout))
    scale = gamma_p * jax.lax.rsqrt(var + BN_EPS)
    shift = beta_p - mean * scale

    # pass B: affine + ReLU, bf16 in / bf16 out
    y = bn_relu_apply(raw, scale, shift, tile)
    return y[:R, :Cout].reshape(N, Ho, Wo, Cout)


def gru_forward(seq, wih, whh, bih, bhh, W_sp, C_ch):
    """seq: (N, T, D) in natural NHWC (w, c) feature order. Returns (N, H)."""
    N, T, D = seq.shape
    H = whh.shape[1]
    Hp = _round_up(H, LANE)                             # lane-aligned per-gate width
    G = 3 * Hp

    # Fold the reference's (c, w) feature ordering into the input weights so the
    # conv output can be a natural NHWC reshape (no activation transpose).
    perm = jnp.arange(C_ch * W_sp).reshape(C_ch, W_sp).T.reshape(-1)
    wih_p = wih[:, perm]                                # (3H, D) in (w, c) column order

    def gate_cols(wm):                                  # (3H, In) -> (In, 3Hp)
        blocks = []
        for g in range(3):
            blk = wm[g * H:(g + 1) * H, :].T            # (In, H)
            blocks.append(jnp.pad(blk, ((0, 0), (0, Hp - H))))
        return jnp.concatenate(blocks, axis=1)

    def gate_bias(b):
        return jnp.concatenate(
            [jnp.pad(b[g * H:(g + 1) * H], (0, Hp - H)) for g in range(3)]
        ).reshape(1, G)

    wih_all = gate_cols(wih_p).astype(jnp.bfloat16)                              # (D, 3Hp)
    whh_all = jnp.pad(gate_cols(whh), ((0, Hp - H), (0, 0))).astype(jnp.bfloat16)  # (Hp, 3Hp)
    bih_all = gate_bias(bih).astype(jnp.float32)
    bhh_all = gate_bias(bhh).astype(jnp.float32)

    # Hoisted input projections: one batched GEMM over all timesteps.
    x_tm = jnp.transpose(seq, (1, 0, 2)).reshape(T * N, D).astype(jnp.bfloat16)
    R = T * N
    tile = _pick_row_tile(R)
    Rp = _round_up(R, tile)
    if Rp != R:
        x_tm = jnp.pad(x_tm, ((0, Rp - R), (0, 0)))
    gi = matmul_bias(x_tm, wih_all, bih_all, tile)      # (Rp, 3Hp) f32, lane-dense
    gi_seq = gi[:R].reshape(T, N, G)

    # Single-invocation recurrence: whole gi in VMEM, fori_loop over timesteps.
    h_final = pl.pallas_call(
        _gru_seq_kernel,
        out_shape=jax.ShapeDtypeStruct((N, Hp), jnp.float32),
    )(gi_seq, whh_all, bhh_all)
    return h_final[:, :H]


def calculate_channels(L, kernel_size, stride, pad, n_convs):
    for _ in range(n_convs):
        L = (L - kernel_size + 2 * pad) // stride + 1
    return L


def init_params(key, in_channels, hidden_channels):
    filters = [1] + FILTERS
    K = len(FILTERS)
    keys = jax.random.split(key, 2 * K + 4)
    convs = []
    for i in range(K):
        cin, cout = filters[i], filters[i + 1]
        fan_in = cin * KSIZE * KSIZE
        w = jax.random.normal(keys[2 * i], (cout, cin, KSIZE, KSIZE), jnp.float32) / jnp.sqrt(float(fan_in))
        b = 0.1 * jax.random.normal(keys[2 * i + 1], (cout,), jnp.float32)
        gamma = jnp.ones((cout,), jnp.float32)          # BatchNorm2d default init
        beta = jnp.zeros((cout,), jnp.float32)
        convs.append((w, b, gamma, beta))

    out_ch = calculate_channels(in_channels, KSIZE, STRIDE, PAD, K)
    D = FILTERS[-1] * out_ch
    H = hidden_channels
    s = 1.0 / jnp.sqrt(float(H))
    kk = keys[2 * K:]
    wih = jax.random.uniform(kk[0], (3 * H, D), jnp.float32, -s, s)
    whh = jax.random.uniform(kk[1], (3 * H, H), jnp.float32, -s, s)
    bih = jax.random.uniform(kk[2], (3 * H,), jnp.float32, -s, s)
    bhh = jax.random.uniform(kk[3], (3 * H,), jnp.float32, -s, s)
    return convs, (wih, whh, bih, bhh)


def reference_encoder_forward(x, params, in_channels):
    """x: (N, L, in_channels) -> final GRU hidden state (N, hidden_channels)."""
    convs, (wih, whh, bih, bhh) = params
    N = x.shape[0]
    out = x.reshape(N, -1, in_channels)[..., None]      # NHWC: (N, L, in_ch, 1)

    for (w, b, gamma, beta) in convs:
        # conv bias b is unused: it is exactly cancelled by training-mode BN
        # mean subtraction, so dropping it preserves the reference numerics.
        out = conv_bn_relu_layer(out, w, gamma, beta)

    # Natural NHWC reshape; the reference's (c, w) feature order is folded into
    # the GRU input weights inside gru_forward.
    Nn, T, W_sp, C_ch = out.shape
    seq = out.reshape(Nn, T, W_sp * C_ch)

    # TODO(synk): gru.flatten_parameters() is a CUDA memory-layout no-op; skipped.
    return gru_forward(seq, wih, whh, bih, bhh, W_sp, C_ch)   # == out.squeeze(0)


if __name__ == "__main__":
    N, L, IN_CH, HIDDEN = 2, 128, 16, 32
    key = jax.random.PRNGKey(0)
    k_x, k_p = jax.random.split(key)
    x = jax.random.normal(k_x, (N, L, IN_CH), dtype=jnp.float32)
    params = init_params(k_p, IN_CH, HIDDEN)

    fwd = jax.jit(lambda xx, pp: reference_encoder_forward(xx, pp, IN_CH))
    out = fwd(x, params)
    out = jax.block_until_ready(out)

    assert out.shape == (N, HIDDEN), out.shape
    assert bool(jnp.all(jnp.isfinite(out)))
    print("KERNEL_OK")
</pallas_src>

<mosaic_0001>
module attributes {stable_mosaic.version = 11 : i64} {
  func.func @_conv_gemm_stats_kernel(%arg0: i32, %arg1: memref<1024x9xbf16, #tpu.memory_space<vmem>>, %arg2: memref<9x128xbf16, #tpu.memory_space<vmem>>, %arg3: memref<1024x128xbf16, #tpu.memory_space<vmem>>, %arg4: memref<1x2x128xf32, #tpu.memory_space<vmem>>) attributes {dimension_semantics = [#tpu.dimension_semantics<parallel>], iteration_bounds = array<i64: 1>, scalar_prefetch = 0 : i64, scratch_operands = 0 : i64, tpu.core_type = #tpu.core_type<tc>, window_params = [{transform_indices = @transform_0, window_bounds = array<i64: 1024, 9>}, {pipeline_mode = #tpu.pipeline_mode<synchronous>, transform_indices = @transform_1, window_bounds = array<i64: 9, 128>}, {transform_indices = @transform_2, window_bounds = array<i64: 1024, 128>}, {transform_indices = @transform_3, window_bounds = array<i64: 1, 2, 128>}]} {
    %c0 = arith.constant 0 : index
    %c0_0 = arith.constant 0 : index
    %0 = vector.load %arg1[%c0, %c0_0] : memref<1024x9xbf16, #tpu.memory_space<vmem>>, vector<1024x9xbf16>
    %c0_1 = arith.constant 0 : index
    %c0_2 = arith.constant 0 : index
    %1 = vector.load %arg2[%c0_1, %c0_2] : memref<9x128xbf16, #tpu.memory_space<vmem>>, vector<9x128xbf16>
    %cst = arith.constant dense<0.000000e+00> : vector<1024x128xf32>
    %2 = tpu.matmul %0, %1, %cst {dimension_numbers = #tpu.dot_dimension_numbers<[1], [0], [0], [1], [0, 0, 1, 1], [], []>} : vector<1024x9xbf16>, vector<9x128xbf16>, vector<1024x128xf32> -> vector<1024x128xf32>
    %3 = arith.truncf %2 : vector<1024x128xf32> to vector<1024x128xbf16>
    %c0_3 = arith.constant 0 : index
    %c0_4 = arith.constant 0 : index
    %4 = vector.load %arg3[%c0_3, %c0_4] : memref<1024x128xbf16, #tpu.memory_space<vmem>>, vector<1024x128xbf16>
    tpu.vector_store %arg3[%c0_3, %c0_4], %3 {strides = array<i32>} : memref<1024x128xbf16, #tpu.memory_space<vmem>>, vector<1024x128xbf16>,
    %cst_5 = arith.constant dense<0.000000e+00> : vector<128xf32>
    %5 = vector.multi_reduction <add>, %2, %cst_5 [0] : vector<1024x128xf32> to vector<128xf32>
    %6 = vector.shape_cast %5 : vector<128xf32> to vector<1x128xf32>
    %7 = arith.mulf %2, %2 : vector<1024x128xf32>
    %cst_6 = arith.constant dense<0.000000e+00> : vector<128xf32>
    %8 = vector.multi_reduction <add>, %7, %cst_6 [0] : vector<1024x128xf32> to vector<128xf32>
    %9 = vector.shape_cast %8 : vector<128xf32> to vector<1x128xf32>
    %10 = tpu.concatenate %6, %9 in 0 : vector<1x128xf32>, vector<1x128xf32> -> vector<2x128xf32>
    %11 = vector.shape_cast %10 : vector<2x128xf32> to vector<1x2x128xf32>
    %c0_7 = arith.constant 0 : index
    %c0_8 = arith.constant 0 : index
    %c0_9 = arith.constant 0 : index
    %12 = vector.load %arg4[%c0_7, %c0_8, %c0_9] : memref<1x2x128xf32, #tpu.memory_space<vmem>>, vector<1x2x128xf32>
    tpu.vector_store %arg4[%c0_7, %c0_8, %c0_9], %11 {strides = array<i32>} : memref<1x2x128xf32, #tpu.memory_space<vmem>>, vector<1x2x128xf32>,
    return
  }
  func.func @transform_0(%arg0: i32) -> (i32, i32) {
    %c0_i32 = arith.constant 0 : i32
    %c0_i32_0 = arith.constant 0 : i32
    return %arg0, %c0_i32 : i32, i32
  }
  func.func @transform_1(%arg0: i32) -> (i32, i32) {
    %c0_i32 = arith.constant 0 : i32
    %c0_i32_0 = arith.constant 0 : i32
    %c0_i32_1 = arith.constant 0 : i32
    return %c0_i32, %c0_i32_0 : i32, i32
  }
  func.func @transform_2(%arg0: i32) -> (i32, i32) {
    %c0_i32 = arith.constant 0 : i32
    %c0_i32_0 = arith.constant 0 : i32
    return %arg0, %c0_i32 : i32, i32
  }
  func.func @transform_3(%arg0: i32) -> (i32, i32, i32) {
    %c0_i32 = arith.constant 0 : i32
    %c0_i32_0 = arith.constant 0 : i32
    %c0_i32_1 = arith.constant 0 : i32
    return %arg0, %c0_i32, %c0_i32_0 : i32, i32, i32
  }
}

module attributes {stable_mosaic.version = 11 : i64} {
  func.func @_bn_relu_kernel(%arg0: i32, %arg1: memref<1024x128xbf16, #tpu.memory_space<vmem>>, %arg2: memref<1x128xf32, #tpu.memory_space<vmem>>, %arg3: memref<1x128xf32, #tpu.memory_space<vmem>>, %arg4: memref<1024x128xbf16, #tpu.memory_space<vmem>>) attributes {dimension_semantics = [#tpu.dimension_semantics<parallel>], iteration_bounds = array<i64: 1>, scalar_prefetch = 0 : i64, scratch_operands = 0 : i64, tpu.core_type = #tpu.core_type<tc>, window_params = [{transform_indices = @transform_0, window_bounds = array<i64: 1024, 128>}, {pipeline_mode = #tpu.pipeline_mode<synchronous>, transform_indices = @transform_1, window_bounds = array<i64: 1, 128>}, {pipeline_mode = #tpu.pipeline_mode<synchronous>, transform_indices = @transform_2, window_bounds = array<i64: 1, 128>}, {transform_indices = @transform_3, window_bounds = array<i64: 1024, 128>}]} {
    %c0 = arith.constant 0 : index
    %c0_0 = arith.constant 0 : index
    %0 = vector.load %arg1[%c0, %c0_0] : memref<1024x128xbf16, #tpu.memory_space<vmem>>, vector<1024x128xbf16>
    %1 = arith.extf %0 : vector<1024x128xbf16> to vector<1024x128xf32>
    %c0_1 = arith.constant 0 : index
    %c0_2 = arith.constant 0 : index
    %2 = vector.load %arg2[%c0_1, %c0_2] : memref<1x128xf32, #tpu.memory_space<vmem>>, vector<1x128xf32>
    %3 = vector.broadcast %2 : vector<1x128xf32> to vector<1024x128xf32>
    %4 = arith.mulf %1, %3 : vector<1024x128xf32>
    %c0_3 = arith.constant 0 : index
    %c0_4 = arith.constant 0 : index
    %5 = vector.load %arg3[%c0_3, %c0_4] : memref<1x128xf32, #tpu.memory_space<vmem>>, vector<1x128xf32>
    %6 = vector.broadcast %5 : vector<1x128xf32> to vector<1024x128xf32>
    %7 = arith.addf %4, %6 : vector<1024x128xf32>
    %cst = arith.constant 0.000000e+00 : f32
    %8 = vector.broadcast %cst : f32 to vector<1024x128xf32>
    %9 = arith.maximumf %7, %8 : vector<1024x128xf32>
    %10 = arith.truncf %9 : vector<1024x128xf32> to vector<1024x128xbf16>
    %c0_5 = arith.constant 0 : index
    %c0_6 = arith.constant 0 : index
    %11 = vector.load %arg4[%c0_5, %c0_6] : memref<1024x128xbf16, #tpu.memory_space<vmem>>, vector<1024x128xbf16>
    tpu.vector_store %arg4[%c0_5, %c0_6], %10 {strides = array<i32>} : memref<1024x128xbf16, #tpu.memory_space<vmem>>, vector<1024x128xbf16>,
    return
  }
  func.func @transform_0(%arg0: i32) -> (i32, i32) {
    %c0_i32 = arith.constant 0 : i32
    %c0_i32_0 = arith.constant 0 : i32
    return %arg0, %c0_i32 : i32, i32
  }
  func.func @transform_1(%arg0: i32) -> (i32, i32) {
    %c0_i32 = arith.constant 0 : i32
    %c0_i32_0 = arith.constant 0 : i32
    %c0_i32_1 = arith.constant 0 : i32
    return %c0_i32, %c0_i32_0 : i32, i32
  }
  func.func @transform_2(%arg0: i32) -> (i32, i32) {
    %c0_i32 = arith.constant 0 : i32
    %c0_i32_0 = arith.constant 0 : i32
    %c0_i32_1 = arith.constant 0 : i32
    return %c0_i32, %c0_i32_0 : i32, i32
  }
  func.func @transform_3(%arg0: i32) -> (i32, i32) {
    %c0_i32 = arith.constant 0 : i32
    %c0_i32_0 = arith.constant 0 : i32
    return %arg0, %c0_i32 : i32, i32
  }
}

module attributes {stable_mosaic.version = 11 : i64} {
  func.func @_conv_gemm_stats_kernel(%arg0: i32, %arg1: memref<256x288xbf16, #tpu.memory_space<vmem>>, %arg2: memref<288x128xbf16, #tpu.memory_space<vmem>>, %arg3: memref<256x128xbf16, #tpu.memory_space<vmem>>, %arg4: memref<1x2x128xf32, #tpu.memory_space<vmem>>) attributes {dimension_semantics = [#tpu.dimension_semantics<parallel>], iteration_bounds = array<i64: 1>, scalar_prefetch = 0 : i64, scratch_operands = 0 : i64, tpu.core_type = #tpu.core_type<tc>, window_params = [{transform_indices = @transform_0, window_bounds = array<i64: 256, 288>}, {pipeline_mode = #tpu.pipeline_mode<synchronous>, transform_indices = @transform_1, window_bounds = array<i64: 288, 128>}, {transform_indices = @transform_2, window_bounds = array<i64: 256, 128>}, {transform_indices = @transform_3, window_bounds = array<i64: 1, 2, 128>}]} {
    %c0 = arith.constant 0 : index
    %c0_0 = arith.constant 0 : index
    %0 = vector.load %arg1[%c0, %c0_0] : memref<256x288xbf16, #tpu.memory_space<vmem>>, vector<256x288xbf16>
    %c0_1 = arith.constant 0 : index
    %c0_2 = arith.constant 0 : index
    %1 = vector.load %arg2[%c0_1, %c0_2] : memref<288x128xbf16, #tpu.memory_space<vmem>>, vector<288x128xbf16>
    %cst = arith.constant dense<0.000000e+00> : vector<256x128xf32>
    %2 = tpu.matmul %0, %1, %cst {dimension_numbers = #tpu.dot_dimension_numbers<[1], [0], [0], [1], [0, 0, 1, 1], [], []>} : vector<256x288xbf16>, vector<288x128xbf16>, vector<256x128xf32> -> vector<256x128xf32>
    %3 = arith.truncf %2 : vector<256x128xf32> to vector<256x128xbf16>
    %c0_3 = arith.constant 0 : index
    %c0_4 = arith.constant 0 : index
    %4 = vector.load %arg3[%c0_3, %c0_4] : memref<256x128xbf16, #tpu.memory_space<vmem>>, vector<256x128xbf16>
    tpu.vector_store %arg3[%c0_3, %c0_4], %3 {strides = array<i32>} : memref<256x128xbf16, #tpu.memory_space<vmem>>, vector<256x128xbf16>,
    %cst_5 = arith.constant dense<0.000000e+00> : vector<128xf32>
    %5 = vector.multi_reduction <add>, %2, %cst_5 [0] : vector<256x128xf32> to vector<128xf32>
    %6 = vector.shape_cast %5 : vector<128xf32> to vector<1x128xf32>
    %7 = arith.mulf %2, %2 : vector<256x128xf32>
    %cst_6 = arith.constant dense<0.000000e+00> : vector<128xf32>
    %8 = vector.multi_reduction <add>, %7, %cst_6 [0] : vector<256x128xf32> to vector<128xf32>
    %9 = vector.shape_cast %8 : vector<128xf32> to vector<1x128xf32>
    %10 = tpu.concatenate %6, %9 in 0 : vector<1x128xf32>, vector<1x128xf32> -> vector<2x128xf32>
    %11 = vector.shape_cast %10 : vector<2x128xf32> to vector<1x2x128xf32>
    %c0_7 = arith.constant 0 : index
    %c0_8 = arith.constant 0 : index
    %c0_9 = arith.constant 0 : index
    %12 = vector.load %arg4[%c0_7, %c0_8, %c0_9] : memref<1x2x128xf32, #tpu.memory_space<vmem>>, vector<1x2x128xf32>
    tpu.vector_store %arg4[%c0_7, %c0_8, %c0_9], %11 {strides = array<i32>} : memref<1x2x128xf32, #tpu.memory_space<vmem>>, vector<1x2x128xf32>,
    return
  }
  func.func @transform_0(%arg0: i32) -> (i32, i32) {
    %c0_i32 = arith.constant 0 : i32
    %c0_i32_0 = arith.constant 0 : i32
    return %arg0, %c0_i32 : i32, i32
  }
  func.func @transform_1(%arg0: i32) -> (i32, i32) {
    %c0_i32 = arith.constant 0 : i32
    %c0_i32_0 = arith.constant 0 : i32
    %c0_i32_1 = arith.constant 0 : i32
    return %c0_i32, %c0_i32_0 : i32, i32
  }
  func.func @transform_2(%arg0: i32) -> (i32, i32) {
    %c0_i32 = arith.constant 0 : i32
    %c0_i32_0 = arith.constant 0 : i32
    return %arg0, %c0_i32 : i32, i32
  }
  func.func @transform_3(%arg0: i32) -> (i32, i32, i32) {
    %c0_i32 = arith.constant 0 : i32
    %c0_i32_0 = arith.constant 0 : i32
    %c0_i32_1 = arith.constant 0 : i32
    return %arg0, %c0_i32, %c0_i32_0 : i32, i32, i32
  }
}

module attributes {stable_mosaic.version = 11 : i64} {
  func.func @_bn_relu_kernel(%arg0: i32, %arg1: memref<256x128xbf16, #tpu.memory_space<vmem>>, %arg2: memref<1x128xf32, #tpu.memory_space<vmem>>, %arg3: memref<1x128xf32, #tpu.memory_space<vmem>>, %arg4: memref<256x128xbf16, #tpu.memory_space<vmem>>) attributes {dimension_semantics = [#tpu.dimension_semantics<parallel>], iteration_bounds = array<i64: 1>, scalar_prefetch = 0 : i64, scratch_operands = 0 : i64, tpu.core_type = #tpu.core_type<tc>, window_params = [{transform_indices = @transform_0, window_bounds = array<i64: 256, 128>}, {pipeline_mode = #tpu.pipeline_mode<synchronous>, transform_indices = @transform_1, window_bounds = array<i64: 1, 128>}, {pipeline_mode = #tpu.pipeline_mode<synchronous>, transform_indices = @transform_2, window_bounds = array<i64: 1, 128>}, {transform_indices = @transform_3, window_bounds = array<i64: 256, 128>}]} {
    %c0 = arith.constant 0 : index
    %c0_0 = arith.constant 0 : index
    %0 = vector.load %arg1[%c0, %c0_0] : memref<256x128xbf16, #tpu.memory_space<vmem>>, vector<256x128xbf16>
    %1 = arith.extf %0 : vector<256x128xbf16> to vector<256x128xf32>
    %c0_1 = arith.constant 0 : index
    %c0_2 = arith.constant 0 : index
    %2 = vector.load %arg2[%c0_1, %c0_2] : memref<1x128xf32, #tpu.memory_space<vmem>>, vector<1x128xf32>
    %3 = vector.broadcast %2 : vector<1x128xf32> to vector<256x128xf32>
    %4 = arith.mulf %1, %3 : vector<256x128xf32>
    %c0_3 = arith.constant 0 : index
    %c0_4 = arith.constant 0 : index
    %5 = vector.load %arg3[%c0_3, %c0_4] : memref<1x128xf32, #tpu.memory_space<vmem>>, vector<1x128xf32>
    %6 = vector.broadcast %5 : vector<1x128xf32> to vector<256x128xf32>
    %7 = arith.addf %4, %6 : vector<256x128xf32>
    %cst = arith.constant 0.000000e+00 : f32
    %8 = vector.broadcast %cst : f32 to vector<256x128xf32>
    %9 = arith.maximumf %7, %8 : vector<256x128xf32>
    %10 = arith.truncf %9 : vector<256x128xf32> to vector<256x128xbf16>
    %c0_5 = arith.constant 0 : index
    %c0_6 = arith.constant 0 : index
    %11 = vector.load %arg4[%c0_5, %c0_6] : memref<256x128xbf16, #tpu.memory_space<vmem>>, vector<256x128xbf16>
    tpu.vector_store %arg4[%c0_5, %c0_6], %10 {strides = array<i32>} : memref<256x128xbf16, #tpu.memory_space<vmem>>, vector<256x128xbf16>,
    return
  }
  func.func @transform_0(%arg0: i32) -> (i32, i32) {
    %c0_i32 = arith.constant 0 : i32
    %c0_i32_0 = arith.constant 0 : i32
    return %arg0, %c0_i32 : i32, i32
  }
  func.func @transform_1(%arg0: i32) -> (i32, i32) {
    %c0_i32 = arith.constant 0 : i32
    %c0_i32_0 = arith.constant 0 : i32
    %c0_i32_1 = arith.constant 0 : i32
    return %c0_i32, %c0_i32_0 : i32, i32
  }
  func.func @transform_2(%arg0: i32) -> (i32, i32) {
    %c0_i32 = arith.constant 0 : i32
    %c0_i32_0 = arith.constant 0 : i32
    %c0_i32_1 = arith.constant 0 : i32
    return %c0_i32, %c0_i32_0 : i32, i32
  }
  func.func @transform_3(%arg0: i32) -> (i32, i32) {
    %c0_i32 = arith.constant 0 : i32
    %c0_i32_0 = arith.constant 0 : i32
    return %arg0, %c0_i32 : i32, i32
  }
}

module attributes {stable_mosaic.version = 11 : i64} {
  func.func @_conv_gemm_stats_kernel(%arg0: i32, %arg1: memref<64x288xbf16, #tpu.memory_space<vmem>>, %arg2: memref<288x128xbf16, #tpu.memory_space<vmem>>, %arg3: memref<64x128xbf16, #tpu.memory_space<vmem>>, %arg4: memref<1x2x128xf32, #tpu.memory_space<vmem>>) attributes {dimension_semantics = [#tpu.dimension_semantics<parallel>], iteration_bounds = array<i64: 1>, scalar_prefetch = 0 : i64, scratch_operands = 0 : i64, tpu.core_type = #tpu.core_type<tc>, window_params = [{transform_indices = @transform_0, window_bounds = array<i64: 64, 288>}, {pipeline_mode = #tpu.pipeline_mode<synchronous>, transform_indices = @transform_1, window_bounds = array<i64: 288, 128>}, {transform_indices = @transform_2, window_bounds = array<i64: 64, 128>}, {transform_indices = @transform_3, window_bounds = array<i64: 1, 2, 128>}]} {
    %c0 = arith.constant 0 : index
    %c0_0 = arith.constant 0 : index
    %0 = vector.load %arg1[%c0, %c0_0] : memref<64x288xbf16, #tpu.memory_space<vmem>>, vector<64x288xbf16>
    %c0_1 = arith.constant 0 : index
    %c0_2 = arith.constant 0 : index
    %1 = vector.load %arg2[%c0_1, %c0_2] : memref<288x128xbf16, #tpu.memory_space<vmem>>, vector<288x128xbf16>
    %cst = arith.constant dense<0.000000e+00> : vector<64x128xf32>
    %2 = tpu.matmul %0, %1, %cst {dimension_numbers = #tpu.dot_dimension_numbers<[1], [0], [0], [1], [0, 0, 1, 1], [], []>} : vector<64x288xbf16>, vector<288x128xbf16>, vector<64x128xf32> -> vector<64x128xf32>
    %3 = arith.truncf %2 : vector<64x128xf32> to vector<64x128xbf16>
    %c0_3 = arith.constant 0 : index
    %c0_4 = arith.constant 0 : index
    %4 = vector.load %arg3[%c0_3, %c0_4] : memref<64x128xbf16, #tpu.memory_space<vmem>>, vector<64x128xbf16>
    tpu.vector_store %arg3[%c0_3, %c0_4], %3 {strides = array<i32>} : memref<64x128xbf16, #tpu.memory_space<vmem>>, vector<64x128xbf16>,
    %cst_5 = arith.constant dense<0.000000e+00> : vector<128xf32>
    %5 = vector.multi_reduction <add>, %2, %cst_5 [0] : vector<64x128xf32> to vector<128xf32>
    %6 = vector.shape_cast %5 : vector<128xf32> to vector<1x128xf32>
    %7 = arith.mulf %2, %2 : vector<64x128xf32>
    %cst_6 = arith.constant dense<0.000000e+00> : vector<128xf32>
    %8 = vector.multi_reduction <add>, %7, %cst_6 [0] : vector<64x128xf32> to vector<128xf32>
    %9 = vector.shape_cast %8 : vector<128xf32> to vector<1x128xf32>
    %10 = tpu.concatenate %6, %9 in 0 : vector<1x128xf32>, vector<1x128xf32> -> vector<2x128xf32>
    %11 = vector.shape_cast %10 : vector<2x128xf32> to vector<1x2x128xf32>
    %c0_7 = arith.constant 0 : index
    %c0_8 = arith.constant 0 : index
    %c0_9 = arith.constant 0 : index
    %12 = vector.load %arg4[%c0_7, %c0_8, %c0_9] : memref<1x2x128xf32, #tpu.memory_space<vmem>>, vector<1x2x128xf32>
    tpu.vector_store %arg4[%c0_7, %c0_8, %c0_9], %11 {strides = array<i32>} : memref<1x2x128xf32, #tpu.memory_space<vmem>>, vector<1x2x128xf32>,
    return
  }
  func.func @transform_0(%arg0: i32) -> (i32, i32) {
    %c0_i32 = arith.constant 0 : i32
    %c0_i32_0 = arith.constant 0 : i32
    return %arg0, %c0_i32 : i32, i32
  }
  func.func @transform_1(%arg0: i32) -> (i32, i32) {
    %c0_i32 = arith.constant 0 : i32
    %c0_i32_0 = arith.constant 0 : i32
    %c0_i32_1 = arith.constant 0 : i32
    return %c0_i32, %c0_i32_0 : i32, i32
  }
  func.func @transform_2(%arg0: i32) -> (i32, i32) {
    %c0_i32 = arith.constant 0 : i32
    %c0_i32_0 = arith.constant 0 : i32
    return %arg0, %c0_i32 : i32, i32
  }
  func.func @transform_3(%arg0: i32) -> (i32, i32, i32) {
    %c0_i32 = arith.constant 0 : i32
    %c0_i32_0 = arith.constant 0 : i32
    %c0_i32_1 = arith.constant 0 : i32
    return %arg0, %c0_i32, %c0_i32_0 : i32, i32, i32
  }
}

module attributes {stable_mosaic.version = 11 : i64} {
  func.func @_bn_relu_kernel(%arg0: i32, %arg1: memref<64x128xbf16, #tpu.memory_space<vmem>>, %arg2: memref<1x128xf32, #tpu.memory_space<vmem>>, %arg3: memref<1x128xf32, #tpu.memory_space<vmem>>, %arg4: memref<64x128xbf16, #tpu.memory_space<vmem>>) attributes {dimension_semantics = [#tpu.dimension_semantics<parallel>], iteration_bounds = array<i64: 1>, scalar_prefetch = 0 : i64, scratch_operands = 0 : i64, tpu.core_type = #tpu.core_type<tc>, window_params = [{transform_indices = @transform_0, window_bounds = array<i64: 64, 128>}, {pipeline_mode = #tpu.pipeline_mode<synchronous>, transform_indices = @transform_1, window_bounds = array<i64: 1, 128>}, {pipeline_mode = #tpu.pipeline_mode<synchronous>, transform_indices = @transform_2, window_bounds = array<i64: 1, 128>}, {transform_indices = @transform_3, window_bounds = array<i64: 64, 128>}]} {
    %c0 = arith.constant 0 : index
    %c0_0 = arith.constant 0 : index
    %0 = vector.load %arg1[%c0, %c0_0] : memref<64x128xbf16, #tpu.memory_space<vmem>>, vector<64x128xbf16>
    %1 = arith.extf %0 : vector<64x128xbf16> to vector<64x128xf32>
    %c0_1 = arith.constant 0 : index
    %c0_2 = arith.constant 0 : index
    %2 = vector.load %arg2[%c0_1, %c0_2] : memref<1x128xf32, #tpu.memory_space<vmem>>, vector<1x128xf32>
    %3 = vector.broadcast %2 : vector<1x128xf32> to vector<64x128xf32>
    %4 = arith.mulf %1, %3 : vector<64x128xf32>
    %c0_3 = arith.constant 0 : index
    %c0_4 = arith.constant 0 : index
    %5 = vector.load %arg3[%c0_3, %c0_4] : memref<1x128xf32, #tpu.memory_space<vmem>>, vector<1x128xf32>
    %6 = vector.broadcast %5 : vector<1x128xf32> to vector<64x128xf32>
    %7 = arith.addf %4, %6 : vector<64x128xf32>
    %cst = arith.constant 0.000000e+00 : f32
    %8 = vector.broadcast %cst : f32 to vector<64x128xf32>
    %9 = arith.maximumf %7, %8 : vector<64x128xf32>
    %10 = arith.truncf %9 : vector<64x128xf32> to vector<64x128xbf16>
    %c0_5 = arith.constant 0 : index
    %c0_6 = arith.constant 0 : index
    %11 = vector.load %arg4[%c0_5, %c0_6] : memref<64x128xbf16, #tpu.memory_space<vmem>>, vector<64x128xbf16>
    tpu.vector_store %arg4[%c0_5, %c0_6], %10 {strides = array<i32>} : memref<64x128xbf16, #tpu.memory_space<vmem>>, vector<64x128xbf16>,
    return
  }
  func.func @transform_0(%arg0: i32) -> (i32, i32) {
    %c0_i32 = arith.constant 0 : i32
    %c0_i32_0 = arith.constant 0 : i32
    return %arg0, %c0_i32 : i32, i32
  }
  func.func @transform_1(%arg0: i32) -> (i32, i32) {
    %c0_i32 = arith.constant 0 : i32
    %c0_i32_0 = arith.constant 0 : i32
    %c0_i32_1 = arith.constant 0 : i32
    return %c0_i32, %c0_i32_0 : i32, i32
  }
  func.func @transform_2(%arg0: i32) -> (i32, i32) {
    %c0_i32 = arith.constant 0 : i32
    %c0_i32_0 = arith.constant 0 : i32
    %c0_i32_1 = arith.constant 0 : i32
    return %c0_i32, %c0_i32_0 : i32, i32
  }
  func.func @transform_3(%arg0: i32) -> (i32, i32) {
    %c0_i32 = arith.constant 0 : i32
    %c0_i32_0 = arith.constant 0 : i32
    return %arg0, %c0_i32 : i32, i32
  }
}

module attributes {stable_mosaic.version = 11 : i64} {
  func.func @_conv_gemm_stats_kernel(%arg0: i32, %arg1: memref<16x576xbf16, #tpu.memory_space<vmem>>, %arg2: memref<576x128xbf16, #tpu.memory_space<vmem>>, %arg3: memref<16x128xbf16, #tpu.memory_space<vmem>>, %arg4: memref<1x2x128xf32, #tpu.memory_space<vmem>>) attributes {dimension_semantics = [#tpu.dimension_semantics<parallel>], iteration_bounds = array<i64: 1>, scalar_prefetch = 0 : i64, scratch_operands = 0 : i64, tpu.core_type = #tpu.core_type<tc>, window_params = [{transform_indices = @transform_0, window_bounds = array<i64: 16, 576>}, {pipeline_mode = #tpu.pipeline_mode<synchronous>, transform_indices = @transform_1, window_bounds = array<i64: 576, 128>}, {transform_indices = @transform_2, window_bounds = array<i64: 16, 128>}, {transform_indices = @transform_3, window_bounds = array<i64: 1, 2, 128>}]} {
    %c0 = arith.constant 0 : index
    %c0_0 = arith.constant 0 : index
    %0 = vector.load %arg1[%c0, %c0_0] : memref<16x576xbf16, #tpu.memory_space<vmem>>, vector<16x576xbf16>
    %c0_1 = arith.constant 0 : index
    %c0_2 = arith.constant 0 : index
    %1 = vector.load %arg2[%c0_1, %c0_2] : memref<576x128xbf16, #tpu.memory_space<vmem>>, vector<576x128xbf16>
    %cst = arith.constant dense<0.000000e+00> : vector<16x128xf32>
    %2 = tpu.matmul %0, %1, %cst {dimension_numbers = #tpu.dot_dimension_numbers<[1], [0], [0], [1], [0, 0, 1, 1], [], []>} : vector<16x576xbf16>, vector<576x128xbf16>, vector<16x128xf32> -> vector<16x128xf32>
    %3 = arith.truncf %2 : vector<16x128xf32> to vector<16x128xbf16>
    %c0_3 = arith.constant 0 : index
    %c0_4 = arith.constant 0 : index
    %4 = vector.load %arg3[%c0_3, %c0_4] : memref<16x128xbf16, #tpu.memory_space<vmem>>, vector<16x128xbf16>
    tpu.vector_store %arg3[%c0_3, %c0_4], %3 {strides = array<i32>} : memref<16x128xbf16, #tpu.memory_space<vmem>>, vector<16x128xbf16>,
    %cst_5 = arith.constant dense<0.000000e+00> : vector<128xf32>
    %5 = vector.multi_reduction <add>, %2, %cst_5 [0] : vector<16x128xf32> to vector<128xf32>
    %6 = vector.shape_cast %5 : vector<128xf32> to vector<1x128xf32>
    %7 = arith.mulf %2, %2 : vector<16x128xf32>
    %cst_6 = arith.constant dense<0.000000e+00> : vector<128xf32>
    %8 = vector.multi_reduction <add>, %7, %cst_6 [0] : vector<16x128xf32> to vector<128xf32>
    %9 = vector.shape_cast %8 : vector<128xf32> to vector<1x128xf32>
    %10 = tpu.concatenate %6, %9 in 0 : vector<1x128xf32>, vector<1x128xf32> -> vector<2x128xf32>
    %11 = vector.shape_cast %10 : vector<2x128xf32> to vector<1x2x128xf32>
    %c0_7 = arith.constant 0 : index
    %c0_8 = arith.constant 0 : index
    %c0_9 = arith.constant 0 : index
    %12 = vector.load %arg4[%c0_7, %c0_8, %c0_9] : memref<1x2x128xf32, #tpu.memory_space<vmem>>, vector<1x2x128xf32>
    tpu.vector_store %arg4[%c0_7, %c0_8, %c0_9], %11 {strides = array<i32>} : memref<1x2x128xf32, #tpu.memory_space<vmem>>, vector<1x2x128xf32>,
    return
  }
  func.func @transform_0(%arg0: i32) -> (i32, i32) {
    %c0_i32 = arith.constant 0 : i32
    %c0_i32_0 = arith.constant 0 : i32
    return %arg0, %c0_i32 : i32, i32
  }
  func.func @transform_1(%arg0: i32) -> (i32, i32) {
    %c0_i32 = arith.constant 0 : i32
    %c0_i32_0 = arith.constant 0 : i32
    %c0_i32_1 = arith.constant 0 : i32
    return %c0_i32, %c0_i32_0 : i32, i32
  }
  func.func @transform_2(%arg0: i32) -> (i32, i32) {
    %c0_i32 = arith.constant 0 : i32
    %c0_i32_0 = arith.constant 0 : i32
    return %arg0, %c0_i32 : i32, i32
  }
  func.func @transform_3(%arg0: i32) -> (i32, i32, i32) {
    %c0_i32 = arith.constant 0 : i32
    %c0_i32_0 = arith.constant 0 : i32
    %c0_i32_1 = arith.constant 0 : i32
    return %arg0, %c0_i32, %c0_i32_0 : i32, i32, i32
  }
}

module attributes {stable_mosaic.version = 11 : i64} {
  func.func @_bn_relu_kernel(%arg0: i32, %arg1: memref<16x128xbf16, #tpu.memory_space<vmem>>, %arg2: memref<1x128xf32, #tpu.memory_space<vmem>>, %arg3: memref<1x128xf32, #tpu.memory_space<vmem>>, %arg4: memref<16x128xbf16, #tpu.memory_space<vmem>>) attributes {dimension_semantics = [#tpu.dimension_semantics<parallel>], iteration_bounds = array<i64: 1>, scalar_prefetch = 0 : i64, scratch_operands = 0 : i64, tpu.core_type = #tpu.core_type<tc>, window_params = [{transform_indices = @transform_0, window_bounds = array<i64: 16, 128>}, {pipeline_mode = #tpu.pipeline_mode<synchronous>, transform_indices = @transform_1, window_bounds = array<i64: 1, 128>}, {pipeline_mode = #tpu.pipeline_mode<synchronous>, transform_indices = @transform_2, window_bounds = array<i64: 1, 128>}, {transform_indices = @transform_3, window_bounds = array<i64: 16, 128>}]} {
    %c0 = arith.constant 0 : index
    %c0_0 = arith.constant 0 : index
    %0 = vector.load %arg1[%c0, %c0_0] : memref<16x128xbf16, #tpu.memory_space<vmem>>, vector<16x128xbf16>
    %1 = arith.extf %0 : vector<16x128xbf16> to vector<16x128xf32>
    %c0_1 = arith.constant 0 : index
    %c0_2 = arith.constant 0 : index
    %2 = vector.load %arg2[%c0_1, %c0_2] : memref<1x128xf32, #tpu.memory_space<vmem>>, vector<1x128xf32>
    %3 = vector.broadcast %2 : vector<1x128xf32> to vector<16x128xf32>
    %4 = arith.mulf %1, %3 : vector<16x128xf32>
    %c0_3 = arith.constant 0 : index
    %c0_4 = arith.constant 0 : index
    %5 = vector.load %arg3[%c0_3, %c0_4] : memref<1x128xf32, #tpu.memory_space<vmem>>, vector<1x128xf32>
    %6 = vector.broadcast %5 : vector<1x128xf32> to vector<16x128xf32>
    %7 = arith.addf %4, %6 : vector<16x128xf32>
    %cst = arith.constant 0.000000e+00 : f32
    %8 = vector.broadcast %cst : f32 to vector<16x128xf32>
    %9 = arith.maximumf %7, %8 : vector<16x128xf32>
    %10 = arith.truncf %9 : vector<16x128xf32> to vector<16x128xbf16>
    %c0_5 = arith.constant 0 : index
    %c0_6 = arith.constant 0 : index
    %11 = vector.load %arg4[%c0_5, %c0_6] : memref<16x128xbf16, #tpu.memory_space<vmem>>, vector<16x128xbf16>
    tpu.vector_store %arg4[%c0_5, %c0_6], %10 {strides = array<i32>} : memref<16x128xbf16, #tpu.memory_space<vmem>>, vector<16x128xbf16>,
    return
  }
  func.func @transform_0(%arg0: i32) -> (i32, i32) {
    %c0_i32 = arith.constant 0 : i32
    %c0_i32_0 = arith.constant 0 : i32
    return %arg0, %c0_i32 : i32, i32
  }
  func.func @transform_1(%arg0: i32) -> (i32, i32) {
    %c0_i32 = arith.constant 0 : i32
    %c0_i32_0 = arith.constant 0 : i32
    %c0_i32_1 = arith.constant 0 : i32
    return %c0_i32, %c0_i32_0 : i32, i32
  }
  func.func @transform_2(%arg0: i32) -> (i32, i32) {
    %c0_i32 = arith.constant 0 : i32
    %c0_i32_0 = arith.constant 0 : i32
    %c0_i32_1 = arith.constant 0 : i32
    return %c0_i32, %c0_i32_0 : i32, i32
  }
  func.func @transform_3(%arg0: i32) -> (i32, i32) {
    %c0_i32 = arith.constant 0 : i32
    %c0_i32_0 = arith.constant 0 : i32
    return %arg0, %c0_i32 : i32, i32
  }
}

module attributes {stable_mosaic.version = 11 : i64} {
  func.func @_conv_gemm_stats_kernel(%arg0: i32, %arg1: memref<8x576xbf16, #tpu.memory_space<vmem>>, %arg2: memref<576x128xbf16, #tpu.memory_space<vmem>>, %arg3: memref<8x128xbf16, #tpu.memory_space<vmem>>, %arg4: memref<1x2x128xf32, #tpu.memory_space<vmem>>) attributes {dimension_semantics = [#tpu.dimension_semantics<parallel>], iteration_bounds = array<i64: 1>, scalar_prefetch = 0 : i64, scratch_operands = 0 : i64, tpu.core_type = #tpu.core_type<tc>, window_params = [{transform_indices = @transform_0, window_bounds = array<i64: 8, 576>}, {pipeline_mode = #tpu.pipeline_mode<synchronous>, transform_indices = @transform_1, window_bounds = array<i64: 576, 128>}, {transform_indices = @transform_2, window_bounds = array<i64: 8, 128>}, {transform_indices = @transform_3, window_bounds = array<i64: 1, 2, 128>}]} {
    %c0 = arith.constant 0 : index
    %c0_0 = arith.constant 0 : index
    %0 = vector.load %arg1[%c0, %c0_0] : memref<8x576xbf16, #tpu.memory_space<vmem>>, vector<8x576xbf16>
    %c0_1 = arith.constant 0 : index
    %c0_2 = arith.constant 0 : index
    %1 = vector.load %arg2[%c0_1, %c0_2] : memref<576x128xbf16, #tpu.memory_space<vmem>>, vector<576x128xbf16>
    %cst = arith.constant dense<0.000000e+00> : vector<8x128xf32>
    %2 = tpu.matmul %0, %1, %cst {dimension_numbers = #tpu.dot_dimension_numbers<[1], [0], [0], [1], [0, 0, 1, 1], [], []>} : vector<8x576xbf16>, vector<576x128xbf16>, vector<8x128xf32> -> vector<8x128xf32>
    %3 = arith.truncf %2 : vector<8x128xf32> to vector<8x128xbf16>
    %c0_3 = arith.constant 0 : index
    %c0_4 = arith.constant 0 : index
    %4 = vector.load %arg3[%c0_3, %c0_4] : memref<8x128xbf16, #tpu.memory_space<vmem>>, vector<8x128xbf16>
    tpu.vector_store %arg3[%c0_3, %c0_4], %3 {strides = array<i32>} : memref<8x128xbf16, #tpu.memory_space<vmem>>, vector<8x128xbf16>,
    %cst_5 = arith.constant dense<0.000000e+00> : vector<128xf32>
    %5 = vector.multi_reduction <add>, %2, %cst_5 [0] : vector<8x128xf32> to vector<128xf32>
    %6 = vector.shape_cast %5 : vector<128xf32> to vector<1x128xf32>
    %7 = arith.mulf %2, %2 : vector<8x128xf32>
    %cst_6 = arith.constant dense<0.000000e+00> : vector<128xf32>
    %8 = vector.multi_reduction <add>, %7, %cst_6 [0] : vector<8x128xf32> to vector<128xf32>
    %9 = vector.shape_cast %8 : vector<128xf32> to vector<1x128xf32>
    %10 = tpu.concatenate %6, %9 in 0 : vector<1x128xf32>, vector<1x128xf32> -> vector<2x128xf32>
    %11 = vector.shape_cast %10 : vector<2x128xf32> to vector<1x2x128xf32>
    %c0_7 = arith.constant 0 : index
    %c0_8 = arith.constant 0 : index
    %c0_9 = arith.constant 0 : index
    %12 = vector.load %arg4[%c0_7, %c0_8, %c0_9] : memref<1x2x128xf32, #tpu.memory_space<vmem>>, vector<1x2x128xf32>
    tpu.vector_store %arg4[%c0_7, %c0_8, %c0_9], %11 {strides = array<i32>} : memref<1x2x128xf32, #tpu.memory_space<vmem>>, vector<1x2x128xf32>,
    return
  }
  func.func @transform_0(%arg0: i32) -> (i32, i32) {
    %c0_i32 = arith.constant 0 : i32
    %c0_i32_0 = arith.constant 0 : i32
    return %arg0, %c0_i32 : i32, i32
  }
  func.func @transform_1(%arg0: i32) -> (i32, i32) {
    %c0_i32 = arith.constant 0 : i32
    %c0_i32_0 = arith.constant 0 : i32
    %c0_i32_1 = arith.constant 0 : i32
    return %c0_i32, %c0_i32_0 : i32, i32
  }
  func.func @transform_2(%arg0: i32) -> (i32, i32) {
    %c0_i32 = arith.constant 0 : i32
    %c0_i32_0 = arith.constant 0 : i32
    return %arg0, %c0_i32 : i32, i32
  }
  func.func @transform_3(%arg0: i32) -> (i32, i32, i32) {
    %c0_i32 = arith.constant 0 : i32
    %c0_i32_0 = arith.constant 0 : i32
    %c0_i32_1 = arith.constant 0 : i32
    return %arg0, %c0_i32, %c0_i32_0 : i32, i32, i32
  }
}

module attributes {stable_mosaic.version = 11 : i64} {
  func.func @_bn_relu_kernel(%arg0: i32, %arg1: memref<8x128xbf16, #tpu.memory_space<vmem>>, %arg2: memref<1x128xf32, #tpu.memory_space<vmem>>, %arg3: memref<1x128xf32, #tpu.memory_space<vmem>>, %arg4: memref<8x128xbf16, #tpu.memory_space<vmem>>) attributes {dimension_semantics = [#tpu.dimension_semantics<parallel>], iteration_bounds = array<i64: 1>, scalar_prefetch = 0 : i64, scratch_operands = 0 : i64, tpu.core_type = #tpu.core_type<tc>, window_params = [{transform_indices = @transform_0, window_bounds = array<i64: 8, 128>}, {pipeline_mode = #tpu.pipeline_mode<synchronous>, transform_indices = @transform_1, window_bounds = array<i64: 1, 128>}, {pipeline_mode = #tpu.pipeline_mode<synchronous>, transform_indices = @transform_2, window_bounds = array<i64: 1, 128>}, {transform_indices = @transform_3, window_bounds = array<i64: 8, 128>}]} {
    %c0 = arith.constant 0 : index
    %c0_0 = arith.constant 0 : index
    %0 = vector.load %arg1[%c0, %c0_0] : memref<8x128xbf16, #tpu.memory_space<vmem>>, vector<8x128xbf16>
    %1 = arith.extf %0 : vector<8x128xbf16> to vector<8x128xf32>
    %c0_1 = arith.constant 0 : index
    %c0_2 = arith.constant 0 : index
    %2 = vector.load %arg2[%c0_1, %c0_2] : memref<1x128xf32, #tpu.memory_space<vmem>>, vector<1x128xf32>
    %3 = vector.broadcast %2 : vector<1x128xf32> to vector<8x128xf32>
    %4 = arith.mulf %1, %3 : vector<8x128xf32>
    %c0_3 = arith.constant 0 : index
    %c0_4 = arith.constant 0 : index
    %5 = vector.load %arg3[%c0_3, %c0_4] : memref<1x128xf32, #tpu.memory_space<vmem>>, vector<1x128xf32>
    %6 = vector.broadcast %5 : vector<1x128xf32> to vector<8x128xf32>
    %7 = arith.addf %4, %6 : vector<8x128xf32>
    %cst = arith.constant 0.000000e+00 : f32
    %8 = vector.broadcast %cst : f32 to vector<8x128xf32>
    %9 = arith.maximumf %7, %8 : vector<8x128xf32>
    %10 = arith.truncf %9 : vector<8x128xf32> to vector<8x128xbf16>
    %c0_5 = arith.constant 0 : index
    %c0_6 = arith.constant 0 : index
    %11 = vector.load %arg4[%c0_5, %c0_6] : memref<8x128xbf16, #tpu.memory_space<vmem>>, vector<8x128xbf16>
    tpu.vector_store %arg4[%c0_5, %c0_6], %10 {strides = array<i32>} : memref<8x128xbf16, #tpu.memory_space<vmem>>, vector<8x128xbf16>,
    return
  }
  func.func @transform_0(%arg0: i32) -> (i32, i32) {
    %c0_i32 = arith.constant 0 : i32
    %c0_i32_0 = arith.constant 0 : i32
    return %arg0, %c0_i32 : i32, i32
  }
  func.func @transform_1(%arg0: i32) -> (i32, i32) {
    %c0_i32 = arith.constant 0 : i32
    %c0_i32_0 = arith.constant 0 : i32
    %c0_i32_1 = arith.constant 0 : i32
    return %c0_i32, %c0_i32_0 : i32, i32
  }
  func.func @transform_2(%arg0: i32) -> (i32, i32) {
    %c0_i32 = arith.constant 0 : i32
    %c0_i32_0 = arith.constant 0 : i32
    %c0_i32_1 = arith.constant 0 : i32
    return %c0_i32, %c0_i32_0 : i32, i32
  }
  func.func @transform_3(%arg0: i32) -> (i32, i32) {
    %c0_i32 = arith.constant 0 : i32
    %c0_i32_0 = arith.constant 0 : i32
    return %arg0, %c0_i32 : i32, i32
  }
}

module attributes {stable_mosaic.version = 11 : i64} {
  func.func @_conv_gemm_stats_kernel(%arg0: i32, %arg1: memref<8x1152xbf16, #tpu.memory_space<vmem>>, %arg2: memref<1152x128xbf16, #tpu.memory_space<vmem>>, %arg3: memref<8x128xbf16, #tpu.memory_space<vmem>>, %arg4: memref<1x2x128xf32, #tpu.memory_space<vmem>>) attributes {dimension_semantics = [#tpu.dimension_semantics<parallel>], iteration_bounds = array<i64: 1>, scalar_prefetch = 0 : i64, scratch_operands = 0 : i64, tpu.core_type = #tpu.core_type<tc>, window_params = [{transform_indices = @transform_0, window_bounds = array<i64: 8, 1152>}, {pipeline_mode = #tpu.pipeline_mode<synchronous>, transform_indices = @transform_1, window_bounds = array<i64: 1152, 128>}, {transform_indices = @transform_2, window_bounds = array<i64: 8, 128>}, {transform_indices = @transform_3, window_bounds = array<i64: 1, 2, 128>}]} {
    %c0 = arith.constant 0 : index
    %c0_0 = arith.constant 0 : index
    %0 = vector.load %arg1[%c0, %c0_0] : memref<8x1152xbf16, #tpu.memory_space<vmem>>, vector<8x1152xbf16>
    %c0_1 = arith.constant 0 : index
    %c0_2 = arith.constant 0 : index
    %1 = vector.load %arg2[%c0_1, %c0_2] : memref<1152x128xbf16, #tpu.memory_space<vmem>>, vector<1152x128xbf16>
    %cst = arith.constant dense<0.000000e+00> : vector<8x128xf32>
    %2 = tpu.matmul %0, %1, %cst {dimension_numbers = #tpu.dot_dimension_numbers<[1], [0], [0], [1], [0, 0, 1, 1], [], []>} : vector<8x1152xbf16>, vector<1152x128xbf16>, vector<8x128xf32> -> vector<8x128xf32>
    %3 = arith.truncf %2 : vector<8x128xf32> to vector<8x128xbf16>
    %c0_3 = arith.constant 0 : index
    %c0_4 = arith.constant 0 : index
    %4 = vector.load %arg3[%c0_3, %c0_4] : memref<8x128xbf16, #tpu.memory_space<vmem>>, vector<8x128xbf16>
    tpu.vector_store %arg3[%c0_3, %c0_4], %3 {strides = array<i32>} : memref<8x128xbf16, #tpu.memory_space<vmem>>, vector<8x128xbf16>,
    %cst_5 = arith.constant dense<0.000000e+00> : vector<128xf32>
    %5 = vector.multi_reduction <add>, %2, %cst_5 [0] : vector<8x128xf32> to vector<128xf32>
    %6 = vector.shape_cast %5 : vector<128xf32> to vector<1x128xf32>
    %7 = arith.mulf %2, %2 : vector<8x128xf32>
    %cst_6 = arith.constant dense<0.000000e+00> : vector<128xf32>
    %8 = vector.multi_reduction <add>, %7, %cst_6 [0] : vector<8x128xf32> to vector<128xf32>
    %9 = vector.shape_cast %8 : vector<128xf32> to vector<1x128xf32>
    %10 = tpu.concatenate %6, %9 in 0 : vector<1x128xf32>, vector<1x128xf32> -> vector<2x128xf32>
    %11 = vector.shape_cast %10 : vector<2x128xf32> to vector<1x2x128xf32>
    %c0_7 = arith.constant 0 : index
    %c0_8 = arith.constant 0 : index
    %c0_9 = arith.constant 0 : index
    %12 = vector.load %arg4[%c0_7, %c0_8, %c0_9] : memref<1x2x128xf32, #tpu.memory_space<vmem>>, vector<1x2x128xf32>
    tpu.vector_store %arg4[%c0_7, %c0_8, %c0_9], %11 {strides = array<i32>} : memref<1x2x128xf32, #tpu.memory_space<vmem>>, vector<1x2x128xf32>,
    return
  }
  func.func @transform_0(%arg0: i32) -> (i32, i32) {
    %c0_i32 = arith.constant 0 : i32
    %c0_i32_0 = arith.constant 0 : i32
    return %arg0, %c0_i32 : i32, i32
  }
  func.func @transform_1(%arg0: i32) -> (i32, i32) {
    %c0_i32 = arith.constant 0 : i32
    %c0_i32_0 = arith.constant 0 : i32
    %c0_i32_1 = arith.constant 0 : i32
    return %c0_i32, %c0_i32_0 : i32, i32
  }
  func.func @transform_2(%arg0: i32) -> (i32, i32) {
    %c0_i32 = arith.constant 0 : i32
    %c0_i32_0 = arith.constant 0 : i32
    return %arg0, %c0_i32 : i32, i32
  }
  func.func @transform_3(%arg0: i32) -> (i32, i32, i32) {
    %c0_i32 = arith.constant 0 : i32
    %c0_i32_0 = arith.constant 0 : i32
    %c0_i32_1 = arith.constant 0 : i32
    return %arg0, %c0_i32, %c0_i32_0 : i32, i32, i32
  }
}

module attributes {stable_mosaic.version = 11 : i64} {
  func.func @_matmul_bias_kernel(%arg0: i32, %arg1: memref<8x128xbf16, #tpu.memory_space<vmem>>, %arg2: memref<128x384xbf16, #tpu.memory_space<vmem>>, %arg3: memref<1x384xf32, #tpu.memory_space<vmem>>, %arg4: memref<8x384xf32, #tpu.memory_space<vmem>>) attributes {dimension_semantics = [#tpu.dimension_semantics<parallel>], iteration_bounds = array<i64: 1>, scalar_prefetch = 0 : i64, scratch_operands = 0 : i64, tpu.core_type = #tpu.core_type<tc>, window_params = [{transform_indices = @transform_0, window_bounds = array<i64: 8, 128>}, {pipeline_mode = #tpu.pipeline_mode<synchronous>, transform_indices = @transform_1, window_bounds = array<i64: 128, 384>}, {pipeline_mode = #tpu.pipeline_mode<synchronous>, transform_indices = @transform_2, window_bounds = array<i64: 1, 384>}, {transform_indices = @transform_3, window_bounds = array<i64: 8, 384>}]} {
    %c0 = arith.constant 0 : index
    %c0_0 = arith.constant 0 : index
    %0 = vector.load %arg1[%c0, %c0_0] : memref<8x128xbf16, #tpu.memory_space<vmem>>, vector<8x128xbf16>
    %c0_1 = arith.constant 0 : index
    %c0_2 = arith.constant 0 : index
    %1 = vector.load %arg2[%c0_1, %c0_2] : memref<128x384xbf16, #tpu.memory_space<vmem>>, vector<128x384xbf16>
    %cst = arith.constant dense<0.000000e+00> : vector<8x384xf32>
    %2 = tpu.matmul %0, %1, %cst {dimension_numbers = #tpu.dot_dimension_numbers<[1], [0], [0], [1], [0, 0, 1, 1], [], []>} : vector<8x128xbf16>, vector<128x384xbf16>, vector<8x384xf32> -> vector<8x384xf32>
    %c0_3 = arith.constant 0 : index
    %c0_4 = arith.constant 0 : index
    %3 = vector.load %arg3[%c0_3, %c0_4] : memref<1x384xf32, #tpu.memory_space<vmem>>, vector<1x384xf32>
    %4 = vector.broadcast %3 : vector<1x384xf32> to vector<8x384xf32>
    %5 = arith.addf %2, %4 : vector<8x384xf32>
    %c0_5 = arith.constant 0 : index
    %c0_6 = arith.constant 0 : index
    %6 = vector.load %arg4[%c0_5, %c0_6] : memref<8x384xf32, #tpu.memory_space<vmem>>, vector<8x384xf32>
    tpu.vector_store %arg4[%c0_5, %c0_6], %5 {strides = array<i32>} : memref<8x384xf32, #tpu.memory_space<vmem>>, vector<8x384xf32>,
    return
  }
  func.func @transform_0(%arg0: i32) -> (i32, i32) {
    %c0_i32 = arith.constant 0 : i32
    %c0_i32_0 = arith.constant 0 : i32
    return %arg0, %c0_i32 : i32, i32
  }
  func.func @transform_1(%arg0: i32) -> (i32, i32) {
    %c0_i32 = arith.constant 0 : i32
    %c0_i32_0 = arith.constant 0 : i32
    %c0_i32_1 = arith.constant 0 : i32
    return %c0_i32, %c0_i32_0 : i32, i32
  }
  func.func @transform_2(%arg0: i32) -> (i32, i32) {
    %c0_i32 = arith.constant 0 : i32
    %c0_i32_0 = arith.constant 0 : i32
    %c0_i32_1 = arith.constant 0 : i32
    return %c0_i32, %c0_i32_0 : i32, i32
  }
  func.func @transform_3(%arg0: i32) -> (i32, i32) {
    %c0_i32 = arith.constant 0 : i32
    %c0_i32_0 = arith.constant 0 : i32
    return %arg0, %c0_i32 : i32, i32
  }
}

module attributes {stable_mosaic.version = 11 : i64} {
  func.func @_gru_seq_kernel(%arg0: memref<2x2x384xf32, #tpu.memory_space<vmem>>, %arg1: memref<128x384xbf16, #tpu.memory_space<vmem>>, %arg2: memref<1x384xf32, #tpu.memory_space<vmem>>, %arg3: memref<2x128xf32, #tpu.memory_space<vmem>>) attributes {dimension_semantics = [], scalar_prefetch = 0 : i64, scratch_operands = 0 : i64, tpu.core_type = #tpu.core_type<tc>} {
    %c0 = arith.constant 0 : index
    %c0_0 = arith.constant 0 : index
    %0 = vector.load %arg1[%c0, %c0_0] : memref<128x384xbf16, #tpu.memory_space<vmem>>, vector<128x384xbf16>
    %c0_1 = arith.constant 0 : index
    %c0_2 = arith.constant 0 : index
    %1 = vector.load %arg2[%c0_1, %c0_2] : memref<1x384xf32, #tpu.memory_space<vmem>>, vector<1x384xf32>
    %cst = arith.constant 0.000000e+00 : f32
    %2 = vector.broadcast %cst : f32 to vector<2x128xf32>
    %c0_i32 = arith.constant 0 : i32
    %3 = arith.index_cast %c0_i32 : i32 to index
    %c0_3 = arith.constant 0 : index
    %c0_4 = arith.constant 0 : index
    %4 = vector.load %arg0[%3, %c0_3, %c0_4] : memref<2x2x384xf32, #tpu.memory_space<vmem>>, vector<1x2x384xf32>
    %5 = vector.shape_cast %4 : vector<1x2x384xf32> to vector<2x384xf32>
    %6 = arith.truncf %2 : vector<2x128xf32> to vector<2x128xbf16>
    %cst_5 = arith.constant dense<0.000000e+00> : vector<2x384xf32>
    %7 = tpu.matmul %6, %0, %cst_5 {dimension_numbers = #tpu.dot_dimension_numbers<[1], [0], [0], [1], [0, 0, 1, 1], [], []>} : vector<2x128xbf16>, vector<128x384xbf16>, vector<2x384xf32> -> vector<2x384xf32>
    %8 = vector.broadcast %1 : vector<1x384xf32> to vector<2x384xf32>
    %9 = arith.addf %7, %8 : vector<2x384xf32>
    %10 = vector.extract_strided_slice %5 {offsets = [0, 0], sizes = [2, 128], strides = [1, 1]} : vector<2x384xf32> to vector<2x128xf32>
    %11 = vector.extract_strided_slice %9 {offsets = [0, 0], sizes = [2, 128], strides = [1, 1]} : vector<2x384xf32> to vector<2x128xf32>
    %12 = arith.addf %10, %11 : vector<2x128xf32>
    %13 = arith.negf %12 : vector<2x128xf32>
    %14 = math.exp %13 : vector<2x128xf32>
    %cst_6 = arith.constant 1.000000e+00 : f32
    %15 = vector.broadcast %cst_6 : f32 to vector<2x128xf32>
    %16 = arith.addf %15, %14 : vector<2x128xf32>
    %17 = arith.divf %15, %16 : vector<2x128xf32>
    %18 = vector.extract_strided_slice %5 {offsets = [0, 128], sizes = [2, 128], strides = [1, 1]} : vector<2x384xf32> to vector<2x128xf32>
    %19 = vector.extract_strided_slice %9 {offsets = [0, 128], sizes = [2, 128], strides = [1, 1]} : vector<2x384xf32> to vector<2x128xf32>
    %20 = arith.addf %18, %19 : vector<2x128xf32>
    %21 = arith.negf %20 : vector<2x128xf32>
    %22 = math.exp %21 : vector<2x128xf32>
    %cst_7 = arith.constant 1.000000e+00 : f32
    %23 = vector.broadcast %cst_7 : f32 to vector<2x128xf32>
    %24 = arith.addf %23, %22 : vector<2x128xf32>
    %25 = arith.divf %23, %24 : vector<2x128xf32>
    %26 = vector.extract_strided_slice %5 {offsets = [0, 256], sizes = [2, 128], strides = [1, 1]} : vector<2x384xf32> to vector<2x128xf32>
    %27 = vector.extract_strided_slice %9 {offsets = [0, 256], sizes = [2, 128], strides = [1, 1]} : vector<2x384xf32> to vector<2x128xf32>
    %28 = arith.mulf %17, %27 : vector<2x128xf32>
    %29 = arith.addf %26, %28 : vector<2x128xf32>
    %30 = math.tanh %29 : vector<2x128xf32>
    %cst_8 = arith.constant 1.000000e+00 : f32
    %31 = vector.broadcast %cst_8 : f32 to vector<2x128xf32>
    %32 = arith.subf %31, %25 : vector<2x128xf32>
    %33 = arith.mulf %32, %30 : vector<2x128xf32>
    %34 = arith.mulf %25, %2 : vector<2x128xf32>
    %35 = arith.addf %33, %34 : vector<2x128xf32>
    %c1_i32 = arith.constant 1 : i32
    %36 = arith.index_cast %c1_i32 : i32 to index
    %c0_9 = arith.constant 0 : index
    %c0_10 = arith.constant 0 : index
    %37 = vector.load %arg0[%36, %c0_9, %c0_10] : memref<2x2x384xf32, #tpu.memory_space<vmem>>, vector<1x2x384xf32>
    %38 = vector.shape_cast %37 : vector<1x2x384xf32> to vector<2x384xf32>
    %39 = arith.truncf %35 : vector<2x128xf32> to vector<2x128xbf16>
    %cst_11 = arith.constant dense<0.000000e+00> : vector<2x384xf32>
    %40 = tpu.matmul %39, %0, %cst_11 {dimension_numbers = #tpu.dot_dimension_numbers<[1], [0], [0], [1], [0, 0, 1, 1], [], []>} : vector<2x128xbf16>, vector<128x384xbf16>, vector<2x384xf32> -> vector<2x384xf32>
    %41 = vector.broadcast %1 : vector<1x384xf32> to vector<2x384xf32>
    %42 = arith.addf %40, %41 : vector<2x384xf32>
    %43 = vector.extract_strided_slice %38 {offsets = [0, 0], sizes = [2, 128], strides = [1, 1]} : vector<2x384xf32> to vector<2x128xf32>
    %44 = vector.extract_strided_slice %42 {offsets = [0, 0], sizes = [2, 128], strides = [1, 1]} : vector<2x384xf32> to vector<2x128xf32>
    %45 = arith.addf %43, %44 : vector<2x128xf32>
    %46 = arith.negf %45 : vector<2x128xf32>
    %47 = math.exp %46 : vector<2x128xf32>
    %cst_12 = arith.constant 1.000000e+00 : f32
    %48 = vector.broadcast %cst_12 : f32 to vector<2x128xf32>
    %49 = arith.addf %48, %47 : vector<2x128xf32>
    %50 = arith.divf %48, %49 : vector<2x128xf32>
    %51 = vector.extract_strided_slice %38 {offsets = [0, 128], sizes = [2, 128], strides = [1, 1]} : vector<2x384xf32> to vector<2x128xf32>
    %52 = vector.extract_strided_slice %42 {offsets = [0, 128], sizes = [2, 128], strides = [1, 1]} : vector<2x384xf32> to vector<2x128xf32>
    %53 = arith.addf %51, %52 : vector<2x128xf32>
    %54 = arith.negf %53 : vector<2x128xf32>
    %55 = math.exp %54 : vector<2x128xf32>
    %cst_13 = arith.constant 1.000000e+00 : f32
    %56 = vector.broadcast %cst_13 : f32 to vector<2x128xf32>
    %57 = arith.addf %56, %55 : vector<2x128xf32>
    %58 = arith.divf %56, %57 : vector<2x128xf32>
    %59 = vector.extract_strided_slice %38 {offsets = [0, 256], sizes = [2, 128], strides = [1, 1]} : vector<2x384xf32> to vector<2x128xf32>
    %60 = vector.extract_strided_slice %42 {offsets = [0, 256], sizes = [2, 128], strides = [1, 1]} : vector<2x384xf32> to vector<2x128xf32>
    %61 = arith.mulf %50, %60 : vector<2x128xf32>
    %62 = arith.addf %59, %61 : vector<2x128xf32>
    %63 = math.tanh %62 : vector<2x128xf32>
    %cst_14 = arith.constant 1.000000e+00 : f32
    %64 = vector.broadcast %cst_14 : f32 to vector<2x128xf32>
    %65 = arith.subf %64, %58 : vector<2x128xf32>
    %66 = arith.mulf %65, %63 : vector<2x128xf32>
    %67 = arith.mulf %58, %35 : vector<2x128xf32>
    %68 = arith.addf %66, %67 : vector<2x128xf32>
    %c2_i32 = arith.constant 2 : i32
    %c0_15 = arith.constant 0 : index
    %c0_16 = arith.constant 0 : index
    %69 = vector.load %arg3[%c0_15, %c0_16] : memref<2x128xf32, #tpu.memory_space<vmem>>, vector<2x128xf32>
    tpu.vector_store %arg3[%c0_15, %c0_16], %68 {strides = array<i32>} : memref<2x128xf32, #tpu.memory_space<vmem>>, vector<2x128xf32>,
    return
  }
}

</mosaic_0001>

<llo_original>
// kernel: _lambda_.15
$region0: #{_lambda_.15}
  #allocation0 [shape = 'u32[]', space=smem, size = 0x4, offset = 0x4, fixed_abs, tag = 'smem constant byte address 0x4 - core index']
  #allocation1 [shape = 'u32[72,128]{1,0:T(1,128)}', space=vmem, size = 0x9000, scoped, tag = 'internal scratch']
  %s0 = inlined_call_operand.vmem [shape: bf16[1024,128], index: 0, kind: input, shape index: {}]
  %s1 = inlined_call_operand.vmem [shape: f32[1,128], index: 1, kind: input, shape index: {}]
  %s2 = inlined_call_operand.vmem [shape: f32[1,128], index: 2, kind: input, shape index: {}]
  %s3 = inlined_call_operand.vmem [shape: bf16[1024,128], index: 3, kind: output, shape index: {}]
  %s4 = sld [smem:[#allocation0]]
  $region22: #{_lambda_.15} parent=0
    _
  %s6 = ssub.s32 1, %s4
  %s7 = scalar_select 0, %s6, %s4
  // Predicated region
  $region2: #{_lambda_.15} parent=0 // pred_check
    _
  $region3: #{_lambda_.15} parent=0 // pred_check_branch
    %9 = sbr.rel (0) target = $region5
  $region4: #{_lambda_.15} parent=0 // pred_region
    _
  $region5: #{_lambda_.15} parent=0 // pred_fallthru
    _
  // Predicated region
  $region6: #{_lambda_.15} parent=0 // pred_check
    _
  $region7: #{_lambda_.15} parent=0 // pred_check_branch
    %11 = sbr.rel (0) target = $region9
  $region8: #{_lambda_.15} parent=0 // pred_region
    _
  $region9: #{_lambda_.15} parent=0 // pred_fallthru
    _
  // Predicated region
  $region10: #{_lambda_.15} parent=0 // pred_check
    _
  $region11: #{_lambda_.15} parent=0 // pred_check_branch
    %13 = sbr.rel (0) target = $region13
  $region12: #{_lambda_.15} parent=0 // pred_region
    _
  $region13: #{_lambda_.15} parent=0 // pred_fallthru
    _
  %v14 = vld [vmem:[%s0] sm:$0xf]
  %v15 = vld [vmem:[%s0 + $0x4] sm:$0xf]
  %v16 = vld [vmem:[%s0 + $0x8] sm:$0xf]
  %v17 = vld [vmem:[%s0 + $0xc] sm:$0xf]
  %v18 = vld [vmem:[%s0 + $0x10] sm:$0xf]
  %v19 = vld [vmem:[%s0 + $0x14] sm:$0xf]
  %v20 = vld [vmem:[%s0 + $0x18] sm:$0xf]
  %v21 = vld [vmem:[%s0 + $0x1c] sm:$0xf]
  %v22 = vld [vmem:[%s0 + $0x20] sm:$0xf]
  %v23 = vld [vmem:[%s0 + $0x24] sm:$0xf]
  %v24 = vld [vmem:[%s0 + $0x28] sm:$0xf]
  %v25 = vld [vmem:[%s0 + $0x2c] sm:$0xf]
  %v26 = vld [vmem:[%s0 + $0x30] sm:$0xf]
  %v27 = vld [vmem:[%s0 + $0x34] sm:$0xf]
  %v28 = vld [vmem:[%s0 + $0x38] sm:$0xf]
  %v29 = vld [vmem:[%s0 + $0x3c] sm:$0xf]
  %v30 = vld [vmem:[%s0 + $0x40] sm:$0xf]
  %v31 = vld [vmem:[%s0 + $0x44] sm:$0xf]
  %v32 = vld [vmem:[%s0 + $0x48] sm:$0xf]
  %v33 = vld [vmem:[%s0 + $0x4c] sm:$0xf]
  %v34 = vld [vmem:[%s0 + $0x50] sm:$0xf]
  %v35 = vld [vmem:[%s0 + $0x54] sm:$0xf]
  %v36 = vld [vmem:[%s0 + $0x58] sm:$0xf]
  %v37 = vld [vmem:[%s0 + $0x5c] sm:$0xf]
  %v38 = vld [vmem:[%s0 + $0x60] sm:$0xf]
  %v39 = vld [vmem:[%s0 + $0x64] sm:$0xf]
  %v40 = vld [vmem:[%s0 + $0x68] sm:$0xf]
  %v41 = vld [vmem:[%s0 + $0x6c] sm:$0xf]
  %v42 = vld [vmem:[%s0 + $0x70] sm:$0xf]
  %v43 = vld [vmem:[%s0 + $0x74] sm:$0xf]
  %v44 = vld [vmem:[%s0 + $0x78] sm:$0xf]
  %v45 = vld [vmem:[%s0 + $0x7c] sm:$0xf]
  %v46 = vld [vmem:[%s0 + $0x80] sm:$0xf]
  %v47 = vld [vmem:[%s0 + $0x84] sm:$0xf]
  %v48 = vld [vmem:[%s0 + $0x88] sm:$0xf]
  %v49 = vld [vmem:[%s0 + $0x8c] sm:$0xf]
  %v50 = vld [vmem:[%s0 + $0x90] sm:$0xf]
  %v51 = vld [vmem:[%s0 + $0x94] sm:$0xf]
  %v52 = vld [vmem:[%s0 + $0x98] sm:$0xf]
  %v53 = vld [vmem:[%s0 + $0x9c] sm:$0xf]
  %v54 = vld [vmem:[%s0 + $0xa0] sm:$0xf]
  %v55 = vld [vmem:[%s0 + $0xa4] sm:$0xf]
  %v56 = vld [vmem:[%s0 + $0xa8] sm:$0xf]
  %v57 = vld [vmem:[%s0 + $0xac] sm:$0xf]
  %v58 = vld [vmem:[%s0 + $0xb0] sm:$0xf]
  %v59 = vld [vmem:[%s0 + $0xb4] sm:$0xf]
  %v60 = vld [vmem:[%s0 + $0xb8] sm:$0xf]
  %v61 = vld [vmem:[%s0 + $0xbc] sm:$0xf]
  %v62 = vld [vmem:[%s0 + $0xc0] sm:$0xf]
  %v63 = vld [vmem:[%s0 + $0xc4] sm:$0xf]
  %v64 = vld [vmem:[%s0 + $0xc8] sm:$0xf]
  %v65 = vld [vmem:[%s0 + $0xcc] sm:$0xf]
  %v66 = vld [vmem:[%s0 + $0xd0] sm:$0xf]
  %v67 = vld [vmem:[%s0 + $0xd4] sm:$0xf]
  %v68 = vld [vmem:[%s0 + $0xd8] sm:$0xf]
  %v69 = vld [vmem:[%s0 + $0xdc] sm:$0xf]
  %v70 = vld [vmem:[%s0 + $0xe0] sm:$0xf]
  %v71 = vld [vmem:[%s0 + $0xe4] sm:$0xf]
  %v72 = vld [vmem:[%s0 + $0xe8] sm:$0xf]
  %v73 = vld [vmem:[%s0 + $0xec] sm:$0xf]
  %v74 = vld [vmem:[%s0 + $0xf0] sm:$0xf]
  %v75 = vld [vmem:[%s0 + $0xf4] sm:$0xf]
  %v76 = vld [vmem:[%s0 + $0xf8] sm:$0xf]
  %v77 = vld [vmem:[%s0 + $0xfc] sm:$0xf]
  %v78 = vld [vmem:[%s0 + $0x100] sm:$0xf]
  %v79 = vld [vmem:[%s0 + $0x104] sm:$0xf]
  %v80 = vld [vmem:[%s0 + $0x108] sm:$0xf]
  %v81 = vld [vmem:[%s0 + $0x10c] sm:$0xf]
  %v82 = vld [vmem:[%s0 + $0x110] sm:$0xf]
  %v83 = vld [vmem:[%s0 + $0x114] sm:$0xf]
  %v84 = vld [vmem:[%s0 + $0x118] sm:$0xf]
  %v85 = vld [vmem:[%s0 + $0x11c] sm:$0xf]
  %v86 = vld [vmem:[%s0 + $0x120] sm:$0xf]
  %v87 = vld [vmem:[%s0 + $0x124] sm:$0xf]
  %v88 = vld [vmem:[%s0 + $0x128] sm:$0xf]
  %v89 = vld [vmem:[%s0 + $0x12c] sm:$0xf]
  %v90 = vld [vmem:[%s0 + $0x130] sm:$0xf]
  %v91 = vld [vmem:[%s0 + $0x134] sm:$0xf]
  %v92 = vld [vmem:[%s0 + $0x138] sm:$0xf]
  %v93 = vld [vmem:[%s0 + $0x13c] sm:$0xf]
  %v94 = vld [vmem:[%s0 + $0x140] sm:$0xf]
  %v95 = vld [vmem:[%s0 + $0x144] sm:$0xf]
  %v96 = vld [vmem:[%s0 + $0x148] sm:$0xf]
  %v97 = vld [vmem:[%s0 + $0x14c] sm:$0xf]
  %v98 = vld [vmem:[%s0 + $0x150] sm:$0xf]
  %v99 = vld [vmem:[%s0 + $0x154] sm:$0xf]
  %v100 = vld [vmem:[%s0 + $0x158] sm:$0xf]
  %v101 = vld [vmem:[%s0 + $0x15c] sm:$0xf]
  %v102 = vld [vmem:[%s0 + $0x160] sm:$0xf]
  %v103 = vld [vmem:[%s0 + $0x164] sm:$0xf]
  %v104 = vld [vmem:[%s0 + $0x168] sm:$0xf]
  %v105 = vld [vmem:[%s0 + $0x16c] sm:$0xf]
  %v106 = vld [vmem:[%s0 + $0x170] sm:$0xf]
  %v107 = vld [vmem:[%s0 + $0x174] sm:$0xf]
  %v108 = vld [vmem:[%s0 + $0x178] sm:$0xf]
  %v109 = vld [vmem:[%s0 + $0x17c] sm:$0xf]
  %v110 = vld [vmem:[%s0 + $0x180] sm:$0xf]
  %v111 = vld [vmem:[%s0 + $0x184] sm:$0xf]
  %v112 = vld [vmem:[%s0 + $0x188] sm:$0xf]
  %v113 = vld [vmem:[%s0 + $0x18c] sm:$0xf]
  %v114 = vld [vmem:[%s0 + $0x190] sm:$0xf]
  %v115 = vld [vmem:[%s0 + $0x194] sm:$0xf]
  %v116 = vld [vmem:[%s0 + $0x198] sm:$0xf]
  %v117 = vld [vmem:[%s0 + $0x19c] sm:$0xf]
  %v118 = vld [vmem:[%s0 + $0x1a0] sm:$0xf]
  %v119 = vld [vmem:[%s0 + $0x1a4] sm:$0xf]
  %v120 = vld [vmem:[%s0 + $0x1a8] sm:$0xf]
  %v121 = vld [vmem:[%s0 + $0x1ac] sm:$0xf]
  %v122 = vld [vmem:[%s0 + $0x1b0] sm:$0xf]
  %v123 = vld [vmem:[%s0 + $0x1b4] sm:$0xf]
  %v124 = vld [vmem:[%s0 + $0x1b8] sm:$0xf]
  %v125 = vld [vmem:[%s0 + $0x1bc] sm:$0xf]
  %v126 = vld [vmem:[%s0 + $0x1c0] sm:$0xf]
  %v127 = vld [vmem:[%s0 + $0x1c4] sm:$0xf]
  %v128 = vld [vmem:[%s0 + $0x1c8] sm:$0xf]
  %v129 = vld [vmem:[%s0 + $0x1cc] sm:$0xf]
  %v130 = vld [vmem:[%s0 + $0x1d0] sm:$0xf]
  %v131 = vld [vmem:[%s0 + $0x1d4] sm:$0xf]
  %v132 = vld [vmem:[%s0 + $0x1d8] sm:$0xf]
  %v133 = vld [vmem:[%s0 + $0x1dc] sm:$0xf]
  %v134 = vld [vmem:[%s0 + $0x1e0] sm:$0xf]
  %v135 = vld [vmem:[%s0 + $0x1e4] sm:$0xf]
  %v136 = vld [vmem:[%s0 + $0x1e8] sm:$0xf]
  %v137 = vld [vmem:[%s0 + $0x1ec] sm:$0xf]
  %v138 = vld [vmem:[%s0 + $0x1f0] sm:$0xf]
  %v139 = vld [vmem:[%s0 + $0x1f4] sm:$0xf]
  %v140 = vld [vmem:[%s0 + $0x1f8] sm:$0xf]
  %v141 = vld [vmem:[%s0 + $0x1fc] sm:$0xf]
  %v142 = vunpack.c.l.bf16 %v14
  %v143 = vunpack.c.l.bf16 %v15
  %v144 = vunpack.c.l.bf16 %v16
  %v145 = vunpack.c.l.bf16 %v17
  %v146 = vunpack.c.l.bf16 %v18
  %v147 = vunpack.c.l.bf16 %v19
  %v148 = vunpack.c.l.bf16 %v20
  %v149 = vunpack.c.l.bf16 %v21
  %v150 = vunpack.c.l.bf16 %v22
  %v151 = vunpack.c.l.bf16 %v23
  %v152 = vunpack.c.l.bf16 %v24
  %v153 = vunpack.c.l.bf16 %v25
  %v154 = vunpack.c.l.bf16 %v26
  %v155 = vunpack.c.l.bf16 %v27
  %v156 = vunpack.c.l.bf16 %v28
  %v157 = vunpack.c.l.bf16 %v29
  %v158 = vunpack.c.l.bf16 %v30
  %v159 = vunpack.c.l.bf16 %v31
  %v160 = vunpack.c.l.bf16 %v32
  %v161 = vunpack.c.l.bf16 %v33
  %v162 = vunpack.c.l.bf16 %v34
  %v163 = vunpack.c.l.bf16 %v35
  %v164 = vunpack.c.l.bf16 %v36
  %v165 = vunpack.c.l.bf16 %v37
  %v166 = vunpack.c.l.bf16 %v38
  %v167 = vunpack.c.l.bf16 %v39
  %v168 = vunpack.c.l.bf16 %v40
  %v169 = vunpack.c.l.bf16 %v41
  %v170 = vunpack.c.l.bf16 %v42
  %v171 = vunpack.c.l.bf16 %v43
  %v172 = vunpack.c.l.bf16 %v44
  %v173 = vunpack.c.l.bf16 %v45
  %v174 = vunpack.c.l.bf16 %v46
  %v175 = vunpack.c.l.bf16 %v47
  %v176 = vunpack.c.l.bf16 %v48
  %v177 = vunpack.c.l.bf16 %v49
  %v178 = vunpack.c.l.bf16 %v50
  %v179 = vunpack.c.l.bf16 %v51
  %v180 = vunpack.c.l.bf16 %v52
  %v181 = vunpack.c.l.bf16 %v53
  %v182 = vunpack.c.l.bf16 %v54
  %v183 = vunpack.c.l.bf16 %v55
  %v184 = vunpack.c.l.bf16 %v56
  %v185 = vunpack.c.l.bf16 %v57
  %v186 = vunpack.c.l.bf16 %v58
  %v187 = vunpack.c.l.bf16 %v59
  %v188 = vunpack.c.l.bf16 %v60
  %v189 = vunpack.c.l.bf16 %v61
  %v190 = vunpack.c.l.bf16 %v62
  %v191 = vunpack.c.l.bf16 %v63
  %v192 = vunpack.c.l.bf16 %v64
  %v193 = vunpack.c.l.bf16 %v65
  %v194 = vunpack.c.l.bf16 %v66
  %v195 = vunpack.c.l.bf16 %v67
  %v196 = vunpack.c.l.bf16 %v68
  %v197 = vunpack.c.l.bf16 %v69
  %v198 = vunpack.c.l.bf16 %v70
  %v199 = vunpack.c.l.bf16 %v71
  %v200 = vunpack.c.l.bf16 %v72
  %v201 = vunpack.c.l.bf16 %v73
  %v202 = vunpack.c.l.bf16 %v74
  %v203 = vunpack.c.l.bf16 %v75
  %v204 = vunpack.c.l.bf16 %v76
  %v205 = vunpack.c.l.bf16 %v77
  %v206 = vunpack.c.l.bf16 %v78
  %v207 = vunpack.c.l.bf16 %v79
  %v208 = vunpack.c.l.bf16 %v80
  %v209 = vunpack.c.l.bf16 %v81
  %v210 = vunpack.c.l.bf16 %v82
  %v211 = vunpack.c.l.bf16 %v83
  %v212 = vunpack.c.l.bf16 %v84
  %v213 = vunpack.c.l.bf16 %v85
  %v214 = vunpack.c.l.bf16 %v86
  %v215 = vunpack.c.l.bf16 %v87
  %v216 = vunpack.c.l.bf16 %v88
  %v217 = vunpack.c.l.bf16 %v89
  %v218 = vunpack.c.l.bf16 %v90
  %v219 = vunpack.c.l.bf16 %v91
  %v220 = vunpack.c.l.bf16 %v92
  %v221 = vunpack.c.l.bf16 %v93
  %v222 = vunpack.c.l.bf16 %v94
  %v223 = vunpack.c.l.bf16 %v95
  %v224 = vunpack.c.l.bf16 %v96
  %v225 = vunpack.c.l.bf16 %v97
  %v226 = vunpack.c.l.bf16 %v98
  %v227 = vunpack.c.l.bf16 %v99
  %v228 = vunpack.c.l.bf16 %v100
  %v229 = vunpack.c.l.bf16 %v101
  %v230 = vunpack.c.l.bf16 %v102
  %v231 = vunpack.c.l.bf16 %v103
  %v232 = vunpack.c.l.bf16 %v104
  %v233 = vunpack.c.l.bf16 %v105
  %v234 = vunpack.c.l.bf16 %v106
  %v235 = vunpack.c.l.bf16 %v107
  %v236 = vunpack.c.l.bf16 %v108
  %v237 = vunpack.c.l.bf16 %v109
  %v238 = vunpack.c.l.bf16 %v110
  %v239 = vunpack.c.l.bf16 %v111
  %v240 = vunpack.c.l.bf16 %v112
  %v241 = vunpack.c.l.bf16 %v113
  %v242 = vunpack.c.l.bf16 %v114
  %v243 = vunpack.c.l.bf16 %v115
  %v244 = vunpack.c.l.bf16 %v116
  %v245 = vunpack.c.l.bf16 %v117
  %v246 = vunpack.c.l.bf16 %v118
  %v247 = vunpack.c.l.bf16 %v119
  %v248 = vunpack.c.l.bf16 %v120
  %v249 = vunpack.c.l.bf16 %v121
  %v250 = vunpack.c.l.bf16 %v122
  %v251 = vunpack.c.l.bf16 %v123
  %v252 = vunpack.c.l.bf16 %v124
  %v253 = vunpack.c.l.bf16 %v125
  %v254 = vunpack.c.l.bf16 %v126
  %v255 = vunpack.c.l.bf16 %v127
  %v256 = vunpack.c.l.bf16 %v128
  %v257 = vunpack.c.l.bf16 %v129
  %v258 = vunpack.c.l.bf16 %v130
  %v259 = vunpack.c.l.bf16 %v131
  %v260 = vunpack.c.l.bf16 %v132
  %v261 = vunpack.c.l.bf16 %v133
  %v262 = vunpack.c.l.bf16 %v134
  %v263 = vunpack.c.l.bf16 %v135
  %v264 = vunpack.c.l.bf16 %v136
  %v265 = vunpack.c.l.bf16 %v137
  %v266 = vunpack.c.l.bf16 %v138
  %v267 = vunpack.c.l.bf16 %v139
  %v268 = vunpack.c.l.bf16 %v140
  %v269 = vunpack.c.l.bf16 %v141
  %v270 = vld [vmem:[%s1] sm:$0x1]
  %v272 = vperm.slane %v270, 0
  %v274 = vmul.f32 %v142, %v272
  %v275 = vmul.f32 %v143, %v272
  %v276 = vmul.f32 %v144, %v272
  %v277 = vmul.f32 %v145, %v272
  %v278 = vmul.f32 %v146, %v272
  %v279 = vmul.f32 %v147, %v272
  %v280 = vmul.f32 %v148, %v272
  %v281 = vmul.f32 %v149, %v272
  %v282 = vmul.f32 %v150, %v272
  %v283 = vmul.f32 %v151, %v272
  %v284 = vmul.f32 %v152, %v272
  %v285 = vmul.f32 %v153, %v272
  %v286 = vmul.f32 %v154, %v272
  %v287 = vmul.f32 %v155, %v272
  %v288 = vmul.f32 %v156, %v272
  %v289 = vmul.f32 %v157, %v272
  %v290 = vmul.f32 %v158, %v272
  %v291 = vmul.f32 %v159, %v272
  %v292 = vmul.f32 %v160, %v272
  %v293 = vmul.f32 %v161, %v272
  %v294 = vmul.f32 %v162, %v272
  %v295 = vmul.f32 %v163, %v272
  %v296 = vmul.f32 %v164, %v272
  %v297 = vmul.f32 %v165, %v272
  %v298 = vmul.f32 %v166, %v272
  %v299 = vmul.f32 %v167, %v272
  %v300 = vmul.f32 %v168, %v272
  %v301 = vmul.f32 %v169, %v272
  %v302 = vmul.f32 %v170, %v272
  %v303 = vmul.f32 %v171, %v272
  %v304 = vmul.f32 %v172, %v272
  %v305 = vmul.f32 %v173, %v272
  %v306 = vmul.f32 %v174, %v272
  %v307 = vmul.f32 %v175, %v272
  %v308 = vmul.f32 %v176, %v272
  %v309 = vmul.f32 %v177, %v272
  %v310 = vmul.f32 %v178, %v272
  %v311 = vmul.f32 %v179, %v272
  %v312 = vmul.f32 %v180, %v272
  %v313 = vmul.f32 %v181, %v272
  %v314 = vmul.f32 %v182, %v272
  %v315 = vmul.f32 %v183, %v272
  %v316 = vmul.f32 %v184, %v272
  %v317 = vmul.f32 %v185, %v272
  %v318 = vmul.f32 %v186, %v272
  %v319 = vmul.f32 %v187, %v272
  %v320 = vmul.f32 %v188, %v272
  %v321 = vmul.f32 %v189, %v272
  %v322 = vmul.f32 %v190, %v272
  %v323 = vmul.f32 %v191, %v272
  %v324 = vmul.f32 %v192, %v272
  %v325 = vmul.f32 %v193, %v272
  %v326 = vmul.f32 %v194, %v272
  %v327 = vmul.f32 %v195, %v272
  %v328 = vmul.f32 %v196, %v272
  %v329 = vmul.f32 %v197, %v272
  %v330 = vmul.f32 %v198, %v272
  %v331 = vmul.f32 %v199, %v272
  %v332 = vmul.f32 %v200, %v272
  %v333 = vmul.f32 %v201, %v272
  %v334 = vmul.f32 %v202, %v272
  %v335 = vmul.f32 %v203, %v272
  %v336 = vmul.f32 %v204, %v272
  %v337 = vmul.f32 %v205, %v272
  %v338 = vmul.f32 %v206, %v272
  %v339 = vmul.f32 %v207, %v272
  %v340 = vmul.f32 %v208, %v272
  %v341 = vmul.f32 %v209, %v272
  %v342 = vmul.f32 %v210, %v272
  %v343 = vmul.f32 %v211, %v272
  %v344 = vmul.f32 %v212, %v272
  %v345 = vmul.f32 %v213, %v272
  %v346 = vmul.f32 %v214, %v272
  %v347 = vmul.f32 %v215, %v272
  %v348 = vmul.f32 %v216, %v272
  %v349 = vmul.f32 %v217, %v272
  %v350 = vmul.f32 %v218, %v272
  %v351 = vmul.f32 %v219, %v272
  %v352 = vmul.f32 %v220, %v272
  %v353 = vmul.f32 %v221, %v272
  %v354 = vmul.f32 %v222, %v272
  %v355 = vmul.f32 %v223, %v272
  %v356 = vmul.f32 %v224, %v272
  %v357 = vmul.f32 %v225, %v272
  %v358 = vmul.f32 %v226, %v272
  %v359 = vmul.f32 %v227, %v272
  %v360 = vmul.f32 %v228, %v272
  %v361 = vmul.f32 %v229, %v272
  %v362 = vmul.f32 %v230, %v272
  %v363 = vmul.f32 %v231, %v272
  %v364 = vmul.f32 %v232, %v272
  %v365 = vmul.f32 %v233, %v272
  %v366 = vmul.f32 %v234, %v272
  %v367 = vmul.f32 %v235, %v272
  %v368 = vmul.f32 %v236, %v272
  %v369 = vmul.f32 %v237, %v272
  %v370 = vmul.f32 %v238, %v272
  %v371 = vmul.f32 %v239, %v272
  %v372 = vmul.f32 %v240, %v272
  %v373 = vmul.f32 %v241, %v272
  %v374 = vmul.f32 %v242, %v272
  %v375 = vmul.f32 %v243, %v272
  %v376 = vmul.f32 %v244, %v272
  %v377 = vmul.f32 %v245, %v272
  %v378 = vmul.f32 %v246, %v272
  %v379 = vmul.f32 %v247, %v272
  %v380 = vmul.f32 %v248, %v272
  %v381 = vmul.f32 %v249, %v272
  %v382 = vmul.f32 %v250, %v272
  %v383 = vmul.f32 %v251, %v272
  %v384 = vmul.f32 %v252, %v272
  %v385 = vmul.f32 %v253, %v272
  %v386 = vmul.f32 %v254, %v272
  %v387 = vmul.f32 %v255, %v272
  %v388 = vmul.f32 %v256, %v272
  %v389 = vmul.f32 %v257, %v272
  %v390 = vmul.f32 %v258, %v272
  %v391 = vmul.f32 %v259, %v272
  %v392 = vmul.f32 %v260, %v272
  %v393 = vmul.f32 %v261, %v272
  %v394 = vmul.f32 %v262, %v272
  %v395 = vmul.f32 %v263, %v272
  %v396 = vmul.f32 %v264, %v272
  %v397 = vmul.f32 %v265, %v272
  %v398 = vmul.f32 %v266, %v272
  %v399 = vmul.f32 %v267, %v272
  %v400 = vmul.f32 %v268, %v272
  %v401 = vmul.f32 %v269, %v272
  %v402 = vld [vmem:[%s2] sm:$0x1]
  %v404 = vperm.slane %v402, 0
  %v406 = vadd.f32 %v274, %v404
  %v407 = vadd.f32 %v275, %v404
  %v408 = vadd.f32 %v276, %v404
  %v409 = vadd.f32 %v277, %v404
  %v410 = vadd.f32 %v278, %v404
  %v411 = vadd.f32 %v279, %v404
  %v412 = vadd.f32 %v280, %v404
  %v413 = vadd.f32 %v281, %v404
  %v414 = vadd.f32 %v282, %v404
  %v415 = vadd.f32 %v283, %v404
  %v416 = vadd.f32 %v284, %v404
  %v417 = vadd.f32 %v285, %v404
  %v418 = vadd.f32 %v286, %v404
  %v419 = vadd.f32 %v287, %v404
  %v420 = vadd.f32 %v288, %v404
  %v421 = vadd.f32 %v289, %v404
  %v422 = vadd.f32 %v290, %v404
  %v423 = vadd.f32 %v291, %v404
  %v424 = vadd.f32 %v292, %v404
  %v425 = vadd.f32 %v293, %v404
  %v426 = vadd.f32 %v294, %v404
  %v427 = vadd.f32 %v295, %v404
  %v428 = vadd.f32 %v296, %v404
  %v429 = vadd.f32 %v297, %v404
  %v430 = vadd.f32 %v298, %v404
  %v431 = vadd.f32 %v299, %v404
  %v432 = vadd.f32 %v300, %v404
  %v433 = vadd.f32 %v301, %v404
  %v434 = vadd.f32 %v302, %v404
  %v435 = vadd.f32 %v303, %v404
  %v436 = vadd.f32 %v304, %v404
  %v437 = vadd.f32 %v305, %v404
  %v438 = vadd.f32 %v306, %v404
  %v439 = vadd.f32 %v307, %v404
  %v440 = vadd.f32 %v308, %v404
  %v441 = vadd.f32 %v309, %v404
  %v442 = vadd.f32 %v310, %v404
  %v443 = vadd.f32 %v311, %v404
  %v444 = vadd.f32 %v312, %v404
  %v445 = vadd.f32 %v313, %v404
  %v446 = vadd.f32 %v314, %v404
  %v447 = vadd.f32 %v315, %v404
  %v448 = vadd.f32 %v316, %v404
  %v449 = vadd.f32 %v317, %v404
  %v450 = vadd.f32 %v318, %v404
  %v451 = vadd.f32 %v319, %v404
  %v452 = vadd.f32 %v320, %v404
  %v453 = vadd.f32 %v321, %v404
  %v454 = vadd.f32 %v322, %v404
  %v455 = vadd.f32 %v323, %v404
  %v456 = vadd.f32 %v324, %v404
  %v457 = vadd.f32 %v325, %v404
  %v458 = vadd.f32 %v326, %v404
  %v459 = vadd.f32 %v327, %v404
  %v460 = vadd.f32 %v328, %v404
  %v461 = vadd.f32 %v329, %v404
  %v462 = vadd.f32 %v330, %v404
  %v463 = vadd.f32 %v331, %v404
  %v464 = vadd.f32 %v332, %v404
  %v465 = vadd.f32 %v333, %v404
  %v466 = vadd.f32 %v334, %v404
  %v467 = vadd.f32 %v335, %v404
  %v468 = vadd.f32 %v336, %v404
  %v469 = vadd.f32 %v337, %v404
  %v470 = vadd.f32 %v338, %v404
  %v471 = vadd.f32 %v339, %v404
  %v472 = vadd.f32 %v340, %v404
  %v473 = vadd.f32 %v341, %v404
  %v474 = vadd.f32 %v342, %v404
  %v475 = vadd.f32 %v343, %v404
  %v476 = vadd.f32 %v344, %v404
  %v477 = vadd.f32 %v345, %v404
  %v478 = vadd.f32 %v346, %v404
  %v479 = vadd.f32 %v347, %v404
  %v480 = vadd.f32 %v348, %v404
  %v481 = vadd.f32 %v349, %v404
  %v482 = vadd.f32 %v350, %v404
  %v483 = vadd.f32 %v351, %v404
  %v484 = vadd.f32 %v352, %v404
  %v485 = vadd.f32 %v353, %v404
  %v486 = vadd.f32 %v354, %v404
  %v487 = vadd.f32 %v355, %v404
  %v488 = vadd.f32 %v356, %v404
  %v489 = vadd.f32 %v357, %v404
  %v490 = vadd.f32 %v358, %v404
  %v491 = vadd.f32 %v359, %v404
  %v492 = vadd.f32 %v360, %v404
  %v493 = vadd.f32 %v361, %v404
  %v494 = vadd.f32 %v362, %v404
  %v495 = vadd.f32 %v363, %v404
  %v496 = vadd.f32 %v364, %v404
  %v497 = vadd.f32 %v365, %v404
  %v498 = vadd.f32 %v366, %v404
  %v499 = vadd.f32 %v367, %v404
  %v500 = vadd.f32 %v368, %v404
  %v501 = vadd.f32 %v369, %v404
  %v502 = vadd.f32 %v370, %v404
  %v503 = vadd.f32 %v371, %v404
  %v504 = vadd.f32 %v372, %v404
  %v505 = vadd.f32 %v373, %v404
  %v506 = vadd.f32 %v374, %v404
  %v507 = vadd.f32 %v375, %v404
  %v508 = vadd.f32 %v376, %v404
  %v509 = vadd.f32 %v377, %v404
  %v510 = vadd.f32 %v378, %v404
  %v511 = vadd.f32 %v379, %v404
  %v512 = vadd.f32 %v380, %v404
  %v513 = vadd.f32 %v381, %v404
  %v514 = vadd.f32 %v382, %v404
  %v515 = vadd.f32 %v383, %v404
  %v516 = vadd.f32 %v384, %v404
  %v517 = vadd.f32 %v385, %v404
  %v518 = vadd.f32 %v386, %v404
  %v519 = vadd.f32 %v387, %v404
  %v520 = vadd.f32 %v388, %v404
  %v521 = vadd.f32 %v389, %v404
  %v522 = vadd.f32 %v390, %v404
  %v523 = vadd.f32 %v391, %v404
  %v524 = vadd.f32 %v392, %v404
  %v525 = vadd.f32 %v393, %v404
  %v526 = vadd.f32 %v394, %v404
  %v527 = vadd.f32 %v395, %v404
  %v528 = vadd.f32 %v396, %v404
  %v529 = vadd.f32 %v397, %v404
  %v530 = vadd.f32 %v398, %v404
  %v531 = vadd.f32 %v399, %v404
  %v532 = vadd.f32 %v400, %v404
  %v533 = vadd.f32 %v401, %v404
  %v534 = vmax.f32 %v406, 0.0
  %v535 = vmax.f32 %v407, 0.0
  %v536 = vmax.f32 %v408, 0.0
  %v537 = vmax.f32 %v409, 0.0
  %v538 = vmax.f32 %v410, 0.0
  %v539 = vmax.f32 %v411, 0.0
  %v540 = vmax.f32 %v412, 0.0
  %v541 = vmax.f32 %v413, 0.0
  %v542 = vmax.f32 %v414, 0.0
  %v543 = vmax.f32 %v415, 0.0
  %v544 = vmax.f32 %v416, 0.0
  %v545 = vmax.f32 %v417, 0.0
  %v546 = vmax.f32 %v418, 0.0
  %v547 = vmax.f32 %v419, 0.0
  %v548 = vmax.f32 %v420, 0.0
  %v549 = vmax.f32 %v421, 0.0
  %v550 = vmax.f32 %v422, 0.0
  %v551 = vmax.f32 %v423, 0.0
  %v552 = vmax.f32 %v424, 0.0
  %v553 = vmax.f32 %v425, 0.0
  %v554 = vmax.f32 %v426, 0.0
  %v555 = vmax.f32 %v427, 0.0
  %v556 = vmax.f32 %v428, 0.0
  %v557 = vmax.f32 %v429, 0.0
  %v558 = vmax.f32 %v430, 0.0
  %v559 = vmax.f32 %v431, 0.0
  %v560 = vmax.f32 %v432, 0.0
  %v561 = vmax.f32 %v433, 0.0
  %v562 = vmax.f32 %v434, 0.0
  %v563 = vmax.f32 %v435, 0.0
  %v564 = vmax.f32 %v436, 0.0
  %v565 = vmax.f32 %v437, 0.0
  %v566 = vmax.f32 %v438, 0.0
  %v567 = vmax.f32 %v439, 0.0
  %v568 = vmax.f32 %v440, 0.0
  %v569 = vmax.f32 %v441, 0.0
  %v570 = vmax.f32 %v442, 0.0
  %v571 = vmax.f32 %v443, 0.0
  %v572 = vmax.f32 %v444, 0.0
  %v573 = vmax.f32 %v445, 0.0
  %v574 = vmax.f32 %v446, 0.0
  %v575 = vmax.f32 %v447, 0.0
  %v576 = vmax.f32 %v448, 0.0
  %v577 = vmax.f32 %v449, 0.0
  %v578 = vmax.f32 %v450, 0.0
  %v579 = vmax.f32 %v451, 0.0
  %v580 = vmax.f32 %v452, 0.0
  %v581 = vmax.f32 %v453, 0.0
  %v582 = vmax.f32 %v454, 0.0
  %v583 = vmax.f32 %v455, 0.0
  %v584 = vmax.f32 %v456, 0.0
  %v585 = vmax.f32 %v457, 0.0
  %v586 = vmax.f32 %v458, 0.0
  %v587 = vmax.f32 %v459, 0.0
  %v588 = vmax.f32 %v460, 0.0
  %v589 = vmax.f32 %v461, 0.0
  %v590 = vmax.f32 %v462, 0.0
  %v591 = vmax.f32 %v463, 0.0
  %v592 = vmax.f32 %v464, 0.0
  %v593 = vmax.f32 %v465, 0.0
  %v594 = vmax.f32 %v466, 0.0
  %v595 = vmax.f32 %v467, 0.0
  %v596 = vmax.f32 %v468, 0.0
  %v597 = vmax.f32 %v469, 0.0
  %v598 = vmax.f32 %v470, 0.0
  %v599 = vmax.f32 %v471, 0.0
  %v600 = vmax.f32 %v472, 0.0
  %v601 = vmax.f32 %v473, 0.0
  %v602 = vmax.f32 %v474, 0.0
  %v603 = vmax.f32 %v475, 0.0
  %v604 = vmax.f32 %v476, 0.0
  %v605 = vmax.f32 %v477, 0.0
  %v606 = vmax.f32 %v478, 0.0
  %v607 = vmax.f32 %v479, 0.0
  %v608 = vmax.f32 %v480, 0.0
  %v609 = vmax.f32 %v481, 0.0
  %v610 = vmax.f32 %v482, 0.0
  %v611 = vmax.f32 %v483, 0.0
  %v612 = vmax.f32 %v484, 0.0
  %v613 = vmax.f32 %v485, 0.0
  %v614 = vmax.f32 %v486, 0.0
  %v615 = vmax.f32 %v487, 0.0
  %v616 = vmax.f32 %v488, 0.0
  %v617 = vmax.f32 %v489, 0.0
  %v618 = vmax.f32 %v490, 0.0
  %v619 = vmax.f32 %v491, 0.0
  %v620 = vmax.f32 %v492, 0.0
  %v621 = vmax.f32 %v493, 0.0
  %v622 = vmax.f32 %v494, 0.0
  %v623 = vmax.f32 %v495, 0.0
  %v624 = vmax.f32 %v496, 0.0
  %v625 = vmax.f32 %v497, 0.0
  %v626 = vmax.f32 %v498, 0.0
  %v627 = vmax.f32 %v499, 0.0
  %v628 = vmax.f32 %v500, 0.0
  %v629 = vmax.f32 %v501, 0.0
  %v630 = vmax.f32 %v502, 0.0
  %v631 = vmax.f32 %v503, 0.0
  %v632 = vmax.f32 %v504, 0.0
  %v633 = vmax.f32 %v505, 0.0
  %v634 = vmax.f32 %v506, 0.0
  %v635 = vmax.f32 %v507, 0.0
  %v636 = vmax.f32 %v508, 0.0
  %v637 = vmax.f32 %v509, 0.0
  %v638 = vmax.f32 %v510, 0.0
  %v639 = vmax.f32 %v511, 0.0
  %v640 = vmax.f32 %v512, 0.0
  %v641 = vmax.f32 %v513, 0.0
  %v642 = vmax.f32 %v514, 0.0
  %v643 = vmax.f32 %v515, 0.0
  %v644 = vmax.f32 %v516, 0.0
  %v645 = vmax.f32 %v517, 0.0
  %v646 = vmax.f32 %v518, 0.0
  %v647 = vmax.f32 %v519, 0.0
  %v648 = vmax.f32 %v520, 0.0
  %v649 = vmax.f32 %v521, 0.0
  %v650 = vmax.f32 %v522, 0.0
  %v651 = vmax.f32 %v523, 0.0
  %v652 = vmax.f32 %v524, 0.0
  %v653 = vmax.f32 %v525, 0.0
  %v654 = vmax.f32 %v526, 0.0
  %v655 = vmax.f32 %v527, 0.0
  %v656 = vmax.f32 %v528, 0.0
  %v657 = vmax.f32 %v529, 0.0
  %v658 = vmax.f32 %v530, 0.0
  %v659 = vmax.f32 %v531, 0.0
  %v660 = vmax.f32 %v532, 0.0
  %v661 = vmax.f32 %v533, 0.0
  %v662 = vpack.c.bf16 %v534, %v534
  %v663 = vpack.c.bf16 %v535, %v535
  %v664 = vpack.c.bf16 %v536, %v536
  %v665 = vpack.c.bf16 %v537, %v537
  %v666 = vpack.c.bf16 %v538, %v538
  %v667 = vpack.c.bf16 %v539, %v539
  %v668 = vpack.c.bf16 %v540, %v540
  %v669 = vpack.c.bf16 %v541, %v541
  %v670 = vpack.c.bf16 %v542, %v542
  %v671 = vpack.c.bf16 %v543, %v543
  %v672 = vpack.c.bf16 %v544, %v544
  %v673 = vpack.c.bf16 %v545, %v545
  %v674 = vpack.c.bf16 %v546, %v546
  %v675 = vpack.c.bf16 %v547, %v547
  %v676 = vpack.c.bf16 %v548, %v548
  %v677 = vpack.c.bf16 %v549, %v549
  %v678 = vpack.c.bf16 %v550, %v550
  %v679 = vpack.c.bf16 %v551, %v551
  %v680 = vpack.c.bf16 %v552, %v552
  %v681 = vpack.c.bf16 %v553, %v553
  %v682 = vpack.c.bf16 %v554, %v554
  %v683 = vpack.c.bf16 %v555, %v555
  %v684 = vpack.c.bf16 %v556, %v556
  %v685 = vpack.c.bf16 %v557, %v557
  %v686 = vpack.c.bf16 %v558, %v558
  %v687 = vpack.c.bf16 %v559, %v559
  %v688 = vpack.c.bf16 %v560, %v560
  %v689 = vpack.c.bf16 %v561, %v561
  %v690 = vpack.c.bf16 %v562, %v562
  %v691 = vpack.c.bf16 %v563, %v563
  %v692 = vpack.c.bf16 %v564, %v564
  %v693 = vpack.c.bf16 %v565, %v565
  %v694 = vpack.c.bf16 %v566, %v566
  %v695 = vpack.c.bf16 %v567, %v567
  %v696 = vpack.c.bf16 %v568, %v568
  %v697 = vpack.c.bf16 %v569, %v569
  %v698 = vpack.c.bf16 %v570, %v570
  %v699 = vpack.c.bf16 %v571, %v571
  %v700 = vpack.c.bf16 %v572, %v572
  %v701 = vpack.c.bf16 %v573, %v573
  %v702 = vpack.c.bf16 %v574, %v574
  %v703 = vpack.c.bf16 %v575, %v575
  %v704 = vpack.c.bf16 %v576, %v576
  %v705 = vpack.c.bf16 %v577, %v577
  %v706 = vpack.c.bf16 %v578, %v578
  %v707 = vpack.c.bf16 %v579, %v579
  %v708 = vpack.c.bf16 %v580, %v580
  %v709 = vpack.c.bf16 %v581, %v581
  %v710 = vpack.c.bf16 %v582, %v582
  %v711 = vpack.c.bf16 %v583, %v583
  %v712 = vpack.c.bf16 %v584, %v584
  %v713 = vpack.c.bf16 %v585, %v585
  %v714 = vpack.c.bf16 %v586, %v586
  %v715 = vpack.c.bf16 %v587, %v587
  %v716 = vpack.c.bf16 %v588, %v588
  %v717 = vpack.c.bf16 %v589, %v589
  %v718 = vpack.c.bf16 %v590, %v590
  %v719 = vpack.c.bf16 %v591, %v591
  %v720 = vpack.c.bf16 %v592, %v592
  %v721 = vpack.c.bf16 %v593, %v593
  %v722 = vpack.c.bf16 %v594, %v594
  %v723 = vpack.c.bf16 %v595, %v595
  %v724 = vpack.c.bf16 %v596, %v596
  %v725 = vpack.c.bf16 %v597, %v597
  %v726 = vpack.c.bf16 %v598, %v598
  %v727 = vpack.c.bf16 %v599, %v599
  %v728 = vpack.c.bf16 %v600, %v600
  %v729 = vpack.c.bf16 %v601, %v601
  %v730 = vpack.c.bf16 %v602, %v602
  %v731 = vpack.c.bf16 %v603, %v603
  %v732 = vpack.c.bf16 %v604, %v604
  %v733 = vpack.c.bf16 %v605, %v605
  %v734 = vpack.c.bf16 %v606, %v606
  %v735 = vpack.c.bf16 %v607, %v607
  %v736 = vpack.c.bf16 %v608, %v608
  %v737 = vpack.c.bf16 %v609, %v609
  %v738 = vpack.c.bf16 %v610, %v610
  %v739 = vpack.c.bf16 %v611, %v611
  %v740 = vpack.c.bf16 %v612, %v612
  %v741 = vpack.c.bf16 %v613, %v613
  %v742 = vpack.c.bf16 %v614, %v614
  %v743 = vpack.c.bf16 %v615, %v615
  %v744 = vpack.c.bf16 %v616, %v616
  %v745 = vpack.c.bf16 %v617, %v617
  %v746 = vpack.c.bf16 %v618, %v618
  %v747 = vpack.c.bf16 %v619, %v619
  %v748 = vpack.c.bf16 %v620, %v620
  %v749 = vpack.c.bf16 %v621, %v621
  %v750 = vpack.c.bf16 %v622, %v622
  %v751 = vpack.c.bf16 %v623, %v623
  %v752 = vpack.c.bf16 %v624, %v624
  %v753 = vpack.c.bf16 %v625, %v625
  %v754 = vpack.c.bf16 %v626, %v626
  %v755 = vpack.c.bf16 %v627, %v627
  %v756 = vpack.c.bf16 %v628, %v628
  %v757 = vpack.c.bf16 %v629, %v629
  %v758 = vpack.c.bf16 %v630, %v630
  %v759 = vpack.c.bf16 %v631, %v631
  %v760 = vpack.c.bf16 %v632, %v632
  %v761 = vpack.c.bf16 %v633, %v633
  %v762 = vpack.c.bf16 %v634, %v634
  %v763 = vpack.c.bf16 %v635, %v635
  %v764 = vpack.c.bf16 %v636, %v636
  %v765 = vpack.c.bf16 %v637, %v637
  %v766 = vpack.c.bf16 %v638, %v638
  %v767 = vpack.c.bf16 %v639, %v639
  %v768 = vpack.c.bf16 %v640, %v640
  %v769 = vpack.c.bf16 %v641, %v641
  %v770 = vpack.c.bf16 %v642, %v642
  %v771 = vpack.c.bf16 %v643, %v643
  %v772 = vpack.c.bf16 %v644, %v644
  %v773 = vpack.c.bf16 %v645, %v645
  %v774 = vpack.c.bf16 %v646, %v646
  %v775 = vpack.c.bf16 %v647, %v647
  %v776 = vpack.c.bf16 %v648, %v648
  %v777 = vpack.c.bf16 %v649, %v649
  %v778 = vpack.c.bf16 %v650, %v650
  %v779 = vpack.c.bf16 %v651, %v651
  %v780 = vpack.c.bf16 %v652, %v652
  %v781 = vpack.c.bf16 %v653, %v653
  %v782 = vpack.c.bf16 %v654, %v654
  %v783 = vpack.c.bf16 %v655, %v655
  %v784 = vpack.c.bf16 %v656, %v656
  %v785 = vpack.c.bf16 %v657, %v657
  %v786 = vpack.c.bf16 %v658, %v658
  %v787 = vpack.c.bf16 %v659, %v659
  %v788 = vpack.c.bf16 %v660, %v660
  %v789 = vpack.c.bf16 %v661, %v661
  %790 = vst [vmem:[%s3] sm:$0xf] %v662
  %791 = vst [vmem:[%s3 + $0x4] sm:$0xf] %v663
  %792 = vst [vmem:[%s3 + $0x8] sm:$0xf] %v664
  %793 = vst [vmem:[%s3 + $0xc] sm:$0xf] %v665
  %794 = vst [vmem:[%s3 + $0x10] sm:$0xf] %v666
  %795 = vst [vmem:[%s3 + $0x14] sm:$0xf] %v667
  %796 = vst [vmem:[%s3 + $0x18] sm:$0xf] %v668
  %797 = vst [vmem:[%s3 + $0x1c] sm:$0xf] %v669
  %798 = vst [vmem:[%s3 + $0x20] sm:$0xf] %v670
  %799 = vst [vmem:[%s3 + $0x24] sm:$0xf] %v671
  %800 = vst [vmem:[%s3 + $0x28] sm:$0xf] %v672
  %801 = vst [vmem:[%s3 + $0x2c] sm:$0xf] %v673
  %802 = vst [vmem:[%s3 + $0x30] sm:$0xf] %v674
  %803 = vst [vmem:[%s3 + $0x34] sm:$0xf] %v675
  %804 = vst [vmem:[%s3 + $0x38] sm:$0xf] %v676
  %805 = vst [vmem:[%s3 + $0x3c] sm:$0xf] %v677
  %806 = vst [vmem:[%s3 + $0x40] sm:$0xf] %v678
  %807 = vst [vmem:[%s3 + $0x44] sm:$0xf] %v679
  %808 = vst [vmem:[%s3 + $0x48] sm:$0xf] %v680
  %809 = vst [vmem:[%s3 + $0x4c] sm:$0xf] %v681
  %810 = vst [vmem:[%s3 + $0x50] sm:$0xf] %v682
  %811 = vst [vmem:[%s3 + $0x54] sm:$0xf] %v683
  %812 = vst [vmem:[%s3 + $0x58] sm:$0xf] %v684
  %813 = vst [vmem:[%s3 + $0x5c] sm:$0xf] %v685
  %814 = vst [vmem:[%s3 + $0x60] sm:$0xf] %v686
  %815 = vst [vmem:[%s3 + $0x64] sm:$0xf] %v687
  %816 = vst [vmem:[%s3 + $0x68] sm:$0xf] %v688
  %817 = vst [vmem:[%s3 + $0x6c] sm:$0xf] %v689
  %818 = vst [vmem:[%s3 + $0x70] sm:$0xf] %v690
  %819 = vst [vmem:[%s3 + $0x74] sm:$0xf] %v691
  %820 = vst [vmem:[%s3 + $0x78] sm:$0xf] %v692
  %821 = vst [vmem:[%s3 + $0x7c] sm:$0xf] %v693
  %822 = vst [vmem:[%s3 + $0x80] sm:$0xf] %v694
  %823 = vst [vmem:[%s3 + $0x84] sm:$0xf] %v695
  %824 = vst [vmem:[%s3 + $0x88] sm:$0xf] %v696
  %825 = vst [vmem:[%s3 + $0x8c] sm:$0xf] %v697
  %826 = vst [vmem:[%s3 + $0x90] sm:$0xf] %v698
  %827 = vst [vmem:[%s3 + $0x94] sm:$0xf] %v699
  %828 = vst [vmem:[%s3 + $0x98] sm:$0xf] %v700
  %829 = vst [vmem:[%s3 + $0x9c] sm:$0xf] %v701
  %830 = vst [vmem:[%s3 + $0xa0] sm:$0xf] %v702
  %831 = vst [vmem:[%s3 + $0xa4] sm:$0xf] %v703
  %832 = vst [vmem:[%s3 + $0xa8] sm:$0xf] %v704
  %833 = vst [vmem:[%s3 + $0xac] sm:$0xf] %v705
  %834 = vst [vmem:[%s3 + $0xb0] sm:$0xf] %v706
  %835 = vst [vmem:[%s3 + $0xb4] sm:$0xf] %v707
  %836 = vst [vmem:[%s3 + $0xb8] sm:$0xf] %v708
  %837 = vst [vmem:[%s3 + $0xbc] sm:$0xf] %v709
  %838 = vst [vmem:[%s3 + $0xc0] sm:$0xf] %v710
  %839 = vst [vmem:[%s3 + $0xc4] sm:$0xf] %v711
  %840 = vst [vmem:[%s3 + $0xc8] sm:$0xf] %v712
  %841 = vst [vmem:[%s3 + $0xcc] sm:$0xf] %v713
  %842 = vst [vmem:[%s3 + $0xd0] sm:$0xf] %v714
  %843 = vst [vmem:[%s3 + $0xd4] sm:$0xf] %v715
  %844 = vst [vmem:[%s3 + $0xd8] sm:$0xf] %v716
  %845 = vst [vmem:[%s3 + $0xdc] sm:$0xf] %v717
  %846 = vst [vmem:[%s3 + $0xe0] sm:$0xf] %v718
  %847 = vst [vmem:[%s3 + $0xe4] sm:$0xf] %v719
  %848 = vst [vmem:[%s3 + $0xe8] sm:$0xf] %v720
  %849 = vst [vmem:[%s3 + $0xec] sm:$0xf] %v721
  %850 = vst [vmem:[%s3 + $0xf0] sm:$0xf] %v722
  %851 = vst [vmem:[%s3 + $0xf4] sm:$0xf] %v723
  %852 = vst [vmem:[%s3 + $0xf8] sm:$0xf] %v724
  %853 = vst [vmem:[%s3 + $0xfc] sm:$0xf] %v725
  %854 = vst [vmem:[%s3 + $0x100] sm:$0xf] %v726
  %855 = vst [vmem:[%s3 + $0x104] sm:$0xf] %v727
  %856 = vst [vmem:[%s3 + $0x108] sm:$0xf] %v728
  %857 = vst [vmem:[%s3 + $0x10c] sm:$0xf] %v729
  %858 = vst [vmem:[%s3 + $0x110] sm:$0xf] %v730
  %859 = vst [vmem:[%s3 + $0x114] sm:$0xf] %v731
  %860 = vst [vmem:[%s3 + $0x118] sm:$0xf] %v732
  %861 = vst [vmem:[%s3 + $0x11c] sm:$0xf] %v733
  %862 = vst [vmem:[%s3 + $0x120] sm:$0xf] %v734
  %863 = vst [vmem:[%s3 + $0x124] sm:$0xf] %v735
  %864 = vst [vmem:[%s3 + $0x128] sm:$0xf] %v736
  %865 = vst [vmem:[%s3 + $0x12c] sm:$0xf] %v737
  %866 = vst [vmem:[%s3 + $0x130] sm:$0xf] %v738
  %867 = vst [vmem:[%s3 + $0x134] sm:$0xf] %v739
  %868 = vst [vmem:[%s3 + $0x138] sm:$0xf] %v740
  %869 = vst [vmem:[%s3 + $0x13c] sm:$0xf] %v741
  %870 = vst [vmem:[%s3 + $0x140] sm:$0xf] %v742
  %871 = vst [vmem:[%s3 + $0x144] sm:$0xf] %v743
  %872 = vst [vmem:[%s3 + $0x148] sm:$0xf] %v744
  %873 = vst [vmem:[%s3 + $0x14c] sm:$0xf] %v745
  %874 = vst [vmem:[%s3 + $0x150] sm:$0xf] %v746
  %875 = vst [vmem:[%s3 + $0x154] sm:$0xf] %v747
  %876 = vst [vmem:[%s3 + $0x158] sm:$0xf] %v748
  %877 = vst [vmem:[%s3 + $0x15c] sm:$0xf] %v749
  %878 = vst [vmem:[%s3 + $0x160] sm:$0xf] %v750
  %879 = vst [vmem:[%s3 + $0x164] sm:$0xf] %v751
  %880 = vst [vmem:[%s3 + $0x168] sm:$0xf] %v752
  %881 = vst [vmem:[%s3 + $0x16c] sm:$0xf] %v753
  %882 = vst [vmem:[%s3 + $0x170] sm:$0xf] %v754
  %883 = vst [vmem:[%s3 + $0x174] sm:$0xf] %v755
  %884 = vst [vmem:[%s3 + $0x178] sm:$0xf] %v756
  %885 = vst [vmem:[%s3 + $0x17c] sm:$0xf] %v757
  %886 = vst [vmem:[%s3 + $0x180] sm:$0xf] %v758
  %887 = vst [vmem:[%s3 + $0x184] sm:$0xf] %v759
  %888 = vst [vmem:[%s3 + $0x188] sm:$0xf] %v760
  %889 = vst [vmem:[%s3 + $0x18c] sm:$0xf] %v761
  %890 = vst [vmem:[%s3 + $0x190] sm:$0xf] %v762
  %891 = vst [vmem:[%s3 + $0x194] sm:$0xf] %v763
  %892 = vst [vmem:[%s3 + $0x198] sm:$0xf] %v764
  %893 = vst [vmem:[%s3 + $0x19c] sm:$0xf] %v765
  %894 = vst [vmem:[%s3 + $0x1a0] sm:$0xf] %v766
  %895 = vst [vmem:[%s3 + $0x1a4] sm:$0xf] %v767
  %896 = vst [vmem:[%s3 + $0x1a8] sm:$0xf] %v768
  %897 = vst [vmem:[%s3 + $0x1ac] sm:$0xf] %v769
  %898 = vst [vmem:[%s3 + $0x1b0] sm:$0xf] %v770
  %899 = vst [vmem:[%s3 + $0x1b4] sm:$0xf] %v771
  %900 = vst [vmem:[%s3 + $0x1b8] sm:$0xf] %v772
  %901 = vst [vmem:[%s3 + $0x1bc] sm:$0xf] %v773
  %902 = vst [vmem:[%s3 + $0x1c0] sm:$0xf] %v774
  %903 = vst [vmem:[%s3 + $0x1c4] sm:$0xf] %v775
  %904 = vst [vmem:[%s3 + $0x1c8] sm:$0xf] %v776
  %905 = vst [vmem:[%s3 + $0x1cc] sm:$0xf] %v777
  %906 = vst [vmem:[%s3 + $0x1d0] sm:$0xf] %v778
  %907 = vst [vmem:[%s3 + $0x1d4] sm:$0xf] %v779
  %908 = vst [vmem:[%s3 + $0x1d8] sm:$0xf] %v780
  %909 = vst [vmem:[%s3 + $0x1dc] sm:$0xf] %v781
  %910 = vst [vmem:[%s3 + $0x1e0] sm:$0xf] %v782
  %911 = vst [vmem:[%s3 + $0x1e4] sm:$0xf] %v783
  %912 = vst [vmem:[%s3 + $0x1e8] sm:$0xf] %v784
  %913 = vst [vmem:[%s3 + $0x1ec] sm:$0xf] %v785
  %914 = vst [vmem:[%s3 + $0x1f0] sm:$0xf] %v786
  %915 = vst [vmem:[%s3 + $0x1f4] sm:$0xf] %v787
  %916 = vst [vmem:[%s3 + $0x1f8] sm:$0xf] %v788
  %917 = vst [vmem:[%s3 + $0x1fc] sm:$0xf] %v789
  // Predicated region
  $region14: #{_lambda_.15} parent=0 // pred_check
    _
  $region15: #{_lambda_.15} parent=0 // pred_check_branch
    %919 = sbr.rel (0) target = $region17
  $region16: #{_lambda_.15} parent=0 // pred_region
    _
  $region17: #{_lambda_.15} parent=0 // pred_fallthru
    _
  // Predicated region
  $region18: #{_lambda_.15} parent=0 // pred_check
    _
  $region19: #{_lambda_.15} parent=0 // pred_check_branch
    %921 = sbr.rel (0) target = $region21
  $region20: #{_lambda_.15} parent=0 // pred_region
    _
  $region21: #{_lambda_.15} parent=0 // pred_fallthru
    _

// kernel: _lambda_.14
$region0: #{_lambda_.14}
  #allocation0 [shape = 'u32[]', space=smem, size = 0x4, offset = 0x4, fixed_abs, tag = 'smem constant byte address 0x4 - core index']
  #allocation1 [shape = 'u32[72,128]{1,0:T(1,128)}', space=vmem, size = 0x9000, scoped, tag = 'internal scratch']
  %s0 = inlined_call_operand.vmem [shape: bf16[1024,9], index: 0, kind: input, shape index: {}]
  %s1 = inlined_call_operand.vmem [shape: bf16[9,128], index: 1, kind: input, shape index: {}]
  %s2 = inlined_call_operand.vmem [shape: bf16[1024,128], index: 2, kind: output, shape index: {0}]
  %s3 = inlined_call_operand.vmem [shape: f32[1,2,128], index: 3, kind: output, shape index: {1}]
  %4 = xla_tuple %s2, %s3
  %s5 = sld [smem:[#allocation0]]
  $region26: #{_lambda_.14} parent=0
    _
  %s7 = ssub.s32 1, %s5
  %s8 = scalar_select 0, %s7, %s5
  // Predicated region
  $region2: #{_lambda_.14} parent=0 // pred_check
    _
  $region3: #{_lambda_.14} parent=0 // pred_check_branch
    %10 = sbr.rel (0) target = $region5
  $region4: #{_lambda_.14} parent=0 // pred_region
    _
  $region5: #{_lambda_.14} parent=0 // pred_fallthru
    _
  // Predicated region
  $region6: #{_lambda_.14} parent=0 // pred_check
    _
  $region7: #{_lambda_.14} parent=0 // pred_check_branch
    %12 = sbr.rel (0) target = $region9
  $region8: #{_lambda_.14} parent=0 // pred_region
    _
  $region9: #{_lambda_.14} parent=0 // pred_fallthru
    _
  %v14 = vld [vmem:[%s0] sm:$0xf]
  %v15 = vld [vmem:[%s0 + $0x4] sm:$0xf]
  %v16 = vld [vmem:[%s0 + $0x8] sm:$0xf]
  %v17 = vld [vmem:[%s0 + $0xc] sm:$0xf]
  %v18 = vld [vmem:[%s0 + $0x10] sm:$0xf]
  %v19 = vld [vmem:[%s0 + $0x14] sm:$0xf]
  %v20 = vld [vmem:[%s0 + $0x18] sm:$0xf]
  %v21 = vld [vmem:[%s0 + $0x1c] sm:$0xf]
  %v22 = vld [vmem:[%s0 + $0x20] sm:$0xf]
  %v23 = vld [vmem:[%s0 + $0x24] sm:$0xf]
  %v24 = vld [vmem:[%s0 + $0x28] sm:$0xf]
  %v25 = vld [vmem:[%s0 + $0x2c] sm:$0xf]
  %v26 = vld [vmem:[%s0 + $0x30] sm:$0xf]
  %v27 = vld [vmem:[%s0 + $0x34] sm:$0xf]
  %v28 = vld [vmem:[%s0 + $0x38] sm:$0xf]
  %v29 = vld [vmem:[%s0 + $0x3c] sm:$0xf]
  %v30 = vld [vmem:[%s0 + $0x40] sm:$0xf]
  %v31 = vld [vmem:[%s0 + $0x44] sm:$0xf]
  %v32 = vld [vmem:[%s0 + $0x48] sm:$0xf]
  %v33 = vld [vmem:[%s0 + $0x4c] sm:$0xf]
  %v34 = vld [vmem:[%s0 + $0x50] sm:$0xf]
  %v35 = vld [vmem:[%s0 + $0x54] sm:$0xf]
  %v36 = vld [vmem:[%s0 + $0x58] sm:$0xf]
  %v37 = vld [vmem:[%s0 + $0x5c] sm:$0xf]
  %v38 = vld [vmem:[%s0 + $0x60] sm:$0xf]
  %v39 = vld [vmem:[%s0 + $0x64] sm:$0xf]
  %v40 = vld [vmem:[%s0 + $0x68] sm:$0xf]
  %v41 = vld [vmem:[%s0 + $0x6c] sm:$0xf]
  %v42 = vld [vmem:[%s0 + $0x70] sm:$0xf]
  %v43 = vld [vmem:[%s0 + $0x74] sm:$0xf]
  %v44 = vld [vmem:[%s0 + $0x78] sm:$0xf]
  %v45 = vld [vmem:[%s0 + $0x7c] sm:$0xf]
  %v46 = vld [vmem:[%s0 + $0x80] sm:$0xf]
  %v47 = vld [vmem:[%s0 + $0x84] sm:$0xf]
  %v48 = vld [vmem:[%s0 + $0x88] sm:$0xf]
  %v49 = vld [vmem:[%s0 + $0x8c] sm:$0xf]
  %v50 = vld [vmem:[%s0 + $0x90] sm:$0xf]
  %v51 = vld [vmem:[%s0 + $0x94] sm:$0xf]
  %v52 = vld [vmem:[%s0 + $0x98] sm:$0xf]
  %v53 = vld [vmem:[%s0 + $0x9c] sm:$0xf]
  %v54 = vld [vmem:[%s0 + $0xa0] sm:$0xf]
  %v55 = vld [vmem:[%s0 + $0xa4] sm:$0xf]
  %v56 = vld [vmem:[%s0 + $0xa8] sm:$0xf]
  %v57 = vld [vmem:[%s0 + $0xac] sm:$0xf]
  %v58 = vld [vmem:[%s0 + $0xb0] sm:$0xf]
  %v59 = vld [vmem:[%s0 + $0xb4] sm:$0xf]
  %v60 = vld [vmem:[%s0 + $0xb8] sm:$0xf]
  %v61 = vld [vmem:[%s0 + $0xbc] sm:$0xf]
  %v62 = vld [vmem:[%s0 + $0xc0] sm:$0xf]
  %v63 = vld [vmem:[%s0 + $0xc4] sm:$0xf]
  %v64 = vld [vmem:[%s0 + $0xc8] sm:$0xf]
  %v65 = vld [vmem:[%s0 + $0xcc] sm:$0xf]
  %v66 = vld [vmem:[%s0 + $0xd0] sm:$0xf]
  %v67 = vld [vmem:[%s0 + $0xd4] sm:$0xf]
  %v68 = vld [vmem:[%s0 + $0xd8] sm:$0xf]
  %v69 = vld [vmem:[%s0 + $0xdc] sm:$0xf]
  %v70 = vld [vmem:[%s0 + $0xe0] sm:$0xf]
  %v71 = vld [vmem:[%s0 + $0xe4] sm:$0xf]
  %v72 = vld [vmem:[%s0 + $0xe8] sm:$0xf]
  %v73 = vld [vmem:[%s0 + $0xec] sm:$0xf]
  %v74 = vld [vmem:[%s0 + $0xf0] sm:$0xf]
  %v75 = vld [vmem:[%s0 + $0xf4] sm:$0xf]
  %v76 = vld [vmem:[%s0 + $0xf8] sm:$0xf]
  %v77 = vld [vmem:[%s0 + $0xfc] sm:$0xf]
  %v78 = vld [vmem:[%s0 + $0x100] sm:$0xf]
  %v79 = vld [vmem:[%s0 + $0x104] sm:$0xf]
  %v80 = vld [vmem:[%s0 + $0x108] sm:$0xf]
  %v81 = vld [vmem:[%s0 + $0x10c] sm:$0xf]
  %v82 = vld [vmem:[%s0 + $0x110] sm:$0xf]
  %v83 = vld [vmem:[%s0 + $0x114] sm:$0xf]
  %v84 = vld [vmem:[%s0 + $0x118] sm:$0xf]
  %v85 = vld [vmem:[%s0 + $0x11c] sm:$0xf]
  %v86 = vld [vmem:[%s0 + $0x120] sm:$0xf]
  %v87 = vld [vmem:[%s0 + $0x124] sm:$0xf]
  %v88 = vld [vmem:[%s0 + $0x128] sm:$0xf]
  %v89 = vld [vmem:[%s0 + $0x12c] sm:$0xf]
  %v90 = vld [vmem:[%s0 + $0x130] sm:$0xf]
  %v91 = vld [vmem:[%s0 + $0x134] sm:$0xf]
  %v92 = vld [vmem:[%s0 + $0x138] sm:$0xf]
  %v93 = vld [vmem:[%s0 + $0x13c] sm:$0xf]
  %v94 = vld [vmem:[%s0 + $0x140] sm:$0xf]
  %v95 = vld [vmem:[%s0 + $0x144] sm:$0xf]
  %v96 = vld [vmem:[%s0 + $0x148] sm:$0xf]
  %v97 = vld [vmem:[%s0 + $0x14c] sm:$0xf]
  %v98 = vld [vmem:[%s0 + $0x150] sm:$0xf]
  %v99 = vld [vmem:[%s0 + $0x154] sm:$0xf]
  %v100 = vld [vmem:[%s0 + $0x158] sm:$0xf]
  %v101 = vld [vmem:[%s0 + $0x15c] sm:$0xf]
  %v102 = vld [vmem:[%s0 + $0x160] sm:$0xf]
  %v103 = vld [vmem:[%s0 + $0x164] sm:$0xf]
  %v104 = vld [vmem:[%s0 + $0x168] sm:$0xf]
  %v105 = vld [vmem:[%s0 + $0x16c] sm:$0xf]
  %v106 = vld [vmem:[%s0 + $0x170] sm:$0xf]
  %v107 = vld [vmem:[%s0 + $0x174] sm:$0xf]
  %v108 = vld [vmem:[%s0 + $0x178] sm:$0xf]
  %v109 = vld [vmem:[%s0 + $0x17c] sm:$0xf]
  %v110 = vld [vmem:[%s0 + $0x180] sm:$0xf]
  %v111 = vld [vmem:[%s0 + $0x184] sm:$0xf]
  %v112 = vld [vmem:[%s0 + $0x188] sm:$0xf]
  %v113 = vld [vmem:[%s0 + $0x18c] sm:$0xf]
  %v114 = vld [vmem:[%s0 + $0x190] sm:$0xf]
  %v115 = vld [vmem:[%s0 + $0x194] sm:$0xf]
  %v116 = vld [vmem:[%s0 + $0x198] sm:$0xf]
  %v117 = vld [vmem:[%s0 + $0x19c] sm:$0xf]
  %v118 = vld [vmem:[%s0 + $0x1a0] sm:$0xf]
  %v119 = vld [vmem:[%s0 + $0x1a4] sm:$0xf]
  %v120 = vld [vmem:[%s0 + $0x1a8] sm:$0xf]
  %v121 = vld [vmem:[%s0 + $0x1ac] sm:$0xf]
  %v122 = vld [vmem:[%s0 + $0x1b0] sm:$0xf]
  %v123 = vld [vmem:[%s0 + $0x1b4] sm:$0xf]
  %v124 = vld [vmem:[%s0 + $0x1b8] sm:$0xf]
  %v125 = vld [vmem:[%s0 + $0x1bc] sm:$0xf]
  %v126 = vld [vmem:[%s0 + $0x1c0] sm:$0xf]
  %v127 = vld [vmem:[%s0 + $0x1c4] sm:$0xf]
  %v128 = vld [vmem:[%s0 + $0x1c8] sm:$0xf]
  %v129 = vld [vmem:[%s0 + $0x1cc] sm:$0xf]
  %v130 = vld [vmem:[%s0 + $0x1d0] sm:$0xf]
  %v131 = vld [vmem:[%s0 + $0x1d4] sm:$0xf]
  %v132 = vld [vmem:[%s0 + $0x1d8] sm:$0xf]
  %v133 = vld [vmem:[%s0 + $0x1dc] sm:$0xf]
  %v134 = vld [vmem:[%s0 + $0x1e0] sm:$0xf]
  %v135 = vld [vmem:[%s0 + $0x1e4] sm:$0xf]
  %v136 = vld [vmem:[%s0 + $0x1e8] sm:$0xf]
  %v137 = vld [vmem:[%s0 + $0x1ec] sm:$0xf]
  %v138 = vld [vmem:[%s0 + $0x1f0] sm:$0xf]
  %v139 = vld [vmem:[%s0 + $0x1f4] sm:$0xf]
  %v140 = vld [vmem:[%s0 + $0x1f8] sm:$0xf]
  %v141 = vld [vmem:[%s0 + $0x1fc] sm:$0xf]
  %v142 = vld [vmem:[%s1] sm:$0xf]
  %v143 = vld [vmem:[%s1 + $0x4] sm:$0x1]
  %v272 = vunpack.c.l.b16 %v14
  %v273 = vunpack.c.l.b16 %v15
  %v274 = vunpack.c.l.b16 %v16
  %v275 = vunpack.c.l.b16 %v17
  %v276 = vunpack.c.l.b16 %v18
  %v277 = vunpack.c.l.b16 %v19
  %v278 = vunpack.c.l.b16 %v20
  %v279 = vunpack.c.l.b16 %v21
  %v280 = vunpack.c.l.b16 %v22
  %v281 = vunpack.c.l.b16 %v23
  %v282 = vunpack.c.l.b16 %v24
  %v283 = vunpack.c.l.b16 %v25
  %v284 = vunpack.c.l.b16 %v26
  %v285 = vunpack.c.l.b16 %v27
  %v286 = vunpack.c.l.b16 %v28
  %v287 = vunpack.c.l.b16 %v29
  %v288 = vunpack.c.l.b16 %v30
  %v289 = vunpack.c.l.b16 %v31
  %v290 = vunpack.c.l.b16 %v32
  %v291 = vunpack.c.l.b16 %v33
  %v292 = vunpack.c.l.b16 %v34
  %v293 = vunpack.c.l.b16 %v35
  %v294 = vunpack.c.l.b16 %v36
  %v295 = vunpack.c.l.b16 %v37
  %v296 = vunpack.c.l.b16 %v38
  %v297 = vunpack.c.l.b16 %v39
  %v298 = vunpack.c.l.b16 %v40
  %v299 = vunpack.c.l.b16 %v41
  %v300 = vunpack.c.l.b16 %v42
  %v301 = vunpack.c.l.b16 %v43
  %v302 = vunpack.c.l.b16 %v44
  %v303 = vunpack.c.l.b16 %v45
  %v304 = vunpack.c.l.b16 %v46
  %v305 = vunpack.c.l.b16 %v47
  %v306 = vunpack.c.l.b16 %v48
  %v307 = vunpack.c.l.b16 %v49
  %v308 = vunpack.c.l.b16 %v50
  %v309 = vunpack.c.l.b16 %v51
  %v310 = vunpack.c.l.b16 %v52
  %v311 = vunpack.c.l.b16 %v53
  %v312 = vunpack.c.l.b16 %v54
  %v313 = vunpack.c.l.b16 %v55
  %v314 = vunpack.c.l.b16 %v56
  %v315 = vunpack.c.l.b16 %v57
  %v316 = vunpack.c.l.b16 %v58
  %v317 = vunpack.c.l.b16 %v59
  %v318 = vunpack.c.l.b16 %v60
  %v319 = vunpack.c.l.b16 %v61
  %v320 = vunpack.c.l.b16 %v62
  %v321 = vunpack.c.l.b16 %v63
  %v322 = vunpack.c.l.b16 %v64
  %v323 = vunpack.c.l.b16 %v65
  %v324 = vunpack.c.l.b16 %v66
  %v325 = vunpack.c.l.b16 %v67
  %v326 = vunpack.c.l.b16 %v68
  %v327 = vunpack.c.l.b16 %v69
  %v328 = vunpack.c.l.b16 %v70
  %v329 = vunpack.c.l.b16 %v71
  %v330 = vunpack.c.l.b16 %v72
  %v331 = vunpack.c.l.b16 %v73
  %v332 = vunpack.c.l.b16 %v74
  %v333 = vunpack.c.l.b16 %v75
  %v334 = vunpack.c.l.b16 %v76
  %v335 = vunpack.c.l.b16 %v77
  %v336 = vunpack.c.l.b16 %v78
  %v337 = vunpack.c.l.b16 %v79
  %v338 = vunpack.c.l.b16 %v80
  %v339 = vunpack.c.l.b16 %v81
  %v340 = vunpack.c.l.b16 %v82
  %v341 = vunpack.c.l.b16 %v83
  %v342 = vunpack.c.l.b16 %v84
  %v343 = vunpack.c.l.b16 %v85
  %v344 = vunpack.c.l.b16 %v86
  %v345 = vunpack.c.l.b16 %v87
  %v346 = vunpack.c.l.b16 %v88
  %v347 = vunpack.c.l.b16 %v89
  %v348 = vunpack.c.l.b16 %v90
  %v349 = vunpack.c.l.b16 %v91
  %v350 = vunpack.c.l.b16 %v92
  %v351 = vunpack.c.l.b16 %v93
  %v352 = vunpack.c.l.b16 %v94
  %v353 = vunpack.c.l.b16 %v95
  %v354 = vunpack.c.l.b16 %v96
  %v355 = vunpack.c.l.b16 %v97
  %v356 = vunpack.c.l.b16 %v98
  %v357 = vunpack.c.l.b16 %v99
  %v358 = vunpack.c.l.b16 %v100
  %v359 = vunpack.c.l.b16 %v101
  %v360 = vunpack.c.l.b16 %v102
  %v361 = vunpack.c.l.b16 %v103
  %v362 = vunpack.c.l.b16 %v104
  %v363 = vunpack.c.l.b16 %v105
  %v364 = vunpack.c.l.b16 %v106
  %v365 = vunpack.c.l.b16 %v107
  %v366 = vunpack.c.l.b16 %v108
  %v367 = vunpack.c.l.b16 %v109
  %v368 = vunpack.c.l.b16 %v110
  %v369 = vunpack.c.l.b16 %v111
  %v370 = vunpack.c.l.b16 %v112
  %v371 = vunpack.c.l.b16 %v113
  %v372 = vunpack.c.l.b16 %v114
  %v373 = vunpack.c.l.b16 %v115
  %v374 = vunpack.c.l.b16 %v116
  %v375 = vunpack.c.l.b16 %v117
  %v376 = vunpack.c.l.b16 %v118
  %v377 = vunpack.c.l.b16 %v119
  %v378 = vunpack.c.l.b16 %v120
  %v379 = vunpack.c.l.b16 %v121
  %v380 = vunpack.c.l.b16 %v122
  %v381 = vunpack.c.l.b16 %v123
  %v382 = vunpack.c.l.b16 %v124
  %v383 = vunpack.c.l.b16 %v125
  %v384 = vunpack.c.l.b16 %v126
  %v385 = vunpack.c.l.b16 %v127
  %v386 = vunpack.c.l.b16 %v128
  %v387 = vunpack.c.l.b16 %v129
  %v388 = vunpack.c.l.b16 %v130
  %v389 = vunpack.c.l.b16 %v131
  %v390 = vunpack.c.l.b16 %v132
  %v391 = vunpack.c.l.b16 %v133
  %v392 = vunpack.c.l.b16 %v134
  %v393 = vunpack.c.l.b16 %v135
  %v394 = vunpack.c.l.b16 %v136
  %v395 = vunpack.c.l.b16 %v137
  %v396 = vunpack.c.l.b16 %v138
  %v397 = vunpack.c.l.b16 %v139
  %v398 = vunpack.c.l.b16 %v140
  %v399 = vunpack.c.l.b16 %v141
  %v400 = vpack.c.b16 %v273, %v272
  %v401 = vpack.c.b16 %v275, %v274
  %v402 = vpack.c.b16 %v277, %v276
  %v403 = vpack.c.b16 %v279, %v278
  %v404 = vpack.c.b16 %v281, %v280
  %v405 = vpack.c.b16 %v283, %v282
  %v406 = vpack.c.b16 %v285, %v284
  %v407 = vpack.c.b16 %v287, %v286
  %v408 = vpack.c.b16 %v289, %v288
  %v409 = vpack.c.b16 %v291, %v290
  %v410 = vpack.c.b16 %v293, %v292
  %v411 = vpack.c.b16 %v295, %v294
  %v412 = vpack.c.b16 %v297, %v296
  %v413 = vpack.c.b16 %v299, %v298
  %v414 = vpack.c.b16 %v301, %v300
  %v415 = vpack.c.b16 %v303, %v302
  %v416 = vpack.c.b16 %v305, %v304
  %v417 = vpack.c.b16 %v307, %v306
  %v418 = vpack.c.b16 %v309, %v308
  %v419 = vpack.c.b16 %v311, %v310
  %v420 = vpack.c.b16 %v313, %v312
  %v421 = vpack.c.b16 %v315, %v314
  %v422 = vpack.c.b16 %v317, %v316
  %v423 = vpack.c.b16 %v319, %v318
  %v424 = vpack.c.b16 %v321, %v320
  %v425 = vpack.c.b16 %v323, %v322
  %v426 = vpack.c.b16 %v325, %v324
  %v427 = vpack.c.b16 %v327, %v326
  %v428 = vpack.c.b16 %v329, %v328
  %v429 = vpack.c.b16 %v331, %v330
  %v430 = vpack.c.b16 %v333, %v332
  %v431 = vpack.c.b16 %v335, %v334
  %v432 = vpack.c.b16 %v337, %v336
  %v433 = vpack.c.b16 %v339, %v338
  %v434 = vpack.c.b16 %v341, %v340
  %v435 = vpack.c.b16 %v343, %v342
  %v436 = vpack.c.b16 %v345, %v344
  %v437 = vpack.c.b16 %v347, %v346
  %v438 = vpack.c.b16 %v349, %v348
  %v439 = vpack.c.b16 %v351, %v350
  %v440 = vpack.c.b16 %v353, %v352
  %v441 = vpack.c.b16 %v355, %v354
  %v442 = vpack.c.b16 %v357, %v356
  %v443 = vpack.c.b16 %v359, %v358
  %v444 = vpack.c.b16 %v361, %v360
  %v445 = vpack.c.b16 %v363, %v362
  %v446 = vpack.c.b16 %v365, %v364
  %v447 = vpack.c.b16 %v367, %v366
  %v448 = vpack.c.b16 %v369, %v368
  %v449 = vpack.c.b16 %v371, %v370
  %v450 = vpack.c.b16 %v373, %v372
  %v451 = vpack.c.b16 %v375, %v374
  %v452 = vpack.c.b16 %v377, %v376
  %v453 = vpack.c.b16 %v379, %v378
  %v454 = vpack.c.b16 %v381, %v380
  %v455 = vpack.c.b16 %v383, %v382
  %v456 = vpack.c.b16 %v385, %v384
  %v457 = vpack.c.b16 %v387, %v386
  %v458 = vpack.c.b16 %v389, %v388
  %v459 = vpack.c.b16 %v391, %v390
  %v460 = vpack.c.b16 %v393, %v392
  %v461 = vpack.c.b16 %v395, %v394
  %v462 = vpack.c.b16 %v397, %v396
  %v463 = vpack.c.b16 %v399, %v398
  %v466 = vunpack.c.l.b16 %v142
  %v467 = vunpack.c.l.b16 %v143
  %v468 = vpack.c.b16 %v467, %v466
  %vm469 = vcmask 72704
  %v471 = vsel %vm469, %v400, 0
  %v474 = vsel %vm469, %v401, 0
  %v477 = vsel %vm469, %v402, 0
  %v480 = vsel %vm469, %v403, 0
  %v483 = vsel %vm469, %v404, 0
  %v486 = vsel %vm469, %v405, 0
  %v489 = vsel %vm469, %v406, 0
  %v492 = vsel %vm469, %v407, 0
  %v495 = vsel %vm469, %v408, 0
  %v498 = vsel %vm469, %v409, 0
  %v501 = vsel %vm469, %v410, 0
  %v504 = vsel %vm469, %v411, 0
  %v507 = vsel %vm469, %v412, 0
  %v510 = vsel %vm469, %v413, 0
  %v513 = vsel %vm469, %v414, 0
  %v516 = vsel %vm469, %v415, 0
  %v519 = vsel %vm469, %v416, 0
  %v522 = vsel %vm469, %v417, 0
  %v525 = vsel %vm469, %v418, 0
  %v528 = vsel %vm469, %v419, 0
  %v531 = vsel %vm469, %v420, 0
  %v534 = vsel %vm469, %v421, 0
  %v537 = vsel %vm469, %v422, 0
  %v540 = vsel %vm469, %v423, 0
  %v543 = vsel %vm469, %v424, 0
  %v546 = vsel %vm469, %v425, 0
  %v549 = vsel %vm469, %v426, 0
  %v552 = vsel %vm469, %v427, 0
  %v555 = vsel %vm469, %v428, 0
  %v558 = vsel %vm469, %v429, 0
  %v561 = vsel %vm469, %v430, 0
  %v564 = vsel %vm469, %v431, 0
  %v567 = vsel %vm469, %v432, 0
  %v570 = vsel %vm469, %v433, 0
  %v573 = vsel %vm469, %v434, 0
  %v576 = vsel %vm469, %v435, 0
  %v579 = vsel %vm469, %v436, 0
  %v582 = vsel %vm469, %v437, 0
  %v585 = vsel %vm469, %v438, 0
  %v588 = vsel %vm469, %v439, 0
  %v591 = vsel %vm469, %v440, 0
  %v594 = vsel %vm469, %v441, 0
  %v597 = vsel %vm469, %v442, 0
  %v600 = vsel %vm469, %v443, 0
  %v603 = vsel %vm469, %v444, 0
  %v606 = vsel %vm469, %v445, 0
  %v609 = vsel %vm469, %v446, 0
  %v612 = vsel %vm469, %v447, 0
  %v615 = vsel %vm469, %v448, 0
  %v618 = vsel %vm469, %v449, 0
  %v621 = vsel %vm469, %v450, 0
  %v624 = vsel %vm469, %v451, 0
  %v627 = vsel %vm469, %v452, 0
  %v630 = vsel %vm469, %v453, 0
  %v633 = vsel %vm469, %v454, 0
  %v636 = vsel %vm469, %v455, 0
  %v639 = vsel %vm469, %v456, 0
  %v642 = vsel %vm469, %v457, 0
  %v645 = vsel %vm469, %v458, 0
  %v648 = vsel %vm469, %v459, 0
  %v651 = vsel %vm469, %v460, 0
  %v654 = vsel %vm469, %v461, 0
  %v657 = vsel %vm469, %v462, 0
  %v660 = vsel %vm469, %v463, 0
  %vm662 = vcmask 1043456
  %vm663 = vcmask 1044480
  %v664 = vsel %vm662, 4294967295, 65535
  %v665 = vsel %vm663, %v664, 0
  %v667 = vand.u32 %v468, %v665
  %669 = vmatpush.bf16.msra.mxu0 0
  %670 = vmatpush.bf16.msra.mxu0 0
  %671 = vmatpush.bf16.msra.mxu0 0
  %672 = vmatpush.bf16.msra.mxu0 0
  %673 = vmatpush.bf16.msra.mxu0 0
  %674 = vmatpush.bf16.msra.mxu0 0
  %675 = vmatpush.bf16.msra.mxu0 0
  %676 = vmatpush.bf16.msra.mxu0 %v667
  %677 = vmatmul.bf16.gmra.mxu0 %v471
  %v678 = vpop.f32.mrf.mxu0
  %v679 = vadd.f32 0.0, %v678
  %v680 = vpop.f32.mrf.mxu0
  %v681 = vadd.f32 0.0, %v680
  %682 = vmatmul.bf16.gmra.mxu0 %v474
  %v683 = vpop.f32.mrf.mxu0
  %v684 = vadd.f32 0.0, %v683
  %v685 = vpop.f32.mrf.mxu0
  %v686 = vadd.f32 0.0, %v685
  %687 = vmatmul.bf16.gmra.mxu0 %v477
  %v688 = vpop.f32.mrf.mxu0
  %v689 = vadd.f32 0.0, %v688
  %v690 = vpop.f32.mrf.mxu0
  %v691 = vadd.f32 0.0, %v690
  %692 = vmatmul.bf16.gmra.mxu0 %v480
  %v693 = vpop.f32.mrf.mxu0
  %v694 = vadd.f32 0.0, %v693
  %v695 = vpop.f32.mrf.mxu0
  %v696 = vadd.f32 0.0, %v695
  %697 = vmatmul.bf16.gmra.mxu0 %v483
  %v698 = vpop.f32.mrf.mxu0
  %v699 = vadd.f32 0.0, %v698
  %v700 = vpop.f32.mrf.mxu0
  %v701 = vadd.f32 0.0, %v700
  %702 = vmatmul.bf16.gmra.mxu0 %v486
  %v703 = vpop.f32.mrf.mxu0
  %v704 = vadd.f32 0.0, %v703
  %v705 = vpop.f32.mrf.mxu0
  %v706 = vadd.f32 0.0, %v705
  %707 = vmatmul.bf16.gmra.mxu0 %v489
  %v708 = vpop.f32.mrf.mxu0
  %v709 = vadd.f32 0.0, %v708
  %v710 = vpop.f32.mrf.mxu0
  %v711 = vadd.f32 0.0, %v710
  %712 = vmatmul.bf16.gmra.mxu0 %v492
  %v713 = vpop.f32.mrf.mxu0
  %v714 = vadd.f32 0.0, %v713
  %v715 = vpop.f32.mrf.mxu0
  %v716 = vadd.f32 0.0, %v715
  %717 = vmatmul.bf16.gmra.mxu0 %v495
  %v718 = vpop.f32.mrf.mxu0
  %v719 = vadd.f32 0.0, %v718
  %v720 = vpop.f32.mrf.mxu0
  %v721 = vadd.f32 0.0, %v720
  %722 = vmatmul.bf16.gmra.mxu0 %v498
  %v723 = vpop.f32.mrf.mxu0
  %v724 = vadd.f32 0.0, %v723
  %v725 = vpop.f32.mrf.mxu0
  %v726 = vadd.f32 0.0, %v725
  %727 = vmatmul.bf16.gmra.mxu0 %v501
  %v728 = vpop.f32.mrf.mxu0
  %v729 = vadd.f32 0.0, %v728
  %v730 = vpop.f32.mrf.mxu0
  %v731 = vadd.f32 0.0, %v730
  %732 = vmatmul.bf16.gmra.mxu0 %v504
  %v733 = vpop.f32.mrf.mxu0
  %v734 = vadd.f32 0.0, %v733
  %v735 = vpop.f32.mrf.mxu0
  %v736 = vadd.f32 0.0, %v735
  %737 = vmatmul.bf16.gmra.mxu0 %v507
  %v738 = vpop.f32.mrf.mxu0
  %v739 = vadd.f32 0.0, %v738
  %v740 = vpop.f32.mrf.mxu0
  %v741 = vadd.f32 0.0, %v740
  %742 = vmatmul.bf16.gmra.mxu0 %v510
  %v743 = vpop.f32.mrf.mxu0
  %v744 = vadd.f32 0.0, %v743
  %v745 = vpop.f32.mrf.mxu0
  %v746 = vadd.f32 0.0, %v745
  %747 = vmatmul.bf16.gmra.mxu0 %v513
  %v748 = vpop.f32.mrf.mxu0
  %v749 = vadd.f32 0.0, %v748
  %v750 = vpop.f32.mrf.mxu0
  %v751 = vadd.f32 0.0, %v750
  %752 = vmatmul.bf16.gmra.mxu0 %v516
  %v753 = vpop.f32.mrf.mxu0
  %v754 = vadd.f32 0.0, %v753
  %v755 = vpop.f32.mrf.mxu0
  %v756 = vadd.f32 0.0, %v755
  %757 = vmatmul.bf16.gmra.mxu0 %v519
  %v758 = vpop.f32.mrf.mxu0
  %v759 = vadd.f32 0.0, %v758
  %v760 = vpop.f32.mrf.mxu0
  %v761 = vadd.f32 0.0, %v760
  %762 = vmatmul.bf16.gmra.mxu0 %v522
  %v763 = vpop.f32.mrf.mxu0
  %v764 = vadd.f32 0.0, %v763
  %v765 = vpop.f32.mrf.mxu0
  %v766 = vadd.f32 0.0, %v765
  %767 = vmatmul.bf16.gmra.mxu0 %v525
  %v768 = vpop.f32.mrf.mxu0
  %v769 = vadd.f32 0.0, %v768
  %v770 = vpop.f32.mrf.mxu0
  %v771 = vadd.f32 0.0, %v770
  %772 = vmatmul.bf16.gmra.mxu0 %v528
  %v773 = vpop.f32.mrf.mxu0
  %v774 = vadd.f32 0.0, %v773
  %v775 = vpop.f32.mrf.mxu0
  %v776 = vadd.f32 0.0, %v775
  %777 = vmatmul.bf16.gmra.mxu0 %v531
  %v778 = vpop.f32.mrf.mxu0
  %v779 = vadd.f32 0.0, %v778
  %v780 = vpop.f32.mrf.mxu0
  %v781 = vadd.f32 0.0, %v780
  %782 = vmatmul.bf16.gmra.mxu0 %v534
  %v783 = vpop.f32.mrf.mxu0
  %v784 = vadd.f32 0.0, %v783
  %v785 = vpop.f32.mrf.mxu0
  %v786 = vadd.f32 0.0, %v785
  %787 = vmatmul.bf16.gmra.mxu0 %v537
  %v788 = vpop.f32.mrf.mxu0
  %v789 = vadd.f32 0.0, %v788
  %v790 = vpop.f32.mrf.mxu0
  %v791 = vadd.f32 0.0, %v790
  %792 = vmatmul.bf16.gmra.mxu0 %v540
  %v793 = vpop.f32.mrf.mxu0
  %v794 = vadd.f32 0.0, %v793
  %v795 = vpop.f32.mrf.mxu0
  %v796 = vadd.f32 0.0, %v795
  %797 = vmatmul.bf16.gmra.mxu0 %v543
  %v798 = vpop.f32.mrf.mxu0
  %v799 = vadd.f32 0.0, %v798
  %v800 = vpop.f32.mrf.mxu0
  %v801 = vadd.f32 0.0, %v800
  %802 = vmatmul.bf16.gmra.mxu0 %v546
  %v803 = vpop.f32.mrf.mxu0
  %v804 = vadd.f32 0.0, %v803
  %v805 = vpop.f32.mrf.mxu0
  %v806 = vadd.f32 0.0, %v805
  %807 = vmatmul.bf16.gmra.mxu0 %v549
  %v808 = vpop.f32.mrf.mxu0
  %v809 = vadd.f32 0.0, %v808
  %v810 = vpop.f32.mrf.mxu0
  %v811 = vadd.f32 0.0, %v810
  %812 = vmatmul.bf16.gmra.mxu0 %v552
  %v813 = vpop.f32.mrf.mxu0
  %v814 = vadd.f32 0.0, %v813
  %v815 = vpop.f32.mrf.mxu0
  %v816 = vadd.f32 0.0, %v815
  %817 = vmatmul.bf16.gmra.mxu0 %v555
  %v818 = vpop.f32.mrf.mxu0
  %v819 = vadd.f32 0.0, %v818
  %v820 = vpop.f32.mrf.mxu0
  %v821 = vadd.f32 0.0, %v820
  %822 = vmatmul.bf16.gmra.mxu0 %v558
  %v823 = vpop.f32.mrf.mxu0
  %v824 = vadd.f32 0.0, %v823
  %v825 = vpop.f32.mrf.mxu0
  %v826 = vadd.f32 0.0, %v825
  %827 = vmatmul.bf16.gmra.mxu0 %v561
  %v828 = vpop.f32.mrf.mxu0
  %v829 = vadd.f32 0.0, %v828
  %v830 = vpop.f32.mrf.mxu0
  %v831 = vadd.f32 0.0, %v830
  %832 = vmatmul.bf16.gmra.mxu0 %v564
  %v833 = vpop.f32.mrf.mxu0
  %v834 = vadd.f32 0.0, %v833
  %v835 = vpop.f32.mrf.mxu0
  %v836 = vadd.f32 0.0, %v835
  %837 = vmatmul.bf16.gmra.mxu0 %v567
  %v838 = vpop.f32.mrf.mxu0
  %v839 = vadd.f32 0.0, %v838
  %v840 = vpop.f32.mrf.mxu0
  %v841 = vadd.f32 0.0, %v840
  %842 = vmatmul.bf16.gmra.mxu0 %v570
  %v843 = vpop.f32.mrf.mxu0
  %v844 = vadd.f32 0.0, %v843
  %v845 = vpop.f32.mrf.mxu0
  %v846 = vadd.f32 0.0, %v845
  %847 = vmatmul.bf16.gmra.mxu0 %v573
  %v848 = vpop.f32.mrf.mxu0
  %v849 = vadd.f32 0.0, %v848
  %v850 = vpop.f32.mrf.mxu0
  %v851 = vadd.f32 0.0, %v850
  %852 = vmatmul.bf16.gmra.mxu0 %v576
  %v853 = vpop.f32.mrf.mxu0
  %v854 = vadd.f32 0.0, %v853
  %v855 = vpop.f32.mrf.mxu0
  %v856 = vadd.f32 0.0, %v855
  %857 = vmatmul.bf16.gmra.mxu0 %v579
  %v858 = vpop.f32.mrf.mxu0
  %v859 = vadd.f32 0.0, %v858
  %v860 = vpop.f32.mrf.mxu0
  %v861 = vadd.f32 0.0, %v860
  %862 = vmatmul.bf16.gmra.mxu0 %v582
  %v863 = vpop.f32.mrf.mxu0
  %v864 = vadd.f32 0.0, %v863
  %v865 = vpop.f32.mrf.mxu0
  %v866 = vadd.f32 0.0, %v865
  %867 = vmatmul.bf16.gmra.mxu0 %v585
  %v868 = vpop.f32.mrf.mxu0
  %v869 = vadd.f32 0.0, %v868
  %v870 = vpop.f32.mrf.mxu0
  %v871 = vadd.f32 0.0, %v870
  %872 = vmatmul.bf16.gmra.mxu0 %v588
  %v873 = vpop.f32.mrf.mxu0
  %v874 = vadd.f32 0.0, %v873
  %v875 = vpop.f32.mrf.mxu0
  %v876 = vadd.f32 0.0, %v875
  %877 = vmatmul.bf16.gmra.mxu0 %v591
  %v878 = vpop.f32.mrf.mxu0
  %v879 = vadd.f32 0.0, %v878
  %v880 = vpop.f32.mrf.mxu0
  %v881 = vadd.f32 0.0, %v880
  %882 = vmatmul.bf16.gmra.mxu0 %v594
  %v883 = vpop.f32.mrf.mxu0
  %v884 = vadd.f32 0.0, %v883
  %v885 = vpop.f32.mrf.mxu0
  %v886 = vadd.f32 0.0, %v885
  %887 = vmatmul.bf16.gmra.mxu0 %v597
  %v888 = vpop.f32.mrf.mxu0
  %v889 = vadd.f32 0.0, %v888
  %v890 = vpop.f32.mrf.mxu0
  %v891 = vadd.f32 0.0, %v890
  %892 = vmatmul.bf16.gmra.mxu0 %v600
  %v893 = vpop.f32.mrf.mxu0
  %v894 = vadd.f32 0.0, %v893
  %v895 = vpop.f32.mrf.mxu0
  %v896 = vadd.f32 0.0, %v895
  %897 = vmatmul.bf16.gmra.mxu0 %v603
  %v898 = vpop.f32.mrf.mxu0
  %v899 = vadd.f32 0.0, %v898
  %v900 = vpop.f32.mrf.mxu0
  %v901 = vadd.f32 0.0, %v900
  %902 = vmatmul.bf16.gmra.mxu0 %v606
  %v903 = vpop.f32.mrf.mxu0
  %v904 = vadd.f32 0.0, %v903
  %v905 = vpop.f32.mrf.mxu0
  %v906 = vadd.f32 0.0, %v905
  %907 = vmatmul.bf16.gmra.mxu0 %v609
  %v908 = vpop.f32.mrf.mxu0
  %v909 = vadd.f32 0.0, %v908
  %v910 = vpop.f32.mrf.mxu0
  %v911 = vadd.f32 0.0, %v910
  %912 = vmatmul.bf16.gmra.mxu0 %v612
  %v913 = vpop.f32.mrf.mxu0
  %v914 = vadd.f32 0.0, %v913
  %v915 = vpop.f32.mrf.mxu0
  %v916 = vadd.f32 0.0, %v915
  %917 = vmatmul.bf16.gmra.mxu0 %v615
  %v918 = vpop.f32.mrf.mxu0
  %v919 = vadd.f32 0.0, %v918
  %v920 = vpop.f32.mrf.mxu0
  %v921 = vadd.f32 0.0, %v920
  %922 = vmatmul.bf16.gmra.mxu0 %v618
  %v923 = vpop.f32.mrf.mxu0
  %v924 = vadd.f32 0.0, %v923
  %v925 = vpop.f32.mrf.mxu0
  %v926 = vadd.f32 0.0, %v925
  %927 = vmatmul.bf16.gmra.mxu0 %v621
  %v928 = vpop.f32.mrf.mxu0
  %v929 = vadd.f32 0.0, %v928
  %v930 = vpop.f32.mrf.mxu0
  %v931 = vadd.f32 0.0, %v930
  %932 = vmatmul.bf16.gmra.mxu0 %v624
  %v933 = vpop.f32.mrf.mxu0
  %v934 = vadd.f32 0.0, %v933
  %v935 = vpop.f32.mrf.mxu0
  %v936 = vadd.f32 0.0, %v935
  %937 = vmatmul.bf16.gmra.mxu0 %v627
  %v938 = vpop.f32.mrf.mxu0
  %v939 = vadd.f32 0.0, %v938
  %v940 = vpop.f32.mrf.mxu0
  %v941 = vadd.f32 0.0, %v940
  %942 = vmatmul.bf16.gmra.mxu0 %v630
  %v943 = vpop.f32.mrf.mxu0
  %v944 = vadd.f32 0.0, %v943
  %v945 = vpop.f32.mrf.mxu0
  %v946 = vadd.f32 0.0, %v945
  %947 = vmatmul.bf16.gmra.mxu0 %v633
  %v948 = vpop.f32.mrf.mxu0
  %v949 = vadd.f32 0.0, %v948
  %v950 = vpop.f32.mrf.mxu0
  %v951 = vadd.f32 0.0, %v950
  %952 = vmatmul.bf16.gmra.mxu0 %v636
  %v953 = vpop.f32.mrf.mxu0
  %v954 = vadd.f32 0.0, %v953
  %v955 = vpop.f32.mrf.mxu0
  %v956 = vadd.f32 0.0, %v955
  %957 = vmatmul.bf16.gmra.mxu0 %v639
  %v958 = vpop.f32.mrf.mxu0
  %v959 = vadd.f32 0.0, %v958
  %v960 = vpop.f32.mrf.mxu0
  %v961 = vadd.f32 0.0, %v960
  %962 = vmatmul.bf16.gmra.mxu0 %v642
  %v963 = vpop.f32.mrf.mxu0
  %v964 = vadd.f32 0.0, %v963
  %v965 = vpop.f32.mrf.mxu0
  %v966 = vadd.f32 0.0, %v965
  %967 = vmatmul.bf16.gmra.mxu0 %v645
  %v968 = vpop.f32.mrf.mxu0
  %v969 = vadd.f32 0.0, %v968
  %v970 = vpop.f32.mrf.mxu0
  %v971 = vadd.f32 0.0, %v970
  %972 = vmatmul.bf16.gmra.mxu0 %v648
  %v973 = vpop.f32.mrf.mxu0
  %v974 = vadd.f32 0.0, %v973
  %v975 = vpop.f32.mrf.mxu0
  %v976 = vadd.f32 0.0, %v975
  %977 = vmatmul.bf16.gmra.mxu0 %v651
  %v978 = vpop.f32.mrf.mxu0
  %v979 = vadd.f32 0.0, %v978
  %v980 = vpop.f32.mrf.mxu0
  %v981 = vadd.f32 0.0, %v980
  %982 = vmatmul.bf16.gmra.mxu0 %v654
  %v983 = vpop.f32.mrf.mxu0
  %v984 = vadd.f32 0.0, %v983
  %v985 = vpop.f32.mrf.mxu0
  %v986 = vadd.f32 0.0, %v985
  %987 = vmatmul.bf16.gmra.mxu0 %v657
  %v988 = vpop.f32.mrf.mxu0
  %v989 = vadd.f32 0.0, %v988
  %v990 = vpop.f32.mrf.mxu0
  %v991 = vadd.f32 0.0, %v990
  %992 = vmatmul.bf16.gmra.mxu0 %v660
  %v993 = vpop.f32.mrf.mxu0
  %v994 = vadd.f32 0.0, %v993
  %v995 = vpop.f32.mrf.mxu0
  %v996 = vadd.f32 0.0, %v995
  %997 = vdwg.mxu0
  %v998 = vpack.c.bf16 %v679, %v679
  %v999 = vpack.c.bf16 %v681, %v681
  %v1000 = vpack.c.bf16 %v684, %v684
  %v1001 = vpack.c.bf16 %v686, %v686
  %v1002 = vpack.c.bf16 %v689, %v689
  %v1003 = vpack.c.bf16 %v691, %v691
  %v1004 = vpack.c.bf16 %v694, %v694
  %v1005 = vpack.c.bf16 %v696, %v696
  %v1006 = vpack.c.bf16 %v699, %v699
  %v1007 = vpack.c.bf16 %v701, %v701
  %v1008 = vpack.c.bf16 %v704, %v704
  %v1009 = vpack.c.bf16 %v706, %v706
  %v1010 = vpack.c.bf16 %v709, %v709
  %v1011 = vpack.c.bf16 %v711, %v711
  %v1012 = vpack.c.bf16 %v714, %v714
  %v1013 = vpack.c.bf16 %v716, %v716
  %v1014 = vpack.c.bf16 %v719, %v719
  %v1015 = vpack.c.bf16 %v721, %v721
  %v1016 = vpack.c.bf16 %v724, %v724
  %v1017 = vpack.c.bf16 %v726, %v726
  %v1018 = vpack.c.bf16 %v729, %v729
  %v1019 = vpack.c.bf16 %v731, %v731
  %v1020 = vpack.c.bf16 %v734, %v734
  %v1021 = vpack.c.bf16 %v736, %v736
  %v1022 = vpack.c.bf16 %v739, %v739
  %v1023 = vpack.c.bf16 %v741, %v741
  %v1024 = vpack.c.bf16 %v744, %v744
  %v1025 = vpack.c.bf16 %v746, %v746
  %v1026 = vpack.c.bf16 %v749, %v749
  %v1027 = vpack.c.bf16 %v751, %v751
  %v1028 = vpack.c.bf16 %v754, %v754
  %v1029 = vpack.c.bf16 %v756, %v756
  %v1030 = vpack.c.bf16 %v759, %v759
  %v1031 = vpack.c.bf16 %v761, %v761
  %v1032 = vpack.c.bf16 %v764, %v764
  %v1033 = vpack.c.bf16 %v766, %v766
  %v1034 = vpack.c.bf16 %v769, %v769
  %v1035 = vpack.c.bf16 %v771, %v771
  %v1036 = vpack.c.bf16 %v774, %v774
  %v1037 = vpack.c.bf16 %v776, %v776
  %v1038 = vpack.c.bf16 %v779, %v779
  %v1039 = vpack.c.bf16 %v781, %v781
  %v1040 = vpack.c.bf16 %v784, %v784
  %v1041 = vpack.c.bf16 %v786, %v786
  %v1042 = vpack.c.bf16 %v789, %v789
  %v1043 = vpack.c.bf16 %v791, %v791
  %v1044 = vpack.c.bf16 %v794, %v794
  %v1045 = vpack.c.bf16 %v796, %v796
  %v1046 = vpack.c.bf16 %v799, %v799
  %v1047 = vpack.c.bf16 %v801, %v801
  %v1048 = vpack.c.bf16 %v804, %v804
  %v1049 = vpack.c.bf16 %v806, %v806
  %v1050 = vpack.c.bf16 %v809, %v809
  %v1051 = vpack.c.bf16 %v811, %v811
  %v1052 = vpack.c.bf16 %v814, %v814
  %v1053 = vpack.c.bf16 %v816, %v816
  %v1054 = vpack.c.bf16 %v819, %v819
  %v1055 = vpack.c.bf16 %v821, %v821
  %v1056 = vpack.c.bf16 %v824, %v824
  %v1057 = vpack.c.bf16 %v826, %v826
  %v1058 = vpack.c.bf16 %v829, %v829
  %v1059 = vpack.c.bf16 %v831, %v831
  %v1060 = vpack.c.bf16 %v834, %v834
  %v1061 = vpack.c.bf16 %v836, %v836
  %v1062 = vpack.c.bf16 %v839, %v839
  %v1063 = vpack.c.bf16 %v841, %v841
  %v1064 = vpack.c.bf16 %v844, %v844
  %v1065 = vpack.c.bf16 %v846, %v846
  %v1066 = vpack.c.bf16 %v849, %v849
  %v1067 = vpack.c.bf16 %v851, %v851
  %v1068 = vpack.c.bf16 %v854, %v854
  %v1069 = vpack.c.bf16 %v856, %v856
  %v1070 = vpack.c.bf16 %v859, %v859
  %v1071 = vpack.c.bf16 %v861, %v861
  %v1072 = vpack.c.bf16 %v864, %v864
  %v1073 = vpack.c.bf16 %v866, %v866
  %v1074 = vpack.c.bf16 %v869, %v869
  %v1075 = vpack.c.bf16 %v871, %v871
  %v1076 = vpack.c.bf16 %v874, %v874
  %v1077 = vpack.c.bf16 %v876, %v876
  %v1078 = vpack.c.bf16 %v879, %v879
  %v1079 = vpack.c.bf16 %v881, %v881
  %v1080 = vpack.c.bf16 %v884, %v884
  %v1081 = vpack.c.bf16 %v886, %v886
  %v1082 = vpack.c.bf16 %v889, %v889
  %v1083 = vpack.c.bf16 %v891, %v891
  %v1084 = vpack.c.bf16 %v894, %v894
  %v1085 = vpack.c.bf16 %v896, %v896
  %v1086 = vpack.c.bf16 %v899, %v899
  %v1087 = vpack.c.bf16 %v901, %v901
  %v1088 = vpack.c.bf16 %v904, %v904
  %v1089 = vpack.c.bf16 %v906, %v906
  %v1090 = vpack.c.bf16 %v909, %v909
  %v1091 = vpack.c.bf16 %v911, %v911
  %v1092 = vpack.c.bf16 %v914, %v914
  %v1093 = vpack.c.bf16 %v916, %v916
  %v1094 = vpack.c.bf16 %v919, %v919
  %v1095 = vpack.c.bf16 %v921, %v921
  %v1096 = vpack.c.bf16 %v924, %v924
  %v1097 = vpack.c.bf16 %v926, %v926
  %v1098 = vpack.c.bf16 %v929, %v929
  %v1099 = vpack.c.bf16 %v931, %v931
  %v1100 = vpack.c.bf16 %v934, %v934
  %v1101 = vpack.c.bf16 %v936, %v936
  %v1102 = vpack.c.bf16 %v939, %v939
  %v1103 = vpack.c.bf16 %v941, %v941
  %v1104 = vpack.c.bf16 %v944, %v944
  %v1105 = vpack.c.bf16 %v946, %v946
  %v1106 = vpack.c.bf16 %v949, %v949
  %v1107 = vpack.c.bf16 %v951, %v951
  %v1108 = vpack.c.bf16 %v954, %v954
  %v1109 = vpack.c.bf16 %v956, %v956
  %v1110 = vpack.c.bf16 %v959, %v959
  %v1111 = vpack.c.bf16 %v961, %v961
  %v1112 = vpack.c.bf16 %v964, %v964
  %v1113 = vpack.c.bf16 %v966, %v966
  %v1114 = vpack.c.bf16 %v969, %v969
  %v1115 = vpack.c.bf16 %v971, %v971
  %v1116 = vpack.c.bf16 %v974, %v974
  %v1117 = vpack.c.bf16 %v976, %v976
  %v1118 = vpack.c.bf16 %v979, %v979
  %v1119 = vpack.c.bf16 %v981, %v981
  %v1120 = vpack.c.bf16 %v984, %v984
  %v1121 = vpack.c.bf16 %v986, %v986
  %v1122 = vpack.c.bf16 %v989, %v989
  %v1123 = vpack.c.bf16 %v991, %v991
  %v1124 = vpack.c.bf16 %v994, %v994
  %v1125 = vpack.c.bf16 %v996, %v996
  %1126 = vst [vmem:[%s2] sm:$0xf] %v998
  %1127 = vst [vmem:[%s2 + $0x4] sm:$0xf] %v999
  %1128 = vst [vmem:[%s2 + $0x8] sm:$0xf] %v1000
  %1129 = vst [vmem:[%s2 + $0xc] sm:$0xf] %v1001
  %1130 = vst [vmem:[%s2 + $0x10] sm:$0xf] %v1002
  %1131 = vst [vmem:[%s2 + $0x14] sm:$0xf] %v1003
  %1132 = vst [vmem:[%s2 + $0x18] sm:$0xf] %v1004
  %1133 = vst [vmem:[%s2 + $0x1c] sm:$0xf] %v1005
  %1134 = vst [vmem:[%s2 + $0x20] sm:$0xf] %v1006
  %1135 = vst [vmem:[%s2 + $0x24] sm:$0xf] %v1007
  %1136 = vst [vmem:[%s2 + $0x28] sm:$0xf] %v1008
  %1137 = vst [vmem:[%s2 + $0x2c] sm:$0xf] %v1009
  %1138 = vst [vmem:[%s2 + $0x30] sm:$0xf] %v1010
  %1139 = vst [vmem:[%s2 + $0x34] sm:$0xf] %v1011
  %1140 = vst [vmem:[%s2 + $0x38] sm:$0xf] %v1012
  %1141 = vst [vmem:[%s2 + $0x3c] sm:$0xf] %v1013
  %1142 = vst [vmem:[%s2 + $0x40] sm:$0xf] %v1014
  %1143 = vst [vmem:[%s2 + $0x44] sm:$0xf] %v1015
  %1144 = vst [vmem:[%s2 + $0x48] sm:$0xf] %v1016
  %1145 = vst [vmem:[%s2 + $0x4c] sm:$0xf] %v1017
  %1146 = vst [vmem:[%s2 + $0x50] sm:$0xf] %v1018
  %1147 = vst [vmem:[%s2 + $0x54] sm:$0xf] %v1019
  %1148 = vst [vmem:[%s2 + $0x58] sm:$0xf] %v1020
  %1149 = vst [vmem:[%s2 + $0x5c] sm:$0xf] %v1021
  %1150 = vst [vmem:[%s2 + $0x60] sm:$0xf] %v1022
  %1151 = vst [vmem:[%s2 + $0x64] sm:$0xf] %v1023
  %1152 = vst [vmem:[%s2 + $0x68] sm:$0xf] %v1024
  %1153 = vst [vmem:[%s2 + $0x6c] sm:$0xf] %v1025
  %1154 = vst [vmem:[%s2 + $0x70] sm:$0xf] %v1026
  %1155 = vst [vmem:[%s2 + $0x74] sm:$0xf] %v1027
  %1156 = vst [vmem:[%s2 + $0x78] sm:$0xf] %v1028
  %1157 = vst [vmem:[%s2 + $0x7c] sm:$0xf] %v1029
  %1158 = vst [vmem:[%s2 + $0x80] sm:$0xf] %v1030
  %1159 = vst [vmem:[%s2 + $0x84] sm:$0xf] %v1031
  %1160 = vst [vmem:[%s2 + $0x88] sm:$0xf] %v1032
  %1161 = vst [vmem:[%s2 + $0x8c] sm:$0xf] %v1033
  %1162 = vst [vmem:[%s2 + $0x90] sm:$0xf] %v1034
  %1163 = vst [vmem:[%s2 + $0x94] sm:$0xf] %v1035
  %1164 = vst [vmem:[%s2 + $0x98] sm:$0xf] %v1036
  %1165 = vst [vmem:[%s2 + $0x9c] sm:$0xf] %v1037
  %1166 = vst [vmem:[%s2 + $0xa0] sm:$0xf] %v1038
  %1167 = vst [vmem:[%s2 + $0xa4] sm:$0xf] %v1039
  %1168 = vst [vmem:[%s2 + $0xa8] sm:$0xf] %v1040
  %1169 = vst [vmem:[%s2 + $0xac] sm:$0xf] %v1041
  %1170 = vst [vmem:[%s2 + $0xb0] sm:$0xf] %v1042
  %1171 = vst [vmem:[%s2 + $0xb4] sm:$0xf] %v1043
  %1172 = vst [vmem:[%s2 + $0xb8] sm:$0xf] %v1044
  %1173 = vst [vmem:[%s2 + $0xbc] sm:$0xf] %v1045
  %1174 = vst [vmem:[%s2 + $0xc0] sm:$0xf] %v1046
  %1175 = vst [vmem:[%s2 + $0xc4] sm:$0xf] %v1047
  %1176 = vst [vmem:[%s2 + $0xc8] sm:$0xf] %v1048
  %1177 = vst [vmem:[%s2 + $0xcc] sm:$0xf] %v1049
  %1178 = vst [vmem:[%s2 + $0xd0] sm:$0xf] %v1050
  %1179 = vst [vmem:[%s2 + $0xd4] sm:$0xf] %v1051
  %1180 = vst [vmem:[%s2 + $0xd8] sm:$0xf] %v1052
  %1181 = vst [vmem:[%s2 + $0xdc] sm:$0xf] %v1053
  %1182 = vst [vmem:[%s2 + $0xe0] sm:$0xf] %v1054
  %1183 = vst [vmem:[%s2 + $0xe4] sm:$0xf] %v1055
  %1184 = vst [vmem:[%s2 + $0xe8] sm:$0xf] %v1056
  %1185 = vst [vmem:[%s2 + $0xec] sm:$0xf] %v1057
  %1186 = vst [vmem:[%s2 + $0xf0] sm:$0xf] %v1058
  %1187 = vst [vmem:[%s2 + $0xf4] sm:$0xf] %v1059
  %1188 = vst [vmem:[%s2 + $0xf8] sm:$0xf] %v1060
  %1189 = vst [vmem:[%s2 + $0xfc] sm:$0xf] %v1061
  %1190 = vst [vmem:[%s2 + $0x100] sm:$0xf] %v1062
  %1191 = vst [vmem:[%s2 + $0x104] sm:$0xf] %v1063
  %1192 = vst [vmem:[%s2 + $0x108] sm:$0xf] %v1064
  %1193 = vst [vmem:[%s2 + $0x10c] sm:$0xf] %v1065
  %1194 = vst [vmem:[%s2 + $0x110] sm:$0xf] %v1066
  %1195 = vst [vmem:[%s2 + $0x114] sm:$0xf] %v1067
  %1196 = vst [vmem:[%s2 + $0x118] sm:$0xf] %v1068
  %1197 = vst [vmem:[%s2 + $0x11c] sm:$0xf] %v1069
  %1198 = vst [vmem:[%s2 + $0x120] sm:$0xf] %v1070
  %1199 = vst [vmem:[%s2 + $0x124] sm:$0xf] %v1071
  %1200 = vst [vmem:[%s2 + $0x128] sm:$0xf] %v1072
  %1201 = vst [vmem:[%s2 + $0x12c] sm:$0xf] %v1073
  %1202 = vst [vmem:[%s2 + $0x130] sm:$0xf] %v1074
  %1203 = vst [vmem:[%s2 + $0x134] sm:$0xf] %v1075
  %1204 = vst [vmem:[%s2 + $0x138] sm:$0xf] %v1076
  %1205 = vst [vmem:[%s2 + $0x13c] sm:$0xf] %v1077
  %1206 = vst [vmem:[%s2 + $0x140] sm:$0xf] %v1078
  %1207 = vst [vmem:[%s2 + $0x144] sm:$0xf] %v1079
  %1208 = vst [vmem:[%s2 + $0x148] sm:$0xf] %v1080
  %1209 = vst [vmem:[%s2 + $0x14c] sm:$0xf] %v1081
  %1210 = vst [vmem:[%s2 + $0x150] sm:$0xf] %v1082
  %1211 = vst [vmem:[%s2 + $0x154] sm:$0xf] %v1083
  %1212 = vst [vmem:[%s2 + $0x158] sm:$0xf] %v1084
  %1213 = vst [vmem:[%s2 + $0x15c] sm:$0xf] %v1085
  %1214 = vst [vmem:[%s2 + $0x160] sm:$0xf] %v1086
  %1215 = vst [vmem:[%s2 + $0x164] sm:$0xf] %v1087
  %1216 = vst [vmem:[%s2 + $0x168] sm:$0xf] %v1088
  %1217 = vst [vmem:[%s2 + $0x16c] sm:$0xf] %v1089
  %1218 = vst [vmem:[%s2 + $0x170] sm:$0xf] %v1090
  %1219 = vst [vmem:[%s2 + $0x174] sm:$0xf] %v1091
  %1220 = vst [vmem:[%s2 + $0x178] sm:$0xf] %v1092
  %1221 = vst [vmem:[%s2 + $0x17c] sm:$0xf] %v1093
  %1222 = vst [vmem:[%s2 + $0x180] sm:$0xf] %v1094
  %1223 = vst [vmem:[%s2 + $0x184] sm:$0xf] %v1095
  %1224 = vst [vmem:[%s2 + $0x188] sm:$0xf] %v1096
  %1225 = vst [vmem:[%s2 + $0x18c] sm:$0xf] %v1097
  %1226 = vst [vmem:[%s2 + $0x190] sm:$0xf] %v1098
  %1227 = vst [vmem:[%s2 + $0x194] sm:$0xf] %v1099
  %1228 = vst [vmem:[%s2 + $0x198] sm:$0xf] %v1100
  %1229 = vst [vmem:[%s2 + $0x19c] sm:$0xf] %v1101
  %1230 = vst [vmem:[%s2 + $0x1a0] sm:$0xf] %v1102
  %1231 = vst [vmem:[%s2 + $0x1a4] sm:$0xf] %v1103
  %1232 = vst [vmem:[%s2 + $0x1a8] sm:$0xf] %v1104
  %1233 = vst [vmem:[%s2 + $0x1ac] sm:$0xf] %v1105
  %1234 = vst [vmem:[%s2 + $0x1b0] sm:$0xf] %v1106
  %1235 = vst [vmem:[%s2 + $0x1b4] sm:$0xf] %v1107
  %1236 = vst [vmem:[%s2 + $0x1b8] sm:$0xf] %v1108
  %1237 = vst [vmem:[%s2 + $0x1bc] sm:$0xf] %v1109
  %1238 = vst [vmem:[%s2 + $0x1c0] sm:$0xf] %v1110
  %1239 = vst [vmem:[%s2 + $0x1c4] sm:$0xf] %v1111
  %1240 = vst [vmem:[%s2 + $0x1c8] sm:$0xf] %v1112
  %1241 = vst [vmem:[%s2 + $0x1cc] sm:$0xf] %v1113
  %1242 = vst [vmem:[%s2 + $0x1d0] sm:$0xf] %v1114
  %1243 = vst [vmem:[%s2 + $0x1d4] sm:$0xf] %v1115
  %1244 = vst [vmem:[%s2 + $0x1d8] sm:$0xf] %v1116
  %1245 = vst [vmem:[%s2 + $0x1dc] sm:$0xf] %v1117
  %1246 = vst [vmem:[%s2 + $0x1e0] sm:$0xf] %v1118
  %1247 = vst [vmem:[%s2 + $0x1e4] sm:$0xf] %v1119
  %1248 = vst [vmem:[%s2 + $0x1e8] sm:$0xf] %v1120
  %1249 = vst [vmem:[%s2 + $0x1ec] sm:$0xf] %v1121
  %1250 = vst [vmem:[%s2 + $0x1f0] sm:$0xf] %v1122
  %1251 = vst [vmem:[%s2 + $0x1f4] sm:$0xf] %v1123
  %1252 = vst [vmem:[%s2 + $0x1f8] sm:$0xf] %v1124
  %1253 = vst [vmem:[%s2 + $0x1fc] sm:$0xf] %v1125
  %v1254 = vadd.f32 %v679, %v681
  %v1255 = vadd.f32 %v1254, %v684
  %v1256 = vadd.f32 %v1255, %v686
  %v1257 = vadd.f32 %v1256, %v689
  %v1258 = vadd.f32 %v1257, %v691
  %v1259 = vadd.f32 %v1258, %v694
  %v1260 = vadd.f32 %v1259, %v696
  %v1261 = vadd.f32 %v1260, %v699
  %v1262 = vadd.f32 %v1261, %v701
  %v1263 = vadd.f32 %v1262, %v704
  %v1264 = vadd.f32 %v1263, %v706
  %v1265 = vadd.f32 %v1264, %v709
  %v1266 = vadd.f32 %v1265, %v711
  %v1267 = vadd.f32 %v1266, %v714
  %v1268 = vadd.f32 %v1267, %v716
  %v1269 = vadd.f32 %v1268, %v719
  %v1270 = vadd.f32 %v1269, %v721
  %v1271 = vadd.f32 %v1270, %v724
  %v1272 = vadd.f32 %v1271, %v726
  %v1273 = vadd.f32 %v1272, %v729
  %v1274 = vadd.f32 %v1273, %v731
  %v1275 = vadd.f32 %v1274, %v734
  %v1276 = vadd.f32 %v1275, %v736
  %v1277 = vadd.f32 %v1276, %v739
  %v1278 = vadd.f32 %v1277, %v741
  %v1279 = vadd.f32 %v1278, %v744
  %v1280 = vadd.f32 %v1279, %v746
  %v1281 = vadd.f32 %v1280, %v749
  %v1282 = vadd.f32 %v1281, %v751
  %v1283 = vadd.f32 %v1282, %v754
  %v1284 = vadd.f32 %v1283, %v756
  %v1285 = vadd.f32 %v1284, %v759
  %v1286 = vadd.f32 %v1285, %v761
  %v1287 = vadd.f32 %v1286, %v764
  %v1288 = vadd.f32 %v1287, %v766
  %v1289 = vadd.f32 %v1288, %v769
  %v1290 = vadd.f32 %v1289, %v771
  %v1291 = vadd.f32 %v1290, %v774
  %v1292 = vadd.f32 %v1291, %v776
  %v1293 = vadd.f32 %v1292, %v779
  %v1294 = vadd.f32 %v1293, %v781
  %v1295 = vadd.f32 %v1294, %v784
  %v1296 = vadd.f32 %v1295, %v786
  %v1297 = vadd.f32 %v1296, %v789
  %v1298 = vadd.f32 %v1297, %v791
  %v1299 = vadd.f32 %v1298, %v794
  %v1300 = vadd.f32 %v1299, %v796
  %v1301 = vadd.f32 %v1300, %v799
  %v1302 = vadd.f32 %v1301, %v801
  %v1303 = vadd.f32 %v1302, %v804
  %v1304 = vadd.f32 %v1303, %v806
  %v1305 = vadd.f32 %v1304, %v809
  %v1306 = vadd.f32 %v1305, %v811
  %v1307 = vadd.f32 %v1306, %v814
  %v1308 = vadd.f32 %v1307, %v816
  %v1309 = vadd.f32 %v1308, %v819
  %v1310 = vadd.f32 %v1309, %v821
  %v1311 = vadd.f32 %v1310, %v824
  %v1312 = vadd.f32 %v1311, %v826
  %v1313 = vadd.f32 %v1312, %v829
  %v1314 = vadd.f32 %v1313, %v831
  %v1315 = vadd.f32 %v1314, %v834
  %v1316 = vadd.f32 %v1315, %v836
  %v1317 = vadd.f32 %v1316, %v839
  %v1318 = vadd.f32 %v1317, %v841
  %v1319 = vadd.f32 %v1318, %v844
  %v1320 = vadd.f32 %v1319, %v846
  %v1321 = vadd.f32 %v1320, %v849
  %v1322 = vadd.f32 %v1321, %v851
  %v1323 = vadd.f32 %v1322, %v854
  %v1324 = vadd.f32 %v1323, %v856
  %v1325 = vadd.f32 %v1324, %v859
  %v1326 = vadd.f32 %v1325, %v861
  %v1327 = vadd.f32 %v1326, %v864
  %v1328 = vadd.f32 %v1327, %v866
  %v1329 = vadd.f32 %v1328, %v869
  %v1330 = vadd.f32 %v1329, %v871
  %v1331 = vadd.f32 %v1330, %v874
  %v1332 = vadd.f32 %v1331, %v876
  %v1333 = vadd.f32 %v1332, %v879
  %v1334 = vadd.f32 %v1333, %v881
  %v1335 = vadd.f32 %v1334, %v884
  %v1336 = vadd.f32 %v1335, %v886
  %v1337 = vadd.f32 %v1336, %v889
  %v1338 = vadd.f32 %v1337, %v891
  %v1339 = vadd.f32 %v1338, %v894
  %v1340 = vadd.f32 %v1339, %v896
  %v1341 = vadd.f32 %v1340, %v899
  %v1342 = vadd.f32 %v1341, %v901
  %v1343 = vadd.f32 %v1342, %v904
  %v1344 = vadd.f32 %v1343, %v906
  %v1345 = vadd.f32 %v1344, %v909
  %v1346 = vadd.f32 %v1345, %v911
  %v1347 = vadd.f32 %v1346, %v914
  %v1348 = vadd.f32 %v1347, %v916
  %v1349 = vadd.f32 %v1348, %v919
  %v1350 = vadd.f32 %v1349, %v921
  %v1351 = vadd.f32 %v1350, %v924
  %v1352 = vadd.f32 %v1351, %v926
  %v1353 = vadd.f32 %v1352, %v929
  %v1354 = vadd.f32 %v1353, %v931
  %v1355 = vadd.f32 %v1354, %v934
  %v1356 = vadd.f32 %v1355, %v936
  %v1357 = vadd.f32 %v1356, %v939
  %v1358 = vadd.f32 %v1357, %v941
  %v1359 = vadd.f32 %v1358, %v944
  %v1360 = vadd.f32 %v1359, %v946
  %v1361 = vadd.f32 %v1360, %v949
  %v1362 = vadd.f32 %v1361, %v951
  %v1363 = vadd.f32 %v1362, %v954
  %v1364 = vadd.f32 %v1363, %v956
  %v1365 = vadd.f32 %v1364, %v959
  %v1366 = vadd.f32 %v1365, %v961
  %v1367 = vadd.f32 %v1366, %v964
  %v1368 = vadd.f32 %v1367, %v966
  %v1369 = vadd.f32 %v1368, %v969
  %v1370 = vadd.f32 %v1369, %v971
  %v1371 = vadd.f32 %v1370, %v974
  %v1372 = vadd.f32 %v1371, %v976
  %v1373 = vadd.f32 %v1372, %v979
  %v1374 = vadd.f32 %v1373, %v981
  %v1375 = vadd.f32 %v1374, %v984
  %v1376 = vadd.f32 %v1375, %v986
  %v1377 = vadd.f32 %v1376, %v989
  %v1378 = vadd.f32 %v1377, %v991
  %v1379 = vadd.f32 %v1378, %v994
  %v1380 = vadd.f32 %v1379, %v996
  %v1381 = vrot.slane %v1380, 4
  %v1382 = vadd.f32 %v1380, %v1381
  %v1383 = vrot.slane %v1382, 2
  %v1384 = vadd.f32 %v1382, %v1383
  %v1385 = vrot.slane %v1384, 1
  %v1386 = vadd.f32 %v1384, %v1385
  %v1387 = vmul.f32 %v679, %v679
  %v1388 = vmul.f32 %v681, %v681
  %v1389 = vmul.f32 %v684, %v684
  %v1390 = vmul.f32 %v686, %v686
  %v1391 = vmul.f32 %v689, %v689
  %v1392 = vmul.f32 %v691, %v691
  %v1393 = vmul.f32 %v694, %v694
  %v1394 = vmul.f32 %v696, %v696
  %v1395 = vmul.f32 %v699, %v699
  %v1396 = vmul.f32 %v701, %v701
  %v1397 = vmul.f32 %v704, %v704
  %v1398 = vmul.f32 %v706, %v706
  %v1399 = vmul.f32 %v709, %v709
  %v1400 = vmul.f32 %v711, %v711
  %v1401 = vmul.f32 %v714, %v714
  %v1402 = vmul.f32 %v716, %v716
  %v1403 = vmul.f32 %v719, %v719
  %v1404 = vmul.f32 %v721, %v721
  %v1405 = vmul.f32 %v724, %v724
  %v1406 = vmul.f32 %v726, %v726
  %v1407 = vmul.f32 %v729, %v729
  %v1408 = vmul.f32 %v731, %v731
  %v1409 = vmul.f32 %v734, %v734
  %v1410 = vmul.f32 %v736, %v736
  %v1411 = vmul.f32 %v739, %v739
  %v1412 = vmul.f32 %v741, %v741
  %v1413 = vmul.f32 %v744, %v744
  %v1414 = vmul.f32 %v746, %v746
  %v1415 = vmul.f32 %v749, %v749
  %v1416 = vmul.f32 %v751, %v751
  %v1417 = vmul.f32 %v754, %v754
  %v1418 = vmul.f32 %v756, %v756
  %v1419 = vmul.f32 %v759, %v759
  %v1420 = vmul.f32 %v761, %v761
  %v1421 = vmul.f32 %v764, %v764
  %v1422 = vmul.f32 %v766, %v766
  %v1423 = vmul.f32 %v769, %v769
  %v1424 = vmul.f32 %v771, %v771
  %v1425 = vmul.f32 %v774, %v774
  %v1426 = vmul.f32 %v776, %v776
  %v1427 = vmul.f32 %v779, %v779
  %v1428 = vmul.f32 %v781, %v781
  %v1429 = vmul.f32 %v784, %v784
  %v1430 = vmul.f32 %v786, %v786
  %v1431 = vmul.f32 %v789, %v789
  %v1432 = vmul.f32 %v791, %v791
  %v1433 = vmul.f32 %v794, %v794
  %v1434 = vmul.f32 %v796, %v796
  %v1435 = vmul.f32 %v799, %v799
  %v1436 = vmul.f32 %v801, %v801
  %v1437 = vmul.f32 %v804, %v804
  %v1438 = vmul.f32 %v806, %v806
  %v1439 = vmul.f32 %v809, %v809
  %v1440 = vmul.f32 %v811, %v811
  %v1441 = vmul.f32 %v814, %v814
  %v1442 = vmul.f32 %v816, %v816
  %v1443 = vmul.f32 %v819, %v819
  %v1444 = vmul.f32 %v821, %v821
  %v1445 = vmul.f32 %v824, %v824
  %v1446 = vmul.f32 %v826, %v826
  %v1447 = vmul.f32 %v829, %v829
  %v1448 = vmul.f32 %v831, %v831
  %v1449 = vmul.f32 %v834, %v834
  %v1450 = vmul.f32 %v836, %v836
  %v1451 = vmul.f32 %v839, %v839
  %v1452 = vmul.f32 %v841, %v841
  %v1453 = vmul.f32 %v844, %v844
  %v1454 = vmul.f32 %v846, %v846
  %v1455 = vmul.f32 %v849, %v849
  %v1456 = vmul.f32 %v851, %v851
  %v1457 = vmul.f32 %v854, %v854
  %v1458 = vmul.f32 %v856, %v856
  %v1459 = vmul.f32 %v859, %v859
  %v1460 = vmul.f32 %v861, %v861
  %v1461 = vmul.f32 %v864, %v864
  %v1462 = vmul.f32 %v866, %v866
  %v1463 = vmul.f32 %v869, %v869
  %v1464 = vmul.f32 %v871, %v871
  %v1465 = vmul.f32 %v874, %v874
  %v1466 = vmul.f32 %v876, %v876
  %v1467 = vmul.f32 %v879, %v879
  %v1468 = vmul.f32 %v881, %v881
  %v1469 = vmul.f32 %v884, %v884
  %v1470 = vmul.f32 %v886, %v886
  %v1471 = vmul.f32 %v889, %v889
  %v1472 = vmul.f32 %v891, %v891
  %v1473 = vmul.f32 %v894, %v894
  %v1474 = vmul.f32 %v896, %v896
  %v1475 = vmul.f32 %v899, %v899
  %v1476 = vmul.f32 %v901, %v901
  %v1477 = vmul.f32 %v904, %v904
  %v1478 = vmul.f32 %v906, %v906
  %v1479 = vmul.f32 %v909, %v909
  %v1480 = vmul.f32 %v911, %v911
  %v1481 = vmul.f32 %v914, %v914
  %v1482 = vmul.f32 %v916, %v916
  %v1483 = vmul.f32 %v919, %v919
  %v1484 = vmul.f32 %v921, %v921
  %v1485 = vmul.f32 %v924, %v924
  %v1486 = vmul.f32 %v926, %v926
  %v1487 = vmul.f32 %v929, %v929
  %v1488 = vmul.f32 %v931, %v931
  %v1489 = vmul.f32 %v934, %v934
  %v1490 = vmul.f32 %v936, %v936
  %v1491 = vmul.f32 %v939, %v939
  %v1492 = vmul.f32 %v941, %v941
  %v1493 = vmul.f32 %v944, %v944
  %v1494 = vmul.f32 %v946, %v946
  %v1495 = vmul.f32 %v949, %v949
  %v1496 = vmul.f32 %v951, %v951
  %v1497 = vmul.f32 %v954, %v954
  %v1498 = vmul.f32 %v956, %v956
  %v1499 = vmul.f32 %v959, %v959
  %v1500 = vmul.f32 %v961, %v961
  %v1501 = vmul.f32 %v964, %v964
  %v1502 = vmul.f32 %v966, %v966
  %v1503 = vmul.f32 %v969, %v969
  %v1504 = vmul.f32 %v971, %v971
  %v1505 = vmul.f32 %v974, %v974
  %v1506 = vmul.f32 %v976, %v976
  %v1507 = vmul.f32 %v979, %v979
  %v1508 = vmul.f32 %v981, %v981
  %v1509 = vmul.f32 %v984, %v984
  %v1510 = vmul.f32 %v986, %v986
  %v1511 = vmul.f32 %v989, %v989
  %v1512 = vmul.f32 %v991, %v991
  %v1513 = vmul.f32 %v994, %v994
  %v1514 = vmul.f32 %v996, %v996
  %v1515 = vadd.f32 %v1387, %v1388
  %v1516 = vadd.f32 %v1515, %v1389
  %v1517 = vadd.f32 %v1516, %v1390
  %v1518 = vadd.f32 %v1517, %v1391
  %v1519 = vadd.f32 %v1518, %v1392
  %v1520 = vadd.f32 %v1519, %v1393
  %v1521 = vadd.f32 %v1520, %v1394
  %v1522 = vadd.f32 %v1521, %v1395
  %v1523 = vadd.f32 %v1522, %v1396
  %v1524 = vadd.f32 %v1523, %v1397
  %v1525 = vadd.f32 %v1524, %v1398
  %v1526 = vadd.f32 %v1525, %v1399
  %v1527 = vadd.f32 %v1526, %v1400
  %v1528 = vadd.f32 %v1527, %v1401
  %v1529 = vadd.f32 %v1528, %v1402
  %v1530 = vadd.f32 %v1529, %v1403
  %v1531 = vadd.f32 %v1530, %v1404
  %v1532 = vadd.f32 %v1531, %v1405
  %v1533 = vadd.f32 %v1532, %v1406
  %v1534 = vadd.f32 %v1533, %v1407
  %v1535 = vadd.f32 %v1534, %v1408
  %v1536 = vadd.f32 %v1535, %v1409
  %v1537 = vadd.f32 %v1536, %v1410
  %v1538 = vadd.f32 %v1537, %v1411
  %v1539 = vadd.f32 %v1538, %v1412
  %v1540 = vadd.f32 %v1539, %v1413
  %v1541 = vadd.f32 %v1540, %v1414
  %v1542 = vadd.f32 %v1541, %v1415
  %v1543 = vadd.f32 %v1542, %v1416
  %v1544 = vadd.f32 %v1543, %v1417
  %v1545 = vadd.f32 %v1544, %v1418
  %v1546 = vadd.f32 %v1545, %v1419
  %v1547 = vadd.f32 %v1546, %v1420
  %v1548 = vadd.f32 %v1547, %v1421
  %v1549 = vadd.f32 %v1548, %v1422
  %v1550 = vadd.f32 %v1549, %v1423
  %v1551 = vadd.f32 %v1550, %v1424
  %v1552 = vadd.f32 %v1551, %v1425
  %v1553 = vadd.f32 %v1552, %v1426
  %v1554 = vadd.f32 %v1553, %v1427
  %v1555 = vadd.f32 %v1554, %v1428
  %v1556 = vadd.f32 %v1555, %v1429
  %v1557 = vadd.f32 %v1556, %v1430
  %v1558 = vadd.f32 %v1557, %v1431
  %v1559 = vadd.f32 %v1558, %v1432
  %v1560 = vadd.f32 %v1559, %v1433
  %v1561 = vadd.f32 %v1560, %v1434
  %v1562 = vadd.f32 %v1561, %v1435
  %v1563 = vadd.f32 %v1562, %v1436
  %v1564 = vadd.f32 %v1563, %v1437
  %v1565 = vadd.f32 %v1564, %v1438
  %v1566 = vadd.f32 %v1565, %v1439
  %v1567 = vadd.f32 %v1566, %v1440
  %v1568 = vadd.f32 %v1567, %v1441
  %v1569 = vadd.f32 %v1568, %v1442
  %v1570 = vadd.f32 %v1569, %v1443
  %v1571 = vadd.f32 %v1570, %v1444
  %v1572 = vadd.f32 %v1571, %v1445
  %v1573 = vadd.f32 %v1572, %v1446
  %v1574 = vadd.f32 %v1573, %v1447
  %v1575 = vadd.f32 %v1574, %v1448
  %v1576 = vadd.f32 %v1575, %v1449
  %v1577 = vadd.f32 %v1576, %v1450
  %v1578 = vadd.f32 %v1577, %v1451
  %v1579 = vadd.f32 %v1578, %v1452
  %v1580 = vadd.f32 %v1579, %v1453
  %v1581 = vadd.f32 %v1580, %v1454
  %v1582 = vadd.f32 %v1581, %v1455
  %v1583 = vadd.f32 %v1582, %v1456
  %v1584 = vadd.f32 %v1583, %v1457
  %v1585 = vadd.f32 %v1584, %v1458
  %v1586 = vadd.f32 %v1585, %v1459
  %v1587 = vadd.f32 %v1586, %v1460
  %v1588 = vadd.f32 %v1587, %v1461
  %v1589 = vadd.f32 %v1588, %v1462
  %v1590 = vadd.f32 %v1589, %v1463
  %v1591 = vadd.f32 %v1590, %v1464
  %v1592 = vadd.f32 %v1591, %v1465
  %v1593 = vadd.f32 %v1592, %v1466
  %v1594 = vadd.f32 %v1593, %v1467
  %v1595 = vadd.f32 %v1594, %v1468
  %v1596 = vadd.f32 %v1595, %v1469
  %v1597 = vadd.f32 %v1596, %v1470
  %v1598 = vadd.f32 %v1597, %v1471
  %v1599 = vadd.f32 %v1598, %v1472
  %v1600 = vadd.f32 %v1599, %v1473
  %v1601 = vadd.f32 %v1600, %v1474
  %v1602 = vadd.f32 %v1601, %v1475
  %v1603 = vadd.f32 %v1602, %v1476
  %v1604 = vadd.f32 %v1603, %v1477
  %v1605 = vadd.f32 %v1604, %v1478
  %v1606 = vadd.f32 %v1605, %v1479
  %v1607 = vadd.f32 %v1606, %v1480
  %v1608 = vadd.f32 %v1607, %v1481
  %v1609 = vadd.f32 %v1608, %v1482
  %v1610 = vadd.f32 %v1609, %v1483
  %v1611 = vadd.f32 %v1610, %v1484
  %v1612 = vadd.f32 %v1611, %v1485
  %v1613 = vadd.f32 %v1612, %v1486
  %v1614 = vadd.f32 %v1613, %v1487
  %v1615 = vadd.f32 %v1614, %v1488
  %v1616 = vadd.f32 %v1615, %v1489
  %v1617 = vadd.f32 %v1616, %v1490
  %v1618 = vadd.f32 %v1617, %v1491
  %v1619 = vadd.f32 %v1618, %v1492
  %v1620 = vadd.f32 %v1619, %v1493
  %v1621 = vadd.f32 %v1620, %v1494
  %v1622 = vadd.f32 %v1621, %v1495
  %v1623 = vadd.f32 %v1622, %v1496
  %v1624 = vadd.f32 %v1623, %v1497
  %v1625 = vadd.f32 %v1624, %v1498
  %v1626 = vadd.f32 %v1625, %v1499
  %v1627 = vadd.f32 %v1626, %v1500
  %v1628 = vadd.f32 %v1627, %v1501
  %v1629 = vadd.f32 %v1628, %v1502
  %v1630 = vadd.f32 %v1629, %v1503
  %v1631 = vadd.f32 %v1630, %v1504
  %v1632 = vadd.f32 %v1631, %v1505
  %v1633 = vadd.f32 %v1632, %v1506
  %v1634 = vadd.f32 %v1633, %v1507
  %v1635 = vadd.f32 %v1634, %v1508
  %v1636 = vadd.f32 %v1635, %v1509
  %v1637 = vadd.f32 %v1636, %v1510
  %v1638 = vadd.f32 %v1637, %v1511
  %v1639 = vadd.f32 %v1638, %v1512
  %v1640 = vadd.f32 %v1639, %v1513
  %v1641 = vadd.f32 %v1640, %v1514
  %v1642 = vrot.slane %v1641, 4
  %v1643 = vadd.f32 %v1641, %v1642
  %v1644 = vrot.slane %v1643, 2
  %v1645 = vadd.f32 %v1643, %v1644
  %v1646 = vrot.slane %v1645, 1
  %v1647 = vadd.f32 %v1645, %v1646
  %vm1648 = vcmask 1040384
  %v1649 = vsel %vm1648, %v1386, %v1647
  %1650 = vst [vmem:[%s3] sm:$0x3] %v1649
  // Predicated region
  $region10: #{_lambda_.14} parent=0 // pred_check
    _
  $region11: #{_lambda_.14} parent=0 // pred_check_branch
    %1652 = sbr.rel (0) target = $region13
  $region12: #{_lambda_.14} parent=0 // pred_region
    _
  $region13: #{_lambda_.14} parent=0 // pred_fallthru
    _
  // Predicated region
  $region14: #{_lambda_.14} parent=0 // pred_check
    _
  $region15: #{_lambda_.14} parent=0 // pred_check_branch
    %1654 = sbr.rel (0) target = $region17
  $region16: #{_lambda_.14} parent=0 // pred_region
    _
  $region17: #{_lambda_.14} parent=0 // pred_fallthru
    _
  // Predicated region
  $region18: #{_lambda_.14} parent=0 // pred_check
    _
  $region19: #{_lambda_.14} parent=0 // pred_check_branch
    %1656 = sbr.rel (0) target = $region21
  $region20: #{_lambda_.14} parent=0 // pred_region
    _
  $region21: #{_lambda_.14} parent=0 // pred_fallthru
    _
  // Predicated region
  $region22: #{_lambda_.14} parent=0 // pred_check
    _
  $region23: #{_lambda_.14} parent=0 // pred_check_branch
    %1658 = sbr.rel (0) target = $region25
  $region24: #{_lambda_.14} parent=0 // pred_region
    _
  $region25: #{_lambda_.14} parent=0 // pred_fallthru
    _

// kernel: _lambda_.17
$region0: #{_lambda_.17}
  #allocation0 [shape = 'u32[]', space=smem, size = 0x4, offset = 0x4, fixed_abs, tag = 'smem constant byte address 0x4 - core index']
  #allocation1 [shape = 'u32[72,128]{1,0:T(1,128)}', space=vmem, size = 0x9000, scoped, tag = 'internal scratch']
  %s0 = inlined_call_operand.vmem [shape: bf16[256,128], index: 0, kind: input, shape index: {}]
  %s1 = inlined_call_operand.vmem [shape: f32[1,128], index: 1, kind: input, shape index: {}]
  %s2 = inlined_call_operand.vmem [shape: f32[1,128], index: 2, kind: input, shape index: {}]
  %s3 = inlined_call_operand.vmem [shape: bf16[256,128], index: 3, kind: output, shape index: {}]
  %s4 = sld [smem:[#allocation0]]
  $region22: #{_lambda_.17} parent=0
    _
  %s6 = ssub.s32 1, %s4
  %s7 = scalar_select 0, %s6, %s4
  // Predicated region
  $region2: #{_lambda_.17} parent=0 // pred_check
    _
  $region3: #{_lambda_.17} parent=0 // pred_check_branch
    %9 = sbr.rel (0) target = $region5
  $region4: #{_lambda_.17} parent=0 // pred_region
    _
  $region5: #{_lambda_.17} parent=0 // pred_fallthru
    _
  // Predicated region
  $region6: #{_lambda_.17} parent=0 // pred_check
    _
  $region7: #{_lambda_.17} parent=0 // pred_check_branch
    %11 = sbr.rel (0) target = $region9
  $region8: #{_lambda_.17} parent=0 // pred_region
    _
  $region9: #{_lambda_.17} parent=0 // pred_fallthru
    _
  // Predicated region
  $region10: #{_lambda_.17} parent=0 // pred_check
    _
  $region11: #{_lambda_.17} parent=0 // pred_check_branch
    %13 = sbr.rel (0) target = $region13
  $region12: #{_lambda_.17} parent=0 // pred_region
    _
  $region13: #{_lambda_.17} parent=0 // pred_fallthru
    _
  %v14 = vld [vmem:[%s0] sm:$0xf]
  %v15 = vld [vmem:[%s0 + $0x4] sm:$0xf]
  %v16 = vld [vmem:[%s0 + $0x8] sm:$0xf]
  %v17 = vld [vmem:[%s0 + $0xc] sm:$0xf]
  %v18 = vld [vmem:[%s0 + $0x10] sm:$0xf]
  %v19 = vld [vmem:[%s0 + $0x14] sm:$0xf]
  %v20 = vld [vmem:[%s0 + $0x18] sm:$0xf]
  %v21 = vld [vmem:[%s0 + $0x1c] sm:$0xf]
  %v22 = vld [vmem:[%s0 + $0x20] sm:$0xf]
  %v23 = vld [vmem:[%s0 + $0x24] sm:$0xf]
  %v24 = vld [vmem:[%s0 + $0x28] sm:$0xf]
  %v25 = vld [vmem:[%s0 + $0x2c] sm:$0xf]
  %v26 = vld [vmem:[%s0 + $0x30] sm:$0xf]
  %v27 = vld [vmem:[%s0 + $0x34] sm:$0xf]
  %v28 = vld [vmem:[%s0 + $0x38] sm:$0xf]
  %v29 = vld [vmem:[%s0 + $0x3c] sm:$0xf]
  %v30 = vld [vmem:[%s0 + $0x40] sm:$0xf]
  %v31 = vld [vmem:[%s0 + $0x44] sm:$0xf]
  %v32 = vld [vmem:[%s0 + $0x48] sm:$0xf]
  %v33 = vld [vmem:[%s0 + $0x4c] sm:$0xf]
  %v34 = vld [vmem:[%s0 + $0x50] sm:$0xf]
  %v35 = vld [vmem:[%s0 + $0x54] sm:$0xf]
  %v36 = vld [vmem:[%s0 + $0x58] sm:$0xf]
  %v37 = vld [vmem:[%s0 + $0x5c] sm:$0xf]
  %v38 = vld [vmem:[%s0 + $0x60] sm:$0xf]
  %v39 = vld [vmem:[%s0 + $0x64] sm:$0xf]
  %v40 = vld [vmem:[%s0 + $0x68] sm:$0xf]
  %v41 = vld [vmem:[%s0 + $0x6c] sm:$0xf]
  %v42 = vld [vmem:[%s0 + $0x70] sm:$0xf]
  %v43 = vld [vmem:[%s0 + $0x74] sm:$0xf]
  %v44 = vld [vmem:[%s0 + $0x78] sm:$0xf]
  %v45 = vld [vmem:[%s0 + $0x7c] sm:$0xf]
  %v46 = vunpack.c.l.bf16 %v14
  %v47 = vunpack.c.l.bf16 %v15
  %v48 = vunpack.c.l.bf16 %v16
  %v49 = vunpack.c.l.bf16 %v17
  %v50 = vunpack.c.l.bf16 %v18
  %v51 = vunpack.c.l.bf16 %v19
  %v52 = vunpack.c.l.bf16 %v20
  %v53 = vunpack.c.l.bf16 %v21
  %v54 = vunpack.c.l.bf16 %v22
  %v55 = vunpack.c.l.bf16 %v23
  %v56 = vunpack.c.l.bf16 %v24
  %v57 = vunpack.c.l.bf16 %v25
  %v58 = vunpack.c.l.bf16 %v26
  %v59 = vunpack.c.l.bf16 %v27
  %v60 = vunpack.c.l.bf16 %v28
  %v61 = vunpack.c.l.bf16 %v29
  %v62 = vunpack.c.l.bf16 %v30
  %v63 = vunpack.c.l.bf16 %v31
  %v64 = vunpack.c.l.bf16 %v32
  %v65 = vunpack.c.l.bf16 %v33
  %v66 = vunpack.c.l.bf16 %v34
  %v67 = vunpack.c.l.bf16 %v35
  %v68 = vunpack.c.l.bf16 %v36
  %v69 = vunpack.c.l.bf16 %v37
  %v70 = vunpack.c.l.bf16 %v38
  %v71 = vunpack.c.l.bf16 %v39
  %v72 = vunpack.c.l.bf16 %v40
  %v73 = vunpack.c.l.bf16 %v41
  %v74 = vunpack.c.l.bf16 %v42
  %v75 = vunpack.c.l.bf16 %v43
  %v76 = vunpack.c.l.bf16 %v44
  %v77 = vunpack.c.l.bf16 %v45
  %v78 = vld [vmem:[%s1] sm:$0x1]
  %v80 = vperm.slane %v78, 0
  %v82 = vmul.f32 %v46, %v80
  %v83 = vmul.f32 %v47, %v80
  %v84 = vmul.f32 %v48, %v80
  %v85 = vmul.f32 %v49, %v80
  %v86 = vmul.f32 %v50, %v80
  %v87 = vmul.f32 %v51, %v80
  %v88 = vmul.f32 %v52, %v80
  %v89 = vmul.f32 %v53, %v80
  %v90 = vmul.f32 %v54, %v80
  %v91 = vmul.f32 %v55, %v80
  %v92 = vmul.f32 %v56, %v80
  %v93 = vmul.f32 %v57, %v80
  %v94 = vmul.f32 %v58, %v80
  %v95 = vmul.f32 %v59, %v80
  %v96 = vmul.f32 %v60, %v80
  %v97 = vmul.f32 %v61, %v80
  %v98 = vmul.f32 %v62, %v80
  %v99 = vmul.f32 %v63, %v80
  %v100 = vmul.f32 %v64, %v80
  %v101 = vmul.f32 %v65, %v80
  %v102 = vmul.f32 %v66, %v80
  %v103 = vmul.f32 %v67, %v80
  %v104 = vmul.f32 %v68, %v80
  %v105 = vmul.f32 %v69, %v80
  %v106 = vmul.f32 %v70, %v80
  %v107 = vmul.f32 %v71, %v80
  %v108 = vmul.f32 %v72, %v80
  %v109 = vmul.f32 %v73, %v80
  %v110 = vmul.f32 %v74, %v80
  %v111 = vmul.f32 %v75, %v80
  %v112 = vmul.f32 %v76, %v80
  %v113 = vmul.f32 %v77, %v80
  %v114 = vld [vmem:[%s2] sm:$0x1]
  %v116 = vperm.slane %v114, 0
  %v118 = vadd.f32 %v82, %v116
  %v119 = vadd.f32 %v83, %v116
  %v120 = vadd.f32 %v84, %v116
  %v121 = vadd.f32 %v85, %v116
  %v122 = vadd.f32 %v86, %v116
  %v123 = vadd.f32 %v87, %v116
  %v124 = vadd.f32 %v88, %v116
  %v125 = vadd.f32 %v89, %v116
  %v126 = vadd.f32 %v90, %v116
  %v127 = vadd.f32 %v91, %v116
  %v128 = vadd.f32 %v92, %v116
  %v129 = vadd.f32 %v93, %v116
  %v130 = vadd.f32 %v94, %v116
  %v131 = vadd.f32 %v95, %v116
  %v132 = vadd.f32 %v96, %v116
  %v133 = vadd.f32 %v97, %v116
  %v134 = vadd.f32 %v98, %v116
  %v135 = vadd.f32 %v99, %v116
  %v136 = vadd.f32 %v100, %v116
  %v137 = vadd.f32 %v101, %v116
  %v138 = vadd.f32 %v102, %v116
  %v139 = vadd.f32 %v103, %v116
  %v140 = vadd.f32 %v104, %v116
  %v141 = vadd.f32 %v105, %v116
  %v142 = vadd.f32 %v106, %v116
  %v143 = vadd.f32 %v107, %v116
  %v144 = vadd.f32 %v108, %v116
  %v145 = vadd.f32 %v109, %v116
  %v146 = vadd.f32 %v110, %v116
  %v147 = vadd.f32 %v111, %v116
  %v148 = vadd.f32 %v112, %v116
  %v149 = vadd.f32 %v113, %v116
  %v150 = vmax.f32 %v118, 0.0
  %v151 = vmax.f32 %v119, 0.0
  %v152 = vmax.f32 %v120, 0.0
  %v153 = vmax.f32 %v121, 0.0
  %v154 = vmax.f32 %v122, 0.0
  %v155 = vmax.f32 %v123, 0.0
  %v156 = vmax.f32 %v124, 0.0
  %v157 = vmax.f32 %v125, 0.0
  %v158 = vmax.f32 %v126, 0.0
  %v159 = vmax.f32 %v127, 0.0
  %v160 = vmax.f32 %v128, 0.0
  %v161 = vmax.f32 %v129, 0.0
  %v162 = vmax.f32 %v130, 0.0
  %v163 = vmax.f32 %v131, 0.0
  %v164 = vmax.f32 %v132, 0.0
  %v165 = vmax.f32 %v133, 0.0
  %v166 = vmax.f32 %v134, 0.0
  %v167 = vmax.f32 %v135, 0.0
  %v168 = vmax.f32 %v136, 0.0
  %v169 = vmax.f32 %v137, 0.0
  %v170 = vmax.f32 %v138, 0.0
  %v171 = vmax.f32 %v139, 0.0
  %v172 = vmax.f32 %v140, 0.0
  %v173 = vmax.f32 %v141, 0.0
  %v174 = vmax.f32 %v142, 0.0
  %v175 = vmax.f32 %v143, 0.0
  %v176 = vmax.f32 %v144, 0.0
  %v177 = vmax.f32 %v145, 0.0
  %v178 = vmax.f32 %v146, 0.0
  %v179 = vmax.f32 %v147, 0.0
  %v180 = vmax.f32 %v148, 0.0
  %v181 = vmax.f32 %v149, 0.0
  %v182 = vpack.c.bf16 %v150, %v150
  %v183 = vpack.c.bf16 %v151, %v151
  %v184 = vpack.c.bf16 %v152, %v152
  %v185 = vpack.c.bf16 %v153, %v153
  %v186 = vpack.c.bf16 %v154, %v154
  %v187 = vpack.c.bf16 %v155, %v155
  %v188 = vpack.c.bf16 %v156, %v156
  %v189 = vpack.c.bf16 %v157, %v157
  %v190 = vpack.c.bf16 %v158, %v158
  %v191 = vpack.c.bf16 %v159, %v159
  %v192 = vpack.c.bf16 %v160, %v160
  %v193 = vpack.c.bf16 %v161, %v161
  %v194 = vpack.c.bf16 %v162, %v162
  %v195 = vpack.c.bf16 %v163, %v163
  %v196 = vpack.c.bf16 %v164, %v164
  %v197 = vpack.c.bf16 %v165, %v165
  %v198 = vpack.c.bf16 %v166, %v166
  %v199 = vpack.c.bf16 %v167, %v167
  %v200 = vpack.c.bf16 %v168, %v168
  %v201 = vpack.c.bf16 %v169, %v169
  %v202 = vpack.c.bf16 %v170, %v170
  %v203 = vpack.c.bf16 %v171, %v171
  %v204 = vpack.c.bf16 %v172, %v172
  %v205 = vpack.c.bf16 %v173, %v173
  %v206 = vpack.c.bf16 %v174, %v174
  %v207 = vpack.c.bf16 %v175, %v175
  %v208 = vpack.c.bf16 %v176, %v176
  %v209 = vpack.c.bf16 %v177, %v177
  %v210 = vpack.c.bf16 %v178, %v178
  %v211 = vpack.c.bf16 %v179, %v179
  %v212 = vpack.c.bf16 %v180, %v180
  %v213 = vpack.c.bf16 %v181, %v181
  %214 = vst [vmem:[%s3] sm:$0xf] %v182
  %215 = vst [vmem:[%s3 + $0x4] sm:$0xf] %v183
  %216 = vst [vmem:[%s3 + $0x8] sm:$0xf] %v184
  %217 = vst [vmem:[%s3 + $0xc] sm:$0xf] %v185
  %218 = vst [vmem:[%s3 + $0x10] sm:$0xf] %v186
  %219 = vst [vmem:[%s3 + $0x14] sm:$0xf] %v187
  %220 = vst [vmem:[%s3 + $0x18] sm:$0xf] %v188
  %221 = vst [vmem:[%s3 + $0x1c] sm:$0xf] %v189
  %222 = vst [vmem:[%s3 + $0x20] sm:$0xf] %v190
  %223 = vst [vmem:[%s3 + $0x24] sm:$0xf] %v191
  %224 = vst [vmem:[%s3 + $0x28] sm:$0xf] %v192
  %225 = vst [vmem:[%s3 + $0x2c] sm:$0xf] %v193
  %226 = vst [vmem:[%s3 + $0x30] sm:$0xf] %v194
  %227 = vst [vmem:[%s3 + $0x34] sm:$0xf] %v195
  %228 = vst [vmem:[%s3 + $0x38] sm:$0xf] %v196
  %229 = vst [vmem:[%s3 + $0x3c] sm:$0xf] %v197
  %230 = vst [vmem:[%s3 + $0x40] sm:$0xf] %v198
  %231 = vst [vmem:[%s3 + $0x44] sm:$0xf] %v199
  %232 = vst [vmem:[%s3 + $0x48] sm:$0xf] %v200
  %233 = vst [vmem:[%s3 + $0x4c] sm:$0xf] %v201
  %234 = vst [vmem:[%s3 + $0x50] sm:$0xf] %v202
  %235 = vst [vmem:[%s3 + $0x54] sm:$0xf] %v203
  %236 = vst [vmem:[%s3 + $0x58] sm:$0xf] %v204
  %237 = vst [vmem:[%s3 + $0x5c] sm:$0xf] %v205
  %238 = vst [vmem:[%s3 + $0x60] sm:$0xf] %v206
  %239 = vst [vmem:[%s3 + $0x64] sm:$0xf] %v207
  %240 = vst [vmem:[%s3 + $0x68] sm:$0xf] %v208
  %241 = vst [vmem:[%s3 + $0x6c] sm:$0xf] %v209
  %242 = vst [vmem:[%s3 + $0x70] sm:$0xf] %v210
  %243 = vst [vmem:[%s3 + $0x74] sm:$0xf] %v211
  %244 = vst [vmem:[%s3 + $0x78] sm:$0xf] %v212
  %245 = vst [vmem:[%s3 + $0x7c] sm:$0xf] %v213
  // Predicated region
  $region14: #{_lambda_.17} parent=0 // pred_check
    _
  $region15: #{_lambda_.17} parent=0 // pred_check_branch
    %247 = sbr.rel (0) target = $region17
  $region16: #{_lambda_.17} parent=0 // pred_region
    _
  $region17: #{_lambda_.17} parent=0 // pred_fallthru
    _
  // Predicated region
  $region18: #{_lambda_.17} parent=0 // pred_check
    _
  $region19: #{_lambda_.17} parent=0 // pred_check_branch
    %249 = sbr.rel (0) target = $region21
  $region20: #{_lambda_.17} parent=0 // pred_region
    _
  $region21: #{_lambda_.17} parent=0 // pred_fallthru
    _

// kernel: _lambda_.16
$region0: #{_lambda_.16}
  #allocation0 [shape = 'u32[]', space=smem, size = 0x4, offset = 0x4, fixed_abs, tag = 'smem constant byte address 0x4 - core index']
  #allocation1 [shape = 'u32[72,128]{1,0:T(1,128)}', space=vmem, size = 0x9000, scoped, tag = 'internal scratch']
  %s0 = inlined_call_operand.vmem [shape: bf16[256,288], index: 0, kind: input, shape index: {}]
  %s1 = inlined_call_operand.vmem [shape: bf16[288,128], index: 1, kind: input, shape index: {}]
  %s2 = inlined_call_operand.vmem [shape: bf16[256,128], index: 2, kind: output, shape index: {0}]
  %s3 = inlined_call_operand.vmem [shape: f32[1,2,128], index: 3, kind: output, shape index: {1}]
  %4 = xla_tuple %s2, %s3
  %s5 = sld [smem:[#allocation0]]
  $region26: #{_lambda_.16} parent=0
    _
  %s7 = ssub.s32 1, %s5
  %s8 = scalar_select 0, %s7, %s5
  // Predicated region
  $region2: #{_lambda_.16} parent=0 // pred_check
    _
  $region3: #{_lambda_.16} parent=0 // pred_check_branch
    %10 = sbr.rel (0) target = $region5
  $region4: #{_lambda_.16} parent=0 // pred_region
    _
  $region5: #{_lambda_.16} parent=0 // pred_fallthru
    _
  // Predicated region
  $region6: #{_lambda_.16} parent=0 // pred_check
    _
  $region7: #{_lambda_.16} parent=0 // pred_check_branch
    %12 = sbr.rel (0) target = $region9
  $region8: #{_lambda_.16} parent=0 // pred_region
    _
  $region9: #{_lambda_.16} parent=0 // pred_fallthru
    _
  %v14 = vld [vmem:[%s0] sm:$0xff]
  %v15 = vld [vmem:[%s0 + $0x8] sm:$0xf]
  %v16 = vld [vmem:[%s0 + $0xc] sm:$0xff]
  %v17 = vld [vmem:[%s0 + $0x14] sm:$0xf]
  %v18 = vld [vmem:[%s0 + $0x18] sm:$0xff]
  %v19 = vld [vmem:[%s0 + $0x20] sm:$0xf]
  %v20 = vld [vmem:[%s0 + $0x24] sm:$0xff]
  %v21 = vld [vmem:[%s0 + $0x2c] sm:$0xf]
  %v22 = vld [vmem:[%s0 + $0x30] sm:$0xff]
  %v23 = vld [vmem:[%s0 + $0x38] sm:$0xf]
  %v24 = vld [vmem:[%s0 + $0x3c] sm:$0xff]
  %v25 = vld [vmem:[%s0 + $0x44] sm:$0xf]
  %v26 = vld [vmem:[%s0 + $0x48] sm:$0xff]
  %v27 = vld [vmem:[%s0 + $0x50] sm:$0xf]
  %v28 = vld [vmem:[%s0 + $0x54] sm:$0xff]
  %v29 = vld [vmem:[%s0 + $0x5c] sm:$0xf]
  %v30 = vld [vmem:[%s0 + $0x60] sm:$0xff]
  %v31 = vld [vmem:[%s0 + $0x68] sm:$0xf]
  %v32 = vld [vmem:[%s0 + $0x6c] sm:$0xff]
  %v33 = vld [vmem:[%s0 + $0x74] sm:$0xf]
  %v34 = vld [vmem:[%s0 + $0x78] sm:$0xff]
  %v35 = vld [vmem:[%s0 + $0x80] sm:$0xf]
  %v36 = vld [vmem:[%s0 + $0x84] sm:$0xff]
  %v37 = vld [vmem:[%s0 + $0x8c] sm:$0xf]
  %v38 = vld [vmem:[%s0 + $0x90] sm:$0xff]
  %v39 = vld [vmem:[%s0 + $0x98] sm:$0xf]
  %v40 = vld [vmem:[%s0 + $0x9c] sm:$0xff]
  %v41 = vld [vmem:[%s0 + $0xa4] sm:$0xf]
  %v42 = vld [vmem:[%s0 + $0xa8] sm:$0xff]
  %v43 = vld [vmem:[%s0 + $0xb0] sm:$0xf]
  %v44 = vld [vmem:[%s0 + $0xb4] sm:$0xff]
  %v45 = vld [vmem:[%s0 + $0xbc] sm:$0xf]
  %v46 = vld [vmem:[%s0 + $0xc0] sm:$0xff]
  %v47 = vld [vmem:[%s0 + $0xc8] sm:$0xf]
  %v48 = vld [vmem:[%s0 + $0xcc] sm:$0xff]
  %v49 = vld [vmem:[%s0 + $0xd4] sm:$0xf]
  %v50 = vld [vmem:[%s0 + $0xd8] sm:$0xff]
  %v51 = vld [vmem:[%s0 + $0xe0] sm:$0xf]
  %v52 = vld [vmem:[%s0 + $0xe4] sm:$0xff]
  %v53 = vld [vmem:[%s0 + $0xec] sm:$0xf]
  %v54 = vld [vmem:[%s0 + $0xf0] sm:$0xff]
  %v55 = vld [vmem:[%s0 + $0xf8] sm:$0xf]
  %v56 = vld [vmem:[%s0 + $0xfc] sm:$0xff]
  %v57 = vld [vmem:[%s0 + $0x104] sm:$0xf]
  %v58 = vld [vmem:[%s0 + $0x108] sm:$0xff]
  %v59 = vld [vmem:[%s0 + $0x110] sm:$0xf]
  %v60 = vld [vmem:[%s0 + $0x114] sm:$0xff]
  %v61 = vld [vmem:[%s0 + $0x11c] sm:$0xf]
  %v62 = vld [vmem:[%s0 + $0x120] sm:$0xff]
  %v63 = vld [vmem:[%s0 + $0x128] sm:$0xf]
  %v64 = vld [vmem:[%s0 + $0x12c] sm:$0xff]
  %v65 = vld [vmem:[%s0 + $0x134] sm:$0xf]
  %v66 = vld [vmem:[%s0 + $0x138] sm:$0xff]
  %v67 = vld [vmem:[%s0 + $0x140] sm:$0xf]
  %v68 = vld [vmem:[%s0 + $0x144] sm:$0xff]
  %v69 = vld [vmem:[%s0 + $0x14c] sm:$0xf]
  %v70 = vld [vmem:[%s0 + $0x150] sm:$0xff]
  %v71 = vld [vmem:[%s0 + $0x158] sm:$0xf]
  %v72 = vld [vmem:[%s0 + $0x15c] sm:$0xff]
  %v73 = vld [vmem:[%s0 + $0x164] sm:$0xf]
  %v74 = vld [vmem:[%s0 + $0x168] sm:$0xff]
  %v75 = vld [vmem:[%s0 + $0x170] sm:$0xf]
  %v76 = vld [vmem:[%s0 + $0x174] sm:$0xff]
  %v77 = vld [vmem:[%s0 + $0x17c] sm:$0xf]
  %v78 = vld [vmem:[%s1] sm:$0xf]
  %v79 = vld [vmem:[%s1 + $0x4] sm:$0xf]
  %v80 = vld [vmem:[%s1 + $0x8] sm:$0xf]
  %v81 = vld [vmem:[%s1 + $0xc] sm:$0xf]
  %v82 = vld [vmem:[%s1 + $0x10] sm:$0xf]
  %v83 = vld [vmem:[%s1 + $0x14] sm:$0xf]
  %v84 = vld [vmem:[%s1 + $0x18] sm:$0xf]
  %v85 = vld [vmem:[%s1 + $0x1c] sm:$0xf]
  %v86 = vld [vmem:[%s1 + $0x20] sm:$0xf]
  %v87 = vld [vmem:[%s1 + $0x24] sm:$0xf]
  %v88 = vld [vmem:[%s1 + $0x28] sm:$0xf]
  %v89 = vld [vmem:[%s1 + $0x2c] sm:$0xf]
  %v90 = vld [vmem:[%s1 + $0x30] sm:$0xf]
  %v91 = vld [vmem:[%s1 + $0x34] sm:$0xf]
  %v92 = vld [vmem:[%s1 + $0x38] sm:$0xf]
  %v93 = vld [vmem:[%s1 + $0x3c] sm:$0xf]
  %v94 = vld [vmem:[%s1 + $0x40] sm:$0xf]
  %v95 = vld [vmem:[%s1 + $0x44] sm:$0xf]
  %v96 = vld [vmem:[%s1 + $0x48] sm:$0xf]
  %v97 = vld [vmem:[%s1 + $0x4c] sm:$0xf]
  %v98 = vld [vmem:[%s1 + $0x50] sm:$0xf]
  %v99 = vld [vmem:[%s1 + $0x54] sm:$0xf]
  %v100 = vld [vmem:[%s1 + $0x58] sm:$0xf]
  %v101 = vld [vmem:[%s1 + $0x5c] sm:$0xf]
  %v102 = vld [vmem:[%s1 + $0x60] sm:$0xf]
  %v103 = vld [vmem:[%s1 + $0x64] sm:$0xf]
  %v104 = vld [vmem:[%s1 + $0x68] sm:$0xf]
  %v105 = vld [vmem:[%s1 + $0x6c] sm:$0xf]
  %v106 = vld [vmem:[%s1 + $0x70] sm:$0xf]
  %v107 = vld [vmem:[%s1 + $0x74] sm:$0xf]
  %v108 = vld [vmem:[%s1 + $0x78] sm:$0xf]
  %v109 = vld [vmem:[%s1 + $0x7c] sm:$0xf]
  %v110 = vld [vmem:[%s1 + $0x80] sm:$0xf]
  %v111 = vld [vmem:[%s1 + $0x84] sm:$0xf]
  %v112 = vld [vmem:[%s1 + $0x88] sm:$0xf]
  %v113 = vld [vmem:[%s1 + $0x8c] sm:$0xf]
  %v178 = vunpack.c.l.b16 %v14
  %v179 = vunpack.c.h.b16 %v14
  %v180 = vunpack.c.l.b16 %v15
  %v181 = vunpack.c.l.b16 %v16
  %v182 = vunpack.c.h.b16 %v16
  %v183 = vunpack.c.l.b16 %v17
  %v184 = vunpack.c.l.b16 %v18
  %v185 = vunpack.c.h.b16 %v18
  %v186 = vunpack.c.l.b16 %v19
  %v187 = vunpack.c.l.b16 %v20
  %v188 = vunpack.c.h.b16 %v20
  %v189 = vunpack.c.l.b16 %v21
  %v190 = vunpack.c.l.b16 %v22
  %v191 = vunpack.c.h.b16 %v22
  %v192 = vunpack.c.l.b16 %v23
  %v193 = vunpack.c.l.b16 %v24
  %v194 = vunpack.c.h.b16 %v24
  %v195 = vunpack.c.l.b16 %v25
  %v196 = vunpack.c.l.b16 %v26
  %v197 = vunpack.c.h.b16 %v26
  %v198 = vunpack.c.l.b16 %v27
  %v199 = vunpack.c.l.b16 %v28
  %v200 = vunpack.c.h.b16 %v28
  %v201 = vunpack.c.l.b16 %v29
  %v202 = vunpack.c.l.b16 %v30
  %v203 = vunpack.c.h.b16 %v30
  %v204 = vunpack.c.l.b16 %v31
  %v205 = vunpack.c.l.b16 %v32
  %v206 = vunpack.c.h.b16 %v32
  %v207 = vunpack.c.l.b16 %v33
  %v208 = vunpack.c.l.b16 %v34
  %v209 = vunpack.c.h.b16 %v34
  %v210 = vunpack.c.l.b16 %v35
  %v211 = vunpack.c.l.b16 %v36
  %v212 = vunpack.c.h.b16 %v36
  %v213 = vunpack.c.l.b16 %v37
  %v214 = vunpack.c.l.b16 %v38
  %v215 = vunpack.c.h.b16 %v38
  %v216 = vunpack.c.l.b16 %v39
  %v217 = vunpack.c.l.b16 %v40
  %v218 = vunpack.c.h.b16 %v40
  %v219 = vunpack.c.l.b16 %v41
  %v220 = vunpack.c.l.b16 %v42
  %v221 = vunpack.c.h.b16 %v42
  %v222 = vunpack.c.l.b16 %v43
  %v223 = vunpack.c.l.b16 %v44
  %v224 = vunpack.c.h.b16 %v44
  %v225 = vunpack.c.l.b16 %v45
  %v226 = vunpack.c.l.b16 %v46
  %v227 = vunpack.c.h.b16 %v46
  %v228 = vunpack.c.l.b16 %v47
  %v229 = vunpack.c.l.b16 %v48
  %v230 = vunpack.c.h.b16 %v48
  %v231 = vunpack.c.l.b16 %v49
  %v232 = vunpack.c.l.b16 %v50
  %v233 = vunpack.c.h.b16 %v50
  %v234 = vunpack.c.l.b16 %v51
  %v235 = vunpack.c.l.b16 %v52
  %v236 = vunpack.c.h.b16 %v52
  %v237 = vunpack.c.l.b16 %v53
  %v238 = vunpack.c.l.b16 %v54
  %v239 = vunpack.c.h.b16 %v54
  %v240 = vunpack.c.l.b16 %v55
  %v241 = vunpack.c.l.b16 %v56
  %v242 = vunpack.c.h.b16 %v56
  %v243 = vunpack.c.l.b16 %v57
  %v244 = vunpack.c.l.b16 %v58
  %v245 = vunpack.c.h.b16 %v58
  %v246 = vunpack.c.l.b16 %v59
  %v247 = vunpack.c.l.b16 %v60
  %v248 = vunpack.c.h.b16 %v60
  %v249 = vunpack.c.l.b16 %v61
  %v250 = vunpack.c.l.b16 %v62
  %v251 = vunpack.c.h.b16 %v62
  %v252 = vunpack.c.l.b16 %v63
  %v253 = vunpack.c.l.b16 %v64
  %v254 = vunpack.c.h.b16 %v64
  %v255 = vunpack.c.l.b16 %v65
  %v256 = vunpack.c.l.b16 %v66
  %v257 = vunpack.c.h.b16 %v66
  %v258 = vunpack.c.l.b16 %v67
  %v259 = vunpack.c.l.b16 %v68
  %v260 = vunpack.c.h.b16 %v68
  %v261 = vunpack.c.l.b16 %v69
  %v262 = vunpack.c.l.b16 %v70
  %v263 = vunpack.c.h.b16 %v70
  %v264 = vunpack.c.l.b16 %v71
  %v265 = vunpack.c.l.b16 %v72
  %v266 = vunpack.c.h.b16 %v72
  %v267 = vunpack.c.l.b16 %v73
  %v268 = vunpack.c.l.b16 %v74
  %v269 = vunpack.c.h.b16 %v74
  %v270 = vunpack.c.l.b16 %v75
  %v271 = vunpack.c.l.b16 %v76
  %v272 = vunpack.c.h.b16 %v76
  %v273 = vunpack.c.l.b16 %v77
  %v274 = vpack.c.b16 %v181, %v178
  %v275 = vpack.c.b16 %v182, %v179
  %v276 = vpack.c.b16 %v183, %v180
  %v277 = vpack.c.b16 %v187, %v184
  %v278 = vpack.c.b16 %v188, %v185
  %v279 = vpack.c.b16 %v189, %v186
  %v280 = vpack.c.b16 %v193, %v190
  %v281 = vpack.c.b16 %v194, %v191
  %v282 = vpack.c.b16 %v195, %v192
  %v283 = vpack.c.b16 %v199, %v196
  %v284 = vpack.c.b16 %v200, %v197
  %v285 = vpack.c.b16 %v201, %v198
  %v286 = vpack.c.b16 %v205, %v202
  %v287 = vpack.c.b16 %v206, %v203
  %v288 = vpack.c.b16 %v207, %v204
  %v289 = vpack.c.b16 %v211, %v208
  %v290 = vpack.c.b16 %v212, %v209
  %v291 = vpack.c.b16 %v213, %v210
  %v292 = vpack.c.b16 %v217, %v214
  %v293 = vpack.c.b16 %v218, %v215
  %v294 = vpack.c.b16 %v219, %v216
  %v295 = vpack.c.b16 %v223, %v220
  %v296 = vpack.c.b16 %v224, %v221
  %v297 = vpack.c.b16 %v225, %v222
  %v298 = vpack.c.b16 %v229, %v226
  %v299 = vpack.c.b16 %v230, %v227
  %v300 = vpack.c.b16 %v231, %v228
  %v301 = vpack.c.b16 %v235, %v232
  %v302 = vpack.c.b16 %v236, %v233
  %v303 = vpack.c.b16 %v237, %v234
  %v304 = vpack.c.b16 %v241, %v238
  %v305 = vpack.c.b16 %v242, %v239
  %v306 = vpack.c.b16 %v243, %v240
  %v307 = vpack.c.b16 %v247, %v244
  %v308 = vpack.c.b16 %v248, %v245
  %v309 = vpack.c.b16 %v249, %v246
  %v310 = vpack.c.b16 %v253, %v250
  %v311 = vpack.c.b16 %v254, %v251
  %v312 = vpack.c.b16 %v255, %v252
  %v313 = vpack.c.b16 %v259, %v256
  %v314 = vpack.c.b16 %v260, %v257
  %v315 = vpack.c.b16 %v261, %v258
  %v316 = vpack.c.b16 %v265, %v262
  %v317 = vpack.c.b16 %v266, %v263
  %v318 = vpack.c.b16 %v267, %v264
  %v319 = vpack.c.b16 %v271, %v268
  %v320 = vpack.c.b16 %v272, %v269
  %v321 = vpack.c.b16 %v273, %v270
  %v390 = vunpack.c.l.b16 %v78
  %v391 = vunpack.c.l.b16 %v79
  %v392 = vunpack.c.l.b16 %v80
  %v393 = vunpack.c.l.b16 %v81
  %v394 = vunpack.c.l.b16 %v82
  %v395 = vunpack.c.l.b16 %v83
  %v396 = vunpack.c.l.b16 %v84
  %v397 = vunpack.c.l.b16 %v85
  %v398 = vunpack.c.l.b16 %v86
  %v399 = vunpack.c.l.b16 %v87
  %v400 = vunpack.c.l.b16 %v88
  %v401 = vunpack.c.l.b16 %v89
  %v402 = vunpack.c.l.b16 %v90
  %v403 = vunpack.c.l.b16 %v91
  %v404 = vunpack.c.l.b16 %v92
  %v405 = vunpack.c.l.b16 %v93
  %v406 = vunpack.c.l.b16 %v94
  %v407 = vunpack.c.l.b16 %v95
  %v408 = vunpack.c.l.b16 %v96
  %v409 = vunpack.c.l.b16 %v97
  %v410 = vunpack.c.l.b16 %v98
  %v411 = vunpack.c.l.b16 %v99
  %v412 = vunpack.c.l.b16 %v100
  %v413 = vunpack.c.l.b16 %v101
  %v414 = vunpack.c.l.b16 %v102
  %v415 = vunpack.c.l.b16 %v103
  %v416 = vunpack.c.l.b16 %v104
  %v417 = vunpack.c.l.b16 %v105
  %v418 = vunpack.c.l.b16 %v106
  %v419 = vunpack.c.l.b16 %v107
  %v420 = vunpack.c.l.b16 %v108
  %v421 = vunpack.c.l.b16 %v109
  %v422 = vunpack.c.l.b16 %v110
  %v423 = vunpack.c.l.b16 %v111
  %v424 = vunpack.c.l.b16 %v112
  %v425 = vunpack.c.l.b16 %v113
  %v426 = vpack.c.b16 %v391, %v390
  %v427 = vpack.c.b16 %v393, %v392
  %v428 = vpack.c.b16 %v395, %v394
  %v429 = vpack.c.b16 %v397, %v396
  %v430 = vpack.c.b16 %v399, %v398
  %v431 = vpack.c.b16 %v401, %v400
  %v432 = vpack.c.b16 %v403, %v402
  %v433 = vpack.c.b16 %v405, %v404
  %v434 = vpack.c.b16 %v407, %v406
  %v435 = vpack.c.b16 %v409, %v408
  %v436 = vpack.c.b16 %v411, %v410
  %v437 = vpack.c.b16 %v413, %v412
  %v438 = vpack.c.b16 %v415, %v414
  %v439 = vpack.c.b16 %v417, %v416
  %v440 = vpack.c.b16 %v419, %v418
  %v441 = vpack.c.b16 %v421, %v420
  %v442 = vpack.c.b16 %v423, %v422
  %v443 = vpack.c.b16 %v425, %v424
  %vm462 = vcmask 261120
  %v464 = vsel %vm462, %v276, 0
  %v467 = vsel %vm462, %v279, 0
  %v470 = vsel %vm462, %v282, 0
  %v473 = vsel %vm462, %v285, 0
  %v476 = vsel %vm462, %v288, 0
  %v479 = vsel %vm462, %v291, 0
  %v482 = vsel %vm462, %v294, 0
  %v485 = vsel %vm462, %v297, 0
  %v488 = vsel %vm462, %v300, 0
  %v491 = vsel %vm462, %v303, 0
  %v494 = vsel %vm462, %v306, 0
  %v497 = vsel %vm462, %v309, 0
  %v500 = vsel %vm462, %v312, 0
  %v503 = vsel %vm462, %v315, 0
  %v506 = vsel %vm462, %v318, 0
  %v509 = vsel %vm462, %v321, 0
  %511 = vmatpush.bf16.msra.mxu0 %v433
  %512 = vmatpush.bf16.msra.mxu0 %v432
  %513 = vmatpush.bf16.msra.mxu0 %v431
  %514 = vmatpush.bf16.msra.mxu0 %v430
  %515 = vmatpush.bf16.msra.mxu0 %v429
  %516 = vmatpush.bf16.msra.mxu0 %v428
  %517 = vmatpush.bf16.msra.mxu0 %v427
  %518 = vmatpush.bf16.msra.mxu0 %v426
  %519 = vmatmul.bf16.gmra.mxu0 %v274
  %v520 = vpop.f32.mrf.mxu0
  %v521 = vadd.f32 0.0, %v520
  %v522 = vpop.f32.mrf.mxu0
  %v523 = vadd.f32 0.0, %v522
  %524 = vmatmul.bf16.gmra.mxu0 %v277
  %v525 = vpop.f32.mrf.mxu0
  %v526 = vadd.f32 0.0, %v525
  %v527 = vpop.f32.mrf.mxu0
  %v528 = vadd.f32 0.0, %v527
  %529 = vmatmul.bf16.gmra.mxu0 %v280
  %v530 = vpop.f32.mrf.mxu0
  %v531 = vadd.f32 0.0, %v530
  %v532 = vpop.f32.mrf.mxu0
  %v533 = vadd.f32 0.0, %v532
  %534 = vmatmul.bf16.gmra.mxu0 %v283
  %v535 = vpop.f32.mrf.mxu0
  %v536 = vadd.f32 0.0, %v535
  %v537 = vpop.f32.mrf.mxu0
  %v538 = vadd.f32 0.0, %v537
  %539 = vmatmul.bf16.gmra.mxu0 %v286
  %v540 = vpop.f32.mrf.mxu0
  %v541 = vadd.f32 0.0, %v540
  %v542 = vpop.f32.mrf.mxu0
  %v543 = vadd.f32 0.0, %v542
  %544 = vmatmul.bf16.gmra.mxu0 %v289
  %v545 = vpop.f32.mrf.mxu0
  %v546 = vadd.f32 0.0, %v545
  %v547 = vpop.f32.mrf.mxu0
  %v548 = vadd.f32 0.0, %v547
  %549 = vmatmul.bf16.gmra.mxu0 %v292
  %v550 = vpop.f32.mrf.mxu0
  %v551 = vadd.f32 0.0, %v550
  %v552 = vpop.f32.mrf.mxu0
  %v553 = vadd.f32 0.0, %v552
  %554 = vmatmul.bf16.gmra.mxu0 %v295
  %v555 = vpop.f32.mrf.mxu0
  %v556 = vadd.f32 0.0, %v555
  %v557 = vpop.f32.mrf.mxu0
  %v558 = vadd.f32 0.0, %v557
  %559 = vmatmul.bf16.gmra.mxu0 %v298
  %v560 = vpop.f32.mrf.mxu0
  %v561 = vadd.f32 0.0, %v560
  %v562 = vpop.f32.mrf.mxu0
  %v563 = vadd.f32 0.0, %v562
  %564 = vmatmul.bf16.gmra.mxu0 %v301
  %v565 = vpop.f32.mrf.mxu0
  %v566 = vadd.f32 0.0, %v565
  %v567 = vpop.f32.mrf.mxu0
  %v568 = vadd.f32 0.0, %v567
  %569 = vmatmul.bf16.gmra.mxu0 %v304
  %v570 = vpop.f32.mrf.mxu0
  %v571 = vadd.f32 0.0, %v570
  %v572 = vpop.f32.mrf.mxu0
  %v573 = vadd.f32 0.0, %v572
  %574 = vmatmul.bf16.gmra.mxu0 %v307
  %v575 = vpop.f32.mrf.mxu0
  %v576 = vadd.f32 0.0, %v575
  %v577 = vpop.f32.mrf.mxu0
  %v578 = vadd.f32 0.0, %v577
  %579 = vmatmul.bf16.gmra.mxu0 %v310
  %v580 = vpop.f32.mrf.mxu0
  %v581 = vadd.f32 0.0, %v580
  %v582 = vpop.f32.mrf.mxu0
  %v583 = vadd.f32 0.0, %v582
  %584 = vmatmul.bf16.gmra.mxu0 %v313
  %v585 = vpop.f32.mrf.mxu0
  %v586 = vadd.f32 0.0, %v585
  %v587 = vpop.f32.mrf.mxu0
  %v588 = vadd.f32 0.0, %v587
  %589 = vmatmul.bf16.gmra.mxu0 %v316
  %v590 = vpop.f32.mrf.mxu0
  %v591 = vadd.f32 0.0, %v590
  %v592 = vpop.f32.mrf.mxu0
  %v593 = vadd.f32 0.0, %v592
  %594 = vmatmul.bf16.gmra.mxu0 %v319
  %v595 = vpop.f32.mrf.mxu0
  %v596 = vadd.f32 0.0, %v595
  %v597 = vpop.f32.mrf.mxu0
  %v598 = vadd.f32 0.0, %v597
  %599 = vdwg.mxu0
  %600 = vmatpush.bf16.msra.mxu0 %v441
  %601 = vmatpush.bf16.msra.mxu0 %v440
  %602 = vmatpush.bf16.msra.mxu0 %v439
  %603 = vmatpush.bf16.msra.mxu0 %v438
  %604 = vmatpush.bf16.msra.mxu0 %v437
  %605 = vmatpush.bf16.msra.mxu0 %v436
  %606 = vmatpush.bf16.msra.mxu0 %v435
  %607 = vmatpush.bf16.msra.mxu0 %v434
  %608 = vmatmul.bf16.gmra.mxu0 %v275
  %v609 = vpop.f32.mrf.mxu0
  %v610 = vadd.f32 %v521, %v609
  %v611 = vpop.f32.mrf.mxu0
  %v612 = vadd.f32 %v523, %v611
  %613 = vmatmul.bf16.gmra.mxu0 %v278
  %v614 = vpop.f32.mrf.mxu0
  %v615 = vadd.f32 %v526, %v614
  %v616 = vpop.f32.mrf.mxu0
  %v617 = vadd.f32 %v528, %v616
  %618 = vmatmul.bf16.gmra.mxu0 %v281
  %v619 = vpop.f32.mrf.mxu0
  %v620 = vadd.f32 %v531, %v619
  %v621 = vpop.f32.mrf.mxu0
  %v622 = vadd.f32 %v533, %v621
  %623 = vmatmul.bf16.gmra.mxu0 %v284
  %v624 = vpop.f32.mrf.mxu0
  %v625 = vadd.f32 %v536, %v624
  %v626 = vpop.f32.mrf.mxu0
  %v627 = vadd.f32 %v538, %v626
  %628 = vmatmul.bf16.gmra.mxu0 %v287
  %v629 = vpop.f32.mrf.mxu0
  %v630 = vadd.f32 %v541, %v629
  %v631 = vpop.f32.mrf.mxu0
  %v632 = vadd.f32 %v543, %v631
  %633 = vmatmul.bf16.gmra.mxu0 %v290
  %v634 = vpop.f32.mrf.mxu0
  %v635 = vadd.f32 %v546, %v634
  %v636 = vpop.f32.mrf.mxu0
  %v637 = vadd.f32 %v548, %v636
  %638 = vmatmul.bf16.gmra.mxu0 %v293
  %v639 = vpop.f32.mrf.mxu0
  %v640 = vadd.f32 %v551, %v639
  %v641 = vpop.f32.mrf.mxu0
  %v642 = vadd.f32 %v553, %v641
  %643 = vmatmul.bf16.gmra.mxu0 %v296
  %v644 = vpop.f32.mrf.mxu0
  %v645 = vadd.f32 %v556, %v644
  %v646 = vpop.f32.mrf.mxu0
  %v647 = vadd.f32 %v558, %v646
  %648 = vmatmul.bf16.gmra.mxu0 %v299
  %v649 = vpop.f32.mrf.mxu0
  %v650 = vadd.f32 %v561, %v649
  %v651 = vpop.f32.mrf.mxu0
  %v652 = vadd.f32 %v563, %v651
  %653 = vmatmul.bf16.gmra.mxu0 %v302
  %v654 = vpop.f32.mrf.mxu0
  %v655 = vadd.f32 %v566, %v654
  %v656 = vpop.f32.mrf.mxu0
  %v657 = vadd.f32 %v568, %v656
  %658 = vmatmul.bf16.gmra.mxu0 %v305
  %v659 = vpop.f32.mrf.mxu0
  %v660 = vadd.f32 %v571, %v659
  %v661 = vpop.f32.mrf.mxu0
  %v662 = vadd.f32 %v573, %v661
  %663 = vmatmul.bf16.gmra.mxu0 %v308
  %v664 = vpop.f32.mrf.mxu0
  %v665 = vadd.f32 %v576, %v664
  %v666 = vpop.f32.mrf.mxu0
  %v667 = vadd.f32 %v578, %v666
  %668 = vmatmul.bf16.gmra.mxu0 %v311
  %v669 = vpop.f32.mrf.mxu0
  %v670 = vadd.f32 %v581, %v669
  %v671 = vpop.f32.mrf.mxu0
  %v672 = vadd.f32 %v583, %v671
  %673 = vmatmul.bf16.gmra.mxu0 %v314
  %v674 = vpop.f32.mrf.mxu0
  %v675 = vadd.f32 %v586, %v674
  %v676 = vpop.f32.mrf.mxu0
  %v677 = vadd.f32 %v588, %v676
  %678 = vmatmul.bf16.gmra.mxu0 %v317
  %v679 = vpop.f32.mrf.mxu0
  %v680 = vadd.f32 %v591, %v679
  %v681 = vpop.f32.mrf.mxu0
  %v682 = vadd.f32 %v593, %v681
  %683 = vmatmul.bf16.gmra.mxu0 %v320
  %v684 = vpop.f32.mrf.mxu0
  %v685 = vadd.f32 %v596, %v684
  %v686 = vpop.f32.mrf.mxu0
  %v687 = vadd.f32 %v598, %v686
  %688 = vdwg.mxu0
  %689 = vmatpush.bf16.msra.mxu0 0
  %690 = vmatpush.bf16.msra.mxu0 0
  %691 = vmatpush.bf16.msra.mxu0 0
  %692 = vmatpush.bf16.msra.mxu0 0
  %693 = vmatpush.bf16.msra.mxu0 0
  %694 = vmatpush.bf16.msra.mxu0 0
  %695 = vmatpush.bf16.msra.mxu0 %v443
  %696 = vmatpush.bf16.msra.mxu0 %v442
  %697 = vmatmul.bf16.gmra.mxu0 %v464
  %v698 = vpop.f32.mrf.mxu0
  %v699 = vadd.f32 %v610, %v698
  %v700 = vpop.f32.mrf.mxu0
  %v701 = vadd.f32 %v612, %v700
  %702 = vmatmul.bf16.gmra.mxu0 %v467
  %v703 = vpop.f32.mrf.mxu0
  %v704 = vadd.f32 %v615, %v703
  %v705 = vpop.f32.mrf.mxu0
  %v706 = vadd.f32 %v617, %v705
  %707 = vmatmul.bf16.gmra.mxu0 %v470
  %v708 = vpop.f32.mrf.mxu0
  %v709 = vadd.f32 %v620, %v708
  %v710 = vpop.f32.mrf.mxu0
  %v711 = vadd.f32 %v622, %v710
  %712 = vmatmul.bf16.gmra.mxu0 %v473
  %v713 = vpop.f32.mrf.mxu0
  %v714 = vadd.f32 %v625, %v713
  %v715 = vpop.f32.mrf.mxu0
  %v716 = vadd.f32 %v627, %v715
  %717 = vmatmul.bf16.gmra.mxu0 %v476
  %v718 = vpop.f32.mrf.mxu0
  %v719 = vadd.f32 %v630, %v718
  %v720 = vpop.f32.mrf.mxu0
  %v721 = vadd.f32 %v632, %v720
  %722 = vmatmul.bf16.gmra.mxu0 %v479
  %v723 = vpop.f32.mrf.mxu0
  %v724 = vadd.f32 %v635, %v723
  %v725 = vpop.f32.mrf.mxu0
  %v726 = vadd.f32 %v637, %v725
  %727 = vmatmul.bf16.gmra.mxu0 %v482
  %v728 = vpop.f32.mrf.mxu0
  %v729 = vadd.f32 %v640, %v728
  %v730 = vpop.f32.mrf.mxu0
  %v731 = vadd.f32 %v642, %v730
  %732 = vmatmul.bf16.gmra.mxu0 %v485
  %v733 = vpop.f32.mrf.mxu0
  %v734 = vadd.f32 %v645, %v733
  %v735 = vpop.f32.mrf.mxu0
  %v736 = vadd.f32 %v647, %v735
  %737 = vmatmul.bf16.gmra.mxu0 %v488
  %v738 = vpop.f32.mrf.mxu0
  %v739 = vadd.f32 %v650, %v738
  %v740 = vpop.f32.mrf.mxu0
  %v741 = vadd.f32 %v652, %v740
  %742 = vmatmul.bf16.gmra.mxu0 %v491
  %v743 = vpop.f32.mrf.mxu0
  %v744 = vadd.f32 %v655, %v743
  %v745 = vpop.f32.mrf.mxu0
  %v746 = vadd.f32 %v657, %v745
  %747 = vmatmul.bf16.gmra.mxu0 %v494
  %v748 = vpop.f32.mrf.mxu0
  %v749 = vadd.f32 %v660, %v748
  %v750 = vpop.f32.mrf.mxu0
  %v751 = vadd.f32 %v662, %v750
  %752 = vmatmul.bf16.gmra.mxu0 %v497
  %v753 = vpop.f32.mrf.mxu0
  %v754 = vadd.f32 %v665, %v753
  %v755 = vpop.f32.mrf.mxu0
  %v756 = vadd.f32 %v667, %v755
  %757 = vmatmul.bf16.gmra.mxu0 %v500
  %v758 = vpop.f32.mrf.mxu0
  %v759 = vadd.f32 %v670, %v758
  %v760 = vpop.f32.mrf.mxu0
  %v761 = vadd.f32 %v672, %v760
  %762 = vmatmul.bf16.gmra.mxu0 %v503
  %v763 = vpop.f32.mrf.mxu0
  %v764 = vadd.f32 %v675, %v763
  %v765 = vpop.f32.mrf.mxu0
  %v766 = vadd.f32 %v677, %v765
  %767 = vmatmul.bf16.gmra.mxu0 %v506
  %v768 = vpop.f32.mrf.mxu0
  %v769 = vadd.f32 %v680, %v768
  %v770 = vpop.f32.mrf.mxu0
  %v771 = vadd.f32 %v682, %v770
  %772 = vmatmul.bf16.gmra.mxu0 %v509
  %v773 = vpop.f32.mrf.mxu0
  %v774 = vadd.f32 %v685, %v773
  %v775 = vpop.f32.mrf.mxu0
  %v776 = vadd.f32 %v687, %v775
  %777 = vdwg.mxu0
  %v778 = vpack.c.bf16 %v699, %v699
  %v779 = vpack.c.bf16 %v701, %v701
  %v780 = vpack.c.bf16 %v704, %v704
  %v781 = vpack.c.bf16 %v706, %v706
  %v782 = vpack.c.bf16 %v709, %v709
  %v783 = vpack.c.bf16 %v711, %v711
  %v784 = vpack.c.bf16 %v714, %v714
  %v785 = vpack.c.bf16 %v716, %v716
  %v786 = vpack.c.bf16 %v719, %v719
  %v787 = vpack.c.bf16 %v721, %v721
  %v788 = vpack.c.bf16 %v724, %v724
  %v789 = vpack.c.bf16 %v726, %v726
  %v790 = vpack.c.bf16 %v729, %v729
  %v791 = vpack.c.bf16 %v731, %v731
  %v792 = vpack.c.bf16 %v734, %v734
  %v793 = vpack.c.bf16 %v736, %v736
  %v794 = vpack.c.bf16 %v739, %v739
  %v795 = vpack.c.bf16 %v741, %v741
  %v796 = vpack.c.bf16 %v744, %v744
  %v797 = vpack.c.bf16 %v746, %v746
  %v798 = vpack.c.bf16 %v749, %v749
  %v799 = vpack.c.bf16 %v751, %v751
  %v800 = vpack.c.bf16 %v754, %v754
  %v801 = vpack.c.bf16 %v756, %v756
  %v802 = vpack.c.bf16 %v759, %v759
  %v803 = vpack.c.bf16 %v761, %v761
  %v804 = vpack.c.bf16 %v764, %v764
  %v805 = vpack.c.bf16 %v766, %v766
  %v806 = vpack.c.bf16 %v769, %v769
  %v807 = vpack.c.bf16 %v771, %v771
  %v808 = vpack.c.bf16 %v774, %v774
  %v809 = vpack.c.bf16 %v776, %v776
  %810 = vst [vmem:[%s2] sm:$0xf] %v778
  %811 = vst [vmem:[%s2 + $0x4] sm:$0xf] %v779
  %812 = vst [vmem:[%s2 + $0x8] sm:$0xf] %v780
  %813 = vst [vmem:[%s2 + $0xc] sm:$0xf] %v781
  %814 = vst [vmem:[%s2 + $0x10] sm:$0xf] %v782
  %815 = vst [vmem:[%s2 + $0x14] sm:$0xf] %v783
  %816 = vst [vmem:[%s2 + $0x18] sm:$0xf] %v784
  %817 = vst [vmem:[%s2 + $0x1c] sm:$0xf] %v785
  %818 = vst [vmem:[%s2 + $0x20] sm:$0xf] %v786
  %819 = vst [vmem:[%s2 + $0x24] sm:$0xf] %v787
  %820 = vst [vmem:[%s2 + $0x28] sm:$0xf] %v788
  %821 = vst [vmem:[%s2 + $0x2c] sm:$0xf] %v789
  %822 = vst [vmem:[%s2 + $0x30] sm:$0xf] %v790
  %823 = vst [vmem:[%s2 + $0x34] sm:$0xf] %v791
  %824 = vst [vmem:[%s2 + $0x38] sm:$0xf] %v792
  %825 = vst [vmem:[%s2 + $0x3c] sm:$0xf] %v793
  %826 = vst [vmem:[%s2 + $0x40] sm:$0xf] %v794
  %827 = vst [vmem:[%s2 + $0x44] sm:$0xf] %v795
  %828 = vst [vmem:[%s2 + $0x48] sm:$0xf] %v796
  %829 = vst [vmem:[%s2 + $0x4c] sm:$0xf] %v797
  %830 = vst [vmem:[%s2 + $0x50] sm:$0xf] %v798
  %831 = vst [vmem:[%s2 + $0x54] sm:$0xf] %v799
  %832 = vst [vmem:[%s2 + $0x58] sm:$0xf] %v800
  %833 = vst [vmem:[%s2 + $0x5c] sm:$0xf] %v801
  %834 = vst [vmem:[%s2 + $0x60] sm:$0xf] %v802
  %835 = vst [vmem:[%s2 + $0x64] sm:$0xf] %v803
  %836 = vst [vmem:[%s2 + $0x68] sm:$0xf] %v804
  %837 = vst [vmem:[%s2 + $0x6c] sm:$0xf] %v805
  %838 = vst [vmem:[%s2 + $0x70] sm:$0xf] %v806
  %839 = vst [vmem:[%s2 + $0x74] sm:$0xf] %v807
  %840 = vst [vmem:[%s2 + $0x78] sm:$0xf] %v808
  %841 = vst [vmem:[%s2 + $0x7c] sm:$0xf] %v809
  %v842 = vadd.f32 %v699, %v701
  %v843 = vadd.f32 %v842, %v704
  %v844 = vadd.f32 %v843, %v706
  %v845 = vadd.f32 %v844, %v709
  %v846 = vadd.f32 %v845, %v711
  %v847 = vadd.f32 %v846, %v714
  %v848 = vadd.f32 %v847, %v716
  %v849 = vadd.f32 %v848, %v719
  %v850 = vadd.f32 %v849, %v721
  %v851 = vadd.f32 %v850, %v724
  %v852 = vadd.f32 %v851, %v726
  %v853 = vadd.f32 %v852, %v729
  %v854 = vadd.f32 %v853, %v731
  %v855 = vadd.f32 %v854, %v734
  %v856 = vadd.f32 %v855, %v736
  %v857 = vadd.f32 %v856, %v739
  %v858 = vadd.f32 %v857, %v741
  %v859 = vadd.f32 %v858, %v744
  %v860 = vadd.f32 %v859, %v746
  %v861 = vadd.f32 %v860, %v749
  %v862 = vadd.f32 %v861, %v751
  %v863 = vadd.f32 %v862, %v754
  %v864 = vadd.f32 %v863, %v756
  %v865 = vadd.f32 %v864, %v759
  %v866 = vadd.f32 %v865, %v761
  %v867 = vadd.f32 %v866, %v764
  %v868 = vadd.f32 %v867, %v766
  %v869 = vadd.f32 %v868, %v769
  %v870 = vadd.f32 %v869, %v771
  %v871 = vadd.f32 %v870, %v774
  %v872 = vadd.f32 %v871, %v776
  %v873 = vrot.slane %v872, 4
  %v874 = vadd.f32 %v872, %v873
  %v875 = vrot.slane %v874, 2
  %v876 = vadd.f32 %v874, %v875
  %v877 = vrot.slane %v876, 1
  %v878 = vadd.f32 %v876, %v877
  %v879 = vmul.f32 %v699, %v699
  %v880 = vmul.f32 %v701, %v701
  %v881 = vmul.f32 %v704, %v704
  %v882 = vmul.f32 %v706, %v706
  %v883 = vmul.f32 %v709, %v709
  %v884 = vmul.f32 %v711, %v711
  %v885 = vmul.f32 %v714, %v714
  %v886 = vmul.f32 %v716, %v716
  %v887 = vmul.f32 %v719, %v719
  %v888 = vmul.f32 %v721, %v721
  %v889 = vmul.f32 %v724, %v724
  %v890 = vmul.f32 %v726, %v726
  %v891 = vmul.f32 %v729, %v729
  %v892 = vmul.f32 %v731, %v731
  %v893 = vmul.f32 %v734, %v734
  %v894 = vmul.f32 %v736, %v736
  %v895 = vmul.f32 %v739, %v739
  %v896 = vmul.f32 %v741, %v741
  %v897 = vmul.f32 %v744, %v744
  %v898 = vmul.f32 %v746, %v746
  %v899 = vmul.f32 %v749, %v749
  %v900 = vmul.f32 %v751, %v751
  %v901 = vmul.f32 %v754, %v754
  %v902 = vmul.f32 %v756, %v756
  %v903 = vmul.f32 %v759, %v759
  %v904 = vmul.f32 %v761, %v761
  %v905 = vmul.f32 %v764, %v764
  %v906 = vmul.f32 %v766, %v766
  %v907 = vmul.f32 %v769, %v769
  %v908 = vmul.f32 %v771, %v771
  %v909 = vmul.f32 %v774, %v774
  %v910 = vmul.f32 %v776, %v776
  %v911 = vadd.f32 %v879, %v880
  %v912 = vadd.f32 %v911, %v881
  %v913 = vadd.f32 %v912, %v882
  %v914 = vadd.f32 %v913, %v883
  %v915 = vadd.f32 %v914, %v884
  %v916 = vadd.f32 %v915, %v885
  %v917 = vadd.f32 %v916, %v886
  %v918 = vadd.f32 %v917, %v887
  %v919 = vadd.f32 %v918, %v888
  %v920 = vadd.f32 %v919, %v889
  %v921 = vadd.f32 %v920, %v890
  %v922 = vadd.f32 %v921, %v891
  %v923 = vadd.f32 %v922, %v892
  %v924 = vadd.f32 %v923, %v893
  %v925 = vadd.f32 %v924, %v894
  %v926 = vadd.f32 %v925, %v895
  %v927 = vadd.f32 %v926, %v896
  %v928 = vadd.f32 %v927, %v897
  %v929 = vadd.f32 %v928, %v898
  %v930 = vadd.f32 %v929, %v899
  %v931 = vadd.f32 %v930, %v900
  %v932 = vadd.f32 %v931, %v901
  %v933 = vadd.f32 %v932, %v902
  %v934 = vadd.f32 %v933, %v903
  %v935 = vadd.f32 %v934, %v904
  %v936 = vadd.f32 %v935, %v905
  %v937 = vadd.f32 %v936, %v906
  %v938 = vadd.f32 %v937, %v907
  %v939 = vadd.f32 %v938, %v908
  %v940 = vadd.f32 %v939, %v909
  %v941 = vadd.f32 %v940, %v910
  %v942 = vrot.slane %v941, 4
  %v943 = vadd.f32 %v941, %v942
  %v944 = vrot.slane %v943, 2
  %v945 = vadd.f32 %v943, %v944
  %v946 = vrot.slane %v945, 1
  %v947 = vadd.f32 %v945, %v946
  %vm948 = vcmask 1040384
  %v949 = vsel %vm948, %v878, %v947
  %950 = vst [vmem:[%s3] sm:$0x3] %v949
  // Predicated region
  $region10: #{_lambda_.16} parent=0 // pred_check
    _
  $region11: #{_lambda_.16} parent=0 // pred_check_branch
    %952 = sbr.rel (0) target = $region13
  $region12: #{_lambda_.16} parent=0 // pred_region
    _
  $region13: #{_lambda_.16} parent=0 // pred_fallthru
    _
  // Predicated region
  $region14: #{_lambda_.16} parent=0 // pred_check
    _
  $region15: #{_lambda_.16} parent=0 // pred_check_branch
    %954 = sbr.rel (0) target = $region17
  $region16: #{_lambda_.16} parent=0 // pred_region
    _
  $region17: #{_lambda_.16} parent=0 // pred_fallthru
    _
  // Predicated region
  $region18: #{_lambda_.16} parent=0 // pred_check
    _
  $region19: #{_lambda_.16} parent=0 // pred_check_branch
    %956 = sbr.rel (0) target = $region21
  $region20: #{_lambda_.16} parent=0 // pred_region
    _
  $region21: #{_lambda_.16} parent=0 // pred_fallthru
    _
  // Predicated region
  $region22: #{_lambda_.16} parent=0 // pred_check
    _
  $region23: #{_lambda_.16} parent=0 // pred_check_branch
    %958 = sbr.rel (0) target = $region25
  $region24: #{_lambda_.16} parent=0 // pred_region
    _
  $region25: #{_lambda_.16} parent=0 // pred_fallthru
    _

// kernel: _lambda_.18
$region0: #{_lambda_.18}
  #allocation0 [shape = 'u32[]', space=smem, size = 0x4, offset = 0x4, fixed_abs, tag = 'smem constant byte address 0x4 - core index']
  #allocation1 [shape = 'u32[72,128]{1,0:T(1,128)}', space=vmem, size = 0x9000, scoped, tag = 'internal scratch']
  %s0 = inlined_call_operand.vmem [shape: bf16[64,288], index: 0, kind: input, shape index: {}]
  %s1 = inlined_call_operand.vmem [shape: bf16[288,128], index: 1, kind: input, shape index: {}]
  %s2 = inlined_call_operand.vmem [shape: bf16[64,128], index: 2, kind: output, shape index: {0}]
  %s3 = inlined_call_operand.vmem [shape: f32[1,2,128], index: 3, kind: output, shape index: {1}]
  %4 = xla_tuple %s2, %s3
  %s5 = sld [smem:[#allocation0]]
  $region26: #{_lambda_.18} parent=0
    _
  %s7 = ssub.s32 1, %s5
  %s8 = scalar_select 0, %s7, %s5
  // Predicated region
  $region2: #{_lambda_.18} parent=0 // pred_check
    _
  $region3: #{_lambda_.18} parent=0 // pred_check_branch
    %10 = sbr.rel (0) target = $region5
  $region4: #{_lambda_.18} parent=0 // pred_region
    _
  $region5: #{_lambda_.18} parent=0 // pred_fallthru
    _
  // Predicated region
  $region6: #{_lambda_.18} parent=0 // pred_check
    _
  $region7: #{_lambda_.18} parent=0 // pred_check_branch
    %12 = sbr.rel (0) target = $region9
  $region8: #{_lambda_.18} parent=0 // pred_region
    _
  $region9: #{_lambda_.18} parent=0 // pred_fallthru
    _
  %v14 = vld [vmem:[%s0] sm:$0xff]
  %v15 = vld [vmem:[%s0 + $0x8] sm:$0xf]
  %v16 = vld [vmem:[%s0 + $0xc] sm:$0xff]
  %v17 = vld [vmem:[%s0 + $0x14] sm:$0xf]
  %v18 = vld [vmem:[%s0 + $0x18] sm:$0xff]
  %v19 = vld [vmem:[%s0 + $0x20] sm:$0xf]
  %v20 = vld [vmem:[%s0 + $0x24] sm:$0xff]
  %v21 = vld [vmem:[%s0 + $0x2c] sm:$0xf]
  %v22 = vld [vmem:[%s0 + $0x30] sm:$0xff]
  %v23 = vld [vmem:[%s0 + $0x38] sm:$0xf]
  %v24 = vld [vmem:[%s0 + $0x3c] sm:$0xff]
  %v25 = vld [vmem:[%s0 + $0x44] sm:$0xf]
  %v26 = vld [vmem:[%s0 + $0x48] sm:$0xff]
  %v27 = vld [vmem:[%s0 + $0x50] sm:$0xf]
  %v28 = vld [vmem:[%s0 + $0x54] sm:$0xff]
  %v29 = vld [vmem:[%s0 + $0x5c] sm:$0xf]
  %v30 = vld [vmem:[%s1] sm:$0xf]
  %v31 = vld [vmem:[%s1 + $0x4] sm:$0xf]
  %v32 = vld [vmem:[%s1 + $0x8] sm:$0xf]
  %v33 = vld [vmem:[%s1 + $0xc] sm:$0xf]
  %v34 = vld [vmem:[%s1 + $0x10] sm:$0xf]
  %v35 = vld [vmem:[%s1 + $0x14] sm:$0xf]
  %v36 = vld [vmem:[%s1 + $0x18] sm:$0xf]
  %v37 = vld [vmem:[%s1 + $0x1c] sm:$0xf]
  %v38 = vld [vmem:[%s1 + $0x20] sm:$0xf]
  %v39 = vld [vmem:[%s1 + $0x24] sm:$0xf]
  %v40 = vld [vmem:[%s1 + $0x28] sm:$0xf]
  %v41 = vld [vmem:[%s1 + $0x2c] sm:$0xf]
  %v42 = vld [vmem:[%s1 + $0x30] sm:$0xf]
  %v43 = vld [vmem:[%s1 + $0x34] sm:$0xf]
  %v44 = vld [vmem:[%s1 + $0x38] sm:$0xf]
  %v45 = vld [vmem:[%s1 + $0x3c] sm:$0xf]
  %v46 = vld [vmem:[%s1 + $0x40] sm:$0xf]
  %v47 = vld [vmem:[%s1 + $0x44] sm:$0xf]
  %v48 = vld [vmem:[%s1 + $0x48] sm:$0xf]
  %v49 = vld [vmem:[%s1 + $0x4c] sm:$0xf]
  %v50 = vld [vmem:[%s1 + $0x50] sm:$0xf]
  %v51 = vld [vmem:[%s1 + $0x54] sm:$0xf]
  %v52 = vld [vmem:[%s1 + $0x58] sm:$0xf]
  %v53 = vld [vmem:[%s1 + $0x5c] sm:$0xf]
  %v54 = vld [vmem:[%s1 + $0x60] sm:$0xf]
  %v55 = vld [vmem:[%s1 + $0x64] sm:$0xf]
  %v56 = vld [vmem:[%s1 + $0x68] sm:$0xf]
  %v57 = vld [vmem:[%s1 + $0x6c] sm:$0xf]
  %v58 = vld [vmem:[%s1 + $0x70] sm:$0xf]
  %v59 = vld [vmem:[%s1 + $0x74] sm:$0xf]
  %v60 = vld [vmem:[%s1 + $0x78] sm:$0xf]
  %v61 = vld [vmem:[%s1 + $0x7c] sm:$0xf]
  %v62 = vld [vmem:[%s1 + $0x80] sm:$0xf]
  %v63 = vld [vmem:[%s1 + $0x84] sm:$0xf]
  %v64 = vld [vmem:[%s1 + $0x88] sm:$0xf]
  %v65 = vld [vmem:[%s1 + $0x8c] sm:$0xf]
  %v82 = vunpack.c.l.b16 %v14
  %v83 = vunpack.c.h.b16 %v14
  %v84 = vunpack.c.l.b16 %v15
  %v85 = vunpack.c.l.b16 %v16
  %v86 = vunpack.c.h.b16 %v16
  %v87 = vunpack.c.l.b16 %v17
  %v88 = vunpack.c.l.b16 %v18
  %v89 = vunpack.c.h.b16 %v18
  %v90 = vunpack.c.l.b16 %v19
  %v91 = vunpack.c.l.b16 %v20
  %v92 = vunpack.c.h.b16 %v20
  %v93 = vunpack.c.l.b16 %v21
  %v94 = vunpack.c.l.b16 %v22
  %v95 = vunpack.c.h.b16 %v22
  %v96 = vunpack.c.l.b16 %v23
  %v97 = vunpack.c.l.b16 %v24
  %v98 = vunpack.c.h.b16 %v24
  %v99 = vunpack.c.l.b16 %v25
  %v100 = vunpack.c.l.b16 %v26
  %v101 = vunpack.c.h.b16 %v26
  %v102 = vunpack.c.l.b16 %v27
  %v103 = vunpack.c.l.b16 %v28
  %v104 = vunpack.c.h.b16 %v28
  %v105 = vunpack.c.l.b16 %v29
  %v106 = vpack.c.b16 %v85, %v82
  %v107 = vpack.c.b16 %v86, %v83
  %v108 = vpack.c.b16 %v87, %v84
  %v109 = vpack.c.b16 %v91, %v88
  %v110 = vpack.c.b16 %v92, %v89
  %v111 = vpack.c.b16 %v93, %v90
  %v112 = vpack.c.b16 %v97, %v94
  %v113 = vpack.c.b16 %v98, %v95
  %v114 = vpack.c.b16 %v99, %v96
  %v115 = vpack.c.b16 %v103, %v100
  %v116 = vpack.c.b16 %v104, %v101
  %v117 = vpack.c.b16 %v105, %v102
  %v162 = vunpack.c.l.b16 %v30
  %v163 = vunpack.c.l.b16 %v31
  %v164 = vunpack.c.l.b16 %v32
  %v165 = vunpack.c.l.b16 %v33
  %v166 = vunpack.c.l.b16 %v34
  %v167 = vunpack.c.l.b16 %v35
  %v168 = vunpack.c.l.b16 %v36
  %v169 = vunpack.c.l.b16 %v37
  %v170 = vunpack.c.l.b16 %v38
  %v171 = vunpack.c.l.b16 %v39
  %v172 = vunpack.c.l.b16 %v40
  %v173 = vunpack.c.l.b16 %v41
  %v174 = vunpack.c.l.b16 %v42
  %v175 = vunpack.c.l.b16 %v43
  %v176 = vunpack.c.l.b16 %v44
  %v177 = vunpack.c.l.b16 %v45
  %v178 = vunpack.c.l.b16 %v46
  %v179 = vunpack.c.l.b16 %v47
  %v180 = vunpack.c.l.b16 %v48
  %v181 = vunpack.c.l.b16 %v49
  %v182 = vunpack.c.l.b16 %v50
  %v183 = vunpack.c.l.b16 %v51
  %v184 = vunpack.c.l.b16 %v52
  %v185 = vunpack.c.l.b16 %v53
  %v186 = vunpack.c.l.b16 %v54
  %v187 = vunpack.c.l.b16 %v55
  %v188 = vunpack.c.l.b16 %v56
  %v189 = vunpack.c.l.b16 %v57
  %v190 = vunpack.c.l.b16 %v58
  %v191 = vunpack.c.l.b16 %v59
  %v192 = vunpack.c.l.b16 %v60
  %v193 = vunpack.c.l.b16 %v61
  %v194 = vunpack.c.l.b16 %v62
  %v195 = vunpack.c.l.b16 %v63
  %v196 = vunpack.c.l.b16 %v64
  %v197 = vunpack.c.l.b16 %v65
  %v198 = vpack.c.b16 %v163, %v162
  %v199 = vpack.c.b16 %v165, %v164
  %v200 = vpack.c.b16 %v167, %v166
  %v201 = vpack.c.b16 %v169, %v168
  %v202 = vpack.c.b16 %v171, %v170
  %v203 = vpack.c.b16 %v173, %v172
  %v204 = vpack.c.b16 %v175, %v174
  %v205 = vpack.c.b16 %v177, %v176
  %v206 = vpack.c.b16 %v179, %v178
  %v207 = vpack.c.b16 %v181, %v180
  %v208 = vpack.c.b16 %v183, %v182
  %v209 = vpack.c.b16 %v185, %v184
  %v210 = vpack.c.b16 %v187, %v186
  %v211 = vpack.c.b16 %v189, %v188
  %v212 = vpack.c.b16 %v191, %v190
  %v213 = vpack.c.b16 %v193, %v192
  %v214 = vpack.c.b16 %v195, %v194
  %v215 = vpack.c.b16 %v197, %v196
  %vm234 = vcmask 261120
  %v236 = vsel %vm234, %v108, 0
  %v239 = vsel %vm234, %v111, 0
  %v242 = vsel %vm234, %v114, 0
  %v245 = vsel %vm234, %v117, 0
  %247 = vmatpush.bf16.msra.mxu0 %v205
  %248 = vmatpush.bf16.msra.mxu0 %v204
  %249 = vmatpush.bf16.msra.mxu0 %v203
  %250 = vmatpush.bf16.msra.mxu0 %v202
  %251 = vmatpush.bf16.msra.mxu0 %v201
  %252 = vmatpush.bf16.msra.mxu0 %v200
  %253 = vmatpush.bf16.msra.mxu0 %v199
  %254 = vmatpush.bf16.msra.mxu0 %v198
  %255 = vmatmul.bf16.gmra.mxu0 %v106
  %v256 = vpop.f32.mrf.mxu0
  %v257 = vadd.f32 0.0, %v256
  %v258 = vpop.f32.mrf.mxu0
  %v259 = vadd.f32 0.0, %v258
  %260 = vmatmul.bf16.gmra.mxu0 %v109
  %v261 = vpop.f32.mrf.mxu0
  %v262 = vadd.f32 0.0, %v261
  %v263 = vpop.f32.mrf.mxu0
  %v264 = vadd.f32 0.0, %v263
  %265 = vmatmul.bf16.gmra.mxu0 %v112
  %v266 = vpop.f32.mrf.mxu0
  %v267 = vadd.f32 0.0, %v266
  %v268 = vpop.f32.mrf.mxu0
  %v269 = vadd.f32 0.0, %v268
  %270 = vmatmul.bf16.gmra.mxu0 %v115
  %v271 = vpop.f32.mrf.mxu0
  %v272 = vadd.f32 0.0, %v271
  %v273 = vpop.f32.mrf.mxu0
  %v274 = vadd.f32 0.0, %v273
  %275 = vdwg.mxu0
  %276 = vmatpush.bf16.msra.mxu0 %v213
  %277 = vmatpush.bf16.msra.mxu0 %v212
  %278 = vmatpush.bf16.msra.mxu0 %v211
  %279 = vmatpush.bf16.msra.mxu0 %v210
  %280 = vmatpush.bf16.msra.mxu0 %v209
  %281 = vmatpush.bf16.msra.mxu0 %v208
  %282 = vmatpush.bf16.msra.mxu0 %v207
  %283 = vmatpush.bf16.msra.mxu0 %v206
  %284 = vmatmul.bf16.gmra.mxu0 %v107
  %v285 = vpop.f32.mrf.mxu0
  %v286 = vadd.f32 %v257, %v285
  %v287 = vpop.f32.mrf.mxu0
  %v288 = vadd.f32 %v259, %v287
  %289 = vmatmul.bf16.gmra.mxu0 %v110
  %v290 = vpop.f32.mrf.mxu0
  %v291 = vadd.f32 %v262, %v290
  %v292 = vpop.f32.mrf.mxu0
  %v293 = vadd.f32 %v264, %v292
  %294 = vmatmul.bf16.gmra.mxu0 %v113
  %v295 = vpop.f32.mrf.mxu0
  %v296 = vadd.f32 %v267, %v295
  %v297 = vpop.f32.mrf.mxu0
  %v298 = vadd.f32 %v269, %v297
  %299 = vmatmul.bf16.gmra.mxu0 %v116
  %v300 = vpop.f32.mrf.mxu0
  %v301 = vadd.f32 %v272, %v300
  %v302 = vpop.f32.mrf.mxu0
  %v303 = vadd.f32 %v274, %v302
  %304 = vdwg.mxu0
  %305 = vmatpush.bf16.msra.mxu0 0
  %306 = vmatpush.bf16.msra.mxu0 0
  %307 = vmatpush.bf16.msra.mxu0 0
  %308 = vmatpush.bf16.msra.mxu0 0
  %309 = vmatpush.bf16.msra.mxu0 0
  %310 = vmatpush.bf16.msra.mxu0 0
  %311 = vmatpush.bf16.msra.mxu0 %v215
  %312 = vmatpush.bf16.msra.mxu0 %v214
  %313 = vmatmul.bf16.gmra.mxu0 %v236
  %v314 = vpop.f32.mrf.mxu0
  %v315 = vadd.f32 %v286, %v314
  %v316 = vpop.f32.mrf.mxu0
  %v317 = vadd.f32 %v288, %v316
  %318 = vmatmul.bf16.gmra.mxu0 %v239
  %v319 = vpop.f32.mrf.mxu0
  %v320 = vadd.f32 %v291, %v319
  %v321 = vpop.f32.mrf.mxu0
  %v322 = vadd.f32 %v293, %v321
  %323 = vmatmul.bf16.gmra.mxu0 %v242
  %v324 = vpop.f32.mrf.mxu0
  %v325 = vadd.f32 %v296, %v324
  %v326 = vpop.f32.mrf.mxu0
  %v327 = vadd.f32 %v298, %v326
  %328 = vmatmul.bf16.gmra.mxu0 %v245
  %v329 = vpop.f32.mrf.mxu0
  %v330 = vadd.f32 %v301, %v329
  %v331 = vpop.f32.mrf.mxu0
  %v332 = vadd.f32 %v303, %v331
  %333 = vdwg.mxu0
  %v334 = vpack.c.bf16 %v315, %v315
  %v335 = vpack.c.bf16 %v317, %v317
  %v336 = vpack.c.bf16 %v320, %v320
  %v337 = vpack.c.bf16 %v322, %v322
  %v338 = vpack.c.bf16 %v325, %v325
  %v339 = vpack.c.bf16 %v327, %v327
  %v340 = vpack.c.bf16 %v330, %v330
  %v341 = vpack.c.bf16 %v332, %v332
  %342 = vst [vmem:[%s2] sm:$0xf] %v334
  %343 = vst [vmem:[%s2 + $0x4] sm:$0xf] %v335
  %344 = vst [vmem:[%s2 + $0x8] sm:$0xf] %v336
  %345 = vst [vmem:[%s2 + $0xc] sm:$0xf] %v337
  %346 = vst [vmem:[%s2 + $0x10] sm:$0xf] %v338
  %347 = vst [vmem:[%s2 + $0x14] sm:$0xf] %v339
  %348 = vst [vmem:[%s2 + $0x18] sm:$0xf] %v340
  %349 = vst [vmem:[%s2 + $0x1c] sm:$0xf] %v341
  %v350 = vadd.f32 %v315, %v317
  %v351 = vadd.f32 %v350, %v320
  %v352 = vadd.f32 %v351, %v322
  %v353 = vadd.f32 %v352, %v325
  %v354 = vadd.f32 %v353, %v327
  %v355 = vadd.f32 %v354, %v330
  %v356 = vadd.f32 %v355, %v332
  %v357 = vrot.slane %v356, 4
  %v358 = vadd.f32 %v356, %v357
  %v359 = vrot.slane %v358, 2
  %v360 = vadd.f32 %v358, %v359
  %v361 = vrot.slane %v360, 1
  %v362 = vadd.f32 %v360, %v361
  %v363 = vmul.f32 %v315, %v315
  %v364 = vmul.f32 %v317, %v317
  %v365 = vmul.f32 %v320, %v320
  %v366 = vmul.f32 %v322, %v322
  %v367 = vmul.f32 %v325, %v325
  %v368 = vmul.f32 %v327, %v327
  %v369 = vmul.f32 %v330, %v330
  %v370 = vmul.f32 %v332, %v332
  %v371 = vadd.f32 %v363, %v364
  %v372 = vadd.f32 %v371, %v365
  %v373 = vadd.f32 %v372, %v366
  %v374 = vadd.f32 %v373, %v367
  %v375 = vadd.f32 %v374, %v368
  %v376 = vadd.f32 %v375, %v369
  %v377 = vadd.f32 %v376, %v370
  %v378 = vrot.slane %v377, 4
  %v379 = vadd.f32 %v377, %v378
  %v380 = vrot.slane %v379, 2
  %v381 = vadd.f32 %v379, %v380
  %v382 = vrot.slane %v381, 1
  %v383 = vadd.f32 %v381, %v382
  %vm384 = vcmask 1040384
  %v385 = vsel %vm384, %v362, %v383
  %386 = vst [vmem:[%s3] sm:$0x3] %v385
  // Predicated region
  $region10: #{_lambda_.18} parent=0 // pred_check
    _
  $region11: #{_lambda_.18} parent=0 // pred_check_branch
    %388 = sbr.rel (0) target = $region13
  $region12: #{_lambda_.18} parent=0 // pred_region
    _
  $region13: #{_lambda_.18} parent=0 // pred_fallthru
    _
  // Predicated region
  $region14: #{_lambda_.18} parent=0 // pred_check
    _
  $region15: #{_lambda_.18} parent=0 // pred_check_branch
    %390 = sbr.rel (0) target = $region17
  $region16: #{_lambda_.18} parent=0 // pred_region
    _
  $region17: #{_lambda_.18} parent=0 // pred_fallthru
    _
  // Predicated region
  $region18: #{_lambda_.18} parent=0 // pred_check
    _
  $region19: #{_lambda_.18} parent=0 // pred_check_branch
    %392 = sbr.rel (0) target = $region21
  $region20: #{_lambda_.18} parent=0 // pred_region
    _
  $region21: #{_lambda_.18} parent=0 // pred_fallthru
    _
  // Predicated region
  $region22: #{_lambda_.18} parent=0 // pred_check
    _
  $region23: #{_lambda_.18} parent=0 // pred_check_branch
    %394 = sbr.rel (0) target = $region25
  $region24: #{_lambda_.18} parent=0 // pred_region
    _
  $region25: #{_lambda_.18} parent=0 // pred_fallthru
    _

// kernel: _lambda_.19
$region0: #{_lambda_.19}
  #allocation0 [shape = 'u32[]', space=smem, size = 0x4, offset = 0x4, fixed_abs, tag = 'smem constant byte address 0x4 - core index']
  #allocation1 [shape = 'u32[72,128]{1,0:T(1,128)}', space=vmem, size = 0x9000, scoped, tag = 'internal scratch']
  %s0 = inlined_call_operand.vmem [shape: bf16[64,128], index: 0, kind: input, shape index: {}]
  %s1 = inlined_call_operand.vmem [shape: f32[1,128], index: 1, kind: input, shape index: {}]
  %s2 = inlined_call_operand.vmem [shape: f32[1,128], index: 2, kind: input, shape index: {}]
  %s3 = inlined_call_operand.vmem [shape: bf16[64,128], index: 3, kind: output, shape index: {}]
  %s4 = sld [smem:[#allocation0]]
  $region22: #{_lambda_.19} parent=0
    _
  %s6 = ssub.s32 1, %s4
  %s7 = scalar_select 0, %s6, %s4
  // Predicated region
  $region2: #{_lambda_.19} parent=0 // pred_check
    _
  $region3: #{_lambda_.19} parent=0 // pred_check_branch
    %9 = sbr.rel (0) target = $region5
  $region4: #{_lambda_.19} parent=0 // pred_region
    _
  $region5: #{_lambda_.19} parent=0 // pred_fallthru
    _
  // Predicated region
  $region6: #{_lambda_.19} parent=0 // pred_check
    _
  $region7: #{_lambda_.19} parent=0 // pred_check_branch
    %11 = sbr.rel (0) target = $region9
  $region8: #{_lambda_.19} parent=0 // pred_region
    _
  $region9: #{_lambda_.19} parent=0 // pred_fallthru
    _
  // Predicated region
  $region10: #{_lambda_.19} parent=0 // pred_check
    _
  $region11: #{_lambda_.19} parent=0 // pred_check_branch
    %13 = sbr.rel (0) target = $region13
  $region12: #{_lambda_.19} parent=0 // pred_region
    _
  $region13: #{_lambda_.19} parent=0 // pred_fallthru
    _
  %v14 = vld [vmem:[%s0] sm:$0xf]
  %v15 = vld [vmem:[%s0 + $0x4] sm:$0xf]
  %v16 = vld [vmem:[%s0 + $0x8] sm:$0xf]
  %v17 = vld [vmem:[%s0 + $0xc] sm:$0xf]
  %v18 = vld [vmem:[%s0 + $0x10] sm:$0xf]
  %v19 = vld [vmem:[%s0 + $0x14] sm:$0xf]
  %v20 = vld [vmem:[%s0 + $0x18] sm:$0xf]
  %v21 = vld [vmem:[%s0 + $0x1c] sm:$0xf]
  %v22 = vunpack.c.l.bf16 %v14
  %v23 = vunpack.c.l.bf16 %v15
  %v24 = vunpack.c.l.bf16 %v16
  %v25 = vunpack.c.l.bf16 %v17
  %v26 = vunpack.c.l.bf16 %v18
  %v27 = vunpack.c.l.bf16 %v19
  %v28 = vunpack.c.l.bf16 %v20
  %v29 = vunpack.c.l.bf16 %v21
  %v30 = vld [vmem:[%s1] sm:$0x1]
  %v32 = vperm.slane %v30, 0
  %v34 = vmul.f32 %v22, %v32
  %v35 = vmul.f32 %v23, %v32
  %v36 = vmul.f32 %v24, %v32
  %v37 = vmul.f32 %v25, %v32
  %v38 = vmul.f32 %v26, %v32
  %v39 = vmul.f32 %v27, %v32
  %v40 = vmul.f32 %v28, %v32
  %v41 = vmul.f32 %v29, %v32
  %v42 = vld [vmem:[%s2] sm:$0x1]
  %v44 = vperm.slane %v42, 0
  %v46 = vadd.f32 %v34, %v44
  %v47 = vadd.f32 %v35, %v44
  %v48 = vadd.f32 %v36, %v44
  %v49 = vadd.f32 %v37, %v44
  %v50 = vadd.f32 %v38, %v44
  %v51 = vadd.f32 %v39, %v44
  %v52 = vadd.f32 %v40, %v44
  %v53 = vadd.f32 %v41, %v44
  %v54 = vmax.f32 %v46, 0.0
  %v55 = vmax.f32 %v47, 0.0
  %v56 = vmax.f32 %v48, 0.0
  %v57 = vmax.f32 %v49, 0.0
  %v58 = vmax.f32 %v50, 0.0
  %v59 = vmax.f32 %v51, 0.0
  %v60 = vmax.f32 %v52, 0.0
  %v61 = vmax.f32 %v53, 0.0
  %v62 = vpack.c.bf16 %v54, %v54
  %v63 = vpack.c.bf16 %v55, %v55
  %v64 = vpack.c.bf16 %v56, %v56
  %v65 = vpack.c.bf16 %v57, %v57
  %v66 = vpack.c.bf16 %v58, %v58
  %v67 = vpack.c.bf16 %v59, %v59
  %v68 = vpack.c.bf16 %v60, %v60
  %v69 = vpack.c.bf16 %v61, %v61
  %70 = vst [vmem:[%s3] sm:$0xf] %v62
  %71 = vst [vmem:[%s3 + $0x4] sm:$0xf] %v63
  %72 = vst [vmem:[%s3 + $0x8] sm:$0xf] %v64
  %73 = vst [vmem:[%s3 + $0xc] sm:$0xf] %v65
  %74 = vst [vmem:[%s3 + $0x10] sm:$0xf] %v66
  %75 = vst [vmem:[%s3 + $0x14] sm:$0xf] %v67
  %76 = vst [vmem:[%s3 + $0x18] sm:$0xf] %v68
  %77 = vst [vmem:[%s3 + $0x1c] sm:$0xf] %v69
  // Predicated region
  $region14: #{_lambda_.19} parent=0 // pred_check
    _
  $region15: #{_lambda_.19} parent=0 // pred_check_branch
    %79 = sbr.rel (0) target = $region17
  $region16: #{_lambda_.19} parent=0 // pred_region
    _
  $region17: #{_lambda_.19} parent=0 // pred_fallthru
    _
  // Predicated region
  $region18: #{_lambda_.19} parent=0 // pred_check
    _
  $region19: #{_lambda_.19} parent=0 // pred_check_branch
    %81 = sbr.rel (0) target = $region21
  $region20: #{_lambda_.19} parent=0 // pred_region
    _
  $region21: #{_lambda_.19} parent=0 // pred_fallthru
    _

// kernel: _lambda_.21
$region0: #{_lambda_.21}
  #allocation0 [shape = 'u32[]', space=smem, size = 0x4, offset = 0x4, fixed_abs, tag = 'smem constant byte address 0x4 - core index']
  #allocation1 [shape = 'u32[72,128]{1,0:T(1,128)}', space=vmem, size = 0x9000, scoped, tag = 'internal scratch']
  %s0 = inlined_call_operand.vmem [shape: bf16[16,128], index: 0, kind: input, shape index: {}]
  %s1 = inlined_call_operand.vmem [shape: f32[1,128], index: 1, kind: input, shape index: {}]
  %s2 = inlined_call_operand.vmem [shape: f32[1,128], index: 2, kind: input, shape index: {}]
  %s3 = inlined_call_operand.vmem [shape: bf16[16,128], index: 3, kind: output, shape index: {}]
  %s4 = sld [smem:[#allocation0]]
  $region22: #{_lambda_.21} parent=0
    _
  %s6 = ssub.s32 1, %s4
  %s7 = scalar_select 0, %s6, %s4
  // Predicated region
  $region2: #{_lambda_.21} parent=0 // pred_check
    _
  $region3: #{_lambda_.21} parent=0 // pred_check_branch
    %9 = sbr.rel (0) target = $region5
  $region4: #{_lambda_.21} parent=0 // pred_region
    _
  $region5: #{_lambda_.21} parent=0 // pred_fallthru
    _
  // Predicated region
  $region6: #{_lambda_.21} parent=0 // pred_check
    _
  $region7: #{_lambda_.21} parent=0 // pred_check_branch
    %11 = sbr.rel (0) target = $region9
  $region8: #{_lambda_.21} parent=0 // pred_region
    _
  $region9: #{_lambda_.21} parent=0 // pred_fallthru
    _
  // Predicated region
  $region10: #{_lambda_.21} parent=0 // pred_check
    _
  $region11: #{_lambda_.21} parent=0 // pred_check_branch
    %13 = sbr.rel (0) target = $region13
  $region12: #{_lambda_.21} parent=0 // pred_region
    _
  $region13: #{_lambda_.21} parent=0 // pred_fallthru
    _
  %v14 = vld [vmem:[%s0] sm:$0xf]
  %v15 = vld [vmem:[%s0 + $0x4] sm:$0xf]
  %v16 = vunpack.c.l.bf16 %v14
  %v17 = vunpack.c.l.bf16 %v15
  %v18 = vld [vmem:[%s1] sm:$0x1]
  %v20 = vperm.slane %v18, 0
  %v22 = vmul.f32 %v16, %v20
  %v23 = vmul.f32 %v17, %v20
  %v24 = vld [vmem:[%s2] sm:$0x1]
  %v26 = vperm.slane %v24, 0
  %v28 = vadd.f32 %v22, %v26
  %v29 = vadd.f32 %v23, %v26
  %v30 = vmax.f32 %v28, 0.0
  %v31 = vmax.f32 %v29, 0.0
  %v32 = vpack.c.bf16 %v30, %v30
  %v33 = vpack.c.bf16 %v31, %v31
  %34 = vst [vmem:[%s3] sm:$0xf] %v32
  %35 = vst [vmem:[%s3 + $0x4] sm:$0xf] %v33
  // Predicated region
  $region14: #{_lambda_.21} parent=0 // pred_check
    _
  $region15: #{_lambda_.21} parent=0 // pred_check_branch
    %37 = sbr.rel (0) target = $region17
  $region16: #{_lambda_.21} parent=0 // pred_region
    _
  $region17: #{_lambda_.21} parent=0 // pred_fallthru
    _
  // Predicated region
  $region18: #{_lambda_.21} parent=0 // pred_check
    _
  $region19: #{_lambda_.21} parent=0 // pred_check_branch
    %39 = sbr.rel (0) target = $region21
  $region20: #{_lambda_.21} parent=0 // pred_region
    _
  $region21: #{_lambda_.21} parent=0 // pred_fallthru
    _

// kernel: _lambda_.20
$region0: #{_lambda_.20}
  #allocation0 [shape = 'u32[]', space=smem, size = 0x4, offset = 0x4, fixed_abs, tag = 'smem constant byte address 0x4 - core index']
  #allocation1 [shape = 'u32[72,128]{1,0:T(1,128)}', space=vmem, size = 0x9000, scoped, tag = 'internal scratch']
  %s0 = inlined_call_operand.vmem [shape: bf16[16,576], index: 0, kind: input, shape index: {}]
  %s1 = inlined_call_operand.vmem [shape: bf16[576,128], index: 1, kind: input, shape index: {}]
  %s2 = inlined_call_operand.vmem [shape: bf16[16,128], index: 2, kind: output, shape index: {0}]
  %s3 = inlined_call_operand.vmem [shape: f32[1,2,128], index: 3, kind: output, shape index: {1}]
  %4 = xla_tuple %s2, %s3
  %s5 = sld [smem:[#allocation0]]
  $region26: #{_lambda_.20} parent=0
    _
  %s7 = ssub.s32 1, %s5
  %s8 = scalar_select 0, %s7, %s5
  // Predicated region
  $region2: #{_lambda_.20} parent=0 // pred_check
    _
  $region3: #{_lambda_.20} parent=0 // pred_check_branch
    %10 = sbr.rel (0) target = $region5
  $region4: #{_lambda_.20} parent=0 // pred_region
    _
  $region5: #{_lambda_.20} parent=0 // pred_fallthru
    _
  // Predicated region
  $region6: #{_lambda_.20} parent=0 // pred_check
    _
  $region7: #{_lambda_.20} parent=0 // pred_check_branch
    %12 = sbr.rel (0) target = $region9
  $region8: #{_lambda_.20} parent=0 // pred_region
    _
  $region9: #{_lambda_.20} parent=0 // pred_fallthru
    _
  %v14 = vld [vmem:[%s0] sm:$0xff]
  %v15 = vld [vmem:[%s0 + $0x8] sm:$0xff]
  %v16 = vld [vmem:[%s0 + $0x10] sm:$0xf]
  %v17 = vld [vmem:[%s0 + $0x14] sm:$0xff]
  %v18 = vld [vmem:[%s0 + $0x1c] sm:$0xff]
  %v19 = vld [vmem:[%s0 + $0x24] sm:$0xf]
  %v20 = vld [vmem:[%s1] sm:$0xf]
  %v21 = vld [vmem:[%s1 + $0x4] sm:$0xf]
  %v22 = vld [vmem:[%s1 + $0x8] sm:$0xf]
  %v23 = vld [vmem:[%s1 + $0xc] sm:$0xf]
  %v24 = vld [vmem:[%s1 + $0x10] sm:$0xf]
  %v25 = vld [vmem:[%s1 + $0x14] sm:$0xf]
  %v26 = vld [vmem:[%s1 + $0x18] sm:$0xf]
  %v27 = vld [vmem:[%s1 + $0x1c] sm:$0xf]
  %v28 = vld [vmem:[%s1 + $0x20] sm:$0xf]
  %v29 = vld [vmem:[%s1 + $0x24] sm:$0xf]
  %v30 = vld [vmem:[%s1 + $0x28] sm:$0xf]
  %v31 = vld [vmem:[%s1 + $0x2c] sm:$0xf]
  %v32 = vld [vmem:[%s1 + $0x30] sm:$0xf]
  %v33 = vld [vmem:[%s1 + $0x34] sm:$0xf]
  %v34 = vld [vmem:[%s1 + $0x38] sm:$0xf]
  %v35 = vld [vmem:[%s1 + $0x3c] sm:$0xf]
  %v36 = vld [vmem:[%s1 + $0x40] sm:$0xf]
  %v37 = vld [vmem:[%s1 + $0x44] sm:$0xf]
  %v38 = vld [vmem:[%s1 + $0x48] sm:$0xf]
  %v39 = vld [vmem:[%s1 + $0x4c] sm:$0xf]
  %v40 = vld [vmem:[%s1 + $0x50] sm:$0xf]
  %v41 = vld [vmem:[%s1 + $0x54] sm:$0xf]
  %v42 = vld [vmem:[%s1 + $0x58] sm:$0xf]
  %v43 = vld [vmem:[%s1 + $0x5c] sm:$0xf]
  %v44 = vld [vmem:[%s1 + $0x60] sm:$0xf]
  %v45 = vld [vmem:[%s1 + $0x64] sm:$0xf]
  %v46 = vld [vmem:[%s1 + $0x68] sm:$0xf]
  %v47 = vld [vmem:[%s1 + $0x6c] sm:$0xf]
  %v48 = vld [vmem:[%s1 + $0x70] sm:$0xf]
  %v49 = vld [vmem:[%s1 + $0x74] sm:$0xf]
  %v50 = vld [vmem:[%s1 + $0x78] sm:$0xf]
  %v51 = vld [vmem:[%s1 + $0x7c] sm:$0xf]
  %v52 = vld [vmem:[%s1 + $0x80] sm:$0xf]
  %v53 = vld [vmem:[%s1 + $0x84] sm:$0xf]
  %v54 = vld [vmem:[%s1 + $0x88] sm:$0xf]
  %v55 = vld [vmem:[%s1 + $0x8c] sm:$0xf]
  %v56 = vld [vmem:[%s1 + $0x90] sm:$0xf]
  %v57 = vld [vmem:[%s1 + $0x94] sm:$0xf]
  %v58 = vld [vmem:[%s1 + $0x98] sm:$0xf]
  %v59 = vld [vmem:[%s1 + $0x9c] sm:$0xf]
  %v60 = vld [vmem:[%s1 + $0xa0] sm:$0xf]
  %v61 = vld [vmem:[%s1 + $0xa4] sm:$0xf]
  %v62 = vld [vmem:[%s1 + $0xa8] sm:$0xf]
  %v63 = vld [vmem:[%s1 + $0xac] sm:$0xf]
  %v64 = vld [vmem:[%s1 + $0xb0] sm:$0xf]
  %v65 = vld [vmem:[%s1 + $0xb4] sm:$0xf]
  %v66 = vld [vmem:[%s1 + $0xb8] sm:$0xf]
  %v67 = vld [vmem:[%s1 + $0xbc] sm:$0xf]
  %v68 = vld [vmem:[%s1 + $0xc0] sm:$0xf]
  %v69 = vld [vmem:[%s1 + $0xc4] sm:$0xf]
  %v70 = vld [vmem:[%s1 + $0xc8] sm:$0xf]
  %v71 = vld [vmem:[%s1 + $0xcc] sm:$0xf]
  %v72 = vld [vmem:[%s1 + $0xd0] sm:$0xf]
  %v73 = vld [vmem:[%s1 + $0xd4] sm:$0xf]
  %v74 = vld [vmem:[%s1 + $0xd8] sm:$0xf]
  %v75 = vld [vmem:[%s1 + $0xdc] sm:$0xf]
  %v76 = vld [vmem:[%s1 + $0xe0] sm:$0xf]
  %v77 = vld [vmem:[%s1 + $0xe4] sm:$0xf]
  %v78 = vld [vmem:[%s1 + $0xe8] sm:$0xf]
  %v79 = vld [vmem:[%s1 + $0xec] sm:$0xf]
  %v80 = vld [vmem:[%s1 + $0xf0] sm:$0xf]
  %v81 = vld [vmem:[%s1 + $0xf4] sm:$0xf]
  %v82 = vld [vmem:[%s1 + $0xf8] sm:$0xf]
  %v83 = vld [vmem:[%s1 + $0xfc] sm:$0xf]
  %v84 = vld [vmem:[%s1 + $0x100] sm:$0xf]
  %v85 = vld [vmem:[%s1 + $0x104] sm:$0xf]
  %v86 = vld [vmem:[%s1 + $0x108] sm:$0xf]
  %v87 = vld [vmem:[%s1 + $0x10c] sm:$0xf]
  %v88 = vld [vmem:[%s1 + $0x110] sm:$0xf]
  %v89 = vld [vmem:[%s1 + $0x114] sm:$0xf]
  %v90 = vld [vmem:[%s1 + $0x118] sm:$0xf]
  %v91 = vld [vmem:[%s1 + $0x11c] sm:$0xf]
  %v98 = vunpack.c.l.b16 %v14
  %v99 = vunpack.c.h.b16 %v14
  %v100 = vunpack.c.l.b16 %v15
  %v101 = vunpack.c.h.b16 %v15
  %v102 = vunpack.c.l.b16 %v16
  %v103 = vunpack.c.l.b16 %v17
  %v104 = vunpack.c.h.b16 %v17
  %v105 = vunpack.c.l.b16 %v18
  %v106 = vunpack.c.h.b16 %v18
  %v107 = vunpack.c.l.b16 %v19
  %v108 = vpack.c.b16 %v103, %v98
  %v109 = vpack.c.b16 %v104, %v99
  %v110 = vpack.c.b16 %v105, %v100
  %v111 = vpack.c.b16 %v106, %v101
  %v112 = vpack.c.b16 %v107, %v102
  %v189 = vunpack.c.l.b16 %v20
  %v190 = vunpack.c.l.b16 %v21
  %v191 = vunpack.c.l.b16 %v22
  %v192 = vunpack.c.l.b16 %v23
  %v193 = vunpack.c.l.b16 %v24
  %v194 = vunpack.c.l.b16 %v25
  %v195 = vunpack.c.l.b16 %v26
  %v196 = vunpack.c.l.b16 %v27
  %v197 = vunpack.c.l.b16 %v28
  %v198 = vunpack.c.l.b16 %v29
  %v199 = vunpack.c.l.b16 %v30
  %v200 = vunpack.c.l.b16 %v31
  %v201 = vunpack.c.l.b16 %v32
  %v202 = vunpack.c.l.b16 %v33
  %v203 = vunpack.c.l.b16 %v34
  %v204 = vunpack.c.l.b16 %v35
  %v205 = vunpack.c.l.b16 %v36
  %v206 = vunpack.c.l.b16 %v37
  %v207 = vunpack.c.l.b16 %v38
  %v208 = vunpack.c.l.b16 %v39
  %v209 = vunpack.c.l.b16 %v40
  %v210 = vunpack.c.l.b16 %v41
  %v211 = vunpack.c.l.b16 %v42
  %v212 = vunpack.c.l.b16 %v43
  %v213 = vunpack.c.l.b16 %v44
  %v214 = vunpack.c.l.b16 %v45
  %v215 = vunpack.c.l.b16 %v46
  %v216 = vunpack.c.l.b16 %v47
  %v217 = vunpack.c.l.b16 %v48
  %v218 = vunpack.c.l.b16 %v49
  %v219 = vunpack.c.l.b16 %v50
  %v220 = vunpack.c.l.b16 %v51
  %v221 = vunpack.c.l.b16 %v52
  %v222 = vunpack.c.l.b16 %v53
  %v223 = vunpack.c.l.b16 %v54
  %v224 = vunpack.c.l.b16 %v55
  %v225 = vunpack.c.l.b16 %v56
  %v226 = vunpack.c.l.b16 %v57
  %v227 = vunpack.c.l.b16 %v58
  %v228 = vunpack.c.l.b16 %v59
  %v229 = vunpack.c.l.b16 %v60
  %v230 = vunpack.c.l.b16 %v61
  %v231 = vunpack.c.l.b16 %v62
  %v232 = vunpack.c.l.b16 %v63
  %v233 = vunpack.c.l.b16 %v64
  %v234 = vunpack.c.l.b16 %v65
  %v235 = vunpack.c.l.b16 %v66
  %v236 = vunpack.c.l.b16 %v67
  %v237 = vunpack.c.l.b16 %v68
  %v238 = vunpack.c.l.b16 %v69
  %v239 = vunpack.c.l.b16 %v70
  %v240 = vunpack.c.l.b16 %v71
  %v241 = vunpack.c.l.b16 %v72
  %v242 = vunpack.c.l.b16 %v73
  %v243 = vunpack.c.l.b16 %v74
  %v244 = vunpack.c.l.b16 %v75
  %v245 = vunpack.c.l.b16 %v76
  %v246 = vunpack.c.l.b16 %v77
  %v247 = vunpack.c.l.b16 %v78
  %v248 = vunpack.c.l.b16 %v79
  %v249 = vunpack.c.l.b16 %v80
  %v250 = vunpack.c.l.b16 %v81
  %v251 = vunpack.c.l.b16 %v82
  %v252 = vunpack.c.l.b16 %v83
  %v253 = vunpack.c.l.b16 %v84
  %v254 = vunpack.c.l.b16 %v85
  %v255 = vunpack.c.l.b16 %v86
  %v256 = vunpack.c.l.b16 %v87
  %v257 = vunpack.c.l.b16 %v88
  %v258 = vunpack.c.l.b16 %v89
  %v259 = vunpack.c.l.b16 %v90
  %v260 = vunpack.c.l.b16 %v91
  %v261 = vpack.c.b16 %v190, %v189
  %v262 = vpack.c.b16 %v192, %v191
  %v263 = vpack.c.b16 %v194, %v193
  %v264 = vpack.c.b16 %v196, %v195
  %v265 = vpack.c.b16 %v198, %v197
  %v266 = vpack.c.b16 %v200, %v199
  %v267 = vpack.c.b16 %v202, %v201
  %v268 = vpack.c.b16 %v204, %v203
  %v269 = vpack.c.b16 %v206, %v205
  %v270 = vpack.c.b16 %v208, %v207
  %v271 = vpack.c.b16 %v210, %v209
  %v272 = vpack.c.b16 %v212, %v211
  %v273 = vpack.c.b16 %v214, %v213
  %v274 = vpack.c.b16 %v216, %v215
  %v275 = vpack.c.b16 %v218, %v217
  %v276 = vpack.c.b16 %v220, %v219
  %v277 = vpack.c.b16 %v222, %v221
  %v278 = vpack.c.b16 %v224, %v223
  %v279 = vpack.c.b16 %v226, %v225
  %v280 = vpack.c.b16 %v228, %v227
  %v281 = vpack.c.b16 %v230, %v229
  %v282 = vpack.c.b16 %v232, %v231
  %v283 = vpack.c.b16 %v234, %v233
  %v284 = vpack.c.b16 %v236, %v235
  %v285 = vpack.c.b16 %v238, %v237
  %v286 = vpack.c.b16 %v240, %v239
  %v287 = vpack.c.b16 %v242, %v241
  %v288 = vpack.c.b16 %v244, %v243
  %v289 = vpack.c.b16 %v246, %v245
  %v290 = vpack.c.b16 %v248, %v247
  %v291 = vpack.c.b16 %v250, %v249
  %v292 = vpack.c.b16 %v252, %v251
  %v293 = vpack.c.b16 %v254, %v253
  %v294 = vpack.c.b16 %v256, %v255
  %v295 = vpack.c.b16 %v258, %v257
  %v296 = vpack.c.b16 %v260, %v259
  %vm333 = vcmask 523264
  %v335 = vsel %vm333, %v112, 0
  %337 = vmatpush.bf16.msra.mxu0 %v268
  %338 = vmatpush.bf16.msra.mxu0 %v267
  %339 = vmatpush.bf16.msra.mxu0 %v266
  %340 = vmatpush.bf16.msra.mxu0 %v265
  %341 = vmatpush.bf16.msra.mxu0 %v264
  %342 = vmatpush.bf16.msra.mxu0 %v263
  %343 = vmatpush.bf16.msra.mxu0 %v262
  %344 = vmatpush.bf16.msra.mxu0 %v261
  %345 = vmatmul.bf16.gmra.mxu0 %v108
  %v346 = vpop.f32.mrf.mxu0
  %v347 = vadd.f32 0.0, %v346
  %v348 = vpop.f32.mrf.mxu0
  %v349 = vadd.f32 0.0, %v348
  %350 = vdwg.mxu0
  %351 = vmatpush.bf16.msra.mxu0 %v276
  %352 = vmatpush.bf16.msra.mxu0 %v275
  %353 = vmatpush.bf16.msra.mxu0 %v274
  %354 = vmatpush.bf16.msra.mxu0 %v273
  %355 = vmatpush.bf16.msra.mxu0 %v272
  %356 = vmatpush.bf16.msra.mxu0 %v271
  %357 = vmatpush.bf16.msra.mxu0 %v270
  %358 = vmatpush.bf16.msra.mxu0 %v269
  %359 = vmatmul.bf16.gmra.mxu0 %v109
  %v360 = vpop.f32.mrf.mxu0
  %v361 = vadd.f32 %v347, %v360
  %v362 = vpop.f32.mrf.mxu0
  %v363 = vadd.f32 %v349, %v362
  %364 = vdwg.mxu0
  %365 = vmatpush.bf16.msra.mxu0 %v284
  %366 = vmatpush.bf16.msra.mxu0 %v283
  %367 = vmatpush.bf16.msra.mxu0 %v282
  %368 = vmatpush.bf16.msra.mxu0 %v281
  %369 = vmatpush.bf16.msra.mxu0 %v280
  %370 = vmatpush.bf16.msra.mxu0 %v279
  %371 = vmatpush.bf16.msra.mxu0 %v278
  %372 = vmatpush.bf16.msra.mxu0 %v277
  %373 = vmatmul.bf16.gmra.mxu0 %v110
  %v374 = vpop.f32.mrf.mxu0
  %v375 = vadd.f32 %v361, %v374
  %v376 = vpop.f32.mrf.mxu0
  %v377 = vadd.f32 %v363, %v376
  %378 = vdwg.mxu0
  %379 = vmatpush.bf16.msra.mxu0 %v292
  %380 = vmatpush.bf16.msra.mxu0 %v291
  %381 = vmatpush.bf16.msra.mxu0 %v290
  %382 = vmatpush.bf16.msra.mxu0 %v289
  %383 = vmatpush.bf16.msra.mxu0 %v288
  %384 = vmatpush.bf16.msra.mxu0 %v287
  %385 = vmatpush.bf16.msra.mxu0 %v286
  %386 = vmatpush.bf16.msra.mxu0 %v285
  %387 = vmatmul.bf16.gmra.mxu0 %v111
  %v388 = vpop.f32.mrf.mxu0
  %v389 = vadd.f32 %v375, %v388
  %v390 = vpop.f32.mrf.mxu0
  %v391 = vadd.f32 %v377, %v390
  %392 = vdwg.mxu0
  %393 = vmatpush.bf16.msra.mxu0 0
  %394 = vmatpush.bf16.msra.mxu0 0
  %395 = vmatpush.bf16.msra.mxu0 0
  %396 = vmatpush.bf16.msra.mxu0 0
  %397 = vmatpush.bf16.msra.mxu0 %v296
  %398 = vmatpush.bf16.msra.mxu0 %v295
  %399 = vmatpush.bf16.msra.mxu0 %v294
  %400 = vmatpush.bf16.msra.mxu0 %v293
  %401 = vmatmul.bf16.gmra.mxu0 %v335
  %v402 = vpop.f32.mrf.mxu0
  %v403 = vadd.f32 %v389, %v402
  %v404 = vpop.f32.mrf.mxu0
  %v405 = vadd.f32 %v391, %v404
  %406 = vdwg.mxu0
  %v407 = vpack.c.bf16 %v403, %v403
  %v408 = vpack.c.bf16 %v405, %v405
  %409 = vst [vmem:[%s2] sm:$0xf] %v407
  %410 = vst [vmem:[%s2 + $0x4] sm:$0xf] %v408
  %v411 = vadd.f32 %v403, %v405
  %v412 = vrot.slane %v411, 4
  %v413 = vadd.f32 %v411, %v412
  %v414 = vrot.slane %v413, 2
  %v415 = vadd.f32 %v413, %v414
  %v416 = vrot.slane %v415, 1
  %v417 = vadd.f32 %v415, %v416
  %v418 = vmul.f32 %v403, %v403
  %v419 = vmul.f32 %v405, %v405
  %v420 = vadd.f32 %v418, %v419
  %v421 = vrot.slane %v420, 4
  %v422 = vadd.f32 %v420, %v421
  %v423 = vrot.slane %v422, 2
  %v424 = vadd.f32 %v422, %v423
  %v425 = vrot.slane %v424, 1
  %v426 = vadd.f32 %v424, %v425
  %vm427 = vcmask 1040384
  %v428 = vsel %vm427, %v417, %v426
  %429 = vst [vmem:[%s3] sm:$0x3] %v428
  // Predicated region
  $region10: #{_lambda_.20} parent=0 // pred_check
    _
  $region11: #{_lambda_.20} parent=0 // pred_check_branch
    %431 = sbr.rel (0) target = $region13
  $region12: #{_lambda_.20} parent=0 // pred_region
    _
  $region13: #{_lambda_.20} parent=0 // pred_fallthru
    _
  // Predicated region
  $region14: #{_lambda_.20} parent=0 // pred_check
    _
  $region15: #{_lambda_.20} parent=0 // pred_check_branch
    %433 = sbr.rel (0) target = $region17
  $region16: #{_lambda_.20} parent=0 // pred_region
    _
  $region17: #{_lambda_.20} parent=0 // pred_fallthru
    _
  // Predicated region
  $region18: #{_lambda_.20} parent=0 // pred_check
    _
  $region19: #{_lambda_.20} parent=0 // pred_check_branch
    %435 = sbr.rel (0) target = $region21
  $region20: #{_lambda_.20} parent=0 // pred_region
    _
  $region21: #{_lambda_.20} parent=0 // pred_fallthru
    _
  // Predicated region
  $region22: #{_lambda_.20} parent=0 // pred_check
    _
  $region23: #{_lambda_.20} parent=0 // pred_check_branch
    %437 = sbr.rel (0) target = $region25
  $region24: #{_lambda_.20} parent=0 // pred_region
    _
  $region25: #{_lambda_.20} parent=0 // pred_fallthru
    _

// kernel: _lambda_.23
$region0: #{_lambda_.23}
  #allocation0 [shape = 'u32[]', space=smem, size = 0x4, offset = 0x4, fixed_abs, tag = 'smem constant byte address 0x4 - core index']
  #allocation1 [shape = 'u32[72,128]{1,0:T(1,128)}', space=vmem, size = 0x9000, scoped, tag = 'internal scratch']
  %s0 = inlined_call_operand.vmem [shape: bf16[8,128], index: 0, kind: input, shape index: {}]
  %s1 = inlined_call_operand.vmem [shape: f32[1,128], index: 1, kind: input, shape index: {}]
  %s2 = inlined_call_operand.vmem [shape: f32[1,128], index: 2, kind: input, shape index: {}]
  %s3 = inlined_call_operand.vmem [shape: bf16[8,128], index: 3, kind: output, shape index: {}]
  %s4 = sld [smem:[#allocation0]]
  $region22: #{_lambda_.23} parent=0
    _
  %s6 = ssub.s32 1, %s4
  %s7 = scalar_select 0, %s6, %s4
  // Predicated region
  $region2: #{_lambda_.23} parent=0 // pred_check
    _
  $region3: #{_lambda_.23} parent=0 // pred_check_branch
    %9 = sbr.rel (0) target = $region5
  $region4: #{_lambda_.23} parent=0 // pred_region
    _
  $region5: #{_lambda_.23} parent=0 // pred_fallthru
    _
  // Predicated region
  $region6: #{_lambda_.23} parent=0 // pred_check
    _
  $region7: #{_lambda_.23} parent=0 // pred_check_branch
    %11 = sbr.rel (0) target = $region9
  $region8: #{_lambda_.23} parent=0 // pred_region
    _
  $region9: #{_lambda_.23} parent=0 // pred_fallthru
    _
  // Predicated region
  $region10: #{_lambda_.23} parent=0 // pred_check
    _
  $region11: #{_lambda_.23} parent=0 // pred_check_branch
    %13 = sbr.rel (0) target = $region13
  $region12: #{_lambda_.23} parent=0 // pred_region
    _
  $region13: #{_lambda_.23} parent=0 // pred_fallthru
    _
  %v14 = vld [vmem:[%s0] sm:$0xf]
  %v15 = vunpack.c.l.bf16 %v14
  %v16 = vld [vmem:[%s1] sm:$0x1]
  %v18 = vperm.slane %v16, 0
  %v20 = vmul.f32 %v15, %v18
  %v21 = vld [vmem:[%s2] sm:$0x1]
  %v23 = vperm.slane %v21, 0
  %v25 = vadd.f32 %v20, %v23
  %v26 = vmax.f32 %v25, 0.0
  %v27 = vpack.c.bf16 %v26, %v26
  %28 = vst [vmem:[%s3] sm:$0xf] %v27
  // Predicated region
  $region14: #{_lambda_.23} parent=0 // pred_check
    _
  $region15: #{_lambda_.23} parent=0 // pred_check_branch
    %30 = sbr.rel (0) target = $region17
  $region16: #{_lambda_.23} parent=0 // pred_region
    _
  $region17: #{_lambda_.23} parent=0 // pred_fallthru
    _
  // Predicated region
  $region18: #{_lambda_.23} parent=0 // pred_check
    _
  $region19: #{_lambda_.23} parent=0 // pred_check_branch
    %32 = sbr.rel (0) target = $region21
  $region20: #{_lambda_.23} parent=0 // pred_region
    _
  $region21: #{_lambda_.23} parent=0 // pred_fallthru
    _

// kernel: _lambda_.22
$region0: #{_lambda_.22}
  #allocation0 [shape = 'u32[]', space=smem, size = 0x4, offset = 0x4, fixed_abs, tag = 'smem constant byte address 0x4 - core index']
  #allocation1 [shape = 'u32[72,128]{1,0:T(1,128)}', space=vmem, size = 0x9000, scoped, tag = 'internal scratch']
  %s0 = inlined_call_operand.vmem [shape: bf16[8,576], index: 0, kind: input, shape index: {}]
  %s1 = inlined_call_operand.vmem [shape: bf16[576,128], index: 1, kind: input, shape index: {}]
  %s2 = inlined_call_operand.vmem [shape: bf16[8,128], index: 2, kind: output, shape index: {0}]
  %s3 = inlined_call_operand.vmem [shape: f32[1,2,128], index: 3, kind: output, shape index: {1}]
  %4 = xla_tuple %s2, %s3
  %s5 = sld [smem:[#allocation0]]
  $region26: #{_lambda_.22} parent=0
    _
  %s7 = ssub.s32 1, %s5
  %s8 = scalar_select 0, %s7, %s5
  // Predicated region
  $region2: #{_lambda_.22} parent=0 // pred_check
    _
  $region3: #{_lambda_.22} parent=0 // pred_check_branch
    %10 = sbr.rel (0) target = $region5
  $region4: #{_lambda_.22} parent=0 // pred_region
    _
  $region5: #{_lambda_.22} parent=0 // pred_fallthru
    _
  // Predicated region
  $region6: #{_lambda_.22} parent=0 // pred_check
    _
  $region7: #{_lambda_.22} parent=0 // pred_check_branch
    %12 = sbr.rel (0) target = $region9
  $region8: #{_lambda_.22} parent=0 // pred_region
    _
  $region9: #{_lambda_.22} parent=0 // pred_fallthru
    _
  %v14 = vld [vmem:[%s0] sm:$0xff]
  %v15 = vld [vmem:[%s0 + $0x8] sm:$0xff]
  %v16 = vld [vmem:[%s0 + $0x10] sm:$0xf]
  %v17 = vld [vmem:[%s1] sm:$0xf]
  %v18 = vld [vmem:[%s1 + $0x4] sm:$0xf]
  %v19 = vld [vmem:[%s1 + $0x8] sm:$0xf]
  %v20 = vld [vmem:[%s1 + $0xc] sm:$0xf]
  %v21 = vld [vmem:[%s1 + $0x10] sm:$0xf]
  %v22 = vld [vmem:[%s1 + $0x14] sm:$0xf]
  %v23 = vld [vmem:[%s1 + $0x18] sm:$0xf]
  %v24 = vld [vmem:[%s1 + $0x1c] sm:$0xf]
  %v25 = vld [vmem:[%s1 + $0x20] sm:$0xf]
  %v26 = vld [vmem:[%s1 + $0x24] sm:$0xf]
  %v27 = vld [vmem:[%s1 + $0x28] sm:$0xf]
  %v28 = vld [vmem:[%s1 + $0x2c] sm:$0xf]
  %v29 = vld [vmem:[%s1 + $0x30] sm:$0xf]
  %v30 = vld [vmem:[%s1 + $0x34] sm:$0xf]
  %v31 = vld [vmem:[%s1 + $0x38] sm:$0xf]
  %v32 = vld [vmem:[%s1 + $0x3c] sm:$0xf]
  %v33 = vld [vmem:[%s1 + $0x40] sm:$0xf]
  %v34 = vld [vmem:[%s1 + $0x44] sm:$0xf]
  %v35 = vld [vmem:[%s1 + $0x48] sm:$0xf]
  %v36 = vld [vmem:[%s1 + $0x4c] sm:$0xf]
  %v37 = vld [vmem:[%s1 + $0x50] sm:$0xf]
  %v38 = vld [vmem:[%s1 + $0x54] sm:$0xf]
  %v39 = vld [vmem:[%s1 + $0x58] sm:$0xf]
  %v40 = vld [vmem:[%s1 + $0x5c] sm:$0xf]
  %v41 = vld [vmem:[%s1 + $0x60] sm:$0xf]
  %v42 = vld [vmem:[%s1 + $0x64] sm:$0xf]
  %v43 = vld [vmem:[%s1 + $0x68] sm:$0xf]
  %v44 = vld [vmem:[%s1 + $0x6c] sm:$0xf]
  %v45 = vld [vmem:[%s1 + $0x70] sm:$0xf]
  %v46 = vld [vmem:[%s1 + $0x74] sm:$0xf]
  %v47 = vld [vmem:[%s1 + $0x78] sm:$0xf]
  %v48 = vld [vmem:[%s1 + $0x7c] sm:$0xf]
  %v49 = vld [vmem:[%s1 + $0x80] sm:$0xf]
  %v50 = vld [vmem:[%s1 + $0x84] sm:$0xf]
  %v51 = vld [vmem:[%s1 + $0x88] sm:$0xf]
  %v52 = vld [vmem:[%s1 + $0x8c] sm:$0xf]
  %v53 = vld [vmem:[%s1 + $0x90] sm:$0xf]
  %v54 = vld [vmem:[%s1 + $0x94] sm:$0xf]
  %v55 = vld [vmem:[%s1 + $0x98] sm:$0xf]
  %v56 = vld [vmem:[%s1 + $0x9c] sm:$0xf]
  %v57 = vld [vmem:[%s1 + $0xa0] sm:$0xf]
  %v58 = vld [vmem:[%s1 + $0xa4] sm:$0xf]
  %v59 = vld [vmem:[%s1 + $0xa8] sm:$0xf]
  %v60 = vld [vmem:[%s1 + $0xac] sm:$0xf]
  %v61 = vld [vmem:[%s1 + $0xb0] sm:$0xf]
  %v62 = vld [vmem:[%s1 + $0xb4] sm:$0xf]
  %v63 = vld [vmem:[%s1 + $0xb8] sm:$0xf]
  %v64 = vld [vmem:[%s1 + $0xbc] sm:$0xf]
  %v65 = vld [vmem:[%s1 + $0xc0] sm:$0xf]
  %v66 = vld [vmem:[%s1 + $0xc4] sm:$0xf]
  %v67 = vld [vmem:[%s1 + $0xc8] sm:$0xf]
  %v68 = vld [vmem:[%s1 + $0xcc] sm:$0xf]
  %v69 = vld [vmem:[%s1 + $0xd0] sm:$0xf]
  %v70 = vld [vmem:[%s1 + $0xd4] sm:$0xf]
  %v71 = vld [vmem:[%s1 + $0xd8] sm:$0xf]
  %v72 = vld [vmem:[%s1 + $0xdc] sm:$0xf]
  %v73 = vld [vmem:[%s1 + $0xe0] sm:$0xf]
  %v74 = vld [vmem:[%s1 + $0xe4] sm:$0xf]
  %v75 = vld [vmem:[%s1 + $0xe8] sm:$0xf]
  %v76 = vld [vmem:[%s1 + $0xec] sm:$0xf]
  %v77 = vld [vmem:[%s1 + $0xf0] sm:$0xf]
  %v78 = vld [vmem:[%s1 + $0xf4] sm:$0xf]
  %v79 = vld [vmem:[%s1 + $0xf8] sm:$0xf]
  %v80 = vld [vmem:[%s1 + $0xfc] sm:$0xf]
  %v81 = vld [vmem:[%s1 + $0x100] sm:$0xf]
  %v82 = vld [vmem:[%s1 + $0x104] sm:$0xf]
  %v83 = vld [vmem:[%s1 + $0x108] sm:$0xf]
  %v84 = vld [vmem:[%s1 + $0x10c] sm:$0xf]
  %v85 = vld [vmem:[%s1 + $0x110] sm:$0xf]
  %v86 = vld [vmem:[%s1 + $0x114] sm:$0xf]
  %v87 = vld [vmem:[%s1 + $0x118] sm:$0xf]
  %v88 = vld [vmem:[%s1 + $0x11c] sm:$0xf]
  %v92 = vunpack.c.l.b16 %v14
  %v93 = vunpack.c.h.b16 %v14
  %v94 = vunpack.c.l.b16 %v15
  %v95 = vunpack.c.h.b16 %v15
  %v96 = vunpack.c.l.b16 %v16
  %v97 = vpack.c.b16 %v92, %v92
  %v98 = vpack.c.b16 %v93, %v93
  %v99 = vpack.c.b16 %v94, %v94
  %v100 = vpack.c.b16 %v95, %v95
  %v101 = vpack.c.b16 %v96, %v96
  %v178 = vunpack.c.l.b16 %v17
  %v179 = vunpack.c.l.b16 %v18
  %v180 = vunpack.c.l.b16 %v19
  %v181 = vunpack.c.l.b16 %v20
  %v182 = vunpack.c.l.b16 %v21
  %v183 = vunpack.c.l.b16 %v22
  %v184 = vunpack.c.l.b16 %v23
  %v185 = vunpack.c.l.b16 %v24
  %v186 = vunpack.c.l.b16 %v25
  %v187 = vunpack.c.l.b16 %v26
  %v188 = vunpack.c.l.b16 %v27
  %v189 = vunpack.c.l.b16 %v28
  %v190 = vunpack.c.l.b16 %v29
  %v191 = vunpack.c.l.b16 %v30
  %v192 = vunpack.c.l.b16 %v31
  %v193 = vunpack.c.l.b16 %v32
  %v194 = vunpack.c.l.b16 %v33
  %v195 = vunpack.c.l.b16 %v34
  %v196 = vunpack.c.l.b16 %v35
  %v197 = vunpack.c.l.b16 %v36
  %v198 = vunpack.c.l.b16 %v37
  %v199 = vunpack.c.l.b16 %v38
  %v200 = vunpack.c.l.b16 %v39
  %v201 = vunpack.c.l.b16 %v40
  %v202 = vunpack.c.l.b16 %v41
  %v203 = vunpack.c.l.b16 %v42
  %v204 = vunpack.c.l.b16 %v43
  %v205 = vunpack.c.l.b16 %v44
  %v206 = vunpack.c.l.b16 %v45
  %v207 = vunpack.c.l.b16 %v46
  %v208 = vunpack.c.l.b16 %v47
  %v209 = vunpack.c.l.b16 %v48
  %v210 = vunpack.c.l.b16 %v49
  %v211 = vunpack.c.l.b16 %v50
  %v212 = vunpack.c.l.b16 %v51
  %v213 = vunpack.c.l.b16 %v52
  %v214 = vunpack.c.l.b16 %v53
  %v215 = vunpack.c.l.b16 %v54
  %v216 = vunpack.c.l.b16 %v55
  %v217 = vunpack.c.l.b16 %v56
  %v218 = vunpack.c.l.b16 %v57
  %v219 = vunpack.c.l.b16 %v58
  %v220 = vunpack.c.l.b16 %v59
  %v221 = vunpack.c.l.b16 %v60
  %v222 = vunpack.c.l.b16 %v61
  %v223 = vunpack.c.l.b16 %v62
  %v224 = vunpack.c.l.b16 %v63
  %v225 = vunpack.c.l.b16 %v64
  %v226 = vunpack.c.l.b16 %v65
  %v227 = vunpack.c.l.b16 %v66
  %v228 = vunpack.c.l.b16 %v67
  %v229 = vunpack.c.l.b16 %v68
  %v230 = vunpack.c.l.b16 %v69
  %v231 = vunpack.c.l.b16 %v70
  %v232 = vunpack.c.l.b16 %v71
  %v233 = vunpack.c.l.b16 %v72
  %v234 = vunpack.c.l.b16 %v73
  %v235 = vunpack.c.l.b16 %v74
  %v236 = vunpack.c.l.b16 %v75
  %v237 = vunpack.c.l.b16 %v76
  %v238 = vunpack.c.l.b16 %v77
  %v239 = vunpack.c.l.b16 %v78
  %v240 = vunpack.c.l.b16 %v79
  %v241 = vunpack.c.l.b16 %v80
  %v242 = vunpack.c.l.b16 %v81
  %v243 = vunpack.c.l.b16 %v82
  %v244 = vunpack.c.l.b16 %v83
  %v245 = vunpack.c.l.b16 %v84
  %v246 = vunpack.c.l.b16 %v85
  %v247 = vunpack.c.l.b16 %v86
  %v248 = vunpack.c.l.b16 %v87
  %v249 = vunpack.c.l.b16 %v88
  %v250 = vpack.c.b16 %v179, %v178
  %v251 = vpack.c.b16 %v181, %v180
  %v252 = vpack.c.b16 %v183, %v182
  %v253 = vpack.c.b16 %v185, %v184
  %v254 = vpack.c.b16 %v187, %v186
  %v255 = vpack.c.b16 %v189, %v188
  %v256 = vpack.c.b16 %v191, %v190
  %v257 = vpack.c.b16 %v193, %v192
  %v258 = vpack.c.b16 %v195, %v194
  %v259 = vpack.c.b16 %v197, %v196
  %v260 = vpack.c.b16 %v199, %v198
  %v261 = vpack.c.b16 %v201, %v200
  %v262 = vpack.c.b16 %v203, %v202
  %v263 = vpack.c.b16 %v205, %v204
  %v264 = vpack.c.b16 %v207, %v206
  %v265 = vpack.c.b16 %v209, %v208
  %v266 = vpack.c.b16 %v211, %v210
  %v267 = vpack.c.b16 %v213, %v212
  %v268 = vpack.c.b16 %v215, %v214
  %v269 = vpack.c.b16 %v217, %v216
  %v270 = vpack.c.b16 %v219, %v218
  %v271 = vpack.c.b16 %v221, %v220
  %v272 = vpack.c.b16 %v223, %v222
  %v273 = vpack.c.b16 %v225, %v224
  %v274 = vpack.c.b16 %v227, %v226
  %v275 = vpack.c.b16 %v229, %v228
  %v276 = vpack.c.b16 %v231, %v230
  %v277 = vpack.c.b16 %v233, %v232
  %v278 = vpack.c.b16 %v235, %v234
  %v279 = vpack.c.b16 %v237, %v236
  %v280 = vpack.c.b16 %v239, %v238
  %v281 = vpack.c.b16 %v241, %v240
  %v282 = vpack.c.b16 %v243, %v242
  %v283 = vpack.c.b16 %v245, %v244
  %v284 = vpack.c.b16 %v247, %v246
  %v285 = vpack.c.b16 %v249, %v248
  %vm322 = vcmask 523264
  %v324 = vsel %vm322, %v101, 0
  %326 = vmatpush.bf16.msra.mxu0 %v257
  %327 = vmatpush.bf16.msra.mxu0 %v256
  %328 = vmatpush.bf16.msra.mxu0 %v255
  %329 = vmatpush.bf16.msra.mxu0 %v254
  %330 = vmatpush.bf16.msra.mxu0 %v253
  %331 = vmatpush.bf16.msra.mxu0 %v252
  %332 = vmatpush.bf16.msra.mxu0 %v251
  %333 = vmatpush.bf16.msra.mxu0 %v250
  %334 = vmatmul.bf16.gmra.mxu0 %v97
  %v335 = vpop.f32.mrf.mxu0
  %v336 = vadd.f32 0.0, %v335
  %v337 = vpop.f32.mrf.mxu0
  %338 = vdwg.mxu0
  %339 = vmatpush.bf16.msra.mxu0 %v265
  %340 = vmatpush.bf16.msra.mxu0 %v264
  %341 = vmatpush.bf16.msra.mxu0 %v263
  %342 = vmatpush.bf16.msra.mxu0 %v262
  %343 = vmatpush.bf16.msra.mxu0 %v261
  %344 = vmatpush.bf16.msra.mxu0 %v260
  %345 = vmatpush.bf16.msra.mxu0 %v259
  %346 = vmatpush.bf16.msra.mxu0 %v258
  %347 = vmatmul.bf16.gmra.mxu0 %v98
  %v348 = vpop.f32.mrf.mxu0
  %v349 = vadd.f32 %v336, %v348
  %v350 = vpop.f32.mrf.mxu0
  %351 = vdwg.mxu0
  %352 = vmatpush.bf16.msra.mxu0 %v273
  %353 = vmatpush.bf16.msra.mxu0 %v272
  %354 = vmatpush.bf16.msra.mxu0 %v271
  %355 = vmatpush.bf16.msra.mxu0 %v270
  %356 = vmatpush.bf16.msra.mxu0 %v269
  %357 = vmatpush.bf16.msra.mxu0 %v268
  %358 = vmatpush.bf16.msra.mxu0 %v267
  %359 = vmatpush.bf16.msra.mxu0 %v266
  %360 = vmatmul.bf16.gmra.mxu0 %v99
  %v361 = vpop.f32.mrf.mxu0
  %v362 = vadd.f32 %v349, %v361
  %v363 = vpop.f32.mrf.mxu0
  %364 = vdwg.mxu0
  %365 = vmatpush.bf16.msra.mxu0 %v281
  %366 = vmatpush.bf16.msra.mxu0 %v280
  %367 = vmatpush.bf16.msra.mxu0 %v279
  %368 = vmatpush.bf16.msra.mxu0 %v278
  %369 = vmatpush.bf16.msra.mxu0 %v277
  %370 = vmatpush.bf16.msra.mxu0 %v276
  %371 = vmatpush.bf16.msra.mxu0 %v275
  %372 = vmatpush.bf16.msra.mxu0 %v274
  %373 = vmatmul.bf16.gmra.mxu0 %v100
  %v374 = vpop.f32.mrf.mxu0
  %v375 = vadd.f32 %v362, %v374
  %v376 = vpop.f32.mrf.mxu0
  %377 = vdwg.mxu0
  %378 = vmatpush.bf16.msra.mxu0 0
  %379 = vmatpush.bf16.msra.mxu0 0
  %380 = vmatpush.bf16.msra.mxu0 0
  %381 = vmatpush.bf16.msra.mxu0 0
  %382 = vmatpush.bf16.msra.mxu0 %v285
  %383 = vmatpush.bf16.msra.mxu0 %v284
  %384 = vmatpush.bf16.msra.mxu0 %v283
  %385 = vmatpush.bf16.msra.mxu0 %v282
  %386 = vmatmul.bf16.gmra.mxu0 %v324
  %v387 = vpop.f32.mrf.mxu0
  %v388 = vadd.f32 %v375, %v387
  %v389 = vpop.f32.mrf.mxu0
  %390 = vdwg.mxu0
  %v391 = vpack.c.bf16 %v388, %v388
  %392 = vst [vmem:[%s2] sm:$0xf] %v391
  %v393 = vrot.slane %v388, 4
  %v394 = vadd.f32 %v388, %v393
  %v395 = vrot.slane %v394, 2
  %v396 = vadd.f32 %v394, %v395
  %v397 = vrot.slane %v396, 1
  %v398 = vadd.f32 %v396, %v397
  %v399 = vmul.f32 %v388, %v388
  %v400 = vrot.slane %v399, 4
  %v401 = vadd.f32 %v399, %v400
  %v402 = vrot.slane %v401, 2
  %v403 = vadd.f32 %v401, %v402
  %v404 = vrot.slane %v403, 1
  %v405 = vadd.f32 %v403, %v404
  %vm406 = vcmask 1040384
  %v407 = vsel %vm406, %v398, %v405
  %408 = vst [vmem:[%s3] sm:$0x3] %v407
  // Predicated region
  $region10: #{_lambda_.22} parent=0 // pred_check
    _
  $region11: #{_lambda_.22} parent=0 // pred_check_branch
    %410 = sbr.rel (0) target = $region13
  $region12: #{_lambda_.22} parent=0 // pred_region
    _
  $region13: #{_lambda_.22} parent=0 // pred_fallthru
    _
  // Predicated region
  $region14: #{_lambda_.22} parent=0 // pred_check
    _
  $region15: #{_lambda_.22} parent=0 // pred_check_branch
    %412 = sbr.rel (0) target = $region17
  $region16: #{_lambda_.22} parent=0 // pred_region
    _
  $region17: #{_lambda_.22} parent=0 // pred_fallthru
    _
  // Predicated region
  $region18: #{_lambda_.22} parent=0 // pred_check
    _
  $region19: #{_lambda_.22} parent=0 // pred_check_branch
    %414 = sbr.rel (0) target = $region21
  $region20: #{_lambda_.22} parent=0 // pred_region
    _
  $region21: #{_lambda_.22} parent=0 // pred_fallthru
    _
  // Predicated region
  $region22: #{_lambda_.22} parent=0 // pred_check
    _
  $region23: #{_lambda_.22} parent=0 // pred_check_branch
    %416 = sbr.rel (0) target = $region25
  $region24: #{_lambda_.22} parent=0 // pred_region
    _
  $region25: #{_lambda_.22} parent=0 // pred_fallthru
    _

// kernel: _lambda_.24
$region0: #{_lambda_.24}
  #allocation0 [shape = 'u32[]', space=smem, size = 0x4, offset = 0x4, fixed_abs, tag = 'smem constant byte address 0x4 - core index']
  #allocation1 [shape = 'u32[72,128]{1,0:T(1,128)}', space=vmem, size = 0x9000, scoped, tag = 'internal scratch']
  %s0 = inlined_call_operand.vmem [shape: bf16[8,1152], index: 0, kind: input, shape index: {}]
  %s1 = inlined_call_operand.vmem [shape: bf16[1152,128], index: 1, kind: input, shape index: {}]
  %s2 = inlined_call_operand.vmem [shape: bf16[8,128], index: 2, kind: output, shape index: {0}]
  %s3 = inlined_call_operand.vmem [shape: f32[1,2,128], index: 3, kind: output, shape index: {1}]
  %4 = xla_tuple %s2, %s3
  %s5 = sld [smem:[#allocation0]]
  $region26: #{_lambda_.24} parent=0
    _
  %s7 = ssub.s32 1, %s5
  %s8 = scalar_select 0, %s7, %s5
  // Predicated region
  $region2: #{_lambda_.24} parent=0 // pred_check
    _
  $region3: #{_lambda_.24} parent=0 // pred_check_branch
    %10 = sbr.rel (0) target = $region5
  $region4: #{_lambda_.24} parent=0 // pred_region
    _
  $region5: #{_lambda_.24} parent=0 // pred_fallthru
    _
  // Predicated region
  $region6: #{_lambda_.24} parent=0 // pred_check
    _
  $region7: #{_lambda_.24} parent=0 // pred_check_branch
    %12 = sbr.rel (0) target = $region9
  $region8: #{_lambda_.24} parent=0 // pred_region
    _
  $region9: #{_lambda_.24} parent=0 // pred_fallthru
    _
  %v13 = vld [vmem:[%s0] sm:$0xff]
  %v14 = vld [vmem:[%s0 + $0x8] sm:$0xff]
  %v15 = vld [vmem:[%s0 + $0x10] sm:$0xff]
  %v16 = vld [vmem:[%s0 + $0x18] sm:$0xff]
  %v17 = vld [vmem:[%s0 + $0x20] sm:$0xf]
  %v18 = vld [vmem:[%s1] sm:$0xf]
  %v19 = vld [vmem:[%s1 + $0x4] sm:$0xf]
  %v20 = vld [vmem:[%s1 + $0x8] sm:$0xf]
  %v21 = vld [vmem:[%s1 + $0xc] sm:$0xf]
  %v22 = vld [vmem:[%s1 + $0x10] sm:$0xf]
  %v23 = vld [vmem:[%s1 + $0x14] sm:$0xf]
  %v24 = vld [vmem:[%s1 + $0x18] sm:$0xf]
  %v25 = vld [vmem:[%s1 + $0x1c] sm:$0xf]
  %v26 = vld [vmem:[%s1 + $0x20] sm:$0xf]
  %v27 = vld [vmem:[%s1 + $0x24] sm:$0xf]
  %v28 = vld [vmem:[%s1 + $0x28] sm:$0xf]
  %v29 = vld [vmem:[%s1 + $0x2c] sm:$0xf]
  %v30 = vld [vmem:[%s1 + $0x30] sm:$0xf]
  %v31 = vld [vmem:[%s1 + $0x34] sm:$0xf]
  %v32 = vld [vmem:[%s1 + $0x38] sm:$0xf]
  %v33 = vld [vmem:[%s1 + $0x3c] sm:$0xf]
  %v34 = vld [vmem:[%s1 + $0x40] sm:$0xf]
  %v35 = vld [vmem:[%s1 + $0x44] sm:$0xf]
  %v36 = vld [vmem:[%s1 + $0x48] sm:$0xf]
  %v37 = vld [vmem:[%s1 + $0x4c] sm:$0xf]
  %v38 = vld [vmem:[%s1 + $0x50] sm:$0xf]
  %v39 = vld [vmem:[%s1 + $0x54] sm:$0xf]
  %v40 = vld [vmem:[%s1 + $0x58] sm:$0xf]
  %v41 = vld [vmem:[%s1 + $0x5c] sm:$0xf]
  %v42 = vld [vmem:[%s1 + $0x60] sm:$0xf]
  %v43 = vld [vmem:[%s1 + $0x64] sm:$0xf]
  %v44 = vld [vmem:[%s1 + $0x68] sm:$0xf]
  %v45 = vld [vmem:[%s1 + $0x6c] sm:$0xf]
  %v46 = vld [vmem:[%s1 + $0x70] sm:$0xf]
  %v47 = vld [vmem:[%s1 + $0x74] sm:$0xf]
  %v48 = vld [vmem:[%s1 + $0x78] sm:$0xf]
  %v49 = vld [vmem:[%s1 + $0x7c] sm:$0xf]
  %v50 = vld [vmem:[%s1 + $0x80] sm:$0xf]
  %v51 = vld [vmem:[%s1 + $0x84] sm:$0xf]
  %v52 = vld [vmem:[%s1 + $0x88] sm:$0xf]
  %v53 = vld [vmem:[%s1 + $0x8c] sm:$0xf]
  %v54 = vld [vmem:[%s1 + $0x90] sm:$0xf]
  %v55 = vld [vmem:[%s1 + $0x94] sm:$0xf]
  %v56 = vld [vmem:[%s1 + $0x98] sm:$0xf]
  %v57 = vld [vmem:[%s1 + $0x9c] sm:$0xf]
  %v58 = vld [vmem:[%s1 + $0xa0] sm:$0xf]
  %v59 = vld [vmem:[%s1 + $0xa4] sm:$0xf]
  %v60 = vld [vmem:[%s1 + $0xa8] sm:$0xf]
  %v61 = vld [vmem:[%s1 + $0xac] sm:$0xf]
  %v62 = vld [vmem:[%s1 + $0xb0] sm:$0xf]
  %v63 = vld [vmem:[%s1 + $0xb4] sm:$0xf]
  %v64 = vld [vmem:[%s1 + $0xb8] sm:$0xf]
  %v65 = vld [vmem:[%s1 + $0xbc] sm:$0xf]
  %v66 = vld [vmem:[%s1 + $0xc0] sm:$0xf]
  %v67 = vld [vmem:[%s1 + $0xc4] sm:$0xf]
  %v68 = vld [vmem:[%s1 + $0xc8] sm:$0xf]
  %v69 = vld [vmem:[%s1 + $0xcc] sm:$0xf]
  %v70 = vld [vmem:[%s1 + $0xd0] sm:$0xf]
  %v71 = vld [vmem:[%s1 + $0xd4] sm:$0xf]
  %v72 = vld [vmem:[%s1 + $0xd8] sm:$0xf]
  %v73 = vld [vmem:[%s1 + $0xdc] sm:$0xf]
  %v74 = vld [vmem:[%s1 + $0xe0] sm:$0xf]
  %v75 = vld [vmem:[%s1 + $0xe4] sm:$0xf]
  %v76 = vld [vmem:[%s1 + $0xe8] sm:$0xf]
  %v77 = vld [vmem:[%s1 + $0xec] sm:$0xf]
  %v78 = vld [vmem:[%s1 + $0xf0] sm:$0xf]
  %v79 = vld [vmem:[%s1 + $0xf4] sm:$0xf]
  %v80 = vld [vmem:[%s1 + $0xf8] sm:$0xf]
  %v81 = vld [vmem:[%s1 + $0xfc] sm:$0xf]
  %v82 = vld [vmem:[%s1 + $0x100] sm:$0xf]
  %v83 = vld [vmem:[%s1 + $0x104] sm:$0xf]
  %v84 = vld [vmem:[%s1 + $0x108] sm:$0xf]
  %v85 = vld [vmem:[%s1 + $0x10c] sm:$0xf]
  %v86 = vld [vmem:[%s1 + $0x110] sm:$0xf]
  %v87 = vld [vmem:[%s1 + $0x114] sm:$0xf]
  %v88 = vld [vmem:[%s1 + $0x118] sm:$0xf]
  %v89 = vld [vmem:[%s1 + $0x11c] sm:$0xf]
  %v90 = vld [vmem:[%s1 + $0x120] sm:$0xf]
  %v91 = vld [vmem:[%s1 + $0x124] sm:$0xf]
  %v92 = vld [vmem:[%s1 + $0x128] sm:$0xf]
  %v93 = vld [vmem:[%s1 + $0x12c] sm:$0xf]
  %v94 = vld [vmem:[%s1 + $0x130] sm:$0xf]
  %v95 = vld [vmem:[%s1 + $0x134] sm:$0xf]
  %v96 = vld [vmem:[%s1 + $0x138] sm:$0xf]
  %v97 = vld [vmem:[%s1 + $0x13c] sm:$0xf]
  %v98 = vld [vmem:[%s1 + $0x140] sm:$0xf]
  %v99 = vld [vmem:[%s1 + $0x144] sm:$0xf]
  %v100 = vld [vmem:[%s1 + $0x148] sm:$0xf]
  %v101 = vld [vmem:[%s1 + $0x14c] sm:$0xf]
  %v102 = vld [vmem:[%s1 + $0x150] sm:$0xf]
  %v103 = vld [vmem:[%s1 + $0x154] sm:$0xf]
  %v104 = vld [vmem:[%s1 + $0x158] sm:$0xf]
  %v105 = vld [vmem:[%s1 + $0x15c] sm:$0xf]
  %v106 = vld [vmem:[%s1 + $0x160] sm:$0xf]
  %v107 = vld [vmem:[%s1 + $0x164] sm:$0xf]
  %v108 = vld [vmem:[%s1 + $0x168] sm:$0xf]
  %v109 = vld [vmem:[%s1 + $0x16c] sm:$0xf]
  %v110 = vld [vmem:[%s1 + $0x170] sm:$0xf]
  %v111 = vld [vmem:[%s1 + $0x174] sm:$0xf]
  %v112 = vld [vmem:[%s1 + $0x178] sm:$0xf]
  %v113 = vld [vmem:[%s1 + $0x17c] sm:$0xf]
  %v114 = vld [vmem:[%s1 + $0x180] sm:$0xf]
  %v115 = vld [vmem:[%s1 + $0x184] sm:$0xf]
  %v116 = vld [vmem:[%s1 + $0x188] sm:$0xf]
  %v117 = vld [vmem:[%s1 + $0x18c] sm:$0xf]
  %v118 = vld [vmem:[%s1 + $0x190] sm:$0xf]
  %v119 = vld [vmem:[%s1 + $0x194] sm:$0xf]
  %v120 = vld [vmem:[%s1 + $0x198] sm:$0xf]
  %v121 = vld [vmem:[%s1 + $0x19c] sm:$0xf]
  %v122 = vld [vmem:[%s1 + $0x1a0] sm:$0xf]
  %v123 = vld [vmem:[%s1 + $0x1a4] sm:$0xf]
  %v124 = vld [vmem:[%s1 + $0x1a8] sm:$0xf]
  %v125 = vld [vmem:[%s1 + $0x1ac] sm:$0xf]
  %v126 = vld [vmem:[%s1 + $0x1b0] sm:$0xf]
  %v127 = vld [vmem:[%s1 + $0x1b4] sm:$0xf]
  %v128 = vld [vmem:[%s1 + $0x1b8] sm:$0xf]
  %v129 = vld [vmem:[%s1 + $0x1bc] sm:$0xf]
  %v130 = vld [vmem:[%s1 + $0x1c0] sm:$0xf]
  %v131 = vld [vmem:[%s1 + $0x1c4] sm:$0xf]
  %v132 = vld [vmem:[%s1 + $0x1c8] sm:$0xf]
  %v133 = vld [vmem:[%s1 + $0x1cc] sm:$0xf]
  %v134 = vld [vmem:[%s1 + $0x1d0] sm:$0xf]
  %v135 = vld [vmem:[%s1 + $0x1d4] sm:$0xf]
  %v136 = vld [vmem:[%s1 + $0x1d8] sm:$0xf]
  %v137 = vld [vmem:[%s1 + $0x1dc] sm:$0xf]
  %v138 = vld [vmem:[%s1 + $0x1e0] sm:$0xf]
  %v139 = vld [vmem:[%s1 + $0x1e4] sm:$0xf]
  %v140 = vld [vmem:[%s1 + $0x1e8] sm:$0xf]
  %v141 = vld [vmem:[%s1 + $0x1ec] sm:$0xf]
  %v142 = vld [vmem:[%s1 + $0x1f0] sm:$0xf]
  %v143 = vld [vmem:[%s1 + $0x1f4] sm:$0xf]
  %v144 = vld [vmem:[%s1 + $0x1f8] sm:$0xf]
  %v145 = vld [vmem:[%s1 + $0x1fc] sm:$0xf]
  %v146 = vld [vmem:[%s1 + $0x200] sm:$0xf]
  %v147 = vld [vmem:[%s1 + $0x204] sm:$0xf]
  %v148 = vld [vmem:[%s1 + $0x208] sm:$0xf]
  %v149 = vld [vmem:[%s1 + $0x20c] sm:$0xf]
  %v150 = vld [vmem:[%s1 + $0x210] sm:$0xf]
  %v151 = vld [vmem:[%s1 + $0x214] sm:$0xf]
  %v152 = vld [vmem:[%s1 + $0x218] sm:$0xf]
  %v153 = vld [vmem:[%s1 + $0x21c] sm:$0xf]
  %v154 = vld [vmem:[%s1 + $0x220] sm:$0xf]
  %v155 = vld [vmem:[%s1 + $0x224] sm:$0xf]
  %v156 = vld [vmem:[%s1 + $0x228] sm:$0xf]
  %v157 = vld [vmem:[%s1 + $0x22c] sm:$0xf]
  %v158 = vld [vmem:[%s1 + $0x230] sm:$0xf]
  %v159 = vld [vmem:[%s1 + $0x234] sm:$0xf]
  %v160 = vld [vmem:[%s1 + $0x238] sm:$0xf]
  %v161 = vld [vmem:[%s1 + $0x23c] sm:$0xf]
  %v167 = vunpack.c.l.b16 %v13
  %v168 = vunpack.c.h.b16 %v13
  %v169 = vunpack.c.l.b16 %v14
  %v170 = vunpack.c.h.b16 %v14
  %v171 = vunpack.c.l.b16 %v15
  %v172 = vunpack.c.h.b16 %v15
  %v173 = vunpack.c.l.b16 %v16
  %v174 = vunpack.c.h.b16 %v16
  %v175 = vunpack.c.l.b16 %v17
  %v176 = vpack.c.b16 %v167, %v167
  %v177 = vpack.c.b16 %v168, %v168
  %v178 = vpack.c.b16 %v169, %v169
  %v179 = vpack.c.b16 %v170, %v170
  %v180 = vpack.c.b16 %v171, %v171
  %v181 = vpack.c.b16 %v172, %v172
  %v182 = vpack.c.b16 %v173, %v173
  %v183 = vpack.c.b16 %v174, %v174
  %v184 = vpack.c.b16 %v175, %v175
  %v338 = vunpack.c.l.b16 %v18
  %v339 = vunpack.c.l.b16 %v19
  %v340 = vunpack.c.l.b16 %v20
  %v341 = vunpack.c.l.b16 %v21
  %v342 = vunpack.c.l.b16 %v22
  %v343 = vunpack.c.l.b16 %v23
  %v344 = vunpack.c.l.b16 %v24
  %v345 = vunpack.c.l.b16 %v25
  %v346 = vunpack.c.l.b16 %v26
  %v347 = vunpack.c.l.b16 %v27
  %v348 = vunpack.c.l.b16 %v28
  %v349 = vunpack.c.l.b16 %v29
  %v350 = vunpack.c.l.b16 %v30
  %v351 = vunpack.c.l.b16 %v31
  %v352 = vunpack.c.l.b16 %v32
  %v353 = vunpack.c.l.b16 %v33
  %v354 = vunpack.c.l.b16 %v34
  %v355 = vunpack.c.l.b16 %v35
  %v356 = vunpack.c.l.b16 %v36
  %v357 = vunpack.c.l.b16 %v37
  %v358 = vunpack.c.l.b16 %v38
  %v359 = vunpack.c.l.b16 %v39
  %v360 = vunpack.c.l.b16 %v40
  %v361 = vunpack.c.l.b16 %v41
  %v362 = vunpack.c.l.b16 %v42
  %v363 = vunpack.c.l.b16 %v43
  %v364 = vunpack.c.l.b16 %v44
  %v365 = vunpack.c.l.b16 %v45
  %v366 = vunpack.c.l.b16 %v46
  %v367 = vunpack.c.l.b16 %v47
  %v368 = vunpack.c.l.b16 %v48
  %v369 = vunpack.c.l.b16 %v49
  %v370 = vunpack.c.l.b16 %v50
  %v371 = vunpack.c.l.b16 %v51
  %v372 = vunpack.c.l.b16 %v52
  %v373 = vunpack.c.l.b16 %v53
  %v374 = vunpack.c.l.b16 %v54
  %v375 = vunpack.c.l.b16 %v55
  %v376 = vunpack.c.l.b16 %v56
  %v377 = vunpack.c.l.b16 %v57
  %v378 = vunpack.c.l.b16 %v58
  %v379 = vunpack.c.l.b16 %v59
  %v380 = vunpack.c.l.b16 %v60
  %v381 = vunpack.c.l.b16 %v61
  %v382 = vunpack.c.l.b16 %v62
  %v383 = vunpack.c.l.b16 %v63
  %v384 = vunpack.c.l.b16 %v64
  %v385 = vunpack.c.l.b16 %v65
  %v386 = vunpack.c.l.b16 %v66
  %v387 = vunpack.c.l.b16 %v67
  %v388 = vunpack.c.l.b16 %v68
  %v389 = vunpack.c.l.b16 %v69
  %v390 = vunpack.c.l.b16 %v70
  %v391 = vunpack.c.l.b16 %v71
  %v392 = vunpack.c.l.b16 %v72
  %v393 = vunpack.c.l.b16 %v73
  %v394 = vunpack.c.l.b16 %v74
  %v395 = vunpack.c.l.b16 %v75
  %v396 = vunpack.c.l.b16 %v76
  %v397 = vunpack.c.l.b16 %v77
  %v398 = vunpack.c.l.b16 %v78
  %v399 = vunpack.c.l.b16 %v79
  %v400 = vunpack.c.l.b16 %v80
  %v401 = vunpack.c.l.b16 %v81
  %v402 = vunpack.c.l.b16 %v82
  %v403 = vunpack.c.l.b16 %v83
  %v404 = vunpack.c.l.b16 %v84
  %v405 = vunpack.c.l.b16 %v85
  %v406 = vunpack.c.l.b16 %v86
  %v407 = vunpack.c.l.b16 %v87
  %v408 = vunpack.c.l.b16 %v88
  %v409 = vunpack.c.l.b16 %v89
  %v410 = vunpack.c.l.b16 %v90
  %v411 = vunpack.c.l.b16 %v91
  %v412 = vunpack.c.l.b16 %v92
  %v413 = vunpack.c.l.b16 %v93
  %v414 = vunpack.c.l.b16 %v94
  %v415 = vunpack.c.l.b16 %v95
  %v416 = vunpack.c.l.b16 %v96
  %v417 = vunpack.c.l.b16 %v97
  %v418 = vunpack.c.l.b16 %v98
  %v419 = vunpack.c.l.b16 %v99
  %v420 = vunpack.c.l.b16 %v100
  %v421 = vunpack.c.l.b16 %v101
  %v422 = vunpack.c.l.b16 %v102
  %v423 = vunpack.c.l.b16 %v103
  %v424 = vunpack.c.l.b16 %v104
  %v425 = vunpack.c.l.b16 %v105
  %v426 = vunpack.c.l.b16 %v106
  %v427 = vunpack.c.l.b16 %v107
  %v428 = vunpack.c.l.b16 %v108
  %v429 = vunpack.c.l.b16 %v109
  %v430 = vunpack.c.l.b16 %v110
  %v431 = vunpack.c.l.b16 %v111
  %v432 = vunpack.c.l.b16 %v112
  %v433 = vunpack.c.l.b16 %v113
  %v434 = vunpack.c.l.b16 %v114
  %v435 = vunpack.c.l.b16 %v115
  %v436 = vunpack.c.l.b16 %v116
  %v437 = vunpack.c.l.b16 %v117
  %v438 = vunpack.c.l.b16 %v118
  %v439 = vunpack.c.l.b16 %v119
  %v440 = vunpack.c.l.b16 %v120
  %v441 = vunpack.c.l.b16 %v121
  %v442 = vunpack.c.l.b16 %v122
  %v443 = vunpack.c.l.b16 %v123
  %v444 = vunpack.c.l.b16 %v124
  %v445 = vunpack.c.l.b16 %v125
  %v446 = vunpack.c.l.b16 %v126
  %v447 = vunpack.c.l.b16 %v127
  %v448 = vunpack.c.l.b16 %v128
  %v449 = vunpack.c.l.b16 %v129
  %v450 = vunpack.c.l.b16 %v130
  %v451 = vunpack.c.l.b16 %v131
  %v452 = vunpack.c.l.b16 %v132
  %v453 = vunpack.c.l.b16 %v133
  %v454 = vunpack.c.l.b16 %v134
  %v455 = vunpack.c.l.b16 %v135
  %v456 = vunpack.c.l.b16 %v136
  %v457 = vunpack.c.l.b16 %v137
  %v458 = vunpack.c.l.b16 %v138
  %v459 = vunpack.c.l.b16 %v139
  %v460 = vunpack.c.l.b16 %v140
  %v461 = vunpack.c.l.b16 %v141
  %v462 = vunpack.c.l.b16 %v142
  %v463 = vunpack.c.l.b16 %v143
  %v464 = vunpack.c.l.b16 %v144
  %v465 = vunpack.c.l.b16 %v145
  %v466 = vunpack.c.l.b16 %v146
  %v467 = vunpack.c.l.b16 %v147
  %v468 = vunpack.c.l.b16 %v148
  %v469 = vunpack.c.l.b16 %v149
  %v470 = vunpack.c.l.b16 %v150
  %v471 = vunpack.c.l.b16 %v151
  %v472 = vunpack.c.l.b16 %v152
  %v473 = vunpack.c.l.b16 %v153
  %v474 = vunpack.c.l.b16 %v154
  %v475 = vunpack.c.l.b16 %v155
  %v476 = vunpack.c.l.b16 %v156
  %v477 = vunpack.c.l.b16 %v157
  %v478 = vunpack.c.l.b16 %v158
  %v479 = vunpack.c.l.b16 %v159
  %v480 = vunpack.c.l.b16 %v160
  %v481 = vunpack.c.l.b16 %v161
  %v482 = vpack.c.b16 %v339, %v338
  %v483 = vpack.c.b16 %v341, %v340
  %v484 = vpack.c.b16 %v343, %v342
  %v485 = vpack.c.b16 %v345, %v344
  %v486 = vpack.c.b16 %v347, %v346
  %v487 = vpack.c.b16 %v349, %v348
  %v488 = vpack.c.b16 %v351, %v350
  %v489 = vpack.c.b16 %v353, %v352
  %v490 = vpack.c.b16 %v355, %v354
  %v491 = vpack.c.b16 %v357, %v356
  %v492 = vpack.c.b16 %v359, %v358
  %v493 = vpack.c.b16 %v361, %v360
  %v494 = vpack.c.b16 %v363, %v362
  %v495 = vpack.c.b16 %v365, %v364
  %v496 = vpack.c.b16 %v367, %v366
  %v497 = vpack.c.b16 %v369, %v368
  %v498 = vpack.c.b16 %v371, %v370
  %v499 = vpack.c.b16 %v373, %v372
  %v500 = vpack.c.b16 %v375, %v374
  %v501 = vpack.c.b16 %v377, %v376
  %v502 = vpack.c.b16 %v379, %v378
  %v503 = vpack.c.b16 %v381, %v380
  %v504 = vpack.c.b16 %v383, %v382
  %v505 = vpack.c.b16 %v385, %v384
  %v506 = vpack.c.b16 %v387, %v386
  %v507 = vpack.c.b16 %v389, %v388
  %v508 = vpack.c.b16 %v391, %v390
  %v509 = vpack.c.b16 %v393, %v392
  %v510 = vpack.c.b16 %v395, %v394
  %v511 = vpack.c.b16 %v397, %v396
  %v512 = vpack.c.b16 %v399, %v398
  %v513 = vpack.c.b16 %v401, %v400
  %v514 = vpack.c.b16 %v403, %v402
  %v515 = vpack.c.b16 %v405, %v404
  %v516 = vpack.c.b16 %v407, %v406
  %v517 = vpack.c.b16 %v409, %v408
  %v518 = vpack.c.b16 %v411, %v410
  %v519 = vpack.c.b16 %v413, %v412
  %v520 = vpack.c.b16 %v415, %v414
  %v521 = vpack.c.b16 %v417, %v416
  %v522 = vpack.c.b16 %v419, %v418
  %v523 = vpack.c.b16 %v421, %v420
  %v524 = vpack.c.b16 %v423, %v422
  %v525 = vpack.c.b16 %v425, %v424
  %v526 = vpack.c.b16 %v427, %v426
  %v527 = vpack.c.b16 %v429, %v428
  %v528 = vpack.c.b16 %v431, %v430
  %v529 = vpack.c.b16 %v433, %v432
  %v530 = vpack.c.b16 %v435, %v434
  %v531 = vpack.c.b16 %v437, %v436
  %v532 = vpack.c.b16 %v439, %v438
  %v533 = vpack.c.b16 %v441, %v440
  %v534 = vpack.c.b16 %v443, %v442
  %v535 = vpack.c.b16 %v445, %v444
  %v536 = vpack.c.b16 %v447, %v446
  %v537 = vpack.c.b16 %v449, %v448
  %v538 = vpack.c.b16 %v451, %v450
  %v539 = vpack.c.b16 %v453, %v452
  %v540 = vpack.c.b16 %v455, %v454
  %v541 = vpack.c.b16 %v457, %v456
  %v542 = vpack.c.b16 %v459, %v458
  %v543 = vpack.c.b16 %v461, %v460
  %v544 = vpack.c.b16 %v463, %v462
  %v545 = vpack.c.b16 %v465, %v464
  %v546 = vpack.c.b16 %v467, %v466
  %v547 = vpack.c.b16 %v469, %v468
  %v548 = vpack.c.b16 %v471, %v470
  %v549 = vpack.c.b16 %v473, %v472
  %v550 = vpack.c.b16 %v475, %v474
  %v551 = vpack.c.b16 %v477, %v476
  %v552 = vpack.c.b16 %v479, %v478
  %v553 = vpack.c.b16 %v481, %v480
  %626 = vmatpush.bf16.msra.mxu0 %v489
  %627 = vmatpush.bf16.msra.mxu0 %v488
  %628 = vmatpush.bf16.msra.mxu0 %v487
  %629 = vmatpush.bf16.msra.mxu0 %v486
  %630 = vmatpush.bf16.msra.mxu0 %v485
  %631 = vmatpush.bf16.msra.mxu0 %v484
  %632 = vmatpush.bf16.msra.mxu0 %v483
  %633 = vmatpush.bf16.msra.mxu0 %v482
  %634 = vmatmul.bf16.gmra.mxu0 %v176
  %v635 = vpop.f32.mrf.mxu0
  %v636 = vadd.f32 0.0, %v635
  %v637 = vpop.f32.mrf.mxu0
  %638 = vdwg.mxu0
  %639 = vmatpush.bf16.msra.mxu0 %v497
  %640 = vmatpush.bf16.msra.mxu0 %v496
  %641 = vmatpush.bf16.msra.mxu0 %v495
  %642 = vmatpush.bf16.msra.mxu0 %v494
  %643 = vmatpush.bf16.msra.mxu0 %v493
  %644 = vmatpush.bf16.msra.mxu0 %v492
  %645 = vmatpush.bf16.msra.mxu0 %v491
  %646 = vmatpush.bf16.msra.mxu0 %v490
  %647 = vmatmul.bf16.gmra.mxu0 %v177
  %v648 = vpop.f32.mrf.mxu0
  %v649 = vadd.f32 %v636, %v648
  %v650 = vpop.f32.mrf.mxu0
  %651 = vdwg.mxu0
  %652 = vmatpush.bf16.msra.mxu0 %v505
  %653 = vmatpush.bf16.msra.mxu0 %v504
  %654 = vmatpush.bf16.msra.mxu0 %v503
  %655 = vmatpush.bf16.msra.mxu0 %v502
  %656 = vmatpush.bf16.msra.mxu0 %v501
  %657 = vmatpush.bf16.msra.mxu0 %v500
  %658 = vmatpush.bf16.msra.mxu0 %v499
  %659 = vmatpush.bf16.msra.mxu0 %v498
  %660 = vmatmul.bf16.gmra.mxu0 %v178
  %v661 = vpop.f32.mrf.mxu0
  %v662 = vadd.f32 %v649, %v661
  %v663 = vpop.f32.mrf.mxu0
  %664 = vdwg.mxu0
  %665 = vmatpush.bf16.msra.mxu0 %v513
  %666 = vmatpush.bf16.msra.mxu0 %v512
  %667 = vmatpush.bf16.msra.mxu0 %v511
  %668 = vmatpush.bf16.msra.mxu0 %v510
  %669 = vmatpush.bf16.msra.mxu0 %v509
  %670 = vmatpush.bf16.msra.mxu0 %v508
  %671 = vmatpush.bf16.msra.mxu0 %v507
  %672 = vmatpush.bf16.msra.mxu0 %v506
  %673 = vmatmul.bf16.gmra.mxu0 %v179
  %v674 = vpop.f32.mrf.mxu0
  %v675 = vadd.f32 %v662, %v674
  %v676 = vpop.f32.mrf.mxu0
  %677 = vdwg.mxu0
  %678 = vmatpush.bf16.msra.mxu0 %v521
  %679 = vmatpush.bf16.msra.mxu0 %v520
  %680 = vmatpush.bf16.msra.mxu0 %v519
  %681 = vmatpush.bf16.msra.mxu0 %v518
  %682 = vmatpush.bf16.msra.mxu0 %v517
  %683 = vmatpush.bf16.msra.mxu0 %v516
  %684 = vmatpush.bf16.msra.mxu0 %v515
  %685 = vmatpush.bf16.msra.mxu0 %v514
  %686 = vmatmul.bf16.gmra.mxu0 %v180
  %v687 = vpop.f32.mrf.mxu0
  %v688 = vadd.f32 %v675, %v687
  %v689 = vpop.f32.mrf.mxu0
  %690 = vdwg.mxu0
  %691 = vmatpush.bf16.msra.mxu0 %v529
  %692 = vmatpush.bf16.msra.mxu0 %v528
  %693 = vmatpush.bf16.msra.mxu0 %v527
  %694 = vmatpush.bf16.msra.mxu0 %v526
  %695 = vmatpush.bf16.msra.mxu0 %v525
  %696 = vmatpush.bf16.msra.mxu0 %v524
  %697 = vmatpush.bf16.msra.mxu0 %v523
  %698 = vmatpush.bf16.msra.mxu0 %v522
  %699 = vmatmul.bf16.gmra.mxu0 %v181
  %v700 = vpop.f32.mrf.mxu0
  %v701 = vadd.f32 %v688, %v700
  %v702 = vpop.f32.mrf.mxu0
  %703 = vdwg.mxu0
  %704 = vmatpush.bf16.msra.mxu0 %v537
  %705 = vmatpush.bf16.msra.mxu0 %v536
  %706 = vmatpush.bf16.msra.mxu0 %v535
  %707 = vmatpush.bf16.msra.mxu0 %v534
  %708 = vmatpush.bf16.msra.mxu0 %v533
  %709 = vmatpush.bf16.msra.mxu0 %v532
  %710 = vmatpush.bf16.msra.mxu0 %v531
  %711 = vmatpush.bf16.msra.mxu0 %v530
  %712 = vmatmul.bf16.gmra.mxu0 %v182
  %v713 = vpop.f32.mrf.mxu0
  %v714 = vadd.f32 %v701, %v713
  %v715 = vpop.f32.mrf.mxu0
  %716 = vdwg.mxu0
  %717 = vmatpush.bf16.msra.mxu0 %v545
  %718 = vmatpush.bf16.msra.mxu0 %v544
  %719 = vmatpush.bf16.msra.mxu0 %v543
  %720 = vmatpush.bf16.msra.mxu0 %v542
  %721 = vmatpush.bf16.msra.mxu0 %v541
  %722 = vmatpush.bf16.msra.mxu0 %v540
  %723 = vmatpush.bf16.msra.mxu0 %v539
  %724 = vmatpush.bf16.msra.mxu0 %v538
  %725 = vmatmul.bf16.gmra.mxu0 %v183
  %v726 = vpop.f32.mrf.mxu0
  %v727 = vadd.f32 %v714, %v726
  %v728 = vpop.f32.mrf.mxu0
  %729 = vdwg.mxu0
  %730 = vmatpush.bf16.msra.mxu0 %v553
  %731 = vmatpush.bf16.msra.mxu0 %v552
  %732 = vmatpush.bf16.msra.mxu0 %v551
  %733 = vmatpush.bf16.msra.mxu0 %v550
  %734 = vmatpush.bf16.msra.mxu0 %v549
  %735 = vmatpush.bf16.msra.mxu0 %v548
  %736 = vmatpush.bf16.msra.mxu0 %v547
  %737 = vmatpush.bf16.msra.mxu0 %v546
  %738 = vmatmul.bf16.gmra.mxu0 %v184
  %v739 = vpop.f32.mrf.mxu0
  %v740 = vadd.f32 %v727, %v739
  %v741 = vpop.f32.mrf.mxu0
  %742 = vdwg.mxu0
  %v743 = vpack.c.bf16 %v740, %v740
  %744 = vst [vmem:[%s2] sm:$0xf] %v743
  %v745 = vrot.slane %v740, 4
  %v746 = vadd.f32 %v740, %v745
  %v747 = vrot.slane %v746, 2
  %v748 = vadd.f32 %v746, %v747
  %v749 = vrot.slane %v748, 1
  %v750 = vadd.f32 %v748, %v749
  %v751 = vmul.f32 %v740, %v740
  %v752 = vrot.slane %v751, 4
  %v753 = vadd.f32 %v751, %v752
  %v754 = vrot.slane %v753, 2
  %v755 = vadd.f32 %v753, %v754
  %v756 = vrot.slane %v755, 1
  %v757 = vadd.f32 %v755, %v756
  %vm758 = vcmask 1040384
  %v759 = vsel %vm758, %v750, %v757
  %760 = vst [vmem:[%s3] sm:$0x3] %v759
  // Predicated region
  $region10: #{_lambda_.24} parent=0 // pred_check
    _
  $region11: #{_lambda_.24} parent=0 // pred_check_branch
    %762 = sbr.rel (0) target = $region13
  $region12: #{_lambda_.24} parent=0 // pred_region
    _
  $region13: #{_lambda_.24} parent=0 // pred_fallthru
    _
  // Predicated region
  $region14: #{_lambda_.24} parent=0 // pred_check
    _
  $region15: #{_lambda_.24} parent=0 // pred_check_branch
    %764 = sbr.rel (0) target = $region17
  $region16: #{_lambda_.24} parent=0 // pred_region
    _
  $region17: #{_lambda_.24} parent=0 // pred_fallthru
    _
  // Predicated region
  $region18: #{_lambda_.24} parent=0 // pred_check
    _
  $region19: #{_lambda_.24} parent=0 // pred_check_branch
    %766 = sbr.rel (0) target = $region21
  $region20: #{_lambda_.24} parent=0 // pred_region
    _
  $region21: #{_lambda_.24} parent=0 // pred_fallthru
    _
  // Predicated region
  $region22: #{_lambda_.24} parent=0 // pred_check
    _
  $region23: #{_lambda_.24} parent=0 // pred_check_branch
    %768 = sbr.rel (0) target = $region25
  $region24: #{_lambda_.24} parent=0 // pred_region
    _
  $region25: #{_lambda_.24} parent=0 // pred_fallthru
    _

// kernel: _lambda_.26
$region0: #{_lambda_.26}
  #allocation0 [shape = 'u32[]', space=smem, size = 0x4, offset = 0x4, fixed_abs, tag = 'smem constant byte address 0x4 - core index']
  #allocation1 [shape = 'u32[72,128]{1,0:T(1,128)}', space=vmem, size = 0x9000, scoped, tag = 'internal scratch']
  %s0 = inlined_call_operand.vmem [shape: bf16[8,128], index: 0, kind: input, shape index: {}]
  %s1 = inlined_call_operand.vmem [shape: bf16[128,384], index: 1, kind: input, shape index: {}]
  %s2 = inlined_call_operand.vmem [shape: f32[1,384], index: 2, kind: input, shape index: {}]
  %s3 = inlined_call_operand.vmem [shape: f32[8,384], index: 3, kind: output, shape index: {}]
  %s4 = sld [smem:[#allocation0]]
  $region22: #{_lambda_.26} parent=0
    _
  %s6 = ssub.s32 1, %s4
  %s7 = scalar_select 0, %s6, %s4
  // Predicated region
  $region2: #{_lambda_.26} parent=0 // pred_check
    _
  $region3: #{_lambda_.26} parent=0 // pred_check_branch
    %9 = sbr.rel (0) target = $region5
  $region4: #{_lambda_.26} parent=0 // pred_region
    _
  $region5: #{_lambda_.26} parent=0 // pred_fallthru
    _
  // Predicated region
  $region6: #{_lambda_.26} parent=0 // pred_check
    _
  $region7: #{_lambda_.26} parent=0 // pred_check_branch
    %11 = sbr.rel (0) target = $region9
  $region8: #{_lambda_.26} parent=0 // pred_region
    _
  $region9: #{_lambda_.26} parent=0 // pred_fallthru
    _
  // Predicated region
  $region10: #{_lambda_.26} parent=0 // pred_check
    _
  $region11: #{_lambda_.26} parent=0 // pred_check_branch
    %13 = sbr.rel (0) target = $region13
  $region12: #{_lambda_.26} parent=0 // pred_region
    _
  $region13: #{_lambda_.26} parent=0 // pred_fallthru
    _
  %v14 = vld [vmem:[%s0] sm:$0xf]
  %v15 = vld [vmem:[%s1] sm:$0xff]
  %v16 = vld [vmem:[%s1 + $0x8] sm:$0xf]
  %v17 = vld [vmem:[%s1 + $0xc] sm:$0xff]
  %v18 = vld [vmem:[%s1 + $0x14] sm:$0xf]
  %v19 = vld [vmem:[%s1 + $0x18] sm:$0xff]
  %v20 = vld [vmem:[%s1 + $0x20] sm:$0xf]
  %v21 = vld [vmem:[%s1 + $0x24] sm:$0xff]
  %v22 = vld [vmem:[%s1 + $0x2c] sm:$0xf]
  %v23 = vld [vmem:[%s1 + $0x30] sm:$0xff]
  %v24 = vld [vmem:[%s1 + $0x38] sm:$0xf]
  %v25 = vld [vmem:[%s1 + $0x3c] sm:$0xff]
  %v26 = vld [vmem:[%s1 + $0x44] sm:$0xf]
  %v27 = vld [vmem:[%s1 + $0x48] sm:$0xff]
  %v28 = vld [vmem:[%s1 + $0x50] sm:$0xf]
  %v29 = vld [vmem:[%s1 + $0x54] sm:$0xff]
  %v30 = vld [vmem:[%s1 + $0x5c] sm:$0xf]
  %v31 = vld [vmem:[%s1 + $0x60] sm:$0xff]
  %v32 = vld [vmem:[%s1 + $0x68] sm:$0xf]
  %v33 = vld [vmem:[%s1 + $0x6c] sm:$0xff]
  %v34 = vld [vmem:[%s1 + $0x74] sm:$0xf]
  %v35 = vld [vmem:[%s1 + $0x78] sm:$0xff]
  %v36 = vld [vmem:[%s1 + $0x80] sm:$0xf]
  %v37 = vld [vmem:[%s1 + $0x84] sm:$0xff]
  %v38 = vld [vmem:[%s1 + $0x8c] sm:$0xf]
  %v39 = vld [vmem:[%s1 + $0x90] sm:$0xff]
  %v40 = vld [vmem:[%s1 + $0x98] sm:$0xf]
  %v41 = vld [vmem:[%s1 + $0x9c] sm:$0xff]
  %v42 = vld [vmem:[%s1 + $0xa4] sm:$0xf]
  %v43 = vld [vmem:[%s1 + $0xa8] sm:$0xff]
  %v44 = vld [vmem:[%s1 + $0xb0] sm:$0xf]
  %v45 = vld [vmem:[%s1 + $0xb4] sm:$0xff]
  %v46 = vld [vmem:[%s1 + $0xbc] sm:$0xf]
  %v47 = vld [vmem:[%s2] sm:$0x7]
  %v49 = vperm.slane %v47, 0
  %v50 = vperm.slane %v47, 1
  %v51 = vperm.slane %v47, 2
  %v87 = vunpack.c.l.b16 %v15
  %v88 = vunpack.c.h.b16 %v15
  %v89 = vunpack.c.l.b16 %v16
  %v90 = vunpack.c.l.b16 %v17
  %v91 = vunpack.c.h.b16 %v17
  %v92 = vunpack.c.l.b16 %v18
  %v93 = vunpack.c.l.b16 %v19
  %v94 = vunpack.c.h.b16 %v19
  %v95 = vunpack.c.l.b16 %v20
  %v96 = vunpack.c.l.b16 %v21
  %v97 = vunpack.c.h.b16 %v21
  %v98 = vunpack.c.l.b16 %v22
  %v99 = vunpack.c.l.b16 %v23
  %v100 = vunpack.c.h.b16 %v23
  %v101 = vunpack.c.l.b16 %v24
  %v102 = vunpack.c.l.b16 %v25
  %v103 = vunpack.c.h.b16 %v25
  %v104 = vunpack.c.l.b16 %v26
  %v105 = vunpack.c.l.b16 %v27
  %v106 = vunpack.c.h.b16 %v27
  %v107 = vunpack.c.l.b16 %v28
  %v108 = vunpack.c.l.b16 %v29
  %v109 = vunpack.c.h.b16 %v29
  %v110 = vunpack.c.l.b16 %v30
  %v111 = vunpack.c.l.b16 %v31
  %v112 = vunpack.c.h.b16 %v31
  %v113 = vunpack.c.l.b16 %v32
  %v114 = vunpack.c.l.b16 %v33
  %v115 = vunpack.c.h.b16 %v33
  %v116 = vunpack.c.l.b16 %v34
  %v117 = vunpack.c.l.b16 %v35
  %v118 = vunpack.c.h.b16 %v35
  %v119 = vunpack.c.l.b16 %v36
  %v120 = vunpack.c.l.b16 %v37
  %v121 = vunpack.c.h.b16 %v37
  %v122 = vunpack.c.l.b16 %v38
  %v123 = vunpack.c.l.b16 %v39
  %v124 = vunpack.c.h.b16 %v39
  %v125 = vunpack.c.l.b16 %v40
  %v126 = vunpack.c.l.b16 %v41
  %v127 = vunpack.c.h.b16 %v41
  %v128 = vunpack.c.l.b16 %v42
  %v129 = vunpack.c.l.b16 %v43
  %v130 = vunpack.c.h.b16 %v43
  %v131 = vunpack.c.l.b16 %v44
  %v132 = vunpack.c.l.b16 %v45
  %v133 = vunpack.c.h.b16 %v45
  %v134 = vunpack.c.l.b16 %v46
  %v135 = vpack.c.b16 %v90, %v87
  %v136 = vpack.c.b16 %v91, %v88
  %v137 = vpack.c.b16 %v92, %v89
  %v138 = vpack.c.b16 %v96, %v93
  %v139 = vpack.c.b16 %v97, %v94
  %v140 = vpack.c.b16 %v98, %v95
  %v141 = vpack.c.b16 %v102, %v99
  %v142 = vpack.c.b16 %v103, %v100
  %v143 = vpack.c.b16 %v104, %v101
  %v144 = vpack.c.b16 %v108, %v105
  %v145 = vpack.c.b16 %v109, %v106
  %v146 = vpack.c.b16 %v110, %v107
  %v147 = vpack.c.b16 %v114, %v111
  %v148 = vpack.c.b16 %v115, %v112
  %v149 = vpack.c.b16 %v116, %v113
  %v150 = vpack.c.b16 %v120, %v117
  %v151 = vpack.c.b16 %v121, %v118
  %v152 = vpack.c.b16 %v122, %v119
  %v153 = vpack.c.b16 %v126, %v123
  %v154 = vpack.c.b16 %v127, %v124
  %v155 = vpack.c.b16 %v128, %v125
  %v156 = vpack.c.b16 %v132, %v129
  %v157 = vpack.c.b16 %v133, %v130
  %v158 = vpack.c.b16 %v134, %v131
  %183 = vmatpush.bf16.msra.mxu0 %v156
  %184 = vmatpush.bf16.msra.mxu0 %v153
  %185 = vmatpush.bf16.msra.mxu0 %v150
  %186 = vmatpush.bf16.msra.mxu0 %v147
  %187 = vmatpush.bf16.msra.mxu0 %v144
  %188 = vmatpush.bf16.msra.mxu0 %v141
  %189 = vmatpush.bf16.msra.mxu0 %v138
  %190 = vmatpush.bf16.msra.mxu0 %v135
  %191 = vmatmul.bf16.gmra.mxu0 %v14
  %v192 = vpop.f32.mrf.mxu0
  %v193 = vadd.f32 %v49, %v192
  %v194 = vpop.f32.mrf.mxu0
  %195 = vdwg.mxu0
  %196 = vmatpush.bf16.msra.mxu0 %v157
  %197 = vmatpush.bf16.msra.mxu0 %v154
  %198 = vmatpush.bf16.msra.mxu0 %v151
  %199 = vmatpush.bf16.msra.mxu0 %v148
  %200 = vmatpush.bf16.msra.mxu0 %v145
  %201 = vmatpush.bf16.msra.mxu0 %v142
  %202 = vmatpush.bf16.msra.mxu0 %v139
  %203 = vmatpush.bf16.msra.mxu0 %v136
  %204 = vmatmul.bf16.gmra.mxu0 %v14
  %v205 = vpop.f32.mrf.mxu0
  %v206 = vadd.f32 %v50, %v205
  %v207 = vpop.f32.mrf.mxu0
  %208 = vdwg.mxu0
  %209 = vmatpush.bf16.msra.mxu0 %v158
  %210 = vmatpush.bf16.msra.mxu0 %v155
  %211 = vmatpush.bf16.msra.mxu0 %v152
  %212 = vmatpush.bf16.msra.mxu0 %v149
  %213 = vmatpush.bf16.msra.mxu0 %v146
  %214 = vmatpush.bf16.msra.mxu0 %v143
  %215 = vmatpush.bf16.msra.mxu0 %v140
  %216 = vmatpush.bf16.msra.mxu0 %v137
  %217 = vmatmul.bf16.gmra.mxu0 %v14
  %v218 = vpop.f32.mrf.mxu0
  %v219 = vadd.f32 %v51, %v218
  %v220 = vpop.f32.mrf.mxu0
  %221 = vdwg.mxu0
  %222 = vst [vmem:[%s3] sm:$0xff] %v193
  %223 = vst [vmem:[%s3 + $0x8] sm:$0xff] %v206
  %224 = vst [vmem:[%s3 + $0x10] sm:$0xff] %v219
  // Predicated region
  $region14: #{_lambda_.26} parent=0 // pred_check
    _
  $region15: #{_lambda_.26} parent=0 // pred_check_branch
    %226 = sbr.rel (0) target = $region17
  $region16: #{_lambda_.26} parent=0 // pred_region
    _
  $region17: #{_lambda_.26} parent=0 // pred_fallthru
    _
  // Predicated region
  $region18: #{_lambda_.26} parent=0 // pred_check
    _
  $region19: #{_lambda_.26} parent=0 // pred_check_branch
    %228 = sbr.rel (0) target = $region21
  $region20: #{_lambda_.26} parent=0 // pred_region
    _
  $region21: #{_lambda_.26} parent=0 // pred_fallthru
    _

// kernel: _lambda_.27
$region0: #{_lambda_.27}
  #allocation0 [shape = 'u32[]', space=smem, size = 0x4, offset = 0x4, fixed_abs, tag = 'smem constant byte address 0x4 - core index']
  #allocation1 [shape = 'u32[72,128]{1,0:T(1,128)}', space=vmem, size = 0x9000, scoped, tag = 'internal scratch']
  %s0 = inlined_call_operand.vmem [shape: f32[2,2,384], index: 0, kind: input, shape index: {}]
  %s1 = inlined_call_operand.vmem [shape: bf16[128,384], index: 1, kind: input, shape index: {}]
  %s2 = inlined_call_operand.vmem [shape: f32[1,384], index: 2, kind: input, shape index: {}]
  %s3 = inlined_call_operand.hbm [shape: f32[2,128], index: 3, kind: output, shape index: {}]
  %s4 = sld [smem:[#allocation0]]
  $region22: #{_lambda_.27} parent=0
    _
  %s6 = ssub.s32 1, %s4
  %s7 = scalar_select 0, %s6, %s4
  $region1: #{_lambda_.27} parent=0
    #allocation2 [shape = 'u8[1024]{0}', space=vmem, size = 0x400, scoped, tag = 'output window, operand 0, single buffered']
    #allocation3 [shape = 's32[1]{0}', space=sflag, size = 0x4, scoped, tag = 'scoped memory for _lambda_.27']
    %8 = vsyncpa [#allocation3], 0
    // Predicated region
    $region2: #{_lambda_.27} parent=1 // pred_check
      _
    $region3: #{_lambda_.27} parent=1 // pred_check_branch
      %10 = sbr.rel (0) target = $region5
    $region4: #{_lambda_.27} parent=1 // pred_region
      _
    $region5: #{_lambda_.27} parent=1 // pred_fallthru
      _
    // Predicated region
    $region6: #{_lambda_.27} parent=1 // pred_check
      _
    $region7: #{_lambda_.27} parent=1 // pred_check_branch
      %12 = sbr.rel (0) target = $region9
    $region8: #{_lambda_.27} parent=1 // pred_region
      _
    $region9: #{_lambda_.27} parent=1 // pred_fallthru
      _
    // Predicated region
    $region10: #{_lambda_.27} parent=1 // pred_check
      _
    $region11: #{_lambda_.27} parent=1 // pred_check_branch
      %14 = sbr.rel (0) target = $region13
    $region12: #{_lambda_.27} parent=1 // pred_region
      _
    $region13: #{_lambda_.27} parent=1 // pred_fallthru
      _
    %v16 = vld [vmem:[%s1] sm:$0xff]
    %v17 = vld [vmem:[%s1 + $0x8] sm:$0xf]
    %v18 = vld [vmem:[%s1 + $0xc] sm:$0xff]
    %v19 = vld [vmem:[%s1 + $0x14] sm:$0xf]
    %v20 = vld [vmem:[%s1 + $0x18] sm:$0xff]
    %v21 = vld [vmem:[%s1 + $0x20] sm:$0xf]
    %v22 = vld [vmem:[%s1 + $0x24] sm:$0xff]
    %v23 = vld [vmem:[%s1 + $0x2c] sm:$0xf]
    %v24 = vld [vmem:[%s1 + $0x30] sm:$0xff]
    %v25 = vld [vmem:[%s1 + $0x38] sm:$0xf]
    %v26 = vld [vmem:[%s1 + $0x3c] sm:$0xff]
    %v27 = vld [vmem:[%s1 + $0x44] sm:$0xf]
    %v28 = vld [vmem:[%s1 + $0x48] sm:$0xff]
    %v29 = vld [vmem:[%s1 + $0x50] sm:$0xf]
    %v30 = vld [vmem:[%s1 + $0x54] sm:$0xff]
    %v31 = vld [vmem:[%s1 + $0x5c] sm:$0xf]
    %v32 = vld [vmem:[%s1 + $0x60] sm:$0xff]
    %v33 = vld [vmem:[%s1 + $0x68] sm:$0xf]
    %v34 = vld [vmem:[%s1 + $0x6c] sm:$0xff]
    %v35 = vld [vmem:[%s1 + $0x74] sm:$0xf]
    %v36 = vld [vmem:[%s1 + $0x78] sm:$0xff]
    %v37 = vld [vmem:[%s1 + $0x80] sm:$0xf]
    %v38 = vld [vmem:[%s1 + $0x84] sm:$0xff]
    %v39 = vld [vmem:[%s1 + $0x8c] sm:$0xf]
    %v40 = vld [vmem:[%s1 + $0x90] sm:$0xff]
    %v41 = vld [vmem:[%s1 + $0x98] sm:$0xf]
    %v42 = vld [vmem:[%s1 + $0x9c] sm:$0xff]
    %v43 = vld [vmem:[%s1 + $0xa4] sm:$0xf]
    %v44 = vld [vmem:[%s1 + $0xa8] sm:$0xff]
    %v45 = vld [vmem:[%s1 + $0xb0] sm:$0xf]
    %v46 = vld [vmem:[%s1 + $0xb4] sm:$0xff]
    %v47 = vld [vmem:[%s1 + $0xbc] sm:$0xf]
    %v48 = vld [vmem:[%s2] sm:$0x7]
    %v49 = vld [vmem:[%s0] sm:$0x3f]
    %v51 = vperm.slane %v48, 0
    %v52 = vperm.slane %v48, 1
    %v53 = vperm.slane %v48, 2
    %v89 = vunpack.c.l.b16 %v16
    %v90 = vunpack.c.h.b16 %v16
    %v91 = vunpack.c.l.b16 %v17
    %v92 = vunpack.c.l.b16 %v18
    %v93 = vunpack.c.h.b16 %v18
    %v94 = vunpack.c.l.b16 %v19
    %v95 = vunpack.c.l.b16 %v20
    %v96 = vunpack.c.h.b16 %v20
    %v97 = vunpack.c.l.b16 %v21
    %v98 = vunpack.c.l.b16 %v22
    %v99 = vunpack.c.h.b16 %v22
    %v100 = vunpack.c.l.b16 %v23
    %v101 = vunpack.c.l.b16 %v24
    %v102 = vunpack.c.h.b16 %v24
    %v103 = vunpack.c.l.b16 %v25
    %v104 = vunpack.c.l.b16 %v26
    %v105 = vunpack.c.h.b16 %v26
    %v106 = vunpack.c.l.b16 %v27
    %v107 = vunpack.c.l.b16 %v28
    %v108 = vunpack.c.h.b16 %v28
    %v109 = vunpack.c.l.b16 %v29
    %v110 = vunpack.c.l.b16 %v30
    %v111 = vunpack.c.h.b16 %v30
    %v112 = vunpack.c.l.b16 %v31
    %v113 = vunpack.c.l.b16 %v32
    %v114 = vunpack.c.h.b16 %v32
    %v115 = vunpack.c.l.b16 %v33
    %v116 = vunpack.c.l.b16 %v34
    %v117 = vunpack.c.h.b16 %v34
    %v118 = vunpack.c.l.b16 %v35
    %v119 = vunpack.c.l.b16 %v36
    %v120 = vunpack.c.h.b16 %v36
    %v121 = vunpack.c.l.b16 %v37
    %v122 = vunpack.c.l.b16 %v38
    %v123 = vunpack.c.h.b16 %v38
    %v124 = vunpack.c.l.b16 %v39
    %v125 = vunpack.c.l.b16 %v40
    %v126 = vunpack.c.h.b16 %v40
    %v127 = vunpack.c.l.b16 %v41
    %v128 = vunpack.c.l.b16 %v42
    %v129 = vunpack.c.h.b16 %v42
    %v130 = vunpack.c.l.b16 %v43
    %v131 = vunpack.c.l.b16 %v44
    %v132 = vunpack.c.h.b16 %v44
    %v133 = vunpack.c.l.b16 %v45
    %v134 = vunpack.c.l.b16 %v46
    %v135 = vunpack.c.h.b16 %v46
    %v136 = vunpack.c.l.b16 %v47
    %v137 = vpack.c.b16 %v92, %v89
    %v138 = vpack.c.b16 %v93, %v90
    %v139 = vpack.c.b16 %v94, %v91
    %v140 = vpack.c.b16 %v98, %v95
    %v141 = vpack.c.b16 %v99, %v96
    %v142 = vpack.c.b16 %v100, %v97
    %v143 = vpack.c.b16 %v104, %v101
    %v144 = vpack.c.b16 %v105, %v102
    %v145 = vpack.c.b16 %v106, %v103
    %v146 = vpack.c.b16 %v110, %v107
    %v147 = vpack.c.b16 %v111, %v108
    %v148 = vpack.c.b16 %v112, %v109
    %v149 = vpack.c.b16 %v116, %v113
    %v150 = vpack.c.b16 %v117, %v114
    %v151 = vpack.c.b16 %v118, %v115
    %v152 = vpack.c.b16 %v122, %v119
    %v153 = vpack.c.b16 %v123, %v120
    %v154 = vpack.c.b16 %v124, %v121
    %v155 = vpack.c.b16 %v128, %v125
    %v156 = vpack.c.b16 %v129, %v126
    %v157 = vpack.c.b16 %v130, %v127
    %v158 = vpack.c.b16 %v134, %v131
    %v159 = vpack.c.b16 %v135, %v132
    %v160 = vpack.c.b16 %v136, %v133
    %185 = vmatpush.bf16.msra.mxu0 %v158
    %186 = vmatpush.bf16.msra.mxu0 %v155
    %187 = vmatpush.bf16.msra.mxu0 %v152
    %188 = vmatpush.bf16.msra.mxu0 %v149
    %189 = vmatpush.bf16.msra.mxu0 %v146
    %190 = vmatpush.bf16.msra.mxu0 %v143
    %191 = vmatpush.bf16.msra.mxu0 %v140
    %192 = vmatpush.bf16.msra.mxu0 %v137
    %193 = vmatmul.bf16.gmra.mxu0 0
    %v194 = vpop.f32.mrf.mxu0
    %v195 = vadd.f32 %v51, %v194
    %v196 = vpop.f32.mrf.mxu0
    %197 = vdwg.mxu0
    %198 = vmatpush.bf16.msra.mxu0 %v159
    %199 = vmatpush.bf16.msra.mxu0 %v156
    %200 = vmatpush.bf16.msra.mxu0 %v153
    %201 = vmatpush.bf16.msra.mxu0 %v150
    %202 = vmatpush.bf16.msra.mxu0 %v147
    %203 = vmatpush.bf16.msra.mxu0 %v144
    %204 = vmatpush.bf16.msra.mxu0 %v141
    %205 = vmatpush.bf16.msra.mxu0 %v138
    %206 = vmatmul.bf16.gmra.mxu0 0
    %v207 = vpop.f32.mrf.mxu0
    %v208 = vadd.f32 %v52, %v207
    %v209 = vpop.f32.mrf.mxu0
    %210 = vdwg.mxu0
    %211 = vmatpush.bf16.msra.mxu0 %v160
    %212 = vmatpush.bf16.msra.mxu0 %v157
    %213 = vmatpush.bf16.msra.mxu0 %v154
    %214 = vmatpush.bf16.msra.mxu0 %v151
    %215 = vmatpush.bf16.msra.mxu0 %v148
    %216 = vmatpush.bf16.msra.mxu0 %v145
    %217 = vmatpush.bf16.msra.mxu0 %v142
    %218 = vmatpush.bf16.msra.mxu0 %v139
    %219 = vmatmul.bf16.gmra.mxu0 0
    %v220 = vpop.f32.mrf.mxu0
    %v221 = vadd.f32 %v53, %v220
    %v222 = vpop.f32.mrf.mxu0
    %223 = vdwg.mxu0
    %v224 = vadd.f32 %v49, %v195
    %v225 = vxor.u32 %v224, 2147483648
    %v226 = vmul.f32 %v225, 1.442695
    %v227 = vpow.pop %v226
    %v228 = vadd.f32 %v227, 1.0
    %v229 = vrcp.pop %v228
    %v230 = vmul.f32 %v228, %v229
    %v231 = vsub.f32 1.0, %v230
    %v232 = vmul.f32 %v229, %v231
    %v233 = vadd.f32 %v229, %v232
    %vm234 = vweird.f32 %v228
    %vm235 = vweird.f32 %v229
    %vm236 = vmor %vm234, %vm235
    %v237 = vsel %vm236, %v229, %v233
    %v238 = vand.u32 2147483647, %v228
    %vm239 = vcmp.eq.f32.partialorder %v238, 8.507059e+37
    %v240 = vand.u32 %v228, 2147483648
    %v241 = vor.u32 1.1754944e-38, %v240
    %v242 = vsel %vm239, %v241, %v237
    %v243 = vmul.f32 1.0, %v242
    %v245 = vrot.slane %v49, 2
    %v247 = vadd.f32 %v245, %v208
    %v248 = vxor.u32 %v247, 2147483648
    %v249 = vmul.f32 %v248, 1.442695
    %v250 = vpow.pop %v249
    %v251 = vadd.f32 %v250, 1.0
    %v252 = vrcp.pop %v251
    %v253 = vmul.f32 %v251, %v252
    %v254 = vsub.f32 1.0, %v253
    %v255 = vmul.f32 %v252, %v254
    %v256 = vadd.f32 %v252, %v255
    %vm257 = vweird.f32 %v251
    %vm258 = vweird.f32 %v252
    %vm259 = vmor %vm257, %vm258
    %v260 = vsel %vm259, %v252, %v256
    %v261 = vand.u32 2147483647, %v251
    %vm262 = vcmp.eq.f32.partialorder %v261, 8.507059e+37
    %v263 = vand.u32 %v251, 2147483648
    %v264 = vor.u32 1.1754944e-38, %v263
    %v265 = vsel %vm262, %v264, %v260
    %v266 = vmul.f32 1.0, %v265
    %v267 = vmul.f32 %v243, %v221
    %v268 = vrot.slane %v49, 4
    %v270 = vadd.f32 %v268, %v267
    %v271 = vtanh.pop %v270
    %v272 = vsub.f32 1.0, %v266
    %v273 = vmul.f32 %v272, %v271
    %v274 = vmul.f32 %v266, 0.0
    %v275 = vadd.f32 %v273, %v274
    %s276 = scalar_lea.vmem %s0, 6
    %v277 = vld [vmem:[%s276] sm:$0x3f]
    %v278 = vpack.c.bf16 %v275, %v275
    %279 = vmatpush.bf16.msra.mxu0 %v158
    %280 = vmatpush.bf16.msra.mxu0 %v155
    %281 = vmatpush.bf16.msra.mxu0 %v152
    %282 = vmatpush.bf16.msra.mxu0 %v149
    %283 = vmatpush.bf16.msra.mxu0 %v146
    %284 = vmatpush.bf16.msra.mxu0 %v143
    %285 = vmatpush.bf16.msra.mxu0 %v140
    %286 = vmatpush.bf16.msra.mxu0 %v137
    %287 = vmatmul.bf16.gmra.mxu0 %v278
    %v288 = vpop.f32.mrf.mxu0
    %v289 = vadd.f32 %v51, %v288
    %v290 = vpop.f32.mrf.mxu0
    %291 = vdwg.mxu0
    %292 = vmatpush.bf16.msra.mxu0 %v159
    %293 = vmatpush.bf16.msra.mxu0 %v156
    %294 = vmatpush.bf16.msra.mxu0 %v153
    %295 = vmatpush.bf16.msra.mxu0 %v150
    %296 = vmatpush.bf16.msra.mxu0 %v147
    %297 = vmatpush.bf16.msra.mxu0 %v144
    %298 = vmatpush.bf16.msra.mxu0 %v141
    %299 = vmatpush.bf16.msra.mxu0 %v138
    %300 = vmatmul.bf16.gmra.mxu0 %v278
    %v301 = vpop.f32.mrf.mxu0
    %v302 = vadd.f32 %v52, %v301
    %v303 = vpop.f32.mrf.mxu0
    %304 = vdwg.mxu0
    %305 = vmatpush.bf16.msra.mxu0 %v160
    %306 = vmatpush.bf16.msra.mxu0 %v157
    %307 = vmatpush.bf16.msra.mxu0 %v154
    %308 = vmatpush.bf16.msra.mxu0 %v151
    %309 = vmatpush.bf16.msra.mxu0 %v148
    %310 = vmatpush.bf16.msra.mxu0 %v145
    %311 = vmatpush.bf16.msra.mxu0 %v142
    %312 = vmatpush.bf16.msra.mxu0 %v139
    %313 = vmatmul.bf16.gmra.mxu0 %v278
    %v314 = vpop.f32.mrf.mxu0
    %v315 = vadd.f32 %v53, %v314
    %v316 = vpop.f32.mrf.mxu0
    %317 = vdwg.mxu0
    %v318 = vadd.f32 %v277, %v289
    %v319 = vxor.u32 %v318, 2147483648
    %v320 = vmul.f32 %v319, 1.442695
    %v321 = vpow.pop %v320
    %v322 = vadd.f32 %v321, 1.0
    %v323 = vrcp.pop %v322
    %v324 = vmul.f32 %v322, %v323
    %v325 = vsub.f32 1.0, %v324
    %v326 = vmul.f32 %v323, %v325
    %v327 = vadd.f32 %v323, %v326
    %vm328 = vweird.f32 %v322
    %vm329 = vweird.f32 %v323
    %vm330 = vmor %vm328, %vm329
    %v331 = vsel %vm330, %v323, %v327
    %v332 = vand.u32 2147483647, %v322
    %vm333 = vcmp.eq.f32.partialorder %v332, 8.507059e+37
    %v334 = vand.u32 %v322, 2147483648
    %v335 = vor.u32 1.1754944e-38, %v334
    %v336 = vsel %vm333, %v335, %v331
    %v337 = vmul.f32 1.0, %v336
    %v339 = vrot.slane %v277, 2
    %v341 = vadd.f32 %v339, %v302
    %v342 = vxor.u32 %v341, 2147483648
    %v343 = vmul.f32 %v342, 1.442695
    %v344 = vpow.pop %v343
    %v345 = vadd.f32 %v344, 1.0
    %v346 = vrcp.pop %v345
    %v347 = vmul.f32 %v345, %v346
    %v348 = vsub.f32 1.0, %v347
    %v349 = vmul.f32 %v346, %v348
    %v350 = vadd.f32 %v346, %v349
    %vm351 = vweird.f32 %v345
    %vm352 = vweird.f32 %v346
    %vm353 = vmor %vm351, %vm352
    %v354 = vsel %vm353, %v346, %v350
    %v355 = vand.u32 2147483647, %v345
    %vm356 = vcmp.eq.f32.partialorder %v355, 8.507059e+37
    %v357 = vand.u32 %v345, 2147483648
    %v358 = vor.u32 1.1754944e-38, %v357
    %v359 = vsel %vm356, %v358, %v354
    %v360 = vmul.f32 1.0, %v359
    %v361 = vmul.f32 %v337, %v315
    %v362 = vrot.slane %v277, 4
    %v364 = vadd.f32 %v362, %v361
    %v365 = vtanh.pop %v364
    %v366 = vsub.f32 1.0, %v360
    %v367 = vmul.f32 %v366, %v365
    %v368 = vmul.f32 %v360, %v275
    %v369 = vadd.f32 %v367, %v368
    %370 = vst [vmem:[#allocation2] sm:$0x3] %v369
    // Predicated region
    $region14: #{_lambda_.27} parent=1 // pred_check
      _
    $region15: #{_lambda_.27} parent=1 // pred_check_branch
      %372 = sbr.rel (0) target = $region17
    $region16: #{_lambda_.27} parent=1 // pred_region
      %374 = vsyncadd [#allocation3], 0
      %s376 = sshll.u32 [#allocation2], 4
      %s377 = int_to_ptr.vmem [resolvable:$true] %s376
      %s378 = sshll.u32 %s3, 4
      %s379 = int_to_ptr.hbm [resolvable:$true] %s378
      %381 = dma.vmem_to_hbm [thread:$0]  %s377, 32, %s379, [#allocation3]
    $region17: #{_lambda_.27} parent=1 // pred_fallthru
      _
    // Predicated region
    $region18: #{_lambda_.27} parent=1 // pred_check
      _
    $region19: #{_lambda_.27} parent=1 // pred_check_branch
      %383 = sbr.rel (0) target = $region21
    $region20: #{_lambda_.27} parent=1 // pred_region
      %385 = dma.done [#allocation3], 32
    $region21: #{_lambda_.27} parent=1 // pred_fallthru
      _
    %386 = vsyncpa [#allocation3], 1

</llo_original>
